<compile_context>
chip_gen: v5e
topology: v5e:2x2
jax: 0.10.0
libtpu: 0.0.40
codegen_flags: <defaults>
</compile_context>

<pallas_src>
import functools
import math

import jax
import jax.numpy as jnp
from jax import lax
from jax.experimental import pallas as pl
from jax.experimental.pallas import tpu as pltpu


LANE = 128            # lane width: output feature dim padded to this only when needed

# MXU operand dtype.  bf16 is native on every TPU generation's MXU (f32
# operands are multi-pass), and halves weight DMA bytes / VMEM residency.
# Accumulation is f32 via preferred_element_type; elementwise math stays f32.
MATMUL_DTYPE = jnp.bfloat16

# Stacked-parameter refs handed to the kernel (after x):
_N_ENC_REFS = 7    # w_qkv, w_o, w_ff1, w_ff2, vecD, vec3D(b_qkv), vecF(b_ff1)
_N_DEC_REFS = 11   # s_w_qkv, s_w_o, c_w_q, c_w_kv, c_w_o, w_ff1, w_ff2,
                   # vecD, vec3D(s_b_qkv), vec2D(c_b_kv), vecF(b_ff1)


# ----------------------------- in-kernel helpers -----------------------------

def _layernorm(x, gamma, beta, eps=1e-5):
    mu = jnp.mean(x, axis=-1, keepdims=True)
    var = jnp.mean((x - mu) ** 2, axis=-1, keepdims=True)
    return (x - mu) * lax.rsqrt(var + eps) * gamma + beta


def _split_heads(t, num_heads):
    """(S, D) f32 -> (H, S, Dh) f32 via static lane slices + leading-axis stack."""
    s, d = t.shape
    dh = d // num_heads
    return jnp.stack([t[:, h * dh:(h + 1) * dh] for h in range(num_heads)], axis=0)


def _attention_core(q, k, v, *, num_heads, mm_dtype):
    """q:(Sq,D), k/v:(Sk,D) in f32, biases already added, 1/sqrt(Dh) folded into Wq.

    Only the score and context contractions are done per head (batched over the
    leading head axis); all projections are full-D matmuls outside this function.
    """
    qs = _split_heads(q, num_heads).astype(mm_dtype)          # (H,Sq,Dh)
    ks = _split_heads(k, num_heads).astype(mm_dtype)          # (H,Sk,Dh)
    vs = _split_heads(v, num_heads).astype(mm_dtype)          # (H,Sk,Dh)

    s = jnp.einsum('hqd,hkd->hqk', qs, ks,
                   preferred_element_type=jnp.float32)        # (H,Sq,Sk) f32
    # TODO(synk): the reference DecoderBlock (as given) applies no causal
    # tgt_mask; add an additive upper-triangular -inf mask here if needed.
    s = s - jnp.max(s, axis=-1, keepdims=True)
    p = jnp.exp(s)
    p = p * pl.reciprocal(jnp.sum(p, axis=-1, keepdims=True), approx=True)

    ctx = jnp.einsum('hqk,hkd->hqd', p.astype(mm_dtype), vs,
                     preferred_element_type=jnp.float32)      # (H,Sq,Dh) f32
    # Re-fuse heads along lanes so the output projection is a single (Sq,D)@(D,D).
    return jnp.concatenate([ctx[h] for h in range(num_heads)], axis=-1)


def _self_attention(x, w_qkv, b_qkv, w_o, b_o, *, num_heads):
    """Fused QKV: one (S,D)@(D,3D) projection + one (S,D)@(D,D) output projection."""
    d = x.shape[-1]
    mm = w_qkv.dtype
    qkv = jnp.dot(x.astype(mm), w_qkv,
                  preferred_element_type=jnp.float32) + b_qkv          # (S, 3D)
    ctx = _attention_core(qkv[:, :d], qkv[:, d:2 * d], qkv[:, 2 * d:],
                          num_heads=num_heads, mm_dtype=mm)
    return jnp.dot(ctx.astype(mm), w_o, preferred_element_type=jnp.float32) + b_o


def _cross_attention(x, mem, w_q, b_q, w_kv, b_kv, w_o, b_o, *, num_heads):
    """Cross attention: Q from x, fused K/V from encoder memory."""
    d = x.shape[-1]
    mm = w_q.dtype
    q = jnp.dot(x.astype(mm), w_q, preferred_element_type=jnp.float32) + b_q    # (S, D)
    kv = jnp.dot(mem.astype(mm), w_kv,
                 preferred_element_type=jnp.float32) + b_kv                     # (S, 2D)
    ctx = _attention_core(q, kv[:, :d], kv[:, d:], num_heads=num_heads, mm_dtype=mm)
    return jnp.dot(ctx.astype(mm), w_o, preferred_element_type=jnp.float32) + b_o


def _ffn(x, w1, b1, w2, b2):
    mm = w1.dtype
    h = jnp.dot(x.astype(mm), w1, preferred_element_type=jnp.float32) + b1
    h = jnp.maximum(h, 0.0)
    return jnp.dot(h.astype(mm), w2, preferred_element_type=jnp.float32) + b2


def _encoder_layer(x, w_qkv, w_o, w1, w2, vd, v3, vf, *, num_heads):
    # vd row order: b_o, ln1_g, ln1_b, b_ff2, ln2_g, ln2_b   (must match wrapper)
    b_o, ln1_g, ln1_b, b2, ln2_g, ln2_b = [vd[i:i + 1] for i in range(6)]
    attn = _self_attention(x, w_qkv, v3, w_o, b_o, num_heads=num_heads)
    x = _layernorm(x + attn, ln1_g, ln1_b)
    ff = _ffn(x, w1, vf, w2, b2)
    return _layernorm(x + ff, ln2_g, ln2_b)


def _decoder_layer(x, memory, s_wqkv, s_wo, c_wq, c_wkv, c_wo, w1, w2,
                   vd, v3, v2, vf, *, num_heads):
    # vd row order: s_b_o, ln1_g, ln1_b, c_b_q, c_b_o, ln2_g, ln2_b,
    #               b_ff2, ln3_g, ln3_b                    (must match wrapper)
    (s_bo, ln1_g, ln1_b, c_bq, c_bo, ln2_g, ln2_b,
     b2, ln3_g, ln3_b) = [vd[i:i + 1] for i in range(10)]
    sa = _self_attention(x, s_wqkv, v3, s_wo, s_bo, num_heads=num_heads)
    x = _layernorm(x + sa, ln1_g, ln1_b)
    ca = _cross_attention(x, memory, c_wq, c_bq, c_wkv, v2, c_wo, c_bo,
                          num_heads=num_heads)
    x = _layernorm(x + ca, ln2_g, ln2_b)
    ff = _ffn(x, w1, vf, w2, b2)
    return _layernorm(x + ff, ln3_g, ln3_b)


# --------------------------------- kernel ------------------------------------

def _transformer_kernel(x_ref, *refs, num_heads, num_enc_layers, num_dec_layers,
                        d_pad):
    enc = refs[:_N_ENC_REFS]
    dec = refs[_N_ENC_REFS:_N_ENC_REFS + _N_DEC_REFS]
    o_ref = refs[_N_ENC_REFS + _N_DEC_REFS]
    (e_wqkv, e_wo, e_w1, e_w2, e_vd, e_v3, e_vf) = enc
    (d_swqkv, d_swo, d_cwq, d_cwkv, d_cwo, d_w1, d_w2,
     d_vd, d_v3, d_v2, d_vf) = dec

    x = x_ref[0].astype(jnp.float32)                   # (S, D), one batch element

    # Fused encoder stack: activations never leave VMEM/vregs for the whole net.
    # (At 2+2 layers static unrolling is fine; switch to lax.fori_loop with a
    # dynamic first-axis index into the stacked refs if the stack gets deep.)
    for l in range(num_enc_layers):
        x = _encoder_layer(x, e_wqkv[l], e_wo[l], e_w1[l], e_w2[l],
                           e_vd[l], e_v3[l], e_vf[l], num_heads=num_heads)

    memory = x   # encoder output stays resident; reused by every decoder layer

    for l in range(num_dec_layers):
        x = _decoder_layer(x, memory,
                           d_swqkv[l], d_swo[l], d_cwq[l], d_cwkv[l], d_cwo[l],
                           d_w1[l], d_w2[l],
                           d_vd[l], d_v3[l], d_v2[l], d_vf[l],
                           num_heads=num_heads)

    # Lane-dense store: pad only when D is not already a multiple of 128.
    s, d = x.shape
    if d_pad > d:
        x = jnp.concatenate([x, jnp.zeros((s, d_pad - d), x.dtype)], axis=-1)
    o_ref[0] = x.astype(o_ref.dtype)


# ----------------------- wrapper-side weight preparation ----------------------
# (plain XLA ops, run once per call; negligible cost)

def _prep_encoder_layer(p, num_heads, mm_dtype):
    (wq, bq, wk, bk, wv, bv, wo, bo, g1, be1, w1, bb1, w2, bb2, g2, be2) = p
    d = wq.shape[0]
    scale = 1.0 / math.sqrt(d // num_heads)     # fold softmax scale into Wq/bq
    w_qkv = jnp.concatenate([wq * scale, wk, wv], axis=1).astype(mm_dtype)  # (D,3D)
    b_qkv = jnp.concatenate([bq * scale, bk, bv], axis=1)                   # (1,3D)
    big = [w_qkv, wo.astype(mm_dtype), w1.astype(mm_dtype), w2.astype(mm_dtype)]
    vec_d = jnp.concatenate([bo, g1, be1, bb2, g2, be2], axis=0)            # (6,D)
    return big, [vec_d, b_qkv, bb1]


def _prep_decoder_layer(p, num_heads, mm_dtype):
    (swq, sbq, swk, sbk, swv, sbv, swo, sbo, g1, be1,
     cwq, cbq, cwk, cbk, cwv, cbv, cwo, cbo, g2, be2,
     w1, bb1, w2, bb2, g3, be3) = p
    d = swq.shape[0]
    scale = 1.0 / math.sqrt(d // num_heads)
    s_wqkv = jnp.concatenate([swq * scale, swk, swv], axis=1).astype(mm_dtype)
    s_bqkv = jnp.concatenate([sbq * scale, sbk, sbv], axis=1)               # (1,3D)
    c_wq = (cwq * scale).astype(mm_dtype)                                   # (D,D)
    c_wkv = jnp.concatenate([cwk, cwv], axis=1).astype(mm_dtype)            # (D,2D)
    c_bkv = jnp.concatenate([cbk, cbv], axis=1)                             # (1,2D)
    big = [s_wqkv, swo.astype(mm_dtype), c_wq, c_wkv, cwo.astype(mm_dtype),
           w1.astype(mm_dtype), w2.astype(mm_dtype)]
    vec_d = jnp.concatenate([sbo, g1, be1, cbq * scale, cbo, g2, be2,
                             bb2, g3, be3], axis=0)                         # (10,D)
    return big, [vec_d, s_bqkv, c_bkv, bb1]


def _stack_params(prepped):
    """prepped: list over layers of (big_list, small_list) with identical structure."""
    n_big = len(prepped[0][0])
    n_small = len(prepped[0][1])
    big = [jnp.stack([lp[0][i] for lp in prepped], axis=0) for i in range(n_big)]
    small = [jnp.stack([lp[1][i] for lp in prepped], axis=0) for i in range(n_small)]
    return big + small


# ------------------------------ pallas_call glue ------------------------------

@functools.partial(jax.jit, static_argnums=(3, 4))
def _forward(x, enc_params, dec_params, num_heads, single_buffer_weights):
    B, S, D = x.shape
    assert D % num_heads == 0
    num_enc_layers = len(enc_params)
    num_dec_layers = len(dec_params)
    d_pad = pl.cdiv(D, LANE) * LANE           # == D when D % 128 == 0

    enc_stacked = _stack_params(
        [_prep_encoder_layer(p, num_heads, MATMUL_DTYPE) for p in enc_params])
    dec_stacked = _stack_params(
        [_prep_decoder_layer(p, num_heads, MATMUL_DTYPE) for p in dec_params])
    assert len(enc_stacked) == _N_ENC_REFS
    assert len(dec_stacked) == _N_DEC_REFS
    params = enc_stacked + dec_stacked

    def const_spec(shape):
        # Constant index map: each stacked weight block is DMA'd into VMEM once
        # and stays resident for every grid step.  Constant-index inputs don't
        # need double buffering -> request a single buffer when allowed.
        n = len(shape)
        idx = lambda b, _n=n: (0,) * _n
        if single_buffer_weights:
            return pl.BlockSpec(shape, idx,
                                pipeline_mode=pl.Buffered(buffer_count=1))
        return pl.BlockSpec(shape, idx)

    kernel = functools.partial(
        _transformer_kernel,
        num_heads=num_heads,
        num_enc_layers=num_enc_layers,
        num_dec_layers=num_dec_layers,
        d_pad=d_pad)

    # TODO(synk): when D/F/layer-count scale past v7x's 64 MiB VMEM, move the
    # big weight stacks to memory_space=pl.ANY and stream them per layer with
    # pltpu.emit_pipeline / manual make_async_copy instead of keeping them
    # resident.
    out = pl.pallas_call(
        kernel,
        out_shape=jax.ShapeDtypeStruct((B, S, d_pad), x.dtype),
        grid=(B,),   # "parallel": feeds both v7x TensorCores; on single-TC
                     # chips the extra grid steps only cost ~0.35 us each.
        in_specs=[pl.BlockSpec((1, S, D), lambda b: (b, 0, 0))]
                 + [const_spec(p.shape) for p in params],
        out_specs=pl.BlockSpec((1, S, d_pad), lambda b: (b, 0, 0)),
        compiler_params=pltpu.CompilerParams(
            dimension_semantics=("parallel",),
            vmem_limit_bytes=32 * 1024 * 1024),
    )(x, *params)

    return out[:, :, :D] if d_pad > D else out


def transformer_forward(x, enc_params, dec_params, num_heads):
    """Whole encoder+decoder stack in one fused pallas_call."""
    try:
        # Preferred: single-buffered constant weight blocks (halves weight VMEM).
        return jax.block_until_ready(
            _forward(x, enc_params, dec_params, num_heads, True))
    except Exception:
        # Fallback if this jax build rejects pipeline_mode on top-level specs;
        # any genuine kernel error will still surface from this second call.
        return _forward(x, enc_params, dec_params, num_heads, False)


# ---------------------------- parameter construction --------------------------

def _init_linear(key, d_in, d_out):
    kw, kb = jax.random.split(key)
    w = 0.02 * jax.random.normal(kw, (d_in, d_out), jnp.float32)
    b = 0.02 * jax.random.normal(kb, (1, d_out), jnp.float32)
    return w, b


def _init_ln(d):
    return jnp.ones((1, d), jnp.float32), jnp.zeros((1, d), jnp.float32)


def init_encoder_params(key, d_model, d_ff):
    keys = jax.random.split(key, 6)
    wq, bq = _init_linear(keys[0], d_model, d_model)
    wk, bk = _init_linear(keys[1], d_model, d_model)
    wv, bv = _init_linear(keys[2], d_model, d_model)
    wo, bo = _init_linear(keys[3], d_model, d_model)
    ln1g, ln1b = _init_ln(d_model)
    w1, b1 = _init_linear(keys[4], d_model, d_ff)
    w2, b2 = _init_linear(keys[5], d_ff, d_model)
    ln2g, ln2b = _init_ln(d_model)
    return [wq, bq, wk, bk, wv, bv, wo, bo, ln1g, ln1b,
            w1, b1, w2, b2, ln2g, ln2b]


def init_decoder_params(key, d_model, d_ff):
    keys = jax.random.split(key, 10)
    swq, sbq = _init_linear(keys[0], d_model, d_model)
    swk, sbk = _init_linear(keys[1], d_model, d_model)
    swv, sbv = _init_linear(keys[2], d_model, d_model)
    swo, sbo = _init_linear(keys[3], d_model, d_model)
    ln1g, ln1b = _init_ln(d_model)
    cwq, cbq = _init_linear(keys[4], d_model, d_model)
    cwk, cbk = _init_linear(keys[5], d_model, d_model)
    cwv, cbv = _init_linear(keys[6], d_model, d_model)
    cwo, cbo = _init_linear(keys[7], d_model, d_model)
    ln2g, ln2b = _init_ln(d_model)
    w1, b1 = _init_linear(keys[8], d_model, d_ff)
    w2, b2 = _init_linear(keys[9], d_ff, d_model)
    ln3g, ln3b = _init_ln(d_model)
    return [swq, sbq, swk, sbk, swv, sbv, swo, sbo, ln1g, ln1b,
            cwq, cbq, cwk, cbk, cwv, cbv, cwo, cbo, ln2g, ln2b,
            w1, b1, w2, b2, ln3g, ln3b]


# --------------------------- pure-JAX reference check --------------------------

def _reference_forward(x, enc_params, dec_params, num_heads):
    def ln(y, g, b, eps=1e-5):
        mu = y.mean(-1, keepdims=True)
        var = ((y - mu) ** 2).mean(-1, keepdims=True)
        return (y - mu) / jnp.sqrt(var + eps) * g + b

    def mha(xq, xkv, wq, bq, wk, bk, wv, bv, wo, bo):
        B, Sq, D = xq.shape
        Sk = xkv.shape[1]
        H = num_heads
        Dh = D // H
        q = (xq @ wq + bq).reshape(B, Sq, H, Dh).transpose(0, 2, 1, 3)
        k = (xkv @ wk + bk).reshape(B, Sk, H, Dh).transpose(0, 2, 1, 3)
        v = (xkv @ wv + bv).reshape(B, Sk, H, Dh).transpose(0, 2, 1, 3)
        s = jnp.einsum('bhqd,bhkd->bhqk', q, k) / math.sqrt(Dh)
        p = jax.nn.softmax(s, axis=-1)
        ctx = jnp.einsum('bhqk,bhkd->bhqd', p, v)
        ctx = ctx.transpose(0, 2, 1, 3).reshape(B, Sq, D)
        return ctx @ wo + bo

    def ffn(y, w1, b1, w2, b2):
        return jnp.maximum(y @ w1 + b1, 0.0) @ w2 + b2

    for p in enc_params:
        (wq, bq, wk, bk, wv, bv, wo, bo, g1, be1, w1, bb1, w2, bb2, g2, be2) = p
        x = ln(x + mha(x, x, wq, bq, wk, bk, wv, bv, wo, bo), g1, be1)
        x = ln(x + ffn(x, w1, bb1, w2, bb2), g2, be2)
    memory = x
    for p in dec_params:
        (swq, sbq, swk, sbk, swv, sbv, swo, sbo, g1, be1,
         cwq, cbq, cwk, cbk, cwv, cbv, cwo, cbo, g2, be2,
         w1, bb1, w2, bb2, g3, be3) = p
        x = ln(x + mha(x, x, swq, sbq, swk, sbk, swv, sbv, swo, sbo), g1, be1)
        x = ln(x + mha(x, memory, cwq, cbq, cwk, cbk, cwv, cbv, cwo, cbo), g2, be2)
        x = ln(x + ffn(x, w1, bb1, w2, bb2), g3, be3)
    return x


# ----------------------------------- main -------------------------------------

if __name__ == "__main__":
    config = {
        "num_encoder_blocks": 2,
        "num_decoder_blocks": 2,
        "d_model": 32,
        "num_heads": 4,
        "d_ff": 64,
    }
    B, S = 2, 8
    D, H, F = config["d_model"], config["num_heads"], config["d_ff"]

    key = jax.random.PRNGKey(0)
    kx, kenc, kdec = jax.random.split(key, 3)
    x = jax.random.normal(kx, (B, S, D), jnp.float32)   # layout: (B, S, D)

    enc_keys = jax.random.split(kenc, config["num_encoder_blocks"])
    dec_keys = jax.random.split(kdec, config["num_decoder_blocks"])
    enc_params = [init_encoder_params(k, D, F) for k in enc_keys]
    dec_params = [init_decoder_params(k, D, F) for k in dec_keys]

    out = transformer_forward(x, enc_params, dec_params, H)
    out = jax.block_until_ready(out)

    assert out.shape == (B, S, D)
    assert bool(jnp.all(jnp.isfinite(out)))

    # Correctness check vs a plain-JAX f32 reference of the same forward pass.
    # Tolerance widened when matmul operands are bf16 (plus approx reciprocal);
    # real bugs would show up as O(1) errors.
    ref = _reference_forward(x, enc_params, dec_params, H)
    err = float(jnp.max(jnp.abs(out - ref)))
    tol = 1e-1 if jnp.dtype(MATMUL_DTYPE) == jnp.dtype(jnp.bfloat16) else 5e-2
    assert err < tol, f"mismatch vs reference: max abs err {err}"

    print("KERNEL_OK")
</pallas_src>

<mosaic_0001>
module attributes {stable_mosaic.version = 11 : i64} {
  func.func @_transformer_kernel(%arg0: i32, %arg1: memref<1x8x32xf32, #tpu.memory_space<vmem>>, %arg2: memref<2x32x96xbf16, #tpu.memory_space<vmem>>, %arg3: memref<2x32x32xbf16, #tpu.memory_space<vmem>>, %arg4: memref<2x32x64xbf16, #tpu.memory_space<vmem>>, %arg5: memref<2x64x32xbf16, #tpu.memory_space<vmem>>, %arg6: memref<2x6x32xf32, #tpu.memory_space<vmem>>, %arg7: memref<2x1x96xf32, #tpu.memory_space<vmem>>, %arg8: memref<2x1x64xf32, #tpu.memory_space<vmem>>, %arg9: memref<2x32x96xbf16, #tpu.memory_space<vmem>>, %arg10: memref<2x32x32xbf16, #tpu.memory_space<vmem>>, %arg11: memref<2x32x32xbf16, #tpu.memory_space<vmem>>, %arg12: memref<2x32x64xbf16, #tpu.memory_space<vmem>>, %arg13: memref<2x32x32xbf16, #tpu.memory_space<vmem>>, %arg14: memref<2x32x64xbf16, #tpu.memory_space<vmem>>, %arg15: memref<2x64x32xbf16, #tpu.memory_space<vmem>>, %arg16: memref<2x10x32xf32, #tpu.memory_space<vmem>>, %arg17: memref<2x1x96xf32, #tpu.memory_space<vmem>>, %arg18: memref<2x1x64xf32, #tpu.memory_space<vmem>>, %arg19: memref<2x1x64xf32, #tpu.memory_space<vmem>>, %arg20: memref<1x8x128xf32, #tpu.memory_space<vmem>>) attributes {dimension_semantics = [#tpu.dimension_semantics<parallel>], iteration_bounds = array<i64: 2>, scalar_prefetch = 0 : i64, scratch_operands = 0 : i64, tpu.core_type = #tpu.core_type<tc>, window_params = [{transform_indices = @transform_0, window_bounds = array<i64: 1, 8, 32>}, {pipeline_mode = #tpu.pipeline_mode<synchronous>, transform_indices = @transform_1, window_bounds = array<i64: 2, 32, 96>}, {pipeline_mode = #tpu.pipeline_mode<synchronous>, transform_indices = @transform_2, window_bounds = array<i64: 2, 32, 32>}, {pipeline_mode = #tpu.pipeline_mode<synchronous>, transform_indices = @transform_3, window_bounds = array<i64: 2, 32, 64>}, {pipeline_mode = #tpu.pipeline_mode<synchronous>, transform_indices = @transform_4, window_bounds = array<i64: 2, 64, 32>}, {pipeline_mode = #tpu.pipeline_mode<synchronous>, transform_indices = @transform_5, window_bounds = array<i64: 2, 6, 32>}, {pipeline_mode = #tpu.pipeline_mode<synchronous>, transform_indices = @transform_6, window_bounds = array<i64: 2, 1, 96>}, {pipeline_mode = #tpu.pipeline_mode<synchronous>, transform_indices = @transform_7, window_bounds = array<i64: 2, 1, 64>}, {pipeline_mode = #tpu.pipeline_mode<synchronous>, transform_indices = @transform_8, window_bounds = array<i64: 2, 32, 96>}, {pipeline_mode = #tpu.pipeline_mode<synchronous>, transform_indices = @transform_9, window_bounds = array<i64: 2, 32, 32>}, {pipeline_mode = #tpu.pipeline_mode<synchronous>, transform_indices = @transform_10, window_bounds = array<i64: 2, 32, 32>}, {pipeline_mode = #tpu.pipeline_mode<synchronous>, transform_indices = @transform_11, window_bounds = array<i64: 2, 32, 64>}, {pipeline_mode = #tpu.pipeline_mode<synchronous>, transform_indices = @transform_12, window_bounds = array<i64: 2, 32, 32>}, {pipeline_mode = #tpu.pipeline_mode<synchronous>, transform_indices = @transform_13, window_bounds = array<i64: 2, 32, 64>}, {pipeline_mode = #tpu.pipeline_mode<synchronous>, transform_indices = @transform_14, window_bounds = array<i64: 2, 64, 32>}, {pipeline_mode = #tpu.pipeline_mode<synchronous>, transform_indices = @transform_15, window_bounds = array<i64: 2, 10, 32>}, {pipeline_mode = #tpu.pipeline_mode<synchronous>, transform_indices = @transform_16, window_bounds = array<i64: 2, 1, 96>}, {pipeline_mode = #tpu.pipeline_mode<synchronous>, transform_indices = @transform_17, window_bounds = array<i64: 2, 1, 64>}, {pipeline_mode = #tpu.pipeline_mode<synchronous>, transform_indices = @transform_18, window_bounds = array<i64: 2, 1, 64>}, {transform_indices = @transform_19, window_bounds = array<i64: 1, 8, 128>}]} {
    %c0 = arith.constant 0 : index
    %c0_0 = arith.constant 0 : index
    %c0_1 = arith.constant 0 : index
    %0 = vector.load %arg1[%c0, %c0_0, %c0_1] : memref<1x8x32xf32, #tpu.memory_space<vmem>>, vector<1x8x32xf32>
    %1 = vector.shape_cast %0 : vector<1x8x32xf32> to vector<8x32xf32>
    %c0_2 = arith.constant 0 : index
    %c0_3 = arith.constant 0 : index
    %c0_4 = arith.constant 0 : index
    %2 = vector.load %arg2[%c0_2, %c0_3, %c0_4] : memref<2x32x96xbf16, #tpu.memory_space<vmem>>, vector<1x32x96xbf16>
    %3 = vector.shape_cast %2 : vector<1x32x96xbf16> to vector<32x96xbf16>
    %c0_5 = arith.constant 0 : index
    %c0_6 = arith.constant 0 : index
    %c0_7 = arith.constant 0 : index
    %4 = vector.load %arg3[%c0_5, %c0_6, %c0_7] : memref<2x32x32xbf16, #tpu.memory_space<vmem>>, vector<1x32x32xbf16>
    %5 = vector.shape_cast %4 : vector<1x32x32xbf16> to vector<32x32xbf16>
    %c0_8 = arith.constant 0 : index
    %c0_9 = arith.constant 0 : index
    %c0_10 = arith.constant 0 : index
    %6 = vector.load %arg4[%c0_8, %c0_9, %c0_10] : memref<2x32x64xbf16, #tpu.memory_space<vmem>>, vector<1x32x64xbf16>
    %7 = vector.shape_cast %6 : vector<1x32x64xbf16> to vector<32x64xbf16>
    %c0_11 = arith.constant 0 : index
    %c0_12 = arith.constant 0 : index
    %c0_13 = arith.constant 0 : index
    %8 = vector.load %arg5[%c0_11, %c0_12, %c0_13] : memref<2x64x32xbf16, #tpu.memory_space<vmem>>, vector<1x64x32xbf16>
    %9 = vector.shape_cast %8 : vector<1x64x32xbf16> to vector<64x32xbf16>
    %c0_14 = arith.constant 0 : index
    %c0_15 = arith.constant 0 : index
    %c0_16 = arith.constant 0 : index
    %10 = vector.load %arg6[%c0_14, %c0_15, %c0_16] : memref<2x6x32xf32, #tpu.memory_space<vmem>>, vector<1x6x32xf32>
    %11 = vector.shape_cast %10 : vector<1x6x32xf32> to vector<6x32xf32>
    %c0_17 = arith.constant 0 : index
    %c0_18 = arith.constant 0 : index
    %c0_19 = arith.constant 0 : index
    %12 = vector.load %arg7[%c0_17, %c0_18, %c0_19] : memref<2x1x96xf32, #tpu.memory_space<vmem>>, vector<1x1x96xf32>
    %13 = vector.shape_cast %12 : vector<1x1x96xf32> to vector<1x96xf32>
    %c0_20 = arith.constant 0 : index
    %c0_21 = arith.constant 0 : index
    %c0_22 = arith.constant 0 : index
    %14 = vector.load %arg8[%c0_20, %c0_21, %c0_22] : memref<2x1x64xf32, #tpu.memory_space<vmem>>, vector<1x1x64xf32>
    %15 = vector.shape_cast %14 : vector<1x1x64xf32> to vector<1x64xf32>
    %16 = vector.extract_strided_slice %11 {offsets = [0, 0], sizes = [1, 32], strides = [1, 1]} : vector<6x32xf32> to vector<1x32xf32>
    %17 = vector.extract_strided_slice %11 {offsets = [1, 0], sizes = [1, 32], strides = [1, 1]} : vector<6x32xf32> to vector<1x32xf32>
    %18 = vector.extract_strided_slice %11 {offsets = [2, 0], sizes = [1, 32], strides = [1, 1]} : vector<6x32xf32> to vector<1x32xf32>
    %19 = vector.extract_strided_slice %11 {offsets = [3, 0], sizes = [1, 32], strides = [1, 1]} : vector<6x32xf32> to vector<1x32xf32>
    %20 = vector.extract_strided_slice %11 {offsets = [4, 0], sizes = [1, 32], strides = [1, 1]} : vector<6x32xf32> to vector<1x32xf32>
    %21 = vector.extract_strided_slice %11 {offsets = [5, 0], sizes = [1, 32], strides = [1, 1]} : vector<6x32xf32> to vector<1x32xf32>
    %22 = arith.truncf %1 : vector<8x32xf32> to vector<8x32xbf16>
    %cst = arith.constant dense<0.000000e+00> : vector<8x96xf32>
    %23 = tpu.matmul %22, %3, %cst {dimension_numbers = #tpu.dot_dimension_numbers<[1], [0], [0], [1], [0, 0, 1, 1], [], []>} : vector<8x32xbf16>, vector<32x96xbf16>, vector<8x96xf32> -> vector<8x96xf32>
    %24 = vector.broadcast %13 : vector<1x96xf32> to vector<8x96xf32>
    %25 = arith.addf %23, %24 : vector<8x96xf32>
    %26 = vector.extract_strided_slice %25 {offsets = [0, 0], sizes = [8, 32], strides = [1, 1]} : vector<8x96xf32> to vector<8x32xf32>
    %27 = vector.extract_strided_slice %25 {offsets = [0, 32], sizes = [8, 32], strides = [1, 1]} : vector<8x96xf32> to vector<8x32xf32>
    %28 = vector.extract_strided_slice %25 {offsets = [0, 64], sizes = [8, 32], strides = [1, 1]} : vector<8x96xf32> to vector<8x32xf32>
    %29 = vector.extract_strided_slice %26 {offsets = [0, 0], sizes = [8, 8], strides = [1, 1]} : vector<8x32xf32> to vector<8x8xf32>
    %30 = vector.extract_strided_slice %26 {offsets = [0, 8], sizes = [8, 8], strides = [1, 1]} : vector<8x32xf32> to vector<8x8xf32>
    %31 = vector.extract_strided_slice %26 {offsets = [0, 16], sizes = [8, 8], strides = [1, 1]} : vector<8x32xf32> to vector<8x8xf32>
    %32 = vector.extract_strided_slice %26 {offsets = [0, 24], sizes = [8, 8], strides = [1, 1]} : vector<8x32xf32> to vector<8x8xf32>
    %33 = vector.shape_cast %29 : vector<8x8xf32> to vector<1x8x8xf32>
    %34 = vector.shape_cast %30 : vector<8x8xf32> to vector<1x8x8xf32>
    %35 = vector.shape_cast %31 : vector<8x8xf32> to vector<1x8x8xf32>
    %36 = vector.shape_cast %32 : vector<8x8xf32> to vector<1x8x8xf32>
    %37 = tpu.concatenate %33, %34, %35, %36 in 0 : vector<1x8x8xf32>, vector<1x8x8xf32>, vector<1x8x8xf32>, vector<1x8x8xf32> -> vector<4x8x8xf32>
    %38 = arith.truncf %37 : vector<4x8x8xf32> to vector<4x8x8xbf16>
    %39 = vector.extract_strided_slice %27 {offsets = [0, 0], sizes = [8, 8], strides = [1, 1]} : vector<8x32xf32> to vector<8x8xf32>
    %40 = vector.extract_strided_slice %27 {offsets = [0, 8], sizes = [8, 8], strides = [1, 1]} : vector<8x32xf32> to vector<8x8xf32>
    %41 = vector.extract_strided_slice %27 {offsets = [0, 16], sizes = [8, 8], strides = [1, 1]} : vector<8x32xf32> to vector<8x8xf32>
    %42 = vector.extract_strided_slice %27 {offsets = [0, 24], sizes = [8, 8], strides = [1, 1]} : vector<8x32xf32> to vector<8x8xf32>
    %43 = vector.shape_cast %39 : vector<8x8xf32> to vector<1x8x8xf32>
    %44 = vector.shape_cast %40 : vector<8x8xf32> to vector<1x8x8xf32>
    %45 = vector.shape_cast %41 : vector<8x8xf32> to vector<1x8x8xf32>
    %46 = vector.shape_cast %42 : vector<8x8xf32> to vector<1x8x8xf32>
    %47 = tpu.concatenate %43, %44, %45, %46 in 0 : vector<1x8x8xf32>, vector<1x8x8xf32>, vector<1x8x8xf32>, vector<1x8x8xf32> -> vector<4x8x8xf32>
    %48 = arith.truncf %47 : vector<4x8x8xf32> to vector<4x8x8xbf16>
    %49 = vector.extract_strided_slice %28 {offsets = [0, 0], sizes = [8, 8], strides = [1, 1]} : vector<8x32xf32> to vector<8x8xf32>
    %50 = vector.extract_strided_slice %28 {offsets = [0, 8], sizes = [8, 8], strides = [1, 1]} : vector<8x32xf32> to vector<8x8xf32>
    %51 = vector.extract_strided_slice %28 {offsets = [0, 16], sizes = [8, 8], strides = [1, 1]} : vector<8x32xf32> to vector<8x8xf32>
    %52 = vector.extract_strided_slice %28 {offsets = [0, 24], sizes = [8, 8], strides = [1, 1]} : vector<8x32xf32> to vector<8x8xf32>
    %53 = vector.shape_cast %49 : vector<8x8xf32> to vector<1x8x8xf32>
    %54 = vector.shape_cast %50 : vector<8x8xf32> to vector<1x8x8xf32>
    %55 = vector.shape_cast %51 : vector<8x8xf32> to vector<1x8x8xf32>
    %56 = vector.shape_cast %52 : vector<8x8xf32> to vector<1x8x8xf32>
    %57 = tpu.concatenate %53, %54, %55, %56 in 0 : vector<1x8x8xf32>, vector<1x8x8xf32>, vector<1x8x8xf32>, vector<1x8x8xf32> -> vector<4x8x8xf32>
    %58 = arith.truncf %57 : vector<4x8x8xf32> to vector<4x8x8xbf16>
    "tpu.trace_start"() <{level = 10 : i32, message = "hqd,hkd->hqk"}> : () -> ()
    %cst_23 = arith.constant dense<0.000000e+00> : vector<4x8x8xf32>
    %59 = tpu.matmul %38, %48, %cst_23 {dimension_numbers = #tpu.dot_dimension_numbers<[2], [2], [1], [1], [0, 0, 0, 1, 1, 1], [0], [0]>} : vector<4x8x8xbf16>, vector<4x8x8xbf16>, vector<4x8x8xf32> -> vector<4x8x8xf32>
    "tpu.trace_stop"() : () -> ()
    %cst_24 = arith.constant dense<0xFF800000> : vector<4x8xf32>
    %60 = vector.multi_reduction <maximumf>, %59, %cst_24 [2] : vector<4x8x8xf32> to vector<4x8xf32>
    %61 = vector.shape_cast %60 : vector<4x8xf32> to vector<4x8x1xf32>
    %62 = vector.broadcast %61 : vector<4x8x1xf32> to vector<4x8x8xf32>
    %63 = arith.subf %59, %62 : vector<4x8x8xf32>
    %64 = math.exp %63 : vector<4x8x8xf32>
    %cst_25 = arith.constant dense<0.000000e+00> : vector<4x8xf32>
    %65 = vector.multi_reduction <add>, %64, %cst_25 [2] : vector<4x8x8xf32> to vector<4x8xf32>
    %66 = vector.shape_cast %65 : vector<4x8xf32> to vector<4x8x1xf32>
    %67 = tpu.reciprocal %66 {approx = true} : vector<4x8x1xf32> -> vector<4x8x1xf32>
    %68 = vector.broadcast %67 : vector<4x8x1xf32> to vector<4x8x8xf32>
    %69 = arith.mulf %64, %68 : vector<4x8x8xf32>
    %70 = arith.truncf %69 : vector<4x8x8xf32> to vector<4x8x8xbf16>
    "tpu.trace_start"() <{level = 10 : i32, message = "hqk,hkd->hqd"}> : () -> ()
    %cst_26 = arith.constant dense<0.000000e+00> : vector<4x8x8xf32>
    %71 = tpu.matmul %70, %58, %cst_26 {dimension_numbers = #tpu.dot_dimension_numbers<[2], [1], [1], [2], [0, 0, 0, 1, 1, 2], [0], [0]>} : vector<4x8x8xbf16>, vector<4x8x8xbf16>, vector<4x8x8xf32> -> vector<4x8x8xf32>
    "tpu.trace_stop"() : () -> ()
    %72 = vector.extract_strided_slice %71 {offsets = [0, 0, 0], sizes = [1, 8, 8], strides = [1, 1, 1]} : vector<4x8x8xf32> to vector<1x8x8xf32>
    %73 = vector.shape_cast %72 : vector<1x8x8xf32> to vector<8x8xf32>
    %74 = vector.extract_strided_slice %71 {offsets = [1, 0, 0], sizes = [1, 8, 8], strides = [1, 1, 1]} : vector<4x8x8xf32> to vector<1x8x8xf32>
    %75 = vector.shape_cast %74 : vector<1x8x8xf32> to vector<8x8xf32>
    %76 = vector.extract_strided_slice %71 {offsets = [2, 0, 0], sizes = [1, 8, 8], strides = [1, 1, 1]} : vector<4x8x8xf32> to vector<1x8x8xf32>
    %77 = vector.shape_cast %76 : vector<1x8x8xf32> to vector<8x8xf32>
    %78 = vector.extract_strided_slice %71 {offsets = [3, 0, 0], sizes = [1, 8, 8], strides = [1, 1, 1]} : vector<4x8x8xf32> to vector<1x8x8xf32>
    %79 = vector.shape_cast %78 : vector<1x8x8xf32> to vector<8x8xf32>
    %80 = tpu.concatenate %73, %75, %77, %79 in 1 : vector<8x8xf32>, vector<8x8xf32>, vector<8x8xf32>, vector<8x8xf32> -> vector<8x32xf32>
    %81 = arith.truncf %80 : vector<8x32xf32> to vector<8x32xbf16>
    %cst_27 = arith.constant dense<0.000000e+00> : vector<8x32xf32>
    %82 = tpu.matmul %81, %5, %cst_27 {dimension_numbers = #tpu.dot_dimension_numbers<[1], [0], [0], [1], [0, 0, 1, 1], [], []>} : vector<8x32xbf16>, vector<32x32xbf16>, vector<8x32xf32> -> vector<8x32xf32>
    %83 = vector.broadcast %16 : vector<1x32xf32> to vector<8x32xf32>
    %84 = arith.addf %82, %83 : vector<8x32xf32>
    %85 = arith.addf %1, %84 : vector<8x32xf32>
    %cst_28 = arith.constant dense<0.000000e+00> : vector<8xf32>
    %86 = vector.multi_reduction <add>, %85, %cst_28 [1] : vector<8x32xf32> to vector<8xf32>
    %87 = vector.shape_cast %86 : vector<8xf32> to vector<8x1xf32>
    %cst_29 = arith.constant 3.200000e+01 : f32
    %88 = vector.broadcast %cst_29 : f32 to vector<8x1xf32>
    %89 = arith.divf %87, %88 : vector<8x1xf32>
    %90 = vector.broadcast %89 : vector<8x1xf32> to vector<8x32xf32>
    %91 = arith.subf %85, %90 : vector<8x32xf32>
    %92 = arith.mulf %91, %91 : vector<8x32xf32>
    %cst_30 = arith.constant dense<0.000000e+00> : vector<8xf32>
    %93 = vector.multi_reduction <add>, %92, %cst_30 [1] : vector<8x32xf32> to vector<8xf32>
    %94 = vector.shape_cast %93 : vector<8xf32> to vector<8x1xf32>
    %cst_31 = arith.constant 3.200000e+01 : f32
    %95 = vector.broadcast %cst_31 : f32 to vector<8x1xf32>
    %96 = arith.divf %94, %95 : vector<8x1xf32>
    %97 = vector.broadcast %89 : vector<8x1xf32> to vector<8x32xf32>
    %98 = arith.subf %85, %97 : vector<8x32xf32>
    %cst_32 = arith.constant 9.99999974E-6 : f32
    %99 = vector.broadcast %cst_32 : f32 to vector<8x1xf32>
    %100 = arith.addf %96, %99 : vector<8x1xf32>
    %101 = math.rsqrt %100 : vector<8x1xf32>
    %102 = vector.broadcast %101 : vector<8x1xf32> to vector<8x32xf32>
    %103 = arith.mulf %98, %102 : vector<8x32xf32>
    %104 = vector.broadcast %17 : vector<1x32xf32> to vector<8x32xf32>
    %105 = arith.mulf %103, %104 : vector<8x32xf32>
    %106 = vector.broadcast %18 : vector<1x32xf32> to vector<8x32xf32>
    %107 = arith.addf %105, %106 : vector<8x32xf32>
    %108 = arith.truncf %107 : vector<8x32xf32> to vector<8x32xbf16>
    %cst_33 = arith.constant dense<0.000000e+00> : vector<8x64xf32>
    %109 = tpu.matmul %108, %7, %cst_33 {dimension_numbers = #tpu.dot_dimension_numbers<[1], [0], [0], [1], [0, 0, 1, 1], [], []>} : vector<8x32xbf16>, vector<32x64xbf16>, vector<8x64xf32> -> vector<8x64xf32>
    %110 = vector.broadcast %15 : vector<1x64xf32> to vector<8x64xf32>
    %111 = arith.addf %109, %110 : vector<8x64xf32>
    %cst_34 = arith.constant 0.000000e+00 : f32
    %112 = vector.broadcast %cst_34 : f32 to vector<8x64xf32>
    %113 = arith.maximumf %111, %112 : vector<8x64xf32>
    %114 = arith.truncf %113 : vector<8x64xf32> to vector<8x64xbf16>
    %cst_35 = arith.constant dense<0.000000e+00> : vector<8x32xf32>
    %115 = tpu.matmul %114, %9, %cst_35 {dimension_numbers = #tpu.dot_dimension_numbers<[1], [0], [0], [1], [0, 0, 1, 1], [], []>} : vector<8x64xbf16>, vector<64x32xbf16>, vector<8x32xf32> -> vector<8x32xf32>
    %116 = vector.broadcast %19 : vector<1x32xf32> to vector<8x32xf32>
    %117 = arith.addf %115, %116 : vector<8x32xf32>
    %118 = arith.addf %107, %117 : vector<8x32xf32>
    %cst_36 = arith.constant dense<0.000000e+00> : vector<8xf32>
    %119 = vector.multi_reduction <add>, %118, %cst_36 [1] : vector<8x32xf32> to vector<8xf32>
    %120 = vector.shape_cast %119 : vector<8xf32> to vector<8x1xf32>
    %cst_37 = arith.constant 3.200000e+01 : f32
    %121 = vector.broadcast %cst_37 : f32 to vector<8x1xf32>
    %122 = arith.divf %120, %121 : vector<8x1xf32>
    %123 = vector.broadcast %122 : vector<8x1xf32> to vector<8x32xf32>
    %124 = arith.subf %118, %123 : vector<8x32xf32>
    %125 = arith.mulf %124, %124 : vector<8x32xf32>
    %cst_38 = arith.constant dense<0.000000e+00> : vector<8xf32>
    %126 = vector.multi_reduction <add>, %125, %cst_38 [1] : vector<8x32xf32> to vector<8xf32>
    %127 = vector.shape_cast %126 : vector<8xf32> to vector<8x1xf32>
    %cst_39 = arith.constant 3.200000e+01 : f32
    %128 = vector.broadcast %cst_39 : f32 to vector<8x1xf32>
    %129 = arith.divf %127, %128 : vector<8x1xf32>
    %130 = vector.broadcast %122 : vector<8x1xf32> to vector<8x32xf32>
    %131 = arith.subf %118, %130 : vector<8x32xf32>
    %cst_40 = arith.constant 9.99999974E-6 : f32
    %132 = vector.broadcast %cst_40 : f32 to vector<8x1xf32>
    %133 = arith.addf %129, %132 : vector<8x1xf32>
    %134 = math.rsqrt %133 : vector<8x1xf32>
    %135 = vector.broadcast %134 : vector<8x1xf32> to vector<8x32xf32>
    %136 = arith.mulf %131, %135 : vector<8x32xf32>
    %137 = vector.broadcast %20 : vector<1x32xf32> to vector<8x32xf32>
    %138 = arith.mulf %136, %137 : vector<8x32xf32>
    %139 = vector.broadcast %21 : vector<1x32xf32> to vector<8x32xf32>
    %140 = arith.addf %138, %139 : vector<8x32xf32>
    %c1 = arith.constant 1 : index
    %c0_41 = arith.constant 0 : index
    %c0_42 = arith.constant 0 : index
    %141 = vector.load %arg2[%c1, %c0_41, %c0_42] : memref<2x32x96xbf16, #tpu.memory_space<vmem>>, vector<1x32x96xbf16>
    %142 = vector.shape_cast %141 : vector<1x32x96xbf16> to vector<32x96xbf16>
    %c1_43 = arith.constant 1 : index
    %c0_44 = arith.constant 0 : index
    %c0_45 = arith.constant 0 : index
    %143 = vector.load %arg3[%c1_43, %c0_44, %c0_45] : memref<2x32x32xbf16, #tpu.memory_space<vmem>>, vector<1x32x32xbf16>
    %144 = vector.shape_cast %143 : vector<1x32x32xbf16> to vector<32x32xbf16>
    %c1_46 = arith.constant 1 : index
    %c0_47 = arith.constant 0 : index
    %c0_48 = arith.constant 0 : index
    %145 = vector.load %arg4[%c1_46, %c0_47, %c0_48] : memref<2x32x64xbf16, #tpu.memory_space<vmem>>, vector<1x32x64xbf16>
    %146 = vector.shape_cast %145 : vector<1x32x64xbf16> to vector<32x64xbf16>
    %c1_49 = arith.constant 1 : index
    %c0_50 = arith.constant 0 : index
    %c0_51 = arith.constant 0 : index
    %147 = vector.load %arg5[%c1_49, %c0_50, %c0_51] : memref<2x64x32xbf16, #tpu.memory_space<vmem>>, vector<1x64x32xbf16>
    %148 = vector.shape_cast %147 : vector<1x64x32xbf16> to vector<64x32xbf16>
    %c1_52 = arith.constant 1 : index
    %c0_53 = arith.constant 0 : index
    %c0_54 = arith.constant 0 : index
    %149 = vector.load %arg6[%c1_52, %c0_53, %c0_54] : memref<2x6x32xf32, #tpu.memory_space<vmem>>, vector<1x6x32xf32>
    %150 = vector.shape_cast %149 : vector<1x6x32xf32> to vector<6x32xf32>
    %c1_55 = arith.constant 1 : index
    %c0_56 = arith.constant 0 : index
    %c0_57 = arith.constant 0 : index
    %151 = vector.load %arg7[%c1_55, %c0_56, %c0_57] : memref<2x1x96xf32, #tpu.memory_space<vmem>>, vector<1x1x96xf32>
    %152 = vector.shape_cast %151 : vector<1x1x96xf32> to vector<1x96xf32>
    %c1_58 = arith.constant 1 : index
    %c0_59 = arith.constant 0 : index
    %c0_60 = arith.constant 0 : index
    %153 = vector.load %arg8[%c1_58, %c0_59, %c0_60] : memref<2x1x64xf32, #tpu.memory_space<vmem>>, vector<1x1x64xf32>
    %154 = vector.shape_cast %153 : vector<1x1x64xf32> to vector<1x64xf32>
    %155 = vector.extract_strided_slice %150 {offsets = [0, 0], sizes = [1, 32], strides = [1, 1]} : vector<6x32xf32> to vector<1x32xf32>
    %156 = vector.extract_strided_slice %150 {offsets = [1, 0], sizes = [1, 32], strides = [1, 1]} : vector<6x32xf32> to vector<1x32xf32>
    %157 = vector.extract_strided_slice %150 {offsets = [2, 0], sizes = [1, 32], strides = [1, 1]} : vector<6x32xf32> to vector<1x32xf32>
    %158 = vector.extract_strided_slice %150 {offsets = [3, 0], sizes = [1, 32], strides = [1, 1]} : vector<6x32xf32> to vector<1x32xf32>
    %159 = vector.extract_strided_slice %150 {offsets = [4, 0], sizes = [1, 32], strides = [1, 1]} : vector<6x32xf32> to vector<1x32xf32>
    %160 = vector.extract_strided_slice %150 {offsets = [5, 0], sizes = [1, 32], strides = [1, 1]} : vector<6x32xf32> to vector<1x32xf32>
    %161 = arith.truncf %140 : vector<8x32xf32> to vector<8x32xbf16>
    %cst_61 = arith.constant dense<0.000000e+00> : vector<8x96xf32>
    %162 = tpu.matmul %161, %142, %cst_61 {dimension_numbers = #tpu.dot_dimension_numbers<[1], [0], [0], [1], [0, 0, 1, 1], [], []>} : vector<8x32xbf16>, vector<32x96xbf16>, vector<8x96xf32> -> vector<8x96xf32>
    %163 = vector.broadcast %152 : vector<1x96xf32> to vector<8x96xf32>
    %164 = arith.addf %162, %163 : vector<8x96xf32>
    %165 = vector.extract_strided_slice %164 {offsets = [0, 0], sizes = [8, 32], strides = [1, 1]} : vector<8x96xf32> to vector<8x32xf32>
    %166 = vector.extract_strided_slice %164 {offsets = [0, 32], sizes = [8, 32], strides = [1, 1]} : vector<8x96xf32> to vector<8x32xf32>
    %167 = vector.extract_strided_slice %164 {offsets = [0, 64], sizes = [8, 32], strides = [1, 1]} : vector<8x96xf32> to vector<8x32xf32>
    %168 = vector.extract_strided_slice %165 {offsets = [0, 0], sizes = [8, 8], strides = [1, 1]} : vector<8x32xf32> to vector<8x8xf32>
    %169 = vector.extract_strided_slice %165 {offsets = [0, 8], sizes = [8, 8], strides = [1, 1]} : vector<8x32xf32> to vector<8x8xf32>
    %170 = vector.extract_strided_slice %165 {offsets = [0, 16], sizes = [8, 8], strides = [1, 1]} : vector<8x32xf32> to vector<8x8xf32>
    %171 = vector.extract_strided_slice %165 {offsets = [0, 24], sizes = [8, 8], strides = [1, 1]} : vector<8x32xf32> to vector<8x8xf32>
    %172 = vector.shape_cast %168 : vector<8x8xf32> to vector<1x8x8xf32>
    %173 = vector.shape_cast %169 : vector<8x8xf32> to vector<1x8x8xf32>
    %174 = vector.shape_cast %170 : vector<8x8xf32> to vector<1x8x8xf32>
    %175 = vector.shape_cast %171 : vector<8x8xf32> to vector<1x8x8xf32>
    %176 = tpu.concatenate %172, %173, %174, %175 in 0 : vector<1x8x8xf32>, vector<1x8x8xf32>, vector<1x8x8xf32>, vector<1x8x8xf32> -> vector<4x8x8xf32>
    %177 = arith.truncf %176 : vector<4x8x8xf32> to vector<4x8x8xbf16>
    %178 = vector.extract_strided_slice %166 {offsets = [0, 0], sizes = [8, 8], strides = [1, 1]} : vector<8x32xf32> to vector<8x8xf32>
    %179 = vector.extract_strided_slice %166 {offsets = [0, 8], sizes = [8, 8], strides = [1, 1]} : vector<8x32xf32> to vector<8x8xf32>
    %180 = vector.extract_strided_slice %166 {offsets = [0, 16], sizes = [8, 8], strides = [1, 1]} : vector<8x32xf32> to vector<8x8xf32>
    %181 = vector.extract_strided_slice %166 {offsets = [0, 24], sizes = [8, 8], strides = [1, 1]} : vector<8x32xf32> to vector<8x8xf32>
    %182 = vector.shape_cast %178 : vector<8x8xf32> to vector<1x8x8xf32>
    %183 = vector.shape_cast %179 : vector<8x8xf32> to vector<1x8x8xf32>
    %184 = vector.shape_cast %180 : vector<8x8xf32> to vector<1x8x8xf32>
    %185 = vector.shape_cast %181 : vector<8x8xf32> to vector<1x8x8xf32>
    %186 = tpu.concatenate %182, %183, %184, %185 in 0 : vector<1x8x8xf32>, vector<1x8x8xf32>, vector<1x8x8xf32>, vector<1x8x8xf32> -> vector<4x8x8xf32>
    %187 = arith.truncf %186 : vector<4x8x8xf32> to vector<4x8x8xbf16>
    %188 = vector.extract_strided_slice %167 {offsets = [0, 0], sizes = [8, 8], strides = [1, 1]} : vector<8x32xf32> to vector<8x8xf32>
    %189 = vector.extract_strided_slice %167 {offsets = [0, 8], sizes = [8, 8], strides = [1, 1]} : vector<8x32xf32> to vector<8x8xf32>
    %190 = vector.extract_strided_slice %167 {offsets = [0, 16], sizes = [8, 8], strides = [1, 1]} : vector<8x32xf32> to vector<8x8xf32>
    %191 = vector.extract_strided_slice %167 {offsets = [0, 24], sizes = [8, 8], strides = [1, 1]} : vector<8x32xf32> to vector<8x8xf32>
    %192 = vector.shape_cast %188 : vector<8x8xf32> to vector<1x8x8xf32>
    %193 = vector.shape_cast %189 : vector<8x8xf32> to vector<1x8x8xf32>
    %194 = vector.shape_cast %190 : vector<8x8xf32> to vector<1x8x8xf32>
    %195 = vector.shape_cast %191 : vector<8x8xf32> to vector<1x8x8xf32>
    %196 = tpu.concatenate %192, %193, %194, %195 in 0 : vector<1x8x8xf32>, vector<1x8x8xf32>, vector<1x8x8xf32>, vector<1x8x8xf32> -> vector<4x8x8xf32>
    %197 = arith.truncf %196 : vector<4x8x8xf32> to vector<4x8x8xbf16>
    "tpu.trace_start"() <{level = 10 : i32, message = "hqd,hkd->hqk"}> : () -> ()
    %cst_62 = arith.constant dense<0.000000e+00> : vector<4x8x8xf32>
    %198 = tpu.matmul %177, %187, %cst_62 {dimension_numbers = #tpu.dot_dimension_numbers<[2], [2], [1], [1], [0, 0, 0, 1, 1, 1], [0], [0]>} : vector<4x8x8xbf16>, vector<4x8x8xbf16>, vector<4x8x8xf32> -> vector<4x8x8xf32>
    "tpu.trace_stop"() : () -> ()
    %cst_63 = arith.constant dense<0xFF800000> : vector<4x8xf32>
    %199 = vector.multi_reduction <maximumf>, %198, %cst_63 [2] : vector<4x8x8xf32> to vector<4x8xf32>
    %200 = vector.shape_cast %199 : vector<4x8xf32> to vector<4x8x1xf32>
    %201 = vector.broadcast %200 : vector<4x8x1xf32> to vector<4x8x8xf32>
    %202 = arith.subf %198, %201 : vector<4x8x8xf32>
    %203 = math.exp %202 : vector<4x8x8xf32>
    %cst_64 = arith.constant dense<0.000000e+00> : vector<4x8xf32>
    %204 = vector.multi_reduction <add>, %203, %cst_64 [2] : vector<4x8x8xf32> to vector<4x8xf32>
    %205 = vector.shape_cast %204 : vector<4x8xf32> to vector<4x8x1xf32>
    %206 = tpu.reciprocal %205 {approx = true} : vector<4x8x1xf32> -> vector<4x8x1xf32>
    %207 = vector.broadcast %206 : vector<4x8x1xf32> to vector<4x8x8xf32>
    %208 = arith.mulf %203, %207 : vector<4x8x8xf32>
    %209 = arith.truncf %208 : vector<4x8x8xf32> to vector<4x8x8xbf16>
    "tpu.trace_start"() <{level = 10 : i32, message = "hqk,hkd->hqd"}> : () -> ()
    %cst_65 = arith.constant dense<0.000000e+00> : vector<4x8x8xf32>
    %210 = tpu.matmul %209, %197, %cst_65 {dimension_numbers = #tpu.dot_dimension_numbers<[2], [1], [1], [2], [0, 0, 0, 1, 1, 2], [0], [0]>} : vector<4x8x8xbf16>, vector<4x8x8xbf16>, vector<4x8x8xf32> -> vector<4x8x8xf32>
    "tpu.trace_stop"() : () -> ()
    %211 = vector.extract_strided_slice %210 {offsets = [0, 0, 0], sizes = [1, 8, 8], strides = [1, 1, 1]} : vector<4x8x8xf32> to vector<1x8x8xf32>
    %212 = vector.shape_cast %211 : vector<1x8x8xf32> to vector<8x8xf32>
    %213 = vector.extract_strided_slice %210 {offsets = [1, 0, 0], sizes = [1, 8, 8], strides = [1, 1, 1]} : vector<4x8x8xf32> to vector<1x8x8xf32>
    %214 = vector.shape_cast %213 : vector<1x8x8xf32> to vector<8x8xf32>
    %215 = vector.extract_strided_slice %210 {offsets = [2, 0, 0], sizes = [1, 8, 8], strides = [1, 1, 1]} : vector<4x8x8xf32> to vector<1x8x8xf32>
    %216 = vector.shape_cast %215 : vector<1x8x8xf32> to vector<8x8xf32>
    %217 = vector.extract_strided_slice %210 {offsets = [3, 0, 0], sizes = [1, 8, 8], strides = [1, 1, 1]} : vector<4x8x8xf32> to vector<1x8x8xf32>
    %218 = vector.shape_cast %217 : vector<1x8x8xf32> to vector<8x8xf32>
    %219 = tpu.concatenate %212, %214, %216, %218 in 1 : vector<8x8xf32>, vector<8x8xf32>, vector<8x8xf32>, vector<8x8xf32> -> vector<8x32xf32>
    %220 = arith.truncf %219 : vector<8x32xf32> to vector<8x32xbf16>
    %cst_66 = arith.constant dense<0.000000e+00> : vector<8x32xf32>
    %221 = tpu.matmul %220, %144, %cst_66 {dimension_numbers = #tpu.dot_dimension_numbers<[1], [0], [0], [1], [0, 0, 1, 1], [], []>} : vector<8x32xbf16>, vector<32x32xbf16>, vector<8x32xf32> -> vector<8x32xf32>
    %222 = vector.broadcast %155 : vector<1x32xf32> to vector<8x32xf32>
    %223 = arith.addf %221, %222 : vector<8x32xf32>
    %224 = arith.addf %140, %223 : vector<8x32xf32>
    %cst_67 = arith.constant dense<0.000000e+00> : vector<8xf32>
    %225 = vector.multi_reduction <add>, %224, %cst_67 [1] : vector<8x32xf32> to vector<8xf32>
    %226 = vector.shape_cast %225 : vector<8xf32> to vector<8x1xf32>
    %cst_68 = arith.constant 3.200000e+01 : f32
    %227 = vector.broadcast %cst_68 : f32 to vector<8x1xf32>
    %228 = arith.divf %226, %227 : vector<8x1xf32>
    %229 = vector.broadcast %228 : vector<8x1xf32> to vector<8x32xf32>
    %230 = arith.subf %224, %229 : vector<8x32xf32>
    %231 = arith.mulf %230, %230 : vector<8x32xf32>
    %cst_69 = arith.constant dense<0.000000e+00> : vector<8xf32>
    %232 = vector.multi_reduction <add>, %231, %cst_69 [1] : vector<8x32xf32> to vector<8xf32>
    %233 = vector.shape_cast %232 : vector<8xf32> to vector<8x1xf32>
    %cst_70 = arith.constant 3.200000e+01 : f32
    %234 = vector.broadcast %cst_70 : f32 to vector<8x1xf32>
    %235 = arith.divf %233, %234 : vector<8x1xf32>
    %236 = vector.broadcast %228 : vector<8x1xf32> to vector<8x32xf32>
    %237 = arith.subf %224, %236 : vector<8x32xf32>
    %cst_71 = arith.constant 9.99999974E-6 : f32
    %238 = vector.broadcast %cst_71 : f32 to vector<8x1xf32>
    %239 = arith.addf %235, %238 : vector<8x1xf32>
    %240 = math.rsqrt %239 : vector<8x1xf32>
    %241 = vector.broadcast %240 : vector<8x1xf32> to vector<8x32xf32>
    %242 = arith.mulf %237, %241 : vector<8x32xf32>
    %243 = vector.broadcast %156 : vector<1x32xf32> to vector<8x32xf32>
    %244 = arith.mulf %242, %243 : vector<8x32xf32>
    %245 = vector.broadcast %157 : vector<1x32xf32> to vector<8x32xf32>
    %246 = arith.addf %244, %245 : vector<8x32xf32>
    %247 = arith.truncf %246 : vector<8x32xf32> to vector<8x32xbf16>
    %cst_72 = arith.constant dense<0.000000e+00> : vector<8x64xf32>
    %248 = tpu.matmul %247, %146, %cst_72 {dimension_numbers = #tpu.dot_dimension_numbers<[1], [0], [0], [1], [0, 0, 1, 1], [], []>} : vector<8x32xbf16>, vector<32x64xbf16>, vector<8x64xf32> -> vector<8x64xf32>
    %249 = vector.broadcast %154 : vector<1x64xf32> to vector<8x64xf32>
    %250 = arith.addf %248, %249 : vector<8x64xf32>
    %cst_73 = arith.constant 0.000000e+00 : f32
    %251 = vector.broadcast %cst_73 : f32 to vector<8x64xf32>
    %252 = arith.maximumf %250, %251 : vector<8x64xf32>
    %253 = arith.truncf %252 : vector<8x64xf32> to vector<8x64xbf16>
    %cst_74 = arith.constant dense<0.000000e+00> : vector<8x32xf32>
    %254 = tpu.matmul %253, %148, %cst_74 {dimension_numbers = #tpu.dot_dimension_numbers<[1], [0], [0], [1], [0, 0, 1, 1], [], []>} : vector<8x64xbf16>, vector<64x32xbf16>, vector<8x32xf32> -> vector<8x32xf32>
    %255 = vector.broadcast %158 : vector<1x32xf32> to vector<8x32xf32>
    %256 = arith.addf %254, %255 : vector<8x32xf32>
    %257 = arith.addf %246, %256 : vector<8x32xf32>
    %cst_75 = arith.constant dense<0.000000e+00> : vector<8xf32>
    %258 = vector.multi_reduction <add>, %257, %cst_75 [1] : vector<8x32xf32> to vector<8xf32>
    %259 = vector.shape_cast %258 : vector<8xf32> to vector<8x1xf32>
    %cst_76 = arith.constant 3.200000e+01 : f32
    %260 = vector.broadcast %cst_76 : f32 to vector<8x1xf32>
    %261 = arith.divf %259, %260 : vector<8x1xf32>
    %262 = vector.broadcast %261 : vector<8x1xf32> to vector<8x32xf32>
    %263 = arith.subf %257, %262 : vector<8x32xf32>
    %264 = arith.mulf %263, %263 : vector<8x32xf32>
    %cst_77 = arith.constant dense<0.000000e+00> : vector<8xf32>
    %265 = vector.multi_reduction <add>, %264, %cst_77 [1] : vector<8x32xf32> to vector<8xf32>
    %266 = vector.shape_cast %265 : vector<8xf32> to vector<8x1xf32>
    %cst_78 = arith.constant 3.200000e+01 : f32
    %267 = vector.broadcast %cst_78 : f32 to vector<8x1xf32>
    %268 = arith.divf %266, %267 : vector<8x1xf32>
    %269 = vector.broadcast %261 : vector<8x1xf32> to vector<8x32xf32>
    %270 = arith.subf %257, %269 : vector<8x32xf32>
    %cst_79 = arith.constant 9.99999974E-6 : f32
    %271 = vector.broadcast %cst_79 : f32 to vector<8x1xf32>
    %272 = arith.addf %268, %271 : vector<8x1xf32>
    %273 = math.rsqrt %272 : vector<8x1xf32>
    %274 = vector.broadcast %273 : vector<8x1xf32> to vector<8x32xf32>
    %275 = arith.mulf %270, %274 : vector<8x32xf32>
    %276 = vector.broadcast %159 : vector<1x32xf32> to vector<8x32xf32>
    %277 = arith.mulf %275, %276 : vector<8x32xf32>
    %278 = vector.broadcast %160 : vector<1x32xf32> to vector<8x32xf32>
    %279 = arith.addf %277, %278 : vector<8x32xf32>
    %c0_80 = arith.constant 0 : index
    %c0_81 = arith.constant 0 : index
    %c0_82 = arith.constant 0 : index
    %280 = vector.load %arg9[%c0_80, %c0_81, %c0_82] : memref<2x32x96xbf16, #tpu.memory_space<vmem>>, vector<1x32x96xbf16>
    %281 = vector.shape_cast %280 : vector<1x32x96xbf16> to vector<32x96xbf16>
    %c0_83 = arith.constant 0 : index
    %c0_84 = arith.constant 0 : index
    %c0_85 = arith.constant 0 : index
    %282 = vector.load %arg10[%c0_83, %c0_84, %c0_85] : memref<2x32x32xbf16, #tpu.memory_space<vmem>>, vector<1x32x32xbf16>
    %283 = vector.shape_cast %282 : vector<1x32x32xbf16> to vector<32x32xbf16>
    %c0_86 = arith.constant 0 : index
    %c0_87 = arith.constant 0 : index
    %c0_88 = arith.constant 0 : index
    %284 = vector.load %arg11[%c0_86, %c0_87, %c0_88] : memref<2x32x32xbf16, #tpu.memory_space<vmem>>, vector<1x32x32xbf16>
    %285 = vector.shape_cast %284 : vector<1x32x32xbf16> to vector<32x32xbf16>
    %c0_89 = arith.constant 0 : index
    %c0_90 = arith.constant 0 : index
    %c0_91 = arith.constant 0 : index
    %286 = vector.load %arg12[%c0_89, %c0_90, %c0_91] : memref<2x32x64xbf16, #tpu.memory_space<vmem>>, vector<1x32x64xbf16>
    %287 = vector.shape_cast %286 : vector<1x32x64xbf16> to vector<32x64xbf16>
    %c0_92 = arith.constant 0 : index
    %c0_93 = arith.constant 0 : index
    %c0_94 = arith.constant 0 : index
    %288 = vector.load %arg13[%c0_92, %c0_93, %c0_94] : memref<2x32x32xbf16, #tpu.memory_space<vmem>>, vector<1x32x32xbf16>
    %289 = vector.shape_cast %288 : vector<1x32x32xbf16> to vector<32x32xbf16>
    %c0_95 = arith.constant 0 : index
    %c0_96 = arith.constant 0 : index
    %c0_97 = arith.constant 0 : index
    %290 = vector.load %arg14[%c0_95, %c0_96, %c0_97] : memref<2x32x64xbf16, #tpu.memory_space<vmem>>, vector<1x32x64xbf16>
    %291 = vector.shape_cast %290 : vector<1x32x64xbf16> to vector<32x64xbf16>
    %c0_98 = arith.constant 0 : index
    %c0_99 = arith.constant 0 : index
    %c0_100 = arith.constant 0 : index
    %292 = vector.load %arg15[%c0_98, %c0_99, %c0_100] : memref<2x64x32xbf16, #tpu.memory_space<vmem>>, vector<1x64x32xbf16>
    %293 = vector.shape_cast %292 : vector<1x64x32xbf16> to vector<64x32xbf16>
    %c0_101 = arith.constant 0 : index
    %c0_102 = arith.constant 0 : index
    %c0_103 = arith.constant 0 : index
    %294 = vector.load %arg16[%c0_101, %c0_102, %c0_103] : memref<2x10x32xf32, #tpu.memory_space<vmem>>, vector<1x10x32xf32>
    %295 = vector.shape_cast %294 : vector<1x10x32xf32> to vector<10x32xf32>
    %c0_104 = arith.constant 0 : index
    %c0_105 = arith.constant 0 : index
    %c0_106 = arith.constant 0 : index
    %296 = vector.load %arg17[%c0_104, %c0_105, %c0_106] : memref<2x1x96xf32, #tpu.memory_space<vmem>>, vector<1x1x96xf32>
    %297 = vector.shape_cast %296 : vector<1x1x96xf32> to vector<1x96xf32>
    %c0_107 = arith.constant 0 : index
    %c0_108 = arith.constant 0 : index
    %c0_109 = arith.constant 0 : index
    %298 = vector.load %arg18[%c0_107, %c0_108, %c0_109] : memref<2x1x64xf32, #tpu.memory_space<vmem>>, vector<1x1x64xf32>
    %299 = vector.shape_cast %298 : vector<1x1x64xf32> to vector<1x64xf32>
    %c0_110 = arith.constant 0 : index
    %c0_111 = arith.constant 0 : index
    %c0_112 = arith.constant 0 : index
    %300 = vector.load %arg19[%c0_110, %c0_111, %c0_112] : memref<2x1x64xf32, #tpu.memory_space<vmem>>, vector<1x1x64xf32>
    %301 = vector.shape_cast %300 : vector<1x1x64xf32> to vector<1x64xf32>
    %302 = vector.extract_strided_slice %295 {offsets = [0, 0], sizes = [1, 32], strides = [1, 1]} : vector<10x32xf32> to vector<1x32xf32>
    %303 = vector.extract_strided_slice %295 {offsets = [1, 0], sizes = [1, 32], strides = [1, 1]} : vector<10x32xf32> to vector<1x32xf32>
    %304 = vector.extract_strided_slice %295 {offsets = [2, 0], sizes = [1, 32], strides = [1, 1]} : vector<10x32xf32> to vector<1x32xf32>
    %305 = vector.extract_strided_slice %295 {offsets = [3, 0], sizes = [1, 32], strides = [1, 1]} : vector<10x32xf32> to vector<1x32xf32>
    %306 = vector.extract_strided_slice %295 {offsets = [4, 0], sizes = [1, 32], strides = [1, 1]} : vector<10x32xf32> to vector<1x32xf32>
    %307 = vector.extract_strided_slice %295 {offsets = [5, 0], sizes = [1, 32], strides = [1, 1]} : vector<10x32xf32> to vector<1x32xf32>
    %308 = vector.extract_strided_slice %295 {offsets = [6, 0], sizes = [1, 32], strides = [1, 1]} : vector<10x32xf32> to vector<1x32xf32>
    %309 = vector.extract_strided_slice %295 {offsets = [7, 0], sizes = [1, 32], strides = [1, 1]} : vector<10x32xf32> to vector<1x32xf32>
    %310 = vector.extract_strided_slice %295 {offsets = [8, 0], sizes = [1, 32], strides = [1, 1]} : vector<10x32xf32> to vector<1x32xf32>
    %311 = vector.extract_strided_slice %295 {offsets = [9, 0], sizes = [1, 32], strides = [1, 1]} : vector<10x32xf32> to vector<1x32xf32>
    %312 = arith.truncf %279 : vector<8x32xf32> to vector<8x32xbf16>
    %cst_113 = arith.constant dense<0.000000e+00> : vector<8x96xf32>
    %313 = tpu.matmul %312, %281, %cst_113 {dimension_numbers = #tpu.dot_dimension_numbers<[1], [0], [0], [1], [0, 0, 1, 1], [], []>} : vector<8x32xbf16>, vector<32x96xbf16>, vector<8x96xf32> -> vector<8x96xf32>
    %314 = vector.broadcast %297 : vector<1x96xf32> to vector<8x96xf32>
    %315 = arith.addf %313, %314 : vector<8x96xf32>
    %316 = vector.extract_strided_slice %315 {offsets = [0, 0], sizes = [8, 32], strides = [1, 1]} : vector<8x96xf32> to vector<8x32xf32>
    %317 = vector.extract_strided_slice %315 {offsets = [0, 32], sizes = [8, 32], strides = [1, 1]} : vector<8x96xf32> to vector<8x32xf32>
    %318 = vector.extract_strided_slice %315 {offsets = [0, 64], sizes = [8, 32], strides = [1, 1]} : vector<8x96xf32> to vector<8x32xf32>
    %319 = vector.extract_strided_slice %316 {offsets = [0, 0], sizes = [8, 8], strides = [1, 1]} : vector<8x32xf32> to vector<8x8xf32>
    %320 = vector.extract_strided_slice %316 {offsets = [0, 8], sizes = [8, 8], strides = [1, 1]} : vector<8x32xf32> to vector<8x8xf32>
    %321 = vector.extract_strided_slice %316 {offsets = [0, 16], sizes = [8, 8], strides = [1, 1]} : vector<8x32xf32> to vector<8x8xf32>
    %322 = vector.extract_strided_slice %316 {offsets = [0, 24], sizes = [8, 8], strides = [1, 1]} : vector<8x32xf32> to vector<8x8xf32>
    %323 = vector.shape_cast %319 : vector<8x8xf32> to vector<1x8x8xf32>
    %324 = vector.shape_cast %320 : vector<8x8xf32> to vector<1x8x8xf32>
    %325 = vector.shape_cast %321 : vector<8x8xf32> to vector<1x8x8xf32>
    %326 = vector.shape_cast %322 : vector<8x8xf32> to vector<1x8x8xf32>
    %327 = tpu.concatenate %323, %324, %325, %326 in 0 : vector<1x8x8xf32>, vector<1x8x8xf32>, vector<1x8x8xf32>, vector<1x8x8xf32> -> vector<4x8x8xf32>
    %328 = arith.truncf %327 : vector<4x8x8xf32> to vector<4x8x8xbf16>
    %329 = vector.extract_strided_slice %317 {offsets = [0, 0], sizes = [8, 8], strides = [1, 1]} : vector<8x32xf32> to vector<8x8xf32>
    %330 = vector.extract_strided_slice %317 {offsets = [0, 8], sizes = [8, 8], strides = [1, 1]} : vector<8x32xf32> to vector<8x8xf32>
    %331 = vector.extract_strided_slice %317 {offsets = [0, 16], sizes = [8, 8], strides = [1, 1]} : vector<8x32xf32> to vector<8x8xf32>
    %332 = vector.extract_strided_slice %317 {offsets = [0, 24], sizes = [8, 8], strides = [1, 1]} : vector<8x32xf32> to vector<8x8xf32>
    %333 = vector.shape_cast %329 : vector<8x8xf32> to vector<1x8x8xf32>
    %334 = vector.shape_cast %330 : vector<8x8xf32> to vector<1x8x8xf32>
    %335 = vector.shape_cast %331 : vector<8x8xf32> to vector<1x8x8xf32>
    %336 = vector.shape_cast %332 : vector<8x8xf32> to vector<1x8x8xf32>
    %337 = tpu.concatenate %333, %334, %335, %336 in 0 : vector<1x8x8xf32>, vector<1x8x8xf32>, vector<1x8x8xf32>, vector<1x8x8xf32> -> vector<4x8x8xf32>
    %338 = arith.truncf %337 : vector<4x8x8xf32> to vector<4x8x8xbf16>
    %339 = vector.extract_strided_slice %318 {offsets = [0, 0], sizes = [8, 8], strides = [1, 1]} : vector<8x32xf32> to vector<8x8xf32>
    %340 = vector.extract_strided_slice %318 {offsets = [0, 8], sizes = [8, 8], strides = [1, 1]} : vector<8x32xf32> to vector<8x8xf32>
    %341 = vector.extract_strided_slice %318 {offsets = [0, 16], sizes = [8, 8], strides = [1, 1]} : vector<8x32xf32> to vector<8x8xf32>
    %342 = vector.extract_strided_slice %318 {offsets = [0, 24], sizes = [8, 8], strides = [1, 1]} : vector<8x32xf32> to vector<8x8xf32>
    %343 = vector.shape_cast %339 : vector<8x8xf32> to vector<1x8x8xf32>
    %344 = vector.shape_cast %340 : vector<8x8xf32> to vector<1x8x8xf32>
    %345 = vector.shape_cast %341 : vector<8x8xf32> to vector<1x8x8xf32>
    %346 = vector.shape_cast %342 : vector<8x8xf32> to vector<1x8x8xf32>
    %347 = tpu.concatenate %343, %344, %345, %346 in 0 : vector<1x8x8xf32>, vector<1x8x8xf32>, vector<1x8x8xf32>, vector<1x8x8xf32> -> vector<4x8x8xf32>
    %348 = arith.truncf %347 : vector<4x8x8xf32> to vector<4x8x8xbf16>
    "tpu.trace_start"() <{level = 10 : i32, message = "hqd,hkd->hqk"}> : () -> ()
    %cst_114 = arith.constant dense<0.000000e+00> : vector<4x8x8xf32>
    %349 = tpu.matmul %328, %338, %cst_114 {dimension_numbers = #tpu.dot_dimension_numbers<[2], [2], [1], [1], [0, 0, 0, 1, 1, 1], [0], [0]>} : vector<4x8x8xbf16>, vector<4x8x8xbf16>, vector<4x8x8xf32> -> vector<4x8x8xf32>
    "tpu.trace_stop"() : () -> ()
    %cst_115 = arith.constant dense<0xFF800000> : vector<4x8xf32>
    %350 = vector.multi_reduction <maximumf>, %349, %cst_115 [2] : vector<4x8x8xf32> to vector<4x8xf32>
    %351 = vector.shape_cast %350 : vector<4x8xf32> to vector<4x8x1xf32>
    %352 = vector.broadcast %351 : vector<4x8x1xf32> to vector<4x8x8xf32>
    %353 = arith.subf %349, %352 : vector<4x8x8xf32>
    %354 = math.exp %353 : vector<4x8x8xf32>
    %cst_116 = arith.constant dense<0.000000e+00> : vector<4x8xf32>
    %355 = vector.multi_reduction <add>, %354, %cst_116 [2] : vector<4x8x8xf32> to vector<4x8xf32>
    %356 = vector.shape_cast %355 : vector<4x8xf32> to vector<4x8x1xf32>
    %357 = tpu.reciprocal %356 {approx = true} : vector<4x8x1xf32> -> vector<4x8x1xf32>
    %358 = vector.broadcast %357 : vector<4x8x1xf32> to vector<4x8x8xf32>
    %359 = arith.mulf %354, %358 : vector<4x8x8xf32>
    %360 = arith.truncf %359 : vector<4x8x8xf32> to vector<4x8x8xbf16>
    "tpu.trace_start"() <{level = 10 : i32, message = "hqk,hkd->hqd"}> : () -> ()
    %cst_117 = arith.constant dense<0.000000e+00> : vector<4x8x8xf32>
    %361 = tpu.matmul %360, %348, %cst_117 {dimension_numbers = #tpu.dot_dimension_numbers<[2], [1], [1], [2], [0, 0, 0, 1, 1, 2], [0], [0]>} : vector<4x8x8xbf16>, vector<4x8x8xbf16>, vector<4x8x8xf32> -> vector<4x8x8xf32>
    "tpu.trace_stop"() : () -> ()
    %362 = vector.extract_strided_slice %361 {offsets = [0, 0, 0], sizes = [1, 8, 8], strides = [1, 1, 1]} : vector<4x8x8xf32> to vector<1x8x8xf32>
    %363 = vector.shape_cast %362 : vector<1x8x8xf32> to vector<8x8xf32>
    %364 = vector.extract_strided_slice %361 {offsets = [1, 0, 0], sizes = [1, 8, 8], strides = [1, 1, 1]} : vector<4x8x8xf32> to vector<1x8x8xf32>
    %365 = vector.shape_cast %364 : vector<1x8x8xf32> to vector<8x8xf32>
    %366 = vector.extract_strided_slice %361 {offsets = [2, 0, 0], sizes = [1, 8, 8], strides = [1, 1, 1]} : vector<4x8x8xf32> to vector<1x8x8xf32>
    %367 = vector.shape_cast %366 : vector<1x8x8xf32> to vector<8x8xf32>
    %368 = vector.extract_strided_slice %361 {offsets = [3, 0, 0], sizes = [1, 8, 8], strides = [1, 1, 1]} : vector<4x8x8xf32> to vector<1x8x8xf32>
    %369 = vector.shape_cast %368 : vector<1x8x8xf32> to vector<8x8xf32>
    %370 = tpu.concatenate %363, %365, %367, %369 in 1 : vector<8x8xf32>, vector<8x8xf32>, vector<8x8xf32>, vector<8x8xf32> -> vector<8x32xf32>
    %371 = arith.truncf %370 : vector<8x32xf32> to vector<8x32xbf16>
    %cst_118 = arith.constant dense<0.000000e+00> : vector<8x32xf32>
    %372 = tpu.matmul %371, %283, %cst_118 {dimension_numbers = #tpu.dot_dimension_numbers<[1], [0], [0], [1], [0, 0, 1, 1], [], []>} : vector<8x32xbf16>, vector<32x32xbf16>, vector<8x32xf32> -> vector<8x32xf32>
    %373 = vector.broadcast %302 : vector<1x32xf32> to vector<8x32xf32>
    %374 = arith.addf %372, %373 : vector<8x32xf32>
    %375 = arith.addf %279, %374 : vector<8x32xf32>
    %cst_119 = arith.constant dense<0.000000e+00> : vector<8xf32>
    %376 = vector.multi_reduction <add>, %375, %cst_119 [1] : vector<8x32xf32> to vector<8xf32>
    %377 = vector.shape_cast %376 : vector<8xf32> to vector<8x1xf32>
    %cst_120 = arith.constant 3.200000e+01 : f32
    %378 = vector.broadcast %cst_120 : f32 to vector<8x1xf32>
    %379 = arith.divf %377, %378 : vector<8x1xf32>
    %380 = vector.broadcast %379 : vector<8x1xf32> to vector<8x32xf32>
    %381 = arith.subf %375, %380 : vector<8x32xf32>
    %382 = arith.mulf %381, %381 : vector<8x32xf32>
    %cst_121 = arith.constant dense<0.000000e+00> : vector<8xf32>
    %383 = vector.multi_reduction <add>, %382, %cst_121 [1] : vector<8x32xf32> to vector<8xf32>
    %384 = vector.shape_cast %383 : vector<8xf32> to vector<8x1xf32>
    %cst_122 = arith.constant 3.200000e+01 : f32
    %385 = vector.broadcast %cst_122 : f32 to vector<8x1xf32>
    %386 = arith.divf %384, %385 : vector<8x1xf32>
    %387 = vector.broadcast %379 : vector<8x1xf32> to vector<8x32xf32>
    %388 = arith.subf %375, %387 : vector<8x32xf32>
    %cst_123 = arith.constant 9.99999974E-6 : f32
    %389 = vector.broadcast %cst_123 : f32 to vector<8x1xf32>
    %390 = arith.addf %386, %389 : vector<8x1xf32>
    %391 = math.rsqrt %390 : vector<8x1xf32>
    %392 = vector.broadcast %391 : vector<8x1xf32> to vector<8x32xf32>
    %393 = arith.mulf %388, %392 : vector<8x32xf32>
    %394 = vector.broadcast %303 : vector<1x32xf32> to vector<8x32xf32>
    %395 = arith.mulf %393, %394 : vector<8x32xf32>
    %396 = vector.broadcast %304 : vector<1x32xf32> to vector<8x32xf32>
    %397 = arith.addf %395, %396 : vector<8x32xf32>
    %398 = arith.truncf %397 : vector<8x32xf32> to vector<8x32xbf16>
    %cst_124 = arith.constant dense<0.000000e+00> : vector<8x32xf32>
    %399 = tpu.matmul %398, %285, %cst_124 {dimension_numbers = #tpu.dot_dimension_numbers<[1], [0], [0], [1], [0, 0, 1, 1], [], []>} : vector<8x32xbf16>, vector<32x32xbf16>, vector<8x32xf32> -> vector<8x32xf32>
    %400 = vector.broadcast %305 : vector<1x32xf32> to vector<8x32xf32>
    %401 = arith.addf %399, %400 : vector<8x32xf32>
    %402 = arith.truncf %279 : vector<8x32xf32> to vector<8x32xbf16>
    %cst_125 = arith.constant dense<0.000000e+00> : vector<8x64xf32>
    %403 = tpu.matmul %402, %287, %cst_125 {dimension_numbers = #tpu.dot_dimension_numbers<[1], [0], [0], [1], [0, 0, 1, 1], [], []>} : vector<8x32xbf16>, vector<32x64xbf16>, vector<8x64xf32> -> vector<8x64xf32>
    %404 = vector.broadcast %299 : vector<1x64xf32> to vector<8x64xf32>
    %405 = arith.addf %403, %404 : vector<8x64xf32>
    %406 = vector.extract_strided_slice %405 {offsets = [0, 0], sizes = [8, 32], strides = [1, 1]} : vector<8x64xf32> to vector<8x32xf32>
    %407 = vector.extract_strided_slice %405 {offsets = [0, 32], sizes = [8, 32], strides = [1, 1]} : vector<8x64xf32> to vector<8x32xf32>
    %408 = vector.extract_strided_slice %401 {offsets = [0, 0], sizes = [8, 8], strides = [1, 1]} : vector<8x32xf32> to vector<8x8xf32>
    %409 = vector.extract_strided_slice %401 {offsets = [0, 8], sizes = [8, 8], strides = [1, 1]} : vector<8x32xf32> to vector<8x8xf32>
    %410 = vector.extract_strided_slice %401 {offsets = [0, 16], sizes = [8, 8], strides = [1, 1]} : vector<8x32xf32> to vector<8x8xf32>
    %411 = vector.extract_strided_slice %401 {offsets = [0, 24], sizes = [8, 8], strides = [1, 1]} : vector<8x32xf32> to vector<8x8xf32>
    %412 = vector.shape_cast %408 : vector<8x8xf32> to vector<1x8x8xf32>
    %413 = vector.shape_cast %409 : vector<8x8xf32> to vector<1x8x8xf32>
    %414 = vector.shape_cast %410 : vector<8x8xf32> to vector<1x8x8xf32>
    %415 = vector.shape_cast %411 : vector<8x8xf32> to vector<1x8x8xf32>
    %416 = tpu.concatenate %412, %413, %414, %415 in 0 : vector<1x8x8xf32>, vector<1x8x8xf32>, vector<1x8x8xf32>, vector<1x8x8xf32> -> vector<4x8x8xf32>
    %417 = arith.truncf %416 : vector<4x8x8xf32> to vector<4x8x8xbf16>
    %418 = vector.extract_strided_slice %406 {offsets = [0, 0], sizes = [8, 8], strides = [1, 1]} : vector<8x32xf32> to vector<8x8xf32>
    %419 = vector.extract_strided_slice %406 {offsets = [0, 8], sizes = [8, 8], strides = [1, 1]} : vector<8x32xf32> to vector<8x8xf32>
    %420 = vector.extract_strided_slice %406 {offsets = [0, 16], sizes = [8, 8], strides = [1, 1]} : vector<8x32xf32> to vector<8x8xf32>
    %421 = vector.extract_strided_slice %406 {offsets = [0, 24], sizes = [8, 8], strides = [1, 1]} : vector<8x32xf32> to vector<8x8xf32>
    %422 = vector.shape_cast %418 : vector<8x8xf32> to vector<1x8x8xf32>
    %423 = vector.shape_cast %419 : vector<8x8xf32> to vector<1x8x8xf32>
    %424 = vector.shape_cast %420 : vector<8x8xf32> to vector<1x8x8xf32>
    %425 = vector.shape_cast %421 : vector<8x8xf32> to vector<1x8x8xf32>
    %426 = tpu.concatenate %422, %423, %424, %425 in 0 : vector<1x8x8xf32>, vector<1x8x8xf32>, vector<1x8x8xf32>, vector<1x8x8xf32> -> vector<4x8x8xf32>
    %427 = arith.truncf %426 : vector<4x8x8xf32> to vector<4x8x8xbf16>
    %428 = vector.extract_strided_slice %407 {offsets = [0, 0], sizes = [8, 8], strides = [1, 1]} : vector<8x32xf32> to vector<8x8xf32>
    %429 = vector.extract_strided_slice %407 {offsets = [0, 8], sizes = [8, 8], strides = [1, 1]} : vector<8x32xf32> to vector<8x8xf32>
    %430 = vector.extract_strided_slice %407 {offsets = [0, 16], sizes = [8, 8], strides = [1, 1]} : vector<8x32xf32> to vector<8x8xf32>
    %431 = vector.extract_strided_slice %407 {offsets = [0, 24], sizes = [8, 8], strides = [1, 1]} : vector<8x32xf32> to vector<8x8xf32>
    %432 = vector.shape_cast %428 : vector<8x8xf32> to vector<1x8x8xf32>
    %433 = vector.shape_cast %429 : vector<8x8xf32> to vector<1x8x8xf32>
    %434 = vector.shape_cast %430 : vector<8x8xf32> to vector<1x8x8xf32>
    %435 = vector.shape_cast %431 : vector<8x8xf32> to vector<1x8x8xf32>
    %436 = tpu.concatenate %432, %433, %434, %435 in 0 : vector<1x8x8xf32>, vector<1x8x8xf32>, vector<1x8x8xf32>, vector<1x8x8xf32> -> vector<4x8x8xf32>
    %437 = arith.truncf %436 : vector<4x8x8xf32> to vector<4x8x8xbf16>
    "tpu.trace_start"() <{level = 10 : i32, message = "hqd,hkd->hqk"}> : () -> ()
    %cst_126 = arith.constant dense<0.000000e+00> : vector<4x8x8xf32>
    %438 = tpu.matmul %417, %427, %cst_126 {dimension_numbers = #tpu.dot_dimension_numbers<[2], [2], [1], [1], [0, 0, 0, 1, 1, 1], [0], [0]>} : vector<4x8x8xbf16>, vector<4x8x8xbf16>, vector<4x8x8xf32> -> vector<4x8x8xf32>
    "tpu.trace_stop"() : () -> ()
    %cst_127 = arith.constant dense<0xFF800000> : vector<4x8xf32>
    %439 = vector.multi_reduction <maximumf>, %438, %cst_127 [2] : vector<4x8x8xf32> to vector<4x8xf32>
    %440 = vector.shape_cast %439 : vector<4x8xf32> to vector<4x8x1xf32>
    %441 = vector.broadcast %440 : vector<4x8x1xf32> to vector<4x8x8xf32>
    %442 = arith.subf %438, %441 : vector<4x8x8xf32>
    %443 = math.exp %442 : vector<4x8x8xf32>
    %cst_128 = arith.constant dense<0.000000e+00> : vector<4x8xf32>
    %444 = vector.multi_reduction <add>, %443, %cst_128 [2] : vector<4x8x8xf32> to vector<4x8xf32>
    %445 = vector.shape_cast %444 : vector<4x8xf32> to vector<4x8x1xf32>
    %446 = tpu.reciprocal %445 {approx = true} : vector<4x8x1xf32> -> vector<4x8x1xf32>
    %447 = vector.broadcast %446 : vector<4x8x1xf32> to vector<4x8x8xf32>
    %448 = arith.mulf %443, %447 : vector<4x8x8xf32>
    %449 = arith.truncf %448 : vector<4x8x8xf32> to vector<4x8x8xbf16>
    "tpu.trace_start"() <{level = 10 : i32, message = "hqk,hkd->hqd"}> : () -> ()
    %cst_129 = arith.constant dense<0.000000e+00> : vector<4x8x8xf32>
    %450 = tpu.matmul %449, %437, %cst_129 {dimension_numbers = #tpu.dot_dimension_numbers<[2], [1], [1], [2], [0, 0, 0, 1, 1, 2], [0], [0]>} : vector<4x8x8xbf16>, vector<4x8x8xbf16>, vector<4x8x8xf32> -> vector<4x8x8xf32>
    "tpu.trace_stop"() : () -> ()
    %451 = vector.extract_strided_slice %450 {offsets = [0, 0, 0], sizes = [1, 8, 8], strides = [1, 1, 1]} : vector<4x8x8xf32> to vector<1x8x8xf32>
    %452 = vector.shape_cast %451 : vector<1x8x8xf32> to vector<8x8xf32>
    %453 = vector.extract_strided_slice %450 {offsets = [1, 0, 0], sizes = [1, 8, 8], strides = [1, 1, 1]} : vector<4x8x8xf32> to vector<1x8x8xf32>
    %454 = vector.shape_cast %453 : vector<1x8x8xf32> to vector<8x8xf32>
    %455 = vector.extract_strided_slice %450 {offsets = [2, 0, 0], sizes = [1, 8, 8], strides = [1, 1, 1]} : vector<4x8x8xf32> to vector<1x8x8xf32>
    %456 = vector.shape_cast %455 : vector<1x8x8xf32> to vector<8x8xf32>
    %457 = vector.extract_strided_slice %450 {offsets = [3, 0, 0], sizes = [1, 8, 8], strides = [1, 1, 1]} : vector<4x8x8xf32> to vector<1x8x8xf32>
    %458 = vector.shape_cast %457 : vector<1x8x8xf32> to vector<8x8xf32>
    %459 = tpu.concatenate %452, %454, %456, %458 in 1 : vector<8x8xf32>, vector<8x8xf32>, vector<8x8xf32>, vector<8x8xf32> -> vector<8x32xf32>
    %460 = arith.truncf %459 : vector<8x32xf32> to vector<8x32xbf16>
    %cst_130 = arith.constant dense<0.000000e+00> : vector<8x32xf32>
    %461 = tpu.matmul %460, %289, %cst_130 {dimension_numbers = #tpu.dot_dimension_numbers<[1], [0], [0], [1], [0, 0, 1, 1], [], []>} : vector<8x32xbf16>, vector<32x32xbf16>, vector<8x32xf32> -> vector<8x32xf32>
    %462 = vector.broadcast %306 : vector<1x32xf32> to vector<8x32xf32>
    %463 = arith.addf %461, %462 : vector<8x32xf32>
    %464 = arith.addf %397, %463 : vector<8x32xf32>
    %cst_131 = arith.constant dense<0.000000e+00> : vector<8xf32>
    %465 = vector.multi_reduction <add>, %464, %cst_131 [1] : vector<8x32xf32> to vector<8xf32>
    %466 = vector.shape_cast %465 : vector<8xf32> to vector<8x1xf32>
    %cst_132 = arith.constant 3.200000e+01 : f32
    %467 = vector.broadcast %cst_132 : f32 to vector<8x1xf32>
    %468 = arith.divf %466, %467 : vector<8x1xf32>
    %469 = vector.broadcast %468 : vector<8x1xf32> to vector<8x32xf32>
    %470 = arith.subf %464, %469 : vector<8x32xf32>
    %471 = arith.mulf %470, %470 : vector<8x32xf32>
    %cst_133 = arith.constant dense<0.000000e+00> : vector<8xf32>
    %472 = vector.multi_reduction <add>, %471, %cst_133 [1] : vector<8x32xf32> to vector<8xf32>
    %473 = vector.shape_cast %472 : vector<8xf32> to vector<8x1xf32>
    %cst_134 = arith.constant 3.200000e+01 : f32
    %474 = vector.broadcast %cst_134 : f32 to vector<8x1xf32>
    %475 = arith.divf %473, %474 : vector<8x1xf32>
    %476 = vector.broadcast %468 : vector<8x1xf32> to vector<8x32xf32>
    %477 = arith.subf %464, %476 : vector<8x32xf32>
    %cst_135 = arith.constant 9.99999974E-6 : f32
    %478 = vector.broadcast %cst_135 : f32 to vector<8x1xf32>
    %479 = arith.addf %475, %478 : vector<8x1xf32>
    %480 = math.rsqrt %479 : vector<8x1xf32>
    %481 = vector.broadcast %480 : vector<8x1xf32> to vector<8x32xf32>
    %482 = arith.mulf %477, %481 : vector<8x32xf32>
    %483 = vector.broadcast %307 : vector<1x32xf32> to vector<8x32xf32>
    %484 = arith.mulf %482, %483 : vector<8x32xf32>
    %485 = vector.broadcast %308 : vector<1x32xf32> to vector<8x32xf32>
    %486 = arith.addf %484, %485 : vector<8x32xf32>
    %487 = arith.truncf %486 : vector<8x32xf32> to vector<8x32xbf16>
    %cst_136 = arith.constant dense<0.000000e+00> : vector<8x64xf32>
    %488 = tpu.matmul %487, %291, %cst_136 {dimension_numbers = #tpu.dot_dimension_numbers<[1], [0], [0], [1], [0, 0, 1, 1], [], []>} : vector<8x32xbf16>, vector<32x64xbf16>, vector<8x64xf32> -> vector<8x64xf32>
    %489 = vector.broadcast %301 : vector<1x64xf32> to vector<8x64xf32>
    %490 = arith.addf %488, %489 : vector<8x64xf32>
    %cst_137 = arith.constant 0.000000e+00 : f32
    %491 = vector.broadcast %cst_137 : f32 to vector<8x64xf32>
    %492 = arith.maximumf %490, %491 : vector<8x64xf32>
    %493 = arith.truncf %492 : vector<8x64xf32> to vector<8x64xbf16>
    %cst_138 = arith.constant dense<0.000000e+00> : vector<8x32xf32>
    %494 = tpu.matmul %493, %293, %cst_138 {dimension_numbers = #tpu.dot_dimension_numbers<[1], [0], [0], [1], [0, 0, 1, 1], [], []>} : vector<8x64xbf16>, vector<64x32xbf16>, vector<8x32xf32> -> vector<8x32xf32>
    %495 = vector.broadcast %309 : vector<1x32xf32> to vector<8x32xf32>
    %496 = arith.addf %494, %495 : vector<8x32xf32>
    %497 = arith.addf %486, %496 : vector<8x32xf32>
    %cst_139 = arith.constant dense<0.000000e+00> : vector<8xf32>
    %498 = vector.multi_reduction <add>, %497, %cst_139 [1] : vector<8x32xf32> to vector<8xf32>
    %499 = vector.shape_cast %498 : vector<8xf32> to vector<8x1xf32>
    %cst_140 = arith.constant 3.200000e+01 : f32
    %500 = vector.broadcast %cst_140 : f32 to vector<8x1xf32>
    %501 = arith.divf %499, %500 : vector<8x1xf32>
    %502 = vector.broadcast %501 : vector<8x1xf32> to vector<8x32xf32>
    %503 = arith.subf %497, %502 : vector<8x32xf32>
    %504 = arith.mulf %503, %503 : vector<8x32xf32>
    %cst_141 = arith.constant dense<0.000000e+00> : vector<8xf32>
    %505 = vector.multi_reduction <add>, %504, %cst_141 [1] : vector<8x32xf32> to vector<8xf32>
    %506 = vector.shape_cast %505 : vector<8xf32> to vector<8x1xf32>
    %cst_142 = arith.constant 3.200000e+01 : f32
    %507 = vector.broadcast %cst_142 : f32 to vector<8x1xf32>
    %508 = arith.divf %506, %507 : vector<8x1xf32>
    %509 = vector.broadcast %501 : vector<8x1xf32> to vector<8x32xf32>
    %510 = arith.subf %497, %509 : vector<8x32xf32>
    %cst_143 = arith.constant 9.99999974E-6 : f32
    %511 = vector.broadcast %cst_143 : f32 to vector<8x1xf32>
    %512 = arith.addf %508, %511 : vector<8x1xf32>
    %513 = math.rsqrt %512 : vector<8x1xf32>
    %514 = vector.broadcast %513 : vector<8x1xf32> to vector<8x32xf32>
    %515 = arith.mulf %510, %514 : vector<8x32xf32>
    %516 = vector.broadcast %310 : vector<1x32xf32> to vector<8x32xf32>
    %517 = arith.mulf %515, %516 : vector<8x32xf32>
    %518 = vector.broadcast %311 : vector<1x32xf32> to vector<8x32xf32>
    %519 = arith.addf %517, %518 : vector<8x32xf32>
    %c1_144 = arith.constant 1 : index
    %c0_145 = arith.constant 0 : index
    %c0_146 = arith.constant 0 : index
    %520 = vector.load %arg9[%c1_144, %c0_145, %c0_146] : memref<2x32x96xbf16, #tpu.memory_space<vmem>>, vector<1x32x96xbf16>
    %521 = vector.shape_cast %520 : vector<1x32x96xbf16> to vector<32x96xbf16>
    %c1_147 = arith.constant 1 : index
    %c0_148 = arith.constant 0 : index
    %c0_149 = arith.constant 0 : index
    %522 = vector.load %arg10[%c1_147, %c0_148, %c0_149] : memref<2x32x32xbf16, #tpu.memory_space<vmem>>, vector<1x32x32xbf16>
    %523 = vector.shape_cast %522 : vector<1x32x32xbf16> to vector<32x32xbf16>
    %c1_150 = arith.constant 1 : index
    %c0_151 = arith.constant 0 : index
    %c0_152 = arith.constant 0 : index
    %524 = vector.load %arg11[%c1_150, %c0_151, %c0_152] : memref<2x32x32xbf16, #tpu.memory_space<vmem>>, vector<1x32x32xbf16>
    %525 = vector.shape_cast %524 : vector<1x32x32xbf16> to vector<32x32xbf16>
    %c1_153 = arith.constant 1 : index
    %c0_154 = arith.constant 0 : index
    %c0_155 = arith.constant 0 : index
    %526 = vector.load %arg12[%c1_153, %c0_154, %c0_155] : memref<2x32x64xbf16, #tpu.memory_space<vmem>>, vector<1x32x64xbf16>
    %527 = vector.shape_cast %526 : vector<1x32x64xbf16> to vector<32x64xbf16>
    %c1_156 = arith.constant 1 : index
    %c0_157 = arith.constant 0 : index
    %c0_158 = arith.constant 0 : index
    %528 = vector.load %arg13[%c1_156, %c0_157, %c0_158] : memref<2x32x32xbf16, #tpu.memory_space<vmem>>, vector<1x32x32xbf16>
    %529 = vector.shape_cast %528 : vector<1x32x32xbf16> to vector<32x32xbf16>
    %c1_159 = arith.constant 1 : index
    %c0_160 = arith.constant 0 : index
    %c0_161 = arith.constant 0 : index
    %530 = vector.load %arg14[%c1_159, %c0_160, %c0_161] : memref<2x32x64xbf16, #tpu.memory_space<vmem>>, vector<1x32x64xbf16>
    %531 = vector.shape_cast %530 : vector<1x32x64xbf16> to vector<32x64xbf16>
    %c1_162 = arith.constant 1 : index
    %c0_163 = arith.constant 0 : index
    %c0_164 = arith.constant 0 : index
    %532 = vector.load %arg15[%c1_162, %c0_163, %c0_164] : memref<2x64x32xbf16, #tpu.memory_space<vmem>>, vector<1x64x32xbf16>
    %533 = vector.shape_cast %532 : vector<1x64x32xbf16> to vector<64x32xbf16>
    %c1_165 = arith.constant 1 : index
    %c0_166 = arith.constant 0 : index
    %c0_167 = arith.constant 0 : index
    %534 = vector.load %arg16[%c1_165, %c0_166, %c0_167] : memref<2x10x32xf32, #tpu.memory_space<vmem>>, vector<1x10x32xf32>
    %535 = vector.shape_cast %534 : vector<1x10x32xf32> to vector<10x32xf32>
    %c1_168 = arith.constant 1 : index
    %c0_169 = arith.constant 0 : index
    %c0_170 = arith.constant 0 : index
    %536 = vector.load %arg17[%c1_168, %c0_169, %c0_170] : memref<2x1x96xf32, #tpu.memory_space<vmem>>, vector<1x1x96xf32>
    %537 = vector.shape_cast %536 : vector<1x1x96xf32> to vector<1x96xf32>
    %c1_171 = arith.constant 1 : index
    %c0_172 = arith.constant 0 : index
    %c0_173 = arith.constant 0 : index
    %538 = vector.load %arg18[%c1_171, %c0_172, %c0_173] : memref<2x1x64xf32, #tpu.memory_space<vmem>>, vector<1x1x64xf32>
    %539 = vector.shape_cast %538 : vector<1x1x64xf32> to vector<1x64xf32>
    %c1_174 = arith.constant 1 : index
    %c0_175 = arith.constant 0 : index
    %c0_176 = arith.constant 0 : index
    %540 = vector.load %arg19[%c1_174, %c0_175, %c0_176] : memref<2x1x64xf32, #tpu.memory_space<vmem>>, vector<1x1x64xf32>
    %541 = vector.shape_cast %540 : vector<1x1x64xf32> to vector<1x64xf32>
    %542 = vector.extract_strided_slice %535 {offsets = [0, 0], sizes = [1, 32], strides = [1, 1]} : vector<10x32xf32> to vector<1x32xf32>
    %543 = vector.extract_strided_slice %535 {offsets = [1, 0], sizes = [1, 32], strides = [1, 1]} : vector<10x32xf32> to vector<1x32xf32>
    %544 = vector.extract_strided_slice %535 {offsets = [2, 0], sizes = [1, 32], strides = [1, 1]} : vector<10x32xf32> to vector<1x32xf32>
    %545 = vector.extract_strided_slice %535 {offsets = [3, 0], sizes = [1, 32], strides = [1, 1]} : vector<10x32xf32> to vector<1x32xf32>
    %546 = vector.extract_strided_slice %535 {offsets = [4, 0], sizes = [1, 32], strides = [1, 1]} : vector<10x32xf32> to vector<1x32xf32>
    %547 = vector.extract_strided_slice %535 {offsets = [5, 0], sizes = [1, 32], strides = [1, 1]} : vector<10x32xf32> to vector<1x32xf32>
    %548 = vector.extract_strided_slice %535 {offsets = [6, 0], sizes = [1, 32], strides = [1, 1]} : vector<10x32xf32> to vector<1x32xf32>
    %549 = vector.extract_strided_slice %535 {offsets = [7, 0], sizes = [1, 32], strides = [1, 1]} : vector<10x32xf32> to vector<1x32xf32>
    %550 = vector.extract_strided_slice %535 {offsets = [8, 0], sizes = [1, 32], strides = [1, 1]} : vector<10x32xf32> to vector<1x32xf32>
    %551 = vector.extract_strided_slice %535 {offsets = [9, 0], sizes = [1, 32], strides = [1, 1]} : vector<10x32xf32> to vector<1x32xf32>
    %552 = arith.truncf %519 : vector<8x32xf32> to vector<8x32xbf16>
    %cst_177 = arith.constant dense<0.000000e+00> : vector<8x96xf32>
    %553 = tpu.matmul %552, %521, %cst_177 {dimension_numbers = #tpu.dot_dimension_numbers<[1], [0], [0], [1], [0, 0, 1, 1], [], []>} : vector<8x32xbf16>, vector<32x96xbf16>, vector<8x96xf32> -> vector<8x96xf32>
    %554 = vector.broadcast %537 : vector<1x96xf32> to vector<8x96xf32>
    %555 = arith.addf %553, %554 : vector<8x96xf32>
    %556 = vector.extract_strided_slice %555 {offsets = [0, 0], sizes = [8, 32], strides = [1, 1]} : vector<8x96xf32> to vector<8x32xf32>
    %557 = vector.extract_strided_slice %555 {offsets = [0, 32], sizes = [8, 32], strides = [1, 1]} : vector<8x96xf32> to vector<8x32xf32>
    %558 = vector.extract_strided_slice %555 {offsets = [0, 64], sizes = [8, 32], strides = [1, 1]} : vector<8x96xf32> to vector<8x32xf32>
    %559 = vector.extract_strided_slice %556 {offsets = [0, 0], sizes = [8, 8], strides = [1, 1]} : vector<8x32xf32> to vector<8x8xf32>
    %560 = vector.extract_strided_slice %556 {offsets = [0, 8], sizes = [8, 8], strides = [1, 1]} : vector<8x32xf32> to vector<8x8xf32>
    %561 = vector.extract_strided_slice %556 {offsets = [0, 16], sizes = [8, 8], strides = [1, 1]} : vector<8x32xf32> to vector<8x8xf32>
    %562 = vector.extract_strided_slice %556 {offsets = [0, 24], sizes = [8, 8], strides = [1, 1]} : vector<8x32xf32> to vector<8x8xf32>
    %563 = vector.shape_cast %559 : vector<8x8xf32> to vector<1x8x8xf32>
    %564 = vector.shape_cast %560 : vector<8x8xf32> to vector<1x8x8xf32>
    %565 = vector.shape_cast %561 : vector<8x8xf32> to vector<1x8x8xf32>
    %566 = vector.shape_cast %562 : vector<8x8xf32> to vector<1x8x8xf32>
    %567 = tpu.concatenate %563, %564, %565, %566 in 0 : vector<1x8x8xf32>, vector<1x8x8xf32>, vector<1x8x8xf32>, vector<1x8x8xf32> -> vector<4x8x8xf32>
    %568 = arith.truncf %567 : vector<4x8x8xf32> to vector<4x8x8xbf16>
    %569 = vector.extract_strided_slice %557 {offsets = [0, 0], sizes = [8, 8], strides = [1, 1]} : vector<8x32xf32> to vector<8x8xf32>
    %570 = vector.extract_strided_slice %557 {offsets = [0, 8], sizes = [8, 8], strides = [1, 1]} : vector<8x32xf32> to vector<8x8xf32>
    %571 = vector.extract_strided_slice %557 {offsets = [0, 16], sizes = [8, 8], strides = [1, 1]} : vector<8x32xf32> to vector<8x8xf32>
    %572 = vector.extract_strided_slice %557 {offsets = [0, 24], sizes = [8, 8], strides = [1, 1]} : vector<8x32xf32> to vector<8x8xf32>
    %573 = vector.shape_cast %569 : vector<8x8xf32> to vector<1x8x8xf32>
    %574 = vector.shape_cast %570 : vector<8x8xf32> to vector<1x8x8xf32>
    %575 = vector.shape_cast %571 : vector<8x8xf32> to vector<1x8x8xf32>
    %576 = vector.shape_cast %572 : vector<8x8xf32> to vector<1x8x8xf32>
    %577 = tpu.concatenate %573, %574, %575, %576 in 0 : vector<1x8x8xf32>, vector<1x8x8xf32>, vector<1x8x8xf32>, vector<1x8x8xf32> -> vector<4x8x8xf32>
    %578 = arith.truncf %577 : vector<4x8x8xf32> to vector<4x8x8xbf16>
    %579 = vector.extract_strided_slice %558 {offsets = [0, 0], sizes = [8, 8], strides = [1, 1]} : vector<8x32xf32> to vector<8x8xf32>
    %580 = vector.extract_strided_slice %558 {offsets = [0, 8], sizes = [8, 8], strides = [1, 1]} : vector<8x32xf32> to vector<8x8xf32>
    %581 = vector.extract_strided_slice %558 {offsets = [0, 16], sizes = [8, 8], strides = [1, 1]} : vector<8x32xf32> to vector<8x8xf32>
    %582 = vector.extract_strided_slice %558 {offsets = [0, 24], sizes = [8, 8], strides = [1, 1]} : vector<8x32xf32> to vector<8x8xf32>
    %583 = vector.shape_cast %579 : vector<8x8xf32> to vector<1x8x8xf32>
    %584 = vector.shape_cast %580 : vector<8x8xf32> to vector<1x8x8xf32>
    %585 = vector.shape_cast %581 : vector<8x8xf32> to vector<1x8x8xf32>
    %586 = vector.shape_cast %582 : vector<8x8xf32> to vector<1x8x8xf32>
    %587 = tpu.concatenate %583, %584, %585, %586 in 0 : vector<1x8x8xf32>, vector<1x8x8xf32>, vector<1x8x8xf32>, vector<1x8x8xf32> -> vector<4x8x8xf32>
    %588 = arith.truncf %587 : vector<4x8x8xf32> to vector<4x8x8xbf16>
    "tpu.trace_start"() <{level = 10 : i32, message = "hqd,hkd->hqk"}> : () -> ()
    %cst_178 = arith.constant dense<0.000000e+00> : vector<4x8x8xf32>
    %589 = tpu.matmul %568, %578, %cst_178 {dimension_numbers = #tpu.dot_dimension_numbers<[2], [2], [1], [1], [0, 0, 0, 1, 1, 1], [0], [0]>} : vector<4x8x8xbf16>, vector<4x8x8xbf16>, vector<4x8x8xf32> -> vector<4x8x8xf32>
    "tpu.trace_stop"() : () -> ()
    %cst_179 = arith.constant dense<0xFF800000> : vector<4x8xf32>
    %590 = vector.multi_reduction <maximumf>, %589, %cst_179 [2] : vector<4x8x8xf32> to vector<4x8xf32>
    %591 = vector.shape_cast %590 : vector<4x8xf32> to vector<4x8x1xf32>
    %592 = vector.broadcast %591 : vector<4x8x1xf32> to vector<4x8x8xf32>
    %593 = arith.subf %589, %592 : vector<4x8x8xf32>
    %594 = math.exp %593 : vector<4x8x8xf32>
    %cst_180 = arith.constant dense<0.000000e+00> : vector<4x8xf32>
    %595 = vector.multi_reduction <add>, %594, %cst_180 [2] : vector<4x8x8xf32> to vector<4x8xf32>
    %596 = vector.shape_cast %595 : vector<4x8xf32> to vector<4x8x1xf32>
    %597 = tpu.reciprocal %596 {approx = true} : vector<4x8x1xf32> -> vector<4x8x1xf32>
    %598 = vector.broadcast %597 : vector<4x8x1xf32> to vector<4x8x8xf32>
    %599 = arith.mulf %594, %598 : vector<4x8x8xf32>
    %600 = arith.truncf %599 : vector<4x8x8xf32> to vector<4x8x8xbf16>
    "tpu.trace_start"() <{level = 10 : i32, message = "hqk,hkd->hqd"}> : () -> ()
    %cst_181 = arith.constant dense<0.000000e+00> : vector<4x8x8xf32>
    %601 = tpu.matmul %600, %588, %cst_181 {dimension_numbers = #tpu.dot_dimension_numbers<[2], [1], [1], [2], [0, 0, 0, 1, 1, 2], [0], [0]>} : vector<4x8x8xbf16>, vector<4x8x8xbf16>, vector<4x8x8xf32> -> vector<4x8x8xf32>
    "tpu.trace_stop"() : () -> ()
    %602 = vector.extract_strided_slice %601 {offsets = [0, 0, 0], sizes = [1, 8, 8], strides = [1, 1, 1]} : vector<4x8x8xf32> to vector<1x8x8xf32>
    %603 = vector.shape_cast %602 : vector<1x8x8xf32> to vector<8x8xf32>
    %604 = vector.extract_strided_slice %601 {offsets = [1, 0, 0], sizes = [1, 8, 8], strides = [1, 1, 1]} : vector<4x8x8xf32> to vector<1x8x8xf32>
    %605 = vector.shape_cast %604 : vector<1x8x8xf32> to vector<8x8xf32>
    %606 = vector.extract_strided_slice %601 {offsets = [2, 0, 0], sizes = [1, 8, 8], strides = [1, 1, 1]} : vector<4x8x8xf32> to vector<1x8x8xf32>
    %607 = vector.shape_cast %606 : vector<1x8x8xf32> to vector<8x8xf32>
    %608 = vector.extract_strided_slice %601 {offsets = [3, 0, 0], sizes = [1, 8, 8], strides = [1, 1, 1]} : vector<4x8x8xf32> to vector<1x8x8xf32>
    %609 = vector.shape_cast %608 : vector<1x8x8xf32> to vector<8x8xf32>
    %610 = tpu.concatenate %603, %605, %607, %609 in 1 : vector<8x8xf32>, vector<8x8xf32>, vector<8x8xf32>, vector<8x8xf32> -> vector<8x32xf32>
    %611 = arith.truncf %610 : vector<8x32xf32> to vector<8x32xbf16>
    %cst_182 = arith.constant dense<0.000000e+00> : vector<8x32xf32>
    %612 = tpu.matmul %611, %523, %cst_182 {dimension_numbers = #tpu.dot_dimension_numbers<[1], [0], [0], [1], [0, 0, 1, 1], [], []>} : vector<8x32xbf16>, vector<32x32xbf16>, vector<8x32xf32> -> vector<8x32xf32>
    %613 = vector.broadcast %542 : vector<1x32xf32> to vector<8x32xf32>
    %614 = arith.addf %612, %613 : vector<8x32xf32>
    %615 = arith.addf %519, %614 : vector<8x32xf32>
    %cst_183 = arith.constant dense<0.000000e+00> : vector<8xf32>
    %616 = vector.multi_reduction <add>, %615, %cst_183 [1] : vector<8x32xf32> to vector<8xf32>
    %617 = vector.shape_cast %616 : vector<8xf32> to vector<8x1xf32>
    %cst_184 = arith.constant 3.200000e+01 : f32
    %618 = vector.broadcast %cst_184 : f32 to vector<8x1xf32>
    %619 = arith.divf %617, %618 : vector<8x1xf32>
    %620 = vector.broadcast %619 : vector<8x1xf32> to vector<8x32xf32>
    %621 = arith.subf %615, %620 : vector<8x32xf32>
    %622 = arith.mulf %621, %621 : vector<8x32xf32>
    %cst_185 = arith.constant dense<0.000000e+00> : vector<8xf32>
    %623 = vector.multi_reduction <add>, %622, %cst_185 [1] : vector<8x32xf32> to vector<8xf32>
    %624 = vector.shape_cast %623 : vector<8xf32> to vector<8x1xf32>
    %cst_186 = arith.constant 3.200000e+01 : f32
    %625 = vector.broadcast %cst_186 : f32 to vector<8x1xf32>
    %626 = arith.divf %624, %625 : vector<8x1xf32>
    %627 = vector.broadcast %619 : vector<8x1xf32> to vector<8x32xf32>
    %628 = arith.subf %615, %627 : vector<8x32xf32>
    %cst_187 = arith.constant 9.99999974E-6 : f32
    %629 = vector.broadcast %cst_187 : f32 to vector<8x1xf32>
    %630 = arith.addf %626, %629 : vector<8x1xf32>
    %631 = math.rsqrt %630 : vector<8x1xf32>
    %632 = vector.broadcast %631 : vector<8x1xf32> to vector<8x32xf32>
    %633 = arith.mulf %628, %632 : vector<8x32xf32>
    %634 = vector.broadcast %543 : vector<1x32xf32> to vector<8x32xf32>
    %635 = arith.mulf %633, %634 : vector<8x32xf32>
    %636 = vector.broadcast %544 : vector<1x32xf32> to vector<8x32xf32>
    %637 = arith.addf %635, %636 : vector<8x32xf32>
    %638 = arith.truncf %637 : vector<8x32xf32> to vector<8x32xbf16>
    %cst_188 = arith.constant dense<0.000000e+00> : vector<8x32xf32>
    %639 = tpu.matmul %638, %525, %cst_188 {dimension_numbers = #tpu.dot_dimension_numbers<[1], [0], [0], [1], [0, 0, 1, 1], [], []>} : vector<8x32xbf16>, vector<32x32xbf16>, vector<8x32xf32> -> vector<8x32xf32>
    %640 = vector.broadcast %545 : vector<1x32xf32> to vector<8x32xf32>
    %641 = arith.addf %639, %640 : vector<8x32xf32>
    %642 = arith.truncf %279 : vector<8x32xf32> to vector<8x32xbf16>
    %cst_189 = arith.constant dense<0.000000e+00> : vector<8x64xf32>
    %643 = tpu.matmul %642, %527, %cst_189 {dimension_numbers = #tpu.dot_dimension_numbers<[1], [0], [0], [1], [0, 0, 1, 1], [], []>} : vector<8x32xbf16>, vector<32x64xbf16>, vector<8x64xf32> -> vector<8x64xf32>
    %644 = vector.broadcast %539 : vector<1x64xf32> to vector<8x64xf32>
    %645 = arith.addf %643, %644 : vector<8x64xf32>
    %646 = vector.extract_strided_slice %645 {offsets = [0, 0], sizes = [8, 32], strides = [1, 1]} : vector<8x64xf32> to vector<8x32xf32>
    %647 = vector.extract_strided_slice %645 {offsets = [0, 32], sizes = [8, 32], strides = [1, 1]} : vector<8x64xf32> to vector<8x32xf32>
    %648 = vector.extract_strided_slice %641 {offsets = [0, 0], sizes = [8, 8], strides = [1, 1]} : vector<8x32xf32> to vector<8x8xf32>
    %649 = vector.extract_strided_slice %641 {offsets = [0, 8], sizes = [8, 8], strides = [1, 1]} : vector<8x32xf32> to vector<8x8xf32>
    %650 = vector.extract_strided_slice %641 {offsets = [0, 16], sizes = [8, 8], strides = [1, 1]} : vector<8x32xf32> to vector<8x8xf32>
    %651 = vector.extract_strided_slice %641 {offsets = [0, 24], sizes = [8, 8], strides = [1, 1]} : vector<8x32xf32> to vector<8x8xf32>
    %652 = vector.shape_cast %648 : vector<8x8xf32> to vector<1x8x8xf32>
    %653 = vector.shape_cast %649 : vector<8x8xf32> to vector<1x8x8xf32>
    %654 = vector.shape_cast %650 : vector<8x8xf32> to vector<1x8x8xf32>
    %655 = vector.shape_cast %651 : vector<8x8xf32> to vector<1x8x8xf32>
    %656 = tpu.concatenate %652, %653, %654, %655 in 0 : vector<1x8x8xf32>, vector<1x8x8xf32>, vector<1x8x8xf32>, vector<1x8x8xf32> -> vector<4x8x8xf32>
    %657 = arith.truncf %656 : vector<4x8x8xf32> to vector<4x8x8xbf16>
    %658 = vector.extract_strided_slice %646 {offsets = [0, 0], sizes = [8, 8], strides = [1, 1]} : vector<8x32xf32> to vector<8x8xf32>
    %659 = vector.extract_strided_slice %646 {offsets = [0, 8], sizes = [8, 8], strides = [1, 1]} : vector<8x32xf32> to vector<8x8xf32>
    %660 = vector.extract_strided_slice %646 {offsets = [0, 16], sizes = [8, 8], strides = [1, 1]} : vector<8x32xf32> to vector<8x8xf32>
    %661 = vector.extract_strided_slice %646 {offsets = [0, 24], sizes = [8, 8], strides = [1, 1]} : vector<8x32xf32> to vector<8x8xf32>
    %662 = vector.shape_cast %658 : vector<8x8xf32> to vector<1x8x8xf32>
    %663 = vector.shape_cast %659 : vector<8x8xf32> to vector<1x8x8xf32>
    %664 = vector.shape_cast %660 : vector<8x8xf32> to vector<1x8x8xf32>
    %665 = vector.shape_cast %661 : vector<8x8xf32> to vector<1x8x8xf32>
    %666 = tpu.concatenate %662, %663, %664, %665 in 0 : vector<1x8x8xf32>, vector<1x8x8xf32>, vector<1x8x8xf32>, vector<1x8x8xf32> -> vector<4x8x8xf32>
    %667 = arith.truncf %666 : vector<4x8x8xf32> to vector<4x8x8xbf16>
    %668 = vector.extract_strided_slice %647 {offsets = [0, 0], sizes = [8, 8], strides = [1, 1]} : vector<8x32xf32> to vector<8x8xf32>
    %669 = vector.extract_strided_slice %647 {offsets = [0, 8], sizes = [8, 8], strides = [1, 1]} : vector<8x32xf32> to vector<8x8xf32>
    %670 = vector.extract_strided_slice %647 {offsets = [0, 16], sizes = [8, 8], strides = [1, 1]} : vector<8x32xf32> to vector<8x8xf32>
    %671 = vector.extract_strided_slice %647 {offsets = [0, 24], sizes = [8, 8], strides = [1, 1]} : vector<8x32xf32> to vector<8x8xf32>
    %672 = vector.shape_cast %668 : vector<8x8xf32> to vector<1x8x8xf32>
    %673 = vector.shape_cast %669 : vector<8x8xf32> to vector<1x8x8xf32>
    %674 = vector.shape_cast %670 : vector<8x8xf32> to vector<1x8x8xf32>
    %675 = vector.shape_cast %671 : vector<8x8xf32> to vector<1x8x8xf32>
    %676 = tpu.concatenate %672, %673, %674, %675 in 0 : vector<1x8x8xf32>, vector<1x8x8xf32>, vector<1x8x8xf32>, vector<1x8x8xf32> -> vector<4x8x8xf32>
    %677 = arith.truncf %676 : vector<4x8x8xf32> to vector<4x8x8xbf16>
    "tpu.trace_start"() <{level = 10 : i32, message = "hqd,hkd->hqk"}> : () -> ()
    %cst_190 = arith.constant dense<0.000000e+00> : vector<4x8x8xf32>
    %678 = tpu.matmul %657, %667, %cst_190 {dimension_numbers = #tpu.dot_dimension_numbers<[2], [2], [1], [1], [0, 0, 0, 1, 1, 1], [0], [0]>} : vector<4x8x8xbf16>, vector<4x8x8xbf16>, vector<4x8x8xf32> -> vector<4x8x8xf32>
    "tpu.trace_stop"() : () -> ()
    %cst_191 = arith.constant dense<0xFF800000> : vector<4x8xf32>
    %679 = vector.multi_reduction <maximumf>, %678, %cst_191 [2] : vector<4x8x8xf32> to vector<4x8xf32>
    %680 = vector.shape_cast %679 : vector<4x8xf32> to vector<4x8x1xf32>
    %681 = vector.broadcast %680 : vector<4x8x1xf32> to vector<4x8x8xf32>
    %682 = arith.subf %678, %681 : vector<4x8x8xf32>
    %683 = math.exp %682 : vector<4x8x8xf32>
    %cst_192 = arith.constant dense<0.000000e+00> : vector<4x8xf32>
    %684 = vector.multi_reduction <add>, %683, %cst_192 [2] : vector<4x8x8xf32> to vector<4x8xf32>
    %685 = vector.shape_cast %684 : vector<4x8xf32> to vector<4x8x1xf32>
    %686 = tpu.reciprocal %685 {approx = true} : vector<4x8x1xf32> -> vector<4x8x1xf32>
    %687 = vector.broadcast %686 : vector<4x8x1xf32> to vector<4x8x8xf32>
    %688 = arith.mulf %683, %687 : vector<4x8x8xf32>
    %689 = arith.truncf %688 : vector<4x8x8xf32> to vector<4x8x8xbf16>
    "tpu.trace_start"() <{level = 10 : i32, message = "hqk,hkd->hqd"}> : () -> ()
    %cst_193 = arith.constant dense<0.000000e+00> : vector<4x8x8xf32>
    %690 = tpu.matmul %689, %677, %cst_193 {dimension_numbers = #tpu.dot_dimension_numbers<[2], [1], [1], [2], [0, 0, 0, 1, 1, 2], [0], [0]>} : vector<4x8x8xbf16>, vector<4x8x8xbf16>, vector<4x8x8xf32> -> vector<4x8x8xf32>
    "tpu.trace_stop"() : () -> ()
    %691 = vector.extract_strided_slice %690 {offsets = [0, 0, 0], sizes = [1, 8, 8], strides = [1, 1, 1]} : vector<4x8x8xf32> to vector<1x8x8xf32>
    %692 = vector.shape_cast %691 : vector<1x8x8xf32> to vector<8x8xf32>
    %693 = vector.extract_strided_slice %690 {offsets = [1, 0, 0], sizes = [1, 8, 8], strides = [1, 1, 1]} : vector<4x8x8xf32> to vector<1x8x8xf32>
    %694 = vector.shape_cast %693 : vector<1x8x8xf32> to vector<8x8xf32>
    %695 = vector.extract_strided_slice %690 {offsets = [2, 0, 0], sizes = [1, 8, 8], strides = [1, 1, 1]} : vector<4x8x8xf32> to vector<1x8x8xf32>
    %696 = vector.shape_cast %695 : vector<1x8x8xf32> to vector<8x8xf32>
    %697 = vector.extract_strided_slice %690 {offsets = [3, 0, 0], sizes = [1, 8, 8], strides = [1, 1, 1]} : vector<4x8x8xf32> to vector<1x8x8xf32>
    %698 = vector.shape_cast %697 : vector<1x8x8xf32> to vector<8x8xf32>
    %699 = tpu.concatenate %692, %694, %696, %698 in 1 : vector<8x8xf32>, vector<8x8xf32>, vector<8x8xf32>, vector<8x8xf32> -> vector<8x32xf32>
    %700 = arith.truncf %699 : vector<8x32xf32> to vector<8x32xbf16>
    %cst_194 = arith.constant dense<0.000000e+00> : vector<8x32xf32>
    %701 = tpu.matmul %700, %529, %cst_194 {dimension_numbers = #tpu.dot_dimension_numbers<[1], [0], [0], [1], [0, 0, 1, 1], [], []>} : vector<8x32xbf16>, vector<32x32xbf16>, vector<8x32xf32> -> vector<8x32xf32>
    %702 = vector.broadcast %546 : vector<1x32xf32> to vector<8x32xf32>
    %703 = arith.addf %701, %702 : vector<8x32xf32>
    %704 = arith.addf %637, %703 : vector<8x32xf32>
    %cst_195 = arith.constant dense<0.000000e+00> : vector<8xf32>
    %705 = vector.multi_reduction <add>, %704, %cst_195 [1] : vector<8x32xf32> to vector<8xf32>
    %706 = vector.shape_cast %705 : vector<8xf32> to vector<8x1xf32>
    %cst_196 = arith.constant 3.200000e+01 : f32
    %707 = vector.broadcast %cst_196 : f32 to vector<8x1xf32>
    %708 = arith.divf %706, %707 : vector<8x1xf32>
    %709 = vector.broadcast %708 : vector<8x1xf32> to vector<8x32xf32>
    %710 = arith.subf %704, %709 : vector<8x32xf32>
    %711 = arith.mulf %710, %710 : vector<8x32xf32>
    %cst_197 = arith.constant dense<0.000000e+00> : vector<8xf32>
    %712 = vector.multi_reduction <add>, %711, %cst_197 [1] : vector<8x32xf32> to vector<8xf32>
    %713 = vector.shape_cast %712 : vector<8xf32> to vector<8x1xf32>
    %cst_198 = arith.constant 3.200000e+01 : f32
    %714 = vector.broadcast %cst_198 : f32 to vector<8x1xf32>
    %715 = arith.divf %713, %714 : vector<8x1xf32>
    %716 = vector.broadcast %708 : vector<8x1xf32> to vector<8x32xf32>
    %717 = arith.subf %704, %716 : vector<8x32xf32>
    %cst_199 = arith.constant 9.99999974E-6 : f32
    %718 = vector.broadcast %cst_199 : f32 to vector<8x1xf32>
    %719 = arith.addf %715, %718 : vector<8x1xf32>
    %720 = math.rsqrt %719 : vector<8x1xf32>
    %721 = vector.broadcast %720 : vector<8x1xf32> to vector<8x32xf32>
    %722 = arith.mulf %717, %721 : vector<8x32xf32>
    %723 = vector.broadcast %547 : vector<1x32xf32> to vector<8x32xf32>
    %724 = arith.mulf %722, %723 : vector<8x32xf32>
    %725 = vector.broadcast %548 : vector<1x32xf32> to vector<8x32xf32>
    %726 = arith.addf %724, %725 : vector<8x32xf32>
    %727 = arith.truncf %726 : vector<8x32xf32> to vector<8x32xbf16>
    %cst_200 = arith.constant dense<0.000000e+00> : vector<8x64xf32>
    %728 = tpu.matmul %727, %531, %cst_200 {dimension_numbers = #tpu.dot_dimension_numbers<[1], [0], [0], [1], [0, 0, 1, 1], [], []>} : vector<8x32xbf16>, vector<32x64xbf16>, vector<8x64xf32> -> vector<8x64xf32>
    %729 = vector.broadcast %541 : vector<1x64xf32> to vector<8x64xf32>
    %730 = arith.addf %728, %729 : vector<8x64xf32>
    %cst_201 = arith.constant 0.000000e+00 : f32
    %731 = vector.broadcast %cst_201 : f32 to vector<8x64xf32>
    %732 = arith.maximumf %730, %731 : vector<8x64xf32>
    %733 = arith.truncf %732 : vector<8x64xf32> to vector<8x64xbf16>
    %cst_202 = arith.constant dense<0.000000e+00> : vector<8x32xf32>
    %734 = tpu.matmul %733, %533, %cst_202 {dimension_numbers = #tpu.dot_dimension_numbers<[1], [0], [0], [1], [0, 0, 1, 1], [], []>} : vector<8x64xbf16>, vector<64x32xbf16>, vector<8x32xf32> -> vector<8x32xf32>
    %735 = vector.broadcast %549 : vector<1x32xf32> to vector<8x32xf32>
    %736 = arith.addf %734, %735 : vector<8x32xf32>
    %737 = arith.addf %726, %736 : vector<8x32xf32>
    %cst_203 = arith.constant dense<0.000000e+00> : vector<8xf32>
    %738 = vector.multi_reduction <add>, %737, %cst_203 [1] : vector<8x32xf32> to vector<8xf32>
    %739 = vector.shape_cast %738 : vector<8xf32> to vector<8x1xf32>
    %cst_204 = arith.constant 3.200000e+01 : f32
    %740 = vector.broadcast %cst_204 : f32 to vector<8x1xf32>
    %741 = arith.divf %739, %740 : vector<8x1xf32>
    %742 = vector.broadcast %741 : vector<8x1xf32> to vector<8x32xf32>
    %743 = arith.subf %737, %742 : vector<8x32xf32>
    %744 = arith.mulf %743, %743 : vector<8x32xf32>
    %cst_205 = arith.constant dense<0.000000e+00> : vector<8xf32>
    %745 = vector.multi_reduction <add>, %744, %cst_205 [1] : vector<8x32xf32> to vector<8xf32>
    %746 = vector.shape_cast %745 : vector<8xf32> to vector<8x1xf32>
    %cst_206 = arith.constant 3.200000e+01 : f32
    %747 = vector.broadcast %cst_206 : f32 to vector<8x1xf32>
    %748 = arith.divf %746, %747 : vector<8x1xf32>
    %749 = vector.broadcast %741 : vector<8x1xf32> to vector<8x32xf32>
    %750 = arith.subf %737, %749 : vector<8x32xf32>
    %cst_207 = arith.constant 9.99999974E-6 : f32
    %751 = vector.broadcast %cst_207 : f32 to vector<8x1xf32>
    %752 = arith.addf %748, %751 : vector<8x1xf32>
    %753 = math.rsqrt %752 : vector<8x1xf32>
    %754 = vector.broadcast %753 : vector<8x1xf32> to vector<8x32xf32>
    %755 = arith.mulf %750, %754 : vector<8x32xf32>
    %756 = vector.broadcast %550 : vector<1x32xf32> to vector<8x32xf32>
    %757 = arith.mulf %755, %756 : vector<8x32xf32>
    %758 = vector.broadcast %551 : vector<1x32xf32> to vector<8x32xf32>
    %759 = arith.addf %757, %758 : vector<8x32xf32>
    %cst_208 = arith.constant 0.000000e+00 : f32
    %760 = vector.broadcast %cst_208 : f32 to vector<8x96xf32>
    %761 = tpu.concatenate %759, %760 in 1 : vector<8x32xf32>, vector<8x96xf32> -> vector<8x128xf32>
    %c0_209 = arith.constant 0 : index
    %c0_210 = arith.constant 0 : index
    %c0_211 = arith.constant 0 : index
    %762 = vector.load %arg20[%c0_209, %c0_210, %c0_211] : memref<1x8x128xf32, #tpu.memory_space<vmem>>, vector<1x8x128xf32>
    %763 = vector.shape_cast %762 : vector<1x8x128xf32> to vector<8x128xf32>
    %764 = vector.shape_cast %761 : vector<8x128xf32> to vector<1x8x128xf32>
    tpu.vector_store %arg20[%c0_209, %c0_210, %c0_211], %764 {strides = array<i32>} : memref<1x8x128xf32, #tpu.memory_space<vmem>>, vector<1x8x128xf32>,
    return
  }
  func.func @transform_0(%arg0: i32) -> (i32, i32, i32) {
    %c0_i32 = arith.constant 0 : i32
    %c0_i32_0 = arith.constant 0 : i32
    %c0_i32_1 = arith.constant 0 : i32
    return %arg0, %c0_i32, %c0_i32_0 : i32, i32, i32
  }
  func.func @transform_1(%arg0: i32) -> (i32, i32, i32) {
    %c0_i32 = arith.constant 0 : i32
    %c0_i32_0 = arith.constant 0 : i32
    %c0_i32_1 = arith.constant 0 : i32
    %c0_i32_2 = arith.constant 0 : i32
    return %c0_i32, %c0_i32_0, %c0_i32_1 : i32, i32, i32
  }
  func.func @transform_2(%arg0: i32) -> (i32, i32, i32) {
    %c0_i32 = arith.constant 0 : i32
    %c0_i32_0 = arith.constant 0 : i32
    %c0_i32_1 = arith.constant 0 : i32
    %c0_i32_2 = arith.constant 0 : i32
    return %c0_i32, %c0_i32_0, %c0_i32_1 : i32, i32, i32
  }
  func.func @transform_3(%arg0: i32) -> (i32, i32, i32) {
    %c0_i32 = arith.constant 0 : i32
    %c0_i32_0 = arith.constant 0 : i32
    %c0_i32_1 = arith.constant 0 : i32
    %c0_i32_2 = arith.constant 0 : i32
    return %c0_i32, %c0_i32_0, %c0_i32_1 : i32, i32, i32
  }
  func.func @transform_4(%arg0: i32) -> (i32, i32, i32) {
    %c0_i32 = arith.constant 0 : i32
    %c0_i32_0 = arith.constant 0 : i32
    %c0_i32_1 = arith.constant 0 : i32
    %c0_i32_2 = arith.constant 0 : i32
    return %c0_i32, %c0_i32_0, %c0_i32_1 : i32, i32, i32
  }
  func.func @transform_5(%arg0: i32) -> (i32, i32, i32) {
    %c0_i32 = arith.constant 0 : i32
    %c0_i32_0 = arith.constant 0 : i32
    %c0_i32_1 = arith.constant 0 : i32
    %c0_i32_2 = arith.constant 0 : i32
    return %c0_i32, %c0_i32_0, %c0_i32_1 : i32, i32, i32
  }
  func.func @transform_6(%arg0: i32) -> (i32, i32, i32) {
    %c0_i32 = arith.constant 0 : i32
    %c0_i32_0 = arith.constant 0 : i32
    %c0_i32_1 = arith.constant 0 : i32
    %c0_i32_2 = arith.constant 0 : i32
    return %c0_i32, %c0_i32_0, %c0_i32_1 : i32, i32, i32
  }
  func.func @transform_7(%arg0: i32) -> (i32, i32, i32) {
    %c0_i32 = arith.constant 0 : i32
    %c0_i32_0 = arith.constant 0 : i32
    %c0_i32_1 = arith.constant 0 : i32
    %c0_i32_2 = arith.constant 0 : i32
    return %c0_i32, %c0_i32_0, %c0_i32_1 : i32, i32, i32
  }
  func.func @transform_8(%arg0: i32) -> (i32, i32, i32) {
    %c0_i32 = arith.constant 0 : i32
    %c0_i32_0 = arith.constant 0 : i32
    %c0_i32_1 = arith.constant 0 : i32
    %c0_i32_2 = arith.constant 0 : i32
    return %c0_i32, %c0_i32_0, %c0_i32_1 : i32, i32, i32
  }
  func.func @transform_9(%arg0: i32) -> (i32, i32, i32) {
    %c0_i32 = arith.constant 0 : i32
    %c0_i32_0 = arith.constant 0 : i32
    %c0_i32_1 = arith.constant 0 : i32
    %c0_i32_2 = arith.constant 0 : i32
    return %c0_i32, %c0_i32_0, %c0_i32_1 : i32, i32, i32
  }
  func.func @transform_10(%arg0: i32) -> (i32, i32, i32) {
    %c0_i32 = arith.constant 0 : i32
    %c0_i32_0 = arith.constant 0 : i32
    %c0_i32_1 = arith.constant 0 : i32
    %c0_i32_2 = arith.constant 0 : i32
    return %c0_i32, %c0_i32_0, %c0_i32_1 : i32, i32, i32
  }
  func.func @transform_11(%arg0: i32) -> (i32, i32, i32) {
    %c0_i32 = arith.constant 0 : i32
    %c0_i32_0 = arith.constant 0 : i32
    %c0_i32_1 = arith.constant 0 : i32
    %c0_i32_2 = arith.constant 0 : i32
    return %c0_i32, %c0_i32_0, %c0_i32_1 : i32, i32, i32
  }
  func.func @transform_12(%arg0: i32) -> (i32, i32, i32) {
    %c0_i32 = arith.constant 0 : i32
    %c0_i32_0 = arith.constant 0 : i32
    %c0_i32_1 = arith.constant 0 : i32
    %c0_i32_2 = arith.constant 0 : i32
    return %c0_i32, %c0_i32_0, %c0_i32_1 : i32, i32, i32
  }
  func.func @transform_13(%arg0: i32) -> (i32, i32, i32) {
    %c0_i32 = arith.constant 0 : i32
    %c0_i32_0 = arith.constant 0 : i32
    %c0_i32_1 = arith.constant 0 : i32
    %c0_i32_2 = arith.constant 0 : i32
    return %c0_i32, %c0_i32_0, %c0_i32_1 : i32, i32, i32
  }
  func.func @transform_14(%arg0: i32) -> (i32, i32, i32) {
    %c0_i32 = arith.constant 0 : i32
    %c0_i32_0 = arith.constant 0 : i32
    %c0_i32_1 = arith.constant 0 : i32
    %c0_i32_2 = arith.constant 0 : i32
    return %c0_i32, %c0_i32_0, %c0_i32_1 : i32, i32, i32
  }
  func.func @transform_15(%arg0: i32) -> (i32, i32, i32) {
    %c0_i32 = arith.constant 0 : i32
    %c0_i32_0 = arith.constant 0 : i32
    %c0_i32_1 = arith.constant 0 : i32
    %c0_i32_2 = arith.constant 0 : i32
    return %c0_i32, %c0_i32_0, %c0_i32_1 : i32, i32, i32
  }
  func.func @transform_16(%arg0: i32) -> (i32, i32, i32) {
    %c0_i32 = arith.constant 0 : i32
    %c0_i32_0 = arith.constant 0 : i32
    %c0_i32_1 = arith.constant 0 : i32
    %c0_i32_2 = arith.constant 0 : i32
    return %c0_i32, %c0_i32_0, %c0_i32_1 : i32, i32, i32
  }
  func.func @transform_17(%arg0: i32) -> (i32, i32, i32) {
    %c0_i32 = arith.constant 0 : i32
    %c0_i32_0 = arith.constant 0 : i32
    %c0_i32_1 = arith.constant 0 : i32
    %c0_i32_2 = arith.constant 0 : i32
    return %c0_i32, %c0_i32_0, %c0_i32_1 : i32, i32, i32
  }
  func.func @transform_18(%arg0: i32) -> (i32, i32, i32) {
    %c0_i32 = arith.constant 0 : i32
    %c0_i32_0 = arith.constant 0 : i32
    %c0_i32_1 = arith.constant 0 : i32
    %c0_i32_2 = arith.constant 0 : i32
    return %c0_i32, %c0_i32_0, %c0_i32_1 : i32, i32, i32
  }
  func.func @transform_19(%arg0: i32) -> (i32, i32, i32) {
    %c0_i32 = arith.constant 0 : i32
    %c0_i32_0 = arith.constant 0 : i32
    %c0_i32_1 = arith.constant 0 : i32
    return %arg0, %c0_i32, %c0_i32_0 : i32, i32, i32
  }
}

module attributes {stable_mosaic.version = 11 : i64} {
  func.func @_transformer_kernel(%arg0: i32, %arg1: memref<1x8x32xf32, #tpu.memory_space<vmem>>, %arg2: memref<2x32x96xbf16, #tpu.memory_space<vmem>>, %arg3: memref<2x32x32xbf16, #tpu.memory_space<vmem>>, %arg4: memref<2x32x64xbf16, #tpu.memory_space<vmem>>, %arg5: memref<2x64x32xbf16, #tpu.memory_space<vmem>>, %arg6: memref<2x6x32xf32, #tpu.memory_space<vmem>>, %arg7: memref<2x1x96xf32, #tpu.memory_space<vmem>>, %arg8: memref<2x1x64xf32, #tpu.memory_space<vmem>>, %arg9: memref<2x32x96xbf16, #tpu.memory_space<vmem>>, %arg10: memref<2x32x32xbf16, #tpu.memory_space<vmem>>, %arg11: memref<2x32x32xbf16, #tpu.memory_space<vmem>>, %arg12: memref<2x32x64xbf16, #tpu.memory_space<vmem>>, %arg13: memref<2x32x32xbf16, #tpu.memory_space<vmem>>, %arg14: memref<2x32x64xbf16, #tpu.memory_space<vmem>>, %arg15: memref<2x64x32xbf16, #tpu.memory_space<vmem>>, %arg16: memref<2x10x32xf32, #tpu.memory_space<vmem>>, %arg17: memref<2x1x96xf32, #tpu.memory_space<vmem>>, %arg18: memref<2x1x64xf32, #tpu.memory_space<vmem>>, %arg19: memref<2x1x64xf32, #tpu.memory_space<vmem>>, %arg20: memref<1x8x128xf32, #tpu.memory_space<vmem>>) attributes {dimension_semantics = [#tpu.dimension_semantics<parallel>], iteration_bounds = array<i64: 2>, scalar_prefetch = 0 : i64, scratch_operands = 0 : i64, tpu.core_type = #tpu.core_type<tc>, window_params = [{transform_indices = @transform_0, window_bounds = array<i64: 1, 8, 32>}, {pipeline_mode = #tpu.pipeline_mode<synchronous>, transform_indices = @transform_1, window_bounds = array<i64: 2, 32, 96>}, {pipeline_mode = #tpu.pipeline_mode<synchronous>, transform_indices = @transform_2, window_bounds = array<i64: 2, 32, 32>}, {pipeline_mode = #tpu.pipeline_mode<synchronous>, transform_indices = @transform_3, window_bounds = array<i64: 2, 32, 64>}, {pipeline_mode = #tpu.pipeline_mode<synchronous>, transform_indices = @transform_4, window_bounds = array<i64: 2, 64, 32>}, {pipeline_mode = #tpu.pipeline_mode<synchronous>, transform_indices = @transform_5, window_bounds = array<i64: 2, 6, 32>}, {pipeline_mode = #tpu.pipeline_mode<synchronous>, transform_indices = @transform_6, window_bounds = array<i64: 2, 1, 96>}, {pipeline_mode = #tpu.pipeline_mode<synchronous>, transform_indices = @transform_7, window_bounds = array<i64: 2, 1, 64>}, {pipeline_mode = #tpu.pipeline_mode<synchronous>, transform_indices = @transform_8, window_bounds = array<i64: 2, 32, 96>}, {pipeline_mode = #tpu.pipeline_mode<synchronous>, transform_indices = @transform_9, window_bounds = array<i64: 2, 32, 32>}, {pipeline_mode = #tpu.pipeline_mode<synchronous>, transform_indices = @transform_10, window_bounds = array<i64: 2, 32, 32>}, {pipeline_mode = #tpu.pipeline_mode<synchronous>, transform_indices = @transform_11, window_bounds = array<i64: 2, 32, 64>}, {pipeline_mode = #tpu.pipeline_mode<synchronous>, transform_indices = @transform_12, window_bounds = array<i64: 2, 32, 32>}, {pipeline_mode = #tpu.pipeline_mode<synchronous>, transform_indices = @transform_13, window_bounds = array<i64: 2, 32, 64>}, {pipeline_mode = #tpu.pipeline_mode<synchronous>, transform_indices = @transform_14, window_bounds = array<i64: 2, 64, 32>}, {pipeline_mode = #tpu.pipeline_mode<synchronous>, transform_indices = @transform_15, window_bounds = array<i64: 2, 10, 32>}, {pipeline_mode = #tpu.pipeline_mode<synchronous>, transform_indices = @transform_16, window_bounds = array<i64: 2, 1, 96>}, {pipeline_mode = #tpu.pipeline_mode<synchronous>, transform_indices = @transform_17, window_bounds = array<i64: 2, 1, 64>}, {pipeline_mode = #tpu.pipeline_mode<synchronous>, transform_indices = @transform_18, window_bounds = array<i64: 2, 1, 64>}, {transform_indices = @transform_19, window_bounds = array<i64: 1, 8, 128>}]} {
    %c0 = arith.constant 0 : index
    %c0_0 = arith.constant 0 : index
    %c0_1 = arith.constant 0 : index
    %0 = vector.load %arg1[%c0, %c0_0, %c0_1] : memref<1x8x32xf32, #tpu.memory_space<vmem>>, vector<1x8x32xf32>
    %1 = vector.shape_cast %0 : vector<1x8x32xf32> to vector<8x32xf32>
    %c0_2 = arith.constant 0 : index
    %c0_3 = arith.constant 0 : index
    %c0_4 = arith.constant 0 : index
    %2 = vector.load %arg2[%c0_2, %c0_3, %c0_4] : memref<2x32x96xbf16, #tpu.memory_space<vmem>>, vector<1x32x96xbf16>
    %3 = vector.shape_cast %2 : vector<1x32x96xbf16> to vector<32x96xbf16>
    %c0_5 = arith.constant 0 : index
    %c0_6 = arith.constant 0 : index
    %c0_7 = arith.constant 0 : index
    %4 = vector.load %arg3[%c0_5, %c0_6, %c0_7] : memref<2x32x32xbf16, #tpu.memory_space<vmem>>, vector<1x32x32xbf16>
    %5 = vector.shape_cast %4 : vector<1x32x32xbf16> to vector<32x32xbf16>
    %c0_8 = arith.constant 0 : index
    %c0_9 = arith.constant 0 : index
    %c0_10 = arith.constant 0 : index
    %6 = vector.load %arg4[%c0_8, %c0_9, %c0_10] : memref<2x32x64xbf16, #tpu.memory_space<vmem>>, vector<1x32x64xbf16>
    %7 = vector.shape_cast %6 : vector<1x32x64xbf16> to vector<32x64xbf16>
    %c0_11 = arith.constant 0 : index
    %c0_12 = arith.constant 0 : index
    %c0_13 = arith.constant 0 : index
    %8 = vector.load %arg5[%c0_11, %c0_12, %c0_13] : memref<2x64x32xbf16, #tpu.memory_space<vmem>>, vector<1x64x32xbf16>
    %9 = vector.shape_cast %8 : vector<1x64x32xbf16> to vector<64x32xbf16>
    %c0_14 = arith.constant 0 : index
    %c0_15 = arith.constant 0 : index
    %c0_16 = arith.constant 0 : index
    %10 = vector.load %arg6[%c0_14, %c0_15, %c0_16] : memref<2x6x32xf32, #tpu.memory_space<vmem>>, vector<1x6x32xf32>
    %11 = vector.shape_cast %10 : vector<1x6x32xf32> to vector<6x32xf32>
    %c0_17 = arith.constant 0 : index
    %c0_18 = arith.constant 0 : index
    %c0_19 = arith.constant 0 : index
    %12 = vector.load %arg7[%c0_17, %c0_18, %c0_19] : memref<2x1x96xf32, #tpu.memory_space<vmem>>, vector<1x1x96xf32>
    %13 = vector.shape_cast %12 : vector<1x1x96xf32> to vector<1x96xf32>
    %c0_20 = arith.constant 0 : index
    %c0_21 = arith.constant 0 : index
    %c0_22 = arith.constant 0 : index
    %14 = vector.load %arg8[%c0_20, %c0_21, %c0_22] : memref<2x1x64xf32, #tpu.memory_space<vmem>>, vector<1x1x64xf32>
    %15 = vector.shape_cast %14 : vector<1x1x64xf32> to vector<1x64xf32>
    %16 = vector.extract_strided_slice %11 {offsets = [0, 0], sizes = [1, 32], strides = [1, 1]} : vector<6x32xf32> to vector<1x32xf32>
    %17 = vector.extract_strided_slice %11 {offsets = [1, 0], sizes = [1, 32], strides = [1, 1]} : vector<6x32xf32> to vector<1x32xf32>
    %18 = vector.extract_strided_slice %11 {offsets = [2, 0], sizes = [1, 32], strides = [1, 1]} : vector<6x32xf32> to vector<1x32xf32>
    %19 = vector.extract_strided_slice %11 {offsets = [3, 0], sizes = [1, 32], strides = [1, 1]} : vector<6x32xf32> to vector<1x32xf32>
    %20 = vector.extract_strided_slice %11 {offsets = [4, 0], sizes = [1, 32], strides = [1, 1]} : vector<6x32xf32> to vector<1x32xf32>
    %21 = vector.extract_strided_slice %11 {offsets = [5, 0], sizes = [1, 32], strides = [1, 1]} : vector<6x32xf32> to vector<1x32xf32>
    %22 = arith.truncf %1 : vector<8x32xf32> to vector<8x32xbf16>
    %cst = arith.constant dense<0.000000e+00> : vector<8x96xf32>
    %23 = tpu.matmul %22, %3, %cst {dimension_numbers = #tpu.dot_dimension_numbers<[1], [0], [0], [1], [0, 0, 1, 1], [], []>} : vector<8x32xbf16>, vector<32x96xbf16>, vector<8x96xf32> -> vector<8x96xf32>
    %24 = vector.broadcast %13 : vector<1x96xf32> to vector<8x96xf32>
    %25 = arith.addf %23, %24 : vector<8x96xf32>
    %26 = vector.extract_strided_slice %25 {offsets = [0, 0], sizes = [8, 32], strides = [1, 1]} : vector<8x96xf32> to vector<8x32xf32>
    %27 = vector.extract_strided_slice %25 {offsets = [0, 32], sizes = [8, 32], strides = [1, 1]} : vector<8x96xf32> to vector<8x32xf32>
    %28 = vector.extract_strided_slice %25 {offsets = [0, 64], sizes = [8, 32], strides = [1, 1]} : vector<8x96xf32> to vector<8x32xf32>
    %29 = vector.extract_strided_slice %26 {offsets = [0, 0], sizes = [8, 8], strides = [1, 1]} : vector<8x32xf32> to vector<8x8xf32>
    %30 = vector.extract_strided_slice %26 {offsets = [0, 8], sizes = [8, 8], strides = [1, 1]} : vector<8x32xf32> to vector<8x8xf32>
    %31 = vector.extract_strided_slice %26 {offsets = [0, 16], sizes = [8, 8], strides = [1, 1]} : vector<8x32xf32> to vector<8x8xf32>
    %32 = vector.extract_strided_slice %26 {offsets = [0, 24], sizes = [8, 8], strides = [1, 1]} : vector<8x32xf32> to vector<8x8xf32>
    %33 = vector.shape_cast %29 : vector<8x8xf32> to vector<1x8x8xf32>
    %34 = vector.shape_cast %30 : vector<8x8xf32> to vector<1x8x8xf32>
    %35 = vector.shape_cast %31 : vector<8x8xf32> to vector<1x8x8xf32>
    %36 = vector.shape_cast %32 : vector<8x8xf32> to vector<1x8x8xf32>
    %37 = tpu.concatenate %33, %34, %35, %36 in 0 : vector<1x8x8xf32>, vector<1x8x8xf32>, vector<1x8x8xf32>, vector<1x8x8xf32> -> vector<4x8x8xf32>
    %38 = arith.truncf %37 : vector<4x8x8xf32> to vector<4x8x8xbf16>
    %39 = vector.extract_strided_slice %27 {offsets = [0, 0], sizes = [8, 8], strides = [1, 1]} : vector<8x32xf32> to vector<8x8xf32>
    %40 = vector.extract_strided_slice %27 {offsets = [0, 8], sizes = [8, 8], strides = [1, 1]} : vector<8x32xf32> to vector<8x8xf32>
    %41 = vector.extract_strided_slice %27 {offsets = [0, 16], sizes = [8, 8], strides = [1, 1]} : vector<8x32xf32> to vector<8x8xf32>
    %42 = vector.extract_strided_slice %27 {offsets = [0, 24], sizes = [8, 8], strides = [1, 1]} : vector<8x32xf32> to vector<8x8xf32>
    %43 = vector.shape_cast %39 : vector<8x8xf32> to vector<1x8x8xf32>
    %44 = vector.shape_cast %40 : vector<8x8xf32> to vector<1x8x8xf32>
    %45 = vector.shape_cast %41 : vector<8x8xf32> to vector<1x8x8xf32>
    %46 = vector.shape_cast %42 : vector<8x8xf32> to vector<1x8x8xf32>
    %47 = tpu.concatenate %43, %44, %45, %46 in 0 : vector<1x8x8xf32>, vector<1x8x8xf32>, vector<1x8x8xf32>, vector<1x8x8xf32> -> vector<4x8x8xf32>
    %48 = arith.truncf %47 : vector<4x8x8xf32> to vector<4x8x8xbf16>
    %49 = vector.extract_strided_slice %28 {offsets = [0, 0], sizes = [8, 8], strides = [1, 1]} : vector<8x32xf32> to vector<8x8xf32>
    %50 = vector.extract_strided_slice %28 {offsets = [0, 8], sizes = [8, 8], strides = [1, 1]} : vector<8x32xf32> to vector<8x8xf32>
    %51 = vector.extract_strided_slice %28 {offsets = [0, 16], sizes = [8, 8], strides = [1, 1]} : vector<8x32xf32> to vector<8x8xf32>
    %52 = vector.extract_strided_slice %28 {offsets = [0, 24], sizes = [8, 8], strides = [1, 1]} : vector<8x32xf32> to vector<8x8xf32>
    %53 = vector.shape_cast %49 : vector<8x8xf32> to vector<1x8x8xf32>
    %54 = vector.shape_cast %50 : vector<8x8xf32> to vector<1x8x8xf32>
    %55 = vector.shape_cast %51 : vector<8x8xf32> to vector<1x8x8xf32>
    %56 = vector.shape_cast %52 : vector<8x8xf32> to vector<1x8x8xf32>
    %57 = tpu.concatenate %53, %54, %55, %56 in 0 : vector<1x8x8xf32>, vector<1x8x8xf32>, vector<1x8x8xf32>, vector<1x8x8xf32> -> vector<4x8x8xf32>
    %58 = arith.truncf %57 : vector<4x8x8xf32> to vector<4x8x8xbf16>
    "tpu.trace_start"() <{level = 10 : i32, message = "hqd,hkd->hqk"}> : () -> ()
    %cst_23 = arith.constant dense<0.000000e+00> : vector<4x8x8xf32>
    %59 = tpu.matmul %38, %48, %cst_23 {dimension_numbers = #tpu.dot_dimension_numbers<[2], [2], [1], [1], [0, 0, 0, 1, 1, 1], [0], [0]>} : vector<4x8x8xbf16>, vector<4x8x8xbf16>, vector<4x8x8xf32> -> vector<4x8x8xf32>
    "tpu.trace_stop"() : () -> ()
    %cst_24 = arith.constant dense<0xFF800000> : vector<4x8xf32>
    %60 = vector.multi_reduction <maximumf>, %59, %cst_24 [2] : vector<4x8x8xf32> to vector<4x8xf32>
    %61 = vector.shape_cast %60 : vector<4x8xf32> to vector<4x8x1xf32>
    %62 = vector.broadcast %61 : vector<4x8x1xf32> to vector<4x8x8xf32>
    %63 = arith.subf %59, %62 : vector<4x8x8xf32>
    %64 = math.exp %63 : vector<4x8x8xf32>
    %cst_25 = arith.constant dense<0.000000e+00> : vector<4x8xf32>
    %65 = vector.multi_reduction <add>, %64, %cst_25 [2] : vector<4x8x8xf32> to vector<4x8xf32>
    %66 = vector.shape_cast %65 : vector<4x8xf32> to vector<4x8x1xf32>
    %67 = tpu.reciprocal %66 {approx = true} : vector<4x8x1xf32> -> vector<4x8x1xf32>
    %68 = vector.broadcast %67 : vector<4x8x1xf32> to vector<4x8x8xf32>
    %69 = arith.mulf %64, %68 : vector<4x8x8xf32>
    %70 = arith.truncf %69 : vector<4x8x8xf32> to vector<4x8x8xbf16>
    "tpu.trace_start"() <{level = 10 : i32, message = "hqk,hkd->hqd"}> : () -> ()
    %cst_26 = arith.constant dense<0.000000e+00> : vector<4x8x8xf32>
    %71 = tpu.matmul %70, %58, %cst_26 {dimension_numbers = #tpu.dot_dimension_numbers<[2], [1], [1], [2], [0, 0, 0, 1, 1, 2], [0], [0]>} : vector<4x8x8xbf16>, vector<4x8x8xbf16>, vector<4x8x8xf32> -> vector<4x8x8xf32>
    "tpu.trace_stop"() : () -> ()
    %72 = vector.extract_strided_slice %71 {offsets = [0, 0, 0], sizes = [1, 8, 8], strides = [1, 1, 1]} : vector<4x8x8xf32> to vector<1x8x8xf32>
    %73 = vector.shape_cast %72 : vector<1x8x8xf32> to vector<8x8xf32>
    %74 = vector.extract_strided_slice %71 {offsets = [1, 0, 0], sizes = [1, 8, 8], strides = [1, 1, 1]} : vector<4x8x8xf32> to vector<1x8x8xf32>
    %75 = vector.shape_cast %74 : vector<1x8x8xf32> to vector<8x8xf32>
    %76 = vector.extract_strided_slice %71 {offsets = [2, 0, 0], sizes = [1, 8, 8], strides = [1, 1, 1]} : vector<4x8x8xf32> to vector<1x8x8xf32>
    %77 = vector.shape_cast %76 : vector<1x8x8xf32> to vector<8x8xf32>
    %78 = vector.extract_strided_slice %71 {offsets = [3, 0, 0], sizes = [1, 8, 8], strides = [1, 1, 1]} : vector<4x8x8xf32> to vector<1x8x8xf32>
    %79 = vector.shape_cast %78 : vector<1x8x8xf32> to vector<8x8xf32>
    %80 = tpu.concatenate %73, %75, %77, %79 in 1 : vector<8x8xf32>, vector<8x8xf32>, vector<8x8xf32>, vector<8x8xf32> -> vector<8x32xf32>
    %81 = arith.truncf %80 : vector<8x32xf32> to vector<8x32xbf16>
    %cst_27 = arith.constant dense<0.000000e+00> : vector<8x32xf32>
    %82 = tpu.matmul %81, %5, %cst_27 {dimension_numbers = #tpu.dot_dimension_numbers<[1], [0], [0], [1], [0, 0, 1, 1], [], []>} : vector<8x32xbf16>, vector<32x32xbf16>, vector<8x32xf32> -> vector<8x32xf32>
    %83 = vector.broadcast %16 : vector<1x32xf32> to vector<8x32xf32>
    %84 = arith.addf %82, %83 : vector<8x32xf32>
    %85 = arith.addf %1, %84 : vector<8x32xf32>
    %cst_28 = arith.constant dense<0.000000e+00> : vector<8xf32>
    %86 = vector.multi_reduction <add>, %85, %cst_28 [1] : vector<8x32xf32> to vector<8xf32>
    %87 = vector.shape_cast %86 : vector<8xf32> to vector<8x1xf32>
    %cst_29 = arith.constant 3.200000e+01 : f32
    %88 = vector.broadcast %cst_29 : f32 to vector<8x1xf32>
    %89 = arith.divf %87, %88 : vector<8x1xf32>
    %90 = vector.broadcast %89 : vector<8x1xf32> to vector<8x32xf32>
    %91 = arith.subf %85, %90 : vector<8x32xf32>
    %92 = arith.mulf %91, %91 : vector<8x32xf32>
    %cst_30 = arith.constant dense<0.000000e+00> : vector<8xf32>
    %93 = vector.multi_reduction <add>, %92, %cst_30 [1] : vector<8x32xf32> to vector<8xf32>
    %94 = vector.shape_cast %93 : vector<8xf32> to vector<8x1xf32>
    %cst_31 = arith.constant 3.200000e+01 : f32
    %95 = vector.broadcast %cst_31 : f32 to vector<8x1xf32>
    %96 = arith.divf %94, %95 : vector<8x1xf32>
    %97 = vector.broadcast %89 : vector<8x1xf32> to vector<8x32xf32>
    %98 = arith.subf %85, %97 : vector<8x32xf32>
    %cst_32 = arith.constant 9.99999974E-6 : f32
    %99 = vector.broadcast %cst_32 : f32 to vector<8x1xf32>
    %100 = arith.addf %96, %99 : vector<8x1xf32>
    %101 = math.rsqrt %100 : vector<8x1xf32>
    %102 = vector.broadcast %101 : vector<8x1xf32> to vector<8x32xf32>
    %103 = arith.mulf %98, %102 : vector<8x32xf32>
    %104 = vector.broadcast %17 : vector<1x32xf32> to vector<8x32xf32>
    %105 = arith.mulf %103, %104 : vector<8x32xf32>
    %106 = vector.broadcast %18 : vector<1x32xf32> to vector<8x32xf32>
    %107 = arith.addf %105, %106 : vector<8x32xf32>
    %108 = arith.truncf %107 : vector<8x32xf32> to vector<8x32xbf16>
    %cst_33 = arith.constant dense<0.000000e+00> : vector<8x64xf32>
    %109 = tpu.matmul %108, %7, %cst_33 {dimension_numbers = #tpu.dot_dimension_numbers<[1], [0], [0], [1], [0, 0, 1, 1], [], []>} : vector<8x32xbf16>, vector<32x64xbf16>, vector<8x64xf32> -> vector<8x64xf32>
    %110 = vector.broadcast %15 : vector<1x64xf32> to vector<8x64xf32>
    %111 = arith.addf %109, %110 : vector<8x64xf32>
    %cst_34 = arith.constant 0.000000e+00 : f32
    %112 = vector.broadcast %cst_34 : f32 to vector<8x64xf32>
    %113 = arith.maximumf %111, %112 : vector<8x64xf32>
    %114 = arith.truncf %113 : vector<8x64xf32> to vector<8x64xbf16>
    %cst_35 = arith.constant dense<0.000000e+00> : vector<8x32xf32>
    %115 = tpu.matmul %114, %9, %cst_35 {dimension_numbers = #tpu.dot_dimension_numbers<[1], [0], [0], [1], [0, 0, 1, 1], [], []>} : vector<8x64xbf16>, vector<64x32xbf16>, vector<8x32xf32> -> vector<8x32xf32>
    %116 = vector.broadcast %19 : vector<1x32xf32> to vector<8x32xf32>
    %117 = arith.addf %115, %116 : vector<8x32xf32>
    %118 = arith.addf %107, %117 : vector<8x32xf32>
    %cst_36 = arith.constant dense<0.000000e+00> : vector<8xf32>
    %119 = vector.multi_reduction <add>, %118, %cst_36 [1] : vector<8x32xf32> to vector<8xf32>
    %120 = vector.shape_cast %119 : vector<8xf32> to vector<8x1xf32>
    %cst_37 = arith.constant 3.200000e+01 : f32
    %121 = vector.broadcast %cst_37 : f32 to vector<8x1xf32>
    %122 = arith.divf %120, %121 : vector<8x1xf32>
    %123 = vector.broadcast %122 : vector<8x1xf32> to vector<8x32xf32>
    %124 = arith.subf %118, %123 : vector<8x32xf32>
    %125 = arith.mulf %124, %124 : vector<8x32xf32>
    %cst_38 = arith.constant dense<0.000000e+00> : vector<8xf32>
    %126 = vector.multi_reduction <add>, %125, %cst_38 [1] : vector<8x32xf32> to vector<8xf32>
    %127 = vector.shape_cast %126 : vector<8xf32> to vector<8x1xf32>
    %cst_39 = arith.constant 3.200000e+01 : f32
    %128 = vector.broadcast %cst_39 : f32 to vector<8x1xf32>
    %129 = arith.divf %127, %128 : vector<8x1xf32>
    %130 = vector.broadcast %122 : vector<8x1xf32> to vector<8x32xf32>
    %131 = arith.subf %118, %130 : vector<8x32xf32>
    %cst_40 = arith.constant 9.99999974E-6 : f32
    %132 = vector.broadcast %cst_40 : f32 to vector<8x1xf32>
    %133 = arith.addf %129, %132 : vector<8x1xf32>
    %134 = math.rsqrt %133 : vector<8x1xf32>
    %135 = vector.broadcast %134 : vector<8x1xf32> to vector<8x32xf32>
    %136 = arith.mulf %131, %135 : vector<8x32xf32>
    %137 = vector.broadcast %20 : vector<1x32xf32> to vector<8x32xf32>
    %138 = arith.mulf %136, %137 : vector<8x32xf32>
    %139 = vector.broadcast %21 : vector<1x32xf32> to vector<8x32xf32>
    %140 = arith.addf %138, %139 : vector<8x32xf32>
    %c1 = arith.constant 1 : index
    %c0_41 = arith.constant 0 : index
    %c0_42 = arith.constant 0 : index
    %141 = vector.load %arg2[%c1, %c0_41, %c0_42] : memref<2x32x96xbf16, #tpu.memory_space<vmem>>, vector<1x32x96xbf16>
    %142 = vector.shape_cast %141 : vector<1x32x96xbf16> to vector<32x96xbf16>
    %c1_43 = arith.constant 1 : index
    %c0_44 = arith.constant 0 : index
    %c0_45 = arith.constant 0 : index
    %143 = vector.load %arg3[%c1_43, %c0_44, %c0_45] : memref<2x32x32xbf16, #tpu.memory_space<vmem>>, vector<1x32x32xbf16>
    %144 = vector.shape_cast %143 : vector<1x32x32xbf16> to vector<32x32xbf16>
    %c1_46 = arith.constant 1 : index
    %c0_47 = arith.constant 0 : index
    %c0_48 = arith.constant 0 : index
    %145 = vector.load %arg4[%c1_46, %c0_47, %c0_48] : memref<2x32x64xbf16, #tpu.memory_space<vmem>>, vector<1x32x64xbf16>
    %146 = vector.shape_cast %145 : vector<1x32x64xbf16> to vector<32x64xbf16>
    %c1_49 = arith.constant 1 : index
    %c0_50 = arith.constant 0 : index
    %c0_51 = arith.constant 0 : index
    %147 = vector.load %arg5[%c1_49, %c0_50, %c0_51] : memref<2x64x32xbf16, #tpu.memory_space<vmem>>, vector<1x64x32xbf16>
    %148 = vector.shape_cast %147 : vector<1x64x32xbf16> to vector<64x32xbf16>
    %c1_52 = arith.constant 1 : index
    %c0_53 = arith.constant 0 : index
    %c0_54 = arith.constant 0 : index
    %149 = vector.load %arg6[%c1_52, %c0_53, %c0_54] : memref<2x6x32xf32, #tpu.memory_space<vmem>>, vector<1x6x32xf32>
    %150 = vector.shape_cast %149 : vector<1x6x32xf32> to vector<6x32xf32>
    %c1_55 = arith.constant 1 : index
    %c0_56 = arith.constant 0 : index
    %c0_57 = arith.constant 0 : index
    %151 = vector.load %arg7[%c1_55, %c0_56, %c0_57] : memref<2x1x96xf32, #tpu.memory_space<vmem>>, vector<1x1x96xf32>
    %152 = vector.shape_cast %151 : vector<1x1x96xf32> to vector<1x96xf32>
    %c1_58 = arith.constant 1 : index
    %c0_59 = arith.constant 0 : index
    %c0_60 = arith.constant 0 : index
    %153 = vector.load %arg8[%c1_58, %c0_59, %c0_60] : memref<2x1x64xf32, #tpu.memory_space<vmem>>, vector<1x1x64xf32>
    %154 = vector.shape_cast %153 : vector<1x1x64xf32> to vector<1x64xf32>
    %155 = vector.extract_strided_slice %150 {offsets = [0, 0], sizes = [1, 32], strides = [1, 1]} : vector<6x32xf32> to vector<1x32xf32>
    %156 = vector.extract_strided_slice %150 {offsets = [1, 0], sizes = [1, 32], strides = [1, 1]} : vector<6x32xf32> to vector<1x32xf32>
    %157 = vector.extract_strided_slice %150 {offsets = [2, 0], sizes = [1, 32], strides = [1, 1]} : vector<6x32xf32> to vector<1x32xf32>
    %158 = vector.extract_strided_slice %150 {offsets = [3, 0], sizes = [1, 32], strides = [1, 1]} : vector<6x32xf32> to vector<1x32xf32>
    %159 = vector.extract_strided_slice %150 {offsets = [4, 0], sizes = [1, 32], strides = [1, 1]} : vector<6x32xf32> to vector<1x32xf32>
    %160 = vector.extract_strided_slice %150 {offsets = [5, 0], sizes = [1, 32], strides = [1, 1]} : vector<6x32xf32> to vector<1x32xf32>
    %161 = arith.truncf %140 : vector<8x32xf32> to vector<8x32xbf16>
    %cst_61 = arith.constant dense<0.000000e+00> : vector<8x96xf32>
    %162 = tpu.matmul %161, %142, %cst_61 {dimension_numbers = #tpu.dot_dimension_numbers<[1], [0], [0], [1], [0, 0, 1, 1], [], []>} : vector<8x32xbf16>, vector<32x96xbf16>, vector<8x96xf32> -> vector<8x96xf32>
    %163 = vector.broadcast %152 : vector<1x96xf32> to vector<8x96xf32>
    %164 = arith.addf %162, %163 : vector<8x96xf32>
    %165 = vector.extract_strided_slice %164 {offsets = [0, 0], sizes = [8, 32], strides = [1, 1]} : vector<8x96xf32> to vector<8x32xf32>
    %166 = vector.extract_strided_slice %164 {offsets = [0, 32], sizes = [8, 32], strides = [1, 1]} : vector<8x96xf32> to vector<8x32xf32>
    %167 = vector.extract_strided_slice %164 {offsets = [0, 64], sizes = [8, 32], strides = [1, 1]} : vector<8x96xf32> to vector<8x32xf32>
    %168 = vector.extract_strided_slice %165 {offsets = [0, 0], sizes = [8, 8], strides = [1, 1]} : vector<8x32xf32> to vector<8x8xf32>
    %169 = vector.extract_strided_slice %165 {offsets = [0, 8], sizes = [8, 8], strides = [1, 1]} : vector<8x32xf32> to vector<8x8xf32>
    %170 = vector.extract_strided_slice %165 {offsets = [0, 16], sizes = [8, 8], strides = [1, 1]} : vector<8x32xf32> to vector<8x8xf32>
    %171 = vector.extract_strided_slice %165 {offsets = [0, 24], sizes = [8, 8], strides = [1, 1]} : vector<8x32xf32> to vector<8x8xf32>
    %172 = vector.shape_cast %168 : vector<8x8xf32> to vector<1x8x8xf32>
    %173 = vector.shape_cast %169 : vector<8x8xf32> to vector<1x8x8xf32>
    %174 = vector.shape_cast %170 : vector<8x8xf32> to vector<1x8x8xf32>
    %175 = vector.shape_cast %171 : vector<8x8xf32> to vector<1x8x8xf32>
    %176 = tpu.concatenate %172, %173, %174, %175 in 0 : vector<1x8x8xf32>, vector<1x8x8xf32>, vector<1x8x8xf32>, vector<1x8x8xf32> -> vector<4x8x8xf32>
    %177 = arith.truncf %176 : vector<4x8x8xf32> to vector<4x8x8xbf16>
    %178 = vector.extract_strided_slice %166 {offsets = [0, 0], sizes = [8, 8], strides = [1, 1]} : vector<8x32xf32> to vector<8x8xf32>
    %179 = vector.extract_strided_slice %166 {offsets = [0, 8], sizes = [8, 8], strides = [1, 1]} : vector<8x32xf32> to vector<8x8xf32>
    %180 = vector.extract_strided_slice %166 {offsets = [0, 16], sizes = [8, 8], strides = [1, 1]} : vector<8x32xf32> to vector<8x8xf32>
    %181 = vector.extract_strided_slice %166 {offsets = [0, 24], sizes = [8, 8], strides = [1, 1]} : vector<8x32xf32> to vector<8x8xf32>
    %182 = vector.shape_cast %178 : vector<8x8xf32> to vector<1x8x8xf32>
    %183 = vector.shape_cast %179 : vector<8x8xf32> to vector<1x8x8xf32>
    %184 = vector.shape_cast %180 : vector<8x8xf32> to vector<1x8x8xf32>
    %185 = vector.shape_cast %181 : vector<8x8xf32> to vector<1x8x8xf32>
    %186 = tpu.concatenate %182, %183, %184, %185 in 0 : vector<1x8x8xf32>, vector<1x8x8xf32>, vector<1x8x8xf32>, vector<1x8x8xf32> -> vector<4x8x8xf32>
    %187 = arith.truncf %186 : vector<4x8x8xf32> to vector<4x8x8xbf16>
    %188 = vector.extract_strided_slice %167 {offsets = [0, 0], sizes = [8, 8], strides = [1, 1]} : vector<8x32xf32> to vector<8x8xf32>
    %189 = vector.extract_strided_slice %167 {offsets = [0, 8], sizes = [8, 8], strides = [1, 1]} : vector<8x32xf32> to vector<8x8xf32>
    %190 = vector.extract_strided_slice %167 {offsets = [0, 16], sizes = [8, 8], strides = [1, 1]} : vector<8x32xf32> to vector<8x8xf32>
    %191 = vector.extract_strided_slice %167 {offsets = [0, 24], sizes = [8, 8], strides = [1, 1]} : vector<8x32xf32> to vector<8x8xf32>
    %192 = vector.shape_cast %188 : vector<8x8xf32> to vector<1x8x8xf32>
    %193 = vector.shape_cast %189 : vector<8x8xf32> to vector<1x8x8xf32>
    %194 = vector.shape_cast %190 : vector<8x8xf32> to vector<1x8x8xf32>
    %195 = vector.shape_cast %191 : vector<8x8xf32> to vector<1x8x8xf32>
    %196 = tpu.concatenate %192, %193, %194, %195 in 0 : vector<1x8x8xf32>, vector<1x8x8xf32>, vector<1x8x8xf32>, vector<1x8x8xf32> -> vector<4x8x8xf32>
    %197 = arith.truncf %196 : vector<4x8x8xf32> to vector<4x8x8xbf16>
    "tpu.trace_start"() <{level = 10 : i32, message = "hqd,hkd->hqk"}> : () -> ()
    %cst_62 = arith.constant dense<0.000000e+00> : vector<4x8x8xf32>
    %198 = tpu.matmul %177, %187, %cst_62 {dimension_numbers = #tpu.dot_dimension_numbers<[2], [2], [1], [1], [0, 0, 0, 1, 1, 1], [0], [0]>} : vector<4x8x8xbf16>, vector<4x8x8xbf16>, vector<4x8x8xf32> -> vector<4x8x8xf32>
    "tpu.trace_stop"() : () -> ()
    %cst_63 = arith.constant dense<0xFF800000> : vector<4x8xf32>
    %199 = vector.multi_reduction <maximumf>, %198, %cst_63 [2] : vector<4x8x8xf32> to vector<4x8xf32>
    %200 = vector.shape_cast %199 : vector<4x8xf32> to vector<4x8x1xf32>
    %201 = vector.broadcast %200 : vector<4x8x1xf32> to vector<4x8x8xf32>
    %202 = arith.subf %198, %201 : vector<4x8x8xf32>
    %203 = math.exp %202 : vector<4x8x8xf32>
    %cst_64 = arith.constant dense<0.000000e+00> : vector<4x8xf32>
    %204 = vector.multi_reduction <add>, %203, %cst_64 [2] : vector<4x8x8xf32> to vector<4x8xf32>
    %205 = vector.shape_cast %204 : vector<4x8xf32> to vector<4x8x1xf32>
    %206 = tpu.reciprocal %205 {approx = true} : vector<4x8x1xf32> -> vector<4x8x1xf32>
    %207 = vector.broadcast %206 : vector<4x8x1xf32> to vector<4x8x8xf32>
    %208 = arith.mulf %203, %207 : vector<4x8x8xf32>
    %209 = arith.truncf %208 : vector<4x8x8xf32> to vector<4x8x8xbf16>
    "tpu.trace_start"() <{level = 10 : i32, message = "hqk,hkd->hqd"}> : () -> ()
    %cst_65 = arith.constant dense<0.000000e+00> : vector<4x8x8xf32>
    %210 = tpu.matmul %209, %197, %cst_65 {dimension_numbers = #tpu.dot_dimension_numbers<[2], [1], [1], [2], [0, 0, 0, 1, 1, 2], [0], [0]>} : vector<4x8x8xbf16>, vector<4x8x8xbf16>, vector<4x8x8xf32> -> vector<4x8x8xf32>
    "tpu.trace_stop"() : () -> ()
    %211 = vector.extract_strided_slice %210 {offsets = [0, 0, 0], sizes = [1, 8, 8], strides = [1, 1, 1]} : vector<4x8x8xf32> to vector<1x8x8xf32>
    %212 = vector.shape_cast %211 : vector<1x8x8xf32> to vector<8x8xf32>
    %213 = vector.extract_strided_slice %210 {offsets = [1, 0, 0], sizes = [1, 8, 8], strides = [1, 1, 1]} : vector<4x8x8xf32> to vector<1x8x8xf32>
    %214 = vector.shape_cast %213 : vector<1x8x8xf32> to vector<8x8xf32>
    %215 = vector.extract_strided_slice %210 {offsets = [2, 0, 0], sizes = [1, 8, 8], strides = [1, 1, 1]} : vector<4x8x8xf32> to vector<1x8x8xf32>
    %216 = vector.shape_cast %215 : vector<1x8x8xf32> to vector<8x8xf32>
    %217 = vector.extract_strided_slice %210 {offsets = [3, 0, 0], sizes = [1, 8, 8], strides = [1, 1, 1]} : vector<4x8x8xf32> to vector<1x8x8xf32>
    %218 = vector.shape_cast %217 : vector<1x8x8xf32> to vector<8x8xf32>
    %219 = tpu.concatenate %212, %214, %216, %218 in 1 : vector<8x8xf32>, vector<8x8xf32>, vector<8x8xf32>, vector<8x8xf32> -> vector<8x32xf32>
    %220 = arith.truncf %219 : vector<8x32xf32> to vector<8x32xbf16>
    %cst_66 = arith.constant dense<0.000000e+00> : vector<8x32xf32>
    %221 = tpu.matmul %220, %144, %cst_66 {dimension_numbers = #tpu.dot_dimension_numbers<[1], [0], [0], [1], [0, 0, 1, 1], [], []>} : vector<8x32xbf16>, vector<32x32xbf16>, vector<8x32xf32> -> vector<8x32xf32>
    %222 = vector.broadcast %155 : vector<1x32xf32> to vector<8x32xf32>
    %223 = arith.addf %221, %222 : vector<8x32xf32>
    %224 = arith.addf %140, %223 : vector<8x32xf32>
    %cst_67 = arith.constant dense<0.000000e+00> : vector<8xf32>
    %225 = vector.multi_reduction <add>, %224, %cst_67 [1] : vector<8x32xf32> to vector<8xf32>
    %226 = vector.shape_cast %225 : vector<8xf32> to vector<8x1xf32>
    %cst_68 = arith.constant 3.200000e+01 : f32
    %227 = vector.broadcast %cst_68 : f32 to vector<8x1xf32>
    %228 = arith.divf %226, %227 : vector<8x1xf32>
    %229 = vector.broadcast %228 : vector<8x1xf32> to vector<8x32xf32>
    %230 = arith.subf %224, %229 : vector<8x32xf32>
    %231 = arith.mulf %230, %230 : vector<8x32xf32>
    %cst_69 = arith.constant dense<0.000000e+00> : vector<8xf32>
    %232 = vector.multi_reduction <add>, %231, %cst_69 [1] : vector<8x32xf32> to vector<8xf32>
    %233 = vector.shape_cast %232 : vector<8xf32> to vector<8x1xf32>
    %cst_70 = arith.constant 3.200000e+01 : f32
    %234 = vector.broadcast %cst_70 : f32 to vector<8x1xf32>
    %235 = arith.divf %233, %234 : vector<8x1xf32>
    %236 = vector.broadcast %228 : vector<8x1xf32> to vector<8x32xf32>
    %237 = arith.subf %224, %236 : vector<8x32xf32>
    %cst_71 = arith.constant 9.99999974E-6 : f32
    %238 = vector.broadcast %cst_71 : f32 to vector<8x1xf32>
    %239 = arith.addf %235, %238 : vector<8x1xf32>
    %240 = math.rsqrt %239 : vector<8x1xf32>
    %241 = vector.broadcast %240 : vector<8x1xf32> to vector<8x32xf32>
    %242 = arith.mulf %237, %241 : vector<8x32xf32>
    %243 = vector.broadcast %156 : vector<1x32xf32> to vector<8x32xf32>
    %244 = arith.mulf %242, %243 : vector<8x32xf32>
    %245 = vector.broadcast %157 : vector<1x32xf32> to vector<8x32xf32>
    %246 = arith.addf %244, %245 : vector<8x32xf32>
    %247 = arith.truncf %246 : vector<8x32xf32> to vector<8x32xbf16>
    %cst_72 = arith.constant dense<0.000000e+00> : vector<8x64xf32>
    %248 = tpu.matmul %247, %146, %cst_72 {dimension_numbers = #tpu.dot_dimension_numbers<[1], [0], [0], [1], [0, 0, 1, 1], [], []>} : vector<8x32xbf16>, vector<32x64xbf16>, vector<8x64xf32> -> vector<8x64xf32>
    %249 = vector.broadcast %154 : vector<1x64xf32> to vector<8x64xf32>
    %250 = arith.addf %248, %249 : vector<8x64xf32>
    %cst_73 = arith.constant 0.000000e+00 : f32
    %251 = vector.broadcast %cst_73 : f32 to vector<8x64xf32>
    %252 = arith.maximumf %250, %251 : vector<8x64xf32>
    %253 = arith.truncf %252 : vector<8x64xf32> to vector<8x64xbf16>
    %cst_74 = arith.constant dense<0.000000e+00> : vector<8x32xf32>
    %254 = tpu.matmul %253, %148, %cst_74 {dimension_numbers = #tpu.dot_dimension_numbers<[1], [0], [0], [1], [0, 0, 1, 1], [], []>} : vector<8x64xbf16>, vector<64x32xbf16>, vector<8x32xf32> -> vector<8x32xf32>
    %255 = vector.broadcast %158 : vector<1x32xf32> to vector<8x32xf32>
    %256 = arith.addf %254, %255 : vector<8x32xf32>
    %257 = arith.addf %246, %256 : vector<8x32xf32>
    %cst_75 = arith.constant dense<0.000000e+00> : vector<8xf32>
    %258 = vector.multi_reduction <add>, %257, %cst_75 [1] : vector<8x32xf32> to vector<8xf32>
    %259 = vector.shape_cast %258 : vector<8xf32> to vector<8x1xf32>
    %cst_76 = arith.constant 3.200000e+01 : f32
    %260 = vector.broadcast %cst_76 : f32 to vector<8x1xf32>
    %261 = arith.divf %259, %260 : vector<8x1xf32>
    %262 = vector.broadcast %261 : vector<8x1xf32> to vector<8x32xf32>
    %263 = arith.subf %257, %262 : vector<8x32xf32>
    %264 = arith.mulf %263, %263 : vector<8x32xf32>
    %cst_77 = arith.constant dense<0.000000e+00> : vector<8xf32>
    %265 = vector.multi_reduction <add>, %264, %cst_77 [1] : vector<8x32xf32> to vector<8xf32>
    %266 = vector.shape_cast %265 : vector<8xf32> to vector<8x1xf32>
    %cst_78 = arith.constant 3.200000e+01 : f32
    %267 = vector.broadcast %cst_78 : f32 to vector<8x1xf32>
    %268 = arith.divf %266, %267 : vector<8x1xf32>
    %269 = vector.broadcast %261 : vector<8x1xf32> to vector<8x32xf32>
    %270 = arith.subf %257, %269 : vector<8x32xf32>
    %cst_79 = arith.constant 9.99999974E-6 : f32
    %271 = vector.broadcast %cst_79 : f32 to vector<8x1xf32>
    %272 = arith.addf %268, %271 : vector<8x1xf32>
    %273 = math.rsqrt %272 : vector<8x1xf32>
    %274 = vector.broadcast %273 : vector<8x1xf32> to vector<8x32xf32>
    %275 = arith.mulf %270, %274 : vector<8x32xf32>
    %276 = vector.broadcast %159 : vector<1x32xf32> to vector<8x32xf32>
    %277 = arith.mulf %275, %276 : vector<8x32xf32>
    %278 = vector.broadcast %160 : vector<1x32xf32> to vector<8x32xf32>
    %279 = arith.addf %277, %278 : vector<8x32xf32>
    %c0_80 = arith.constant 0 : index
    %c0_81 = arith.constant 0 : index
    %c0_82 = arith.constant 0 : index
    %280 = vector.load %arg9[%c0_80, %c0_81, %c0_82] : memref<2x32x96xbf16, #tpu.memory_space<vmem>>, vector<1x32x96xbf16>
    %281 = vector.shape_cast %280 : vector<1x32x96xbf16> to vector<32x96xbf16>
    %c0_83 = arith.constant 0 : index
    %c0_84 = arith.constant 0 : index
    %c0_85 = arith.constant 0 : index
    %282 = vector.load %arg10[%c0_83, %c0_84, %c0_85] : memref<2x32x32xbf16, #tpu.memory_space<vmem>>, vector<1x32x32xbf16>
    %283 = vector.shape_cast %282 : vector<1x32x32xbf16> to vector<32x32xbf16>
    %c0_86 = arith.constant 0 : index
    %c0_87 = arith.constant 0 : index
    %c0_88 = arith.constant 0 : index
    %284 = vector.load %arg11[%c0_86, %c0_87, %c0_88] : memref<2x32x32xbf16, #tpu.memory_space<vmem>>, vector<1x32x32xbf16>
    %285 = vector.shape_cast %284 : vector<1x32x32xbf16> to vector<32x32xbf16>
    %c0_89 = arith.constant 0 : index
    %c0_90 = arith.constant 0 : index
    %c0_91 = arith.constant 0 : index
    %286 = vector.load %arg12[%c0_89, %c0_90, %c0_91] : memref<2x32x64xbf16, #tpu.memory_space<vmem>>, vector<1x32x64xbf16>
    %287 = vector.shape_cast %286 : vector<1x32x64xbf16> to vector<32x64xbf16>
    %c0_92 = arith.constant 0 : index
    %c0_93 = arith.constant 0 : index
    %c0_94 = arith.constant 0 : index
    %288 = vector.load %arg13[%c0_92, %c0_93, %c0_94] : memref<2x32x32xbf16, #tpu.memory_space<vmem>>, vector<1x32x32xbf16>
    %289 = vector.shape_cast %288 : vector<1x32x32xbf16> to vector<32x32xbf16>
    %c0_95 = arith.constant 0 : index
    %c0_96 = arith.constant 0 : index
    %c0_97 = arith.constant 0 : index
    %290 = vector.load %arg14[%c0_95, %c0_96, %c0_97] : memref<2x32x64xbf16, #tpu.memory_space<vmem>>, vector<1x32x64xbf16>
    %291 = vector.shape_cast %290 : vector<1x32x64xbf16> to vector<32x64xbf16>
    %c0_98 = arith.constant 0 : index
    %c0_99 = arith.constant 0 : index
    %c0_100 = arith.constant 0 : index
    %292 = vector.load %arg15[%c0_98, %c0_99, %c0_100] : memref<2x64x32xbf16, #tpu.memory_space<vmem>>, vector<1x64x32xbf16>
    %293 = vector.shape_cast %292 : vector<1x64x32xbf16> to vector<64x32xbf16>
    %c0_101 = arith.constant 0 : index
    %c0_102 = arith.constant 0 : index
    %c0_103 = arith.constant 0 : index
    %294 = vector.load %arg16[%c0_101, %c0_102, %c0_103] : memref<2x10x32xf32, #tpu.memory_space<vmem>>, vector<1x10x32xf32>
    %295 = vector.shape_cast %294 : vector<1x10x32xf32> to vector<10x32xf32>
    %c0_104 = arith.constant 0 : index
    %c0_105 = arith.constant 0 : index
    %c0_106 = arith.constant 0 : index
    %296 = vector.load %arg17[%c0_104, %c0_105, %c0_106] : memref<2x1x96xf32, #tpu.memory_space<vmem>>, vector<1x1x96xf32>
    %297 = vector.shape_cast %296 : vector<1x1x96xf32> to vector<1x96xf32>
    %c0_107 = arith.constant 0 : index
    %c0_108 = arith.constant 0 : index
    %c0_109 = arith.constant 0 : index
    %298 = vector.load %arg18[%c0_107, %c0_108, %c0_109] : memref<2x1x64xf32, #tpu.memory_space<vmem>>, vector<1x1x64xf32>
    %299 = vector.shape_cast %298 : vector<1x1x64xf32> to vector<1x64xf32>
    %c0_110 = arith.constant 0 : index
    %c0_111 = arith.constant 0 : index
    %c0_112 = arith.constant 0 : index
    %300 = vector.load %arg19[%c0_110, %c0_111, %c0_112] : memref<2x1x64xf32, #tpu.memory_space<vmem>>, vector<1x1x64xf32>
    %301 = vector.shape_cast %300 : vector<1x1x64xf32> to vector<1x64xf32>
    %302 = vector.extract_strided_slice %295 {offsets = [0, 0], sizes = [1, 32], strides = [1, 1]} : vector<10x32xf32> to vector<1x32xf32>
    %303 = vector.extract_strided_slice %295 {offsets = [1, 0], sizes = [1, 32], strides = [1, 1]} : vector<10x32xf32> to vector<1x32xf32>
    %304 = vector.extract_strided_slice %295 {offsets = [2, 0], sizes = [1, 32], strides = [1, 1]} : vector<10x32xf32> to vector<1x32xf32>
    %305 = vector.extract_strided_slice %295 {offsets = [3, 0], sizes = [1, 32], strides = [1, 1]} : vector<10x32xf32> to vector<1x32xf32>
    %306 = vector.extract_strided_slice %295 {offsets = [4, 0], sizes = [1, 32], strides = [1, 1]} : vector<10x32xf32> to vector<1x32xf32>
    %307 = vector.extract_strided_slice %295 {offsets = [5, 0], sizes = [1, 32], strides = [1, 1]} : vector<10x32xf32> to vector<1x32xf32>
    %308 = vector.extract_strided_slice %295 {offsets = [6, 0], sizes = [1, 32], strides = [1, 1]} : vector<10x32xf32> to vector<1x32xf32>
    %309 = vector.extract_strided_slice %295 {offsets = [7, 0], sizes = [1, 32], strides = [1, 1]} : vector<10x32xf32> to vector<1x32xf32>
    %310 = vector.extract_strided_slice %295 {offsets = [8, 0], sizes = [1, 32], strides = [1, 1]} : vector<10x32xf32> to vector<1x32xf32>
    %311 = vector.extract_strided_slice %295 {offsets = [9, 0], sizes = [1, 32], strides = [1, 1]} : vector<10x32xf32> to vector<1x32xf32>
    %312 = arith.truncf %279 : vector<8x32xf32> to vector<8x32xbf16>
    %cst_113 = arith.constant dense<0.000000e+00> : vector<8x96xf32>
    %313 = tpu.matmul %312, %281, %cst_113 {dimension_numbers = #tpu.dot_dimension_numbers<[1], [0], [0], [1], [0, 0, 1, 1], [], []>} : vector<8x32xbf16>, vector<32x96xbf16>, vector<8x96xf32> -> vector<8x96xf32>
    %314 = vector.broadcast %297 : vector<1x96xf32> to vector<8x96xf32>
    %315 = arith.addf %313, %314 : vector<8x96xf32>
    %316 = vector.extract_strided_slice %315 {offsets = [0, 0], sizes = [8, 32], strides = [1, 1]} : vector<8x96xf32> to vector<8x32xf32>
    %317 = vector.extract_strided_slice %315 {offsets = [0, 32], sizes = [8, 32], strides = [1, 1]} : vector<8x96xf32> to vector<8x32xf32>
    %318 = vector.extract_strided_slice %315 {offsets = [0, 64], sizes = [8, 32], strides = [1, 1]} : vector<8x96xf32> to vector<8x32xf32>
    %319 = vector.extract_strided_slice %316 {offsets = [0, 0], sizes = [8, 8], strides = [1, 1]} : vector<8x32xf32> to vector<8x8xf32>
    %320 = vector.extract_strided_slice %316 {offsets = [0, 8], sizes = [8, 8], strides = [1, 1]} : vector<8x32xf32> to vector<8x8xf32>
    %321 = vector.extract_strided_slice %316 {offsets = [0, 16], sizes = [8, 8], strides = [1, 1]} : vector<8x32xf32> to vector<8x8xf32>
    %322 = vector.extract_strided_slice %316 {offsets = [0, 24], sizes = [8, 8], strides = [1, 1]} : vector<8x32xf32> to vector<8x8xf32>
    %323 = vector.shape_cast %319 : vector<8x8xf32> to vector<1x8x8xf32>
    %324 = vector.shape_cast %320 : vector<8x8xf32> to vector<1x8x8xf32>
    %325 = vector.shape_cast %321 : vector<8x8xf32> to vector<1x8x8xf32>
    %326 = vector.shape_cast %322 : vector<8x8xf32> to vector<1x8x8xf32>
    %327 = tpu.concatenate %323, %324, %325, %326 in 0 : vector<1x8x8xf32>, vector<1x8x8xf32>, vector<1x8x8xf32>, vector<1x8x8xf32> -> vector<4x8x8xf32>
    %328 = arith.truncf %327 : vector<4x8x8xf32> to vector<4x8x8xbf16>
    %329 = vector.extract_strided_slice %317 {offsets = [0, 0], sizes = [8, 8], strides = [1, 1]} : vector<8x32xf32> to vector<8x8xf32>
    %330 = vector.extract_strided_slice %317 {offsets = [0, 8], sizes = [8, 8], strides = [1, 1]} : vector<8x32xf32> to vector<8x8xf32>
    %331 = vector.extract_strided_slice %317 {offsets = [0, 16], sizes = [8, 8], strides = [1, 1]} : vector<8x32xf32> to vector<8x8xf32>
    %332 = vector.extract_strided_slice %317 {offsets = [0, 24], sizes = [8, 8], strides = [1, 1]} : vector<8x32xf32> to vector<8x8xf32>
    %333 = vector.shape_cast %329 : vector<8x8xf32> to vector<1x8x8xf32>
    %334 = vector.shape_cast %330 : vector<8x8xf32> to vector<1x8x8xf32>
    %335 = vector.shape_cast %331 : vector<8x8xf32> to vector<1x8x8xf32>
    %336 = vector.shape_cast %332 : vector<8x8xf32> to vector<1x8x8xf32>
    %337 = tpu.concatenate %333, %334, %335, %336 in 0 : vector<1x8x8xf32>, vector<1x8x8xf32>, vector<1x8x8xf32>, vector<1x8x8xf32> -> vector<4x8x8xf32>
    %338 = arith.truncf %337 : vector<4x8x8xf32> to vector<4x8x8xbf16>
    %339 = vector.extract_strided_slice %318 {offsets = [0, 0], sizes = [8, 8], strides = [1, 1]} : vector<8x32xf32> to vector<8x8xf32>
    %340 = vector.extract_strided_slice %318 {offsets = [0, 8], sizes = [8, 8], strides = [1, 1]} : vector<8x32xf32> to vector<8x8xf32>
    %341 = vector.extract_strided_slice %318 {offsets = [0, 16], sizes = [8, 8], strides = [1, 1]} : vector<8x32xf32> to vector<8x8xf32>
    %342 = vector.extract_strided_slice %318 {offsets = [0, 24], sizes = [8, 8], strides = [1, 1]} : vector<8x32xf32> to vector<8x8xf32>
    %343 = vector.shape_cast %339 : vector<8x8xf32> to vector<1x8x8xf32>
    %344 = vector.shape_cast %340 : vector<8x8xf32> to vector<1x8x8xf32>
    %345 = vector.shape_cast %341 : vector<8x8xf32> to vector<1x8x8xf32>
    %346 = vector.shape_cast %342 : vector<8x8xf32> to vector<1x8x8xf32>
    %347 = tpu.concatenate %343, %344, %345, %346 in 0 : vector<1x8x8xf32>, vector<1x8x8xf32>, vector<1x8x8xf32>, vector<1x8x8xf32> -> vector<4x8x8xf32>
    %348 = arith.truncf %347 : vector<4x8x8xf32> to vector<4x8x8xbf16>
    "tpu.trace_start"() <{level = 10 : i32, message = "hqd,hkd->hqk"}> : () -> ()
    %cst_114 = arith.constant dense<0.000000e+00> : vector<4x8x8xf32>
    %349 = tpu.matmul %328, %338, %cst_114 {dimension_numbers = #tpu.dot_dimension_numbers<[2], [2], [1], [1], [0, 0, 0, 1, 1, 1], [0], [0]>} : vector<4x8x8xbf16>, vector<4x8x8xbf16>, vector<4x8x8xf32> -> vector<4x8x8xf32>
    "tpu.trace_stop"() : () -> ()
    %cst_115 = arith.constant dense<0xFF800000> : vector<4x8xf32>
    %350 = vector.multi_reduction <maximumf>, %349, %cst_115 [2] : vector<4x8x8xf32> to vector<4x8xf32>
    %351 = vector.shape_cast %350 : vector<4x8xf32> to vector<4x8x1xf32>
    %352 = vector.broadcast %351 : vector<4x8x1xf32> to vector<4x8x8xf32>
    %353 = arith.subf %349, %352 : vector<4x8x8xf32>
    %354 = math.exp %353 : vector<4x8x8xf32>
    %cst_116 = arith.constant dense<0.000000e+00> : vector<4x8xf32>
    %355 = vector.multi_reduction <add>, %354, %cst_116 [2] : vector<4x8x8xf32> to vector<4x8xf32>
    %356 = vector.shape_cast %355 : vector<4x8xf32> to vector<4x8x1xf32>
    %357 = tpu.reciprocal %356 {approx = true} : vector<4x8x1xf32> -> vector<4x8x1xf32>
    %358 = vector.broadcast %357 : vector<4x8x1xf32> to vector<4x8x8xf32>
    %359 = arith.mulf %354, %358 : vector<4x8x8xf32>
    %360 = arith.truncf %359 : vector<4x8x8xf32> to vector<4x8x8xbf16>
    "tpu.trace_start"() <{level = 10 : i32, message = "hqk,hkd->hqd"}> : () -> ()
    %cst_117 = arith.constant dense<0.000000e+00> : vector<4x8x8xf32>
    %361 = tpu.matmul %360, %348, %cst_117 {dimension_numbers = #tpu.dot_dimension_numbers<[2], [1], [1], [2], [0, 0, 0, 1, 1, 2], [0], [0]>} : vector<4x8x8xbf16>, vector<4x8x8xbf16>, vector<4x8x8xf32> -> vector<4x8x8xf32>
    "tpu.trace_stop"() : () -> ()
    %362 = vector.extract_strided_slice %361 {offsets = [0, 0, 0], sizes = [1, 8, 8], strides = [1, 1, 1]} : vector<4x8x8xf32> to vector<1x8x8xf32>
    %363 = vector.shape_cast %362 : vector<1x8x8xf32> to vector<8x8xf32>
    %364 = vector.extract_strided_slice %361 {offsets = [1, 0, 0], sizes = [1, 8, 8], strides = [1, 1, 1]} : vector<4x8x8xf32> to vector<1x8x8xf32>
    %365 = vector.shape_cast %364 : vector<1x8x8xf32> to vector<8x8xf32>
    %366 = vector.extract_strided_slice %361 {offsets = [2, 0, 0], sizes = [1, 8, 8], strides = [1, 1, 1]} : vector<4x8x8xf32> to vector<1x8x8xf32>
    %367 = vector.shape_cast %366 : vector<1x8x8xf32> to vector<8x8xf32>
    %368 = vector.extract_strided_slice %361 {offsets = [3, 0, 0], sizes = [1, 8, 8], strides = [1, 1, 1]} : vector<4x8x8xf32> to vector<1x8x8xf32>
    %369 = vector.shape_cast %368 : vector<1x8x8xf32> to vector<8x8xf32>
    %370 = tpu.concatenate %363, %365, %367, %369 in 1 : vector<8x8xf32>, vector<8x8xf32>, vector<8x8xf32>, vector<8x8xf32> -> vector<8x32xf32>
    %371 = arith.truncf %370 : vector<8x32xf32> to vector<8x32xbf16>
    %cst_118 = arith.constant dense<0.000000e+00> : vector<8x32xf32>
    %372 = tpu.matmul %371, %283, %cst_118 {dimension_numbers = #tpu.dot_dimension_numbers<[1], [0], [0], [1], [0, 0, 1, 1], [], []>} : vector<8x32xbf16>, vector<32x32xbf16>, vector<8x32xf32> -> vector<8x32xf32>
    %373 = vector.broadcast %302 : vector<1x32xf32> to vector<8x32xf32>
    %374 = arith.addf %372, %373 : vector<8x32xf32>
    %375 = arith.addf %279, %374 : vector<8x32xf32>
    %cst_119 = arith.constant dense<0.000000e+00> : vector<8xf32>
    %376 = vector.multi_reduction <add>, %375, %cst_119 [1] : vector<8x32xf32> to vector<8xf32>
    %377 = vector.shape_cast %376 : vector<8xf32> to vector<8x1xf32>
    %cst_120 = arith.constant 3.200000e+01 : f32
    %378 = vector.broadcast %cst_120 : f32 to vector<8x1xf32>
    %379 = arith.divf %377, %378 : vector<8x1xf32>
    %380 = vector.broadcast %379 : vector<8x1xf32> to vector<8x32xf32>
    %381 = arith.subf %375, %380 : vector<8x32xf32>
    %382 = arith.mulf %381, %381 : vector<8x32xf32>
    %cst_121 = arith.constant dense<0.000000e+00> : vector<8xf32>
    %383 = vector.multi_reduction <add>, %382, %cst_121 [1] : vector<8x32xf32> to vector<8xf32>
    %384 = vector.shape_cast %383 : vector<8xf32> to vector<8x1xf32>
    %cst_122 = arith.constant 3.200000e+01 : f32
    %385 = vector.broadcast %cst_122 : f32 to vector<8x1xf32>
    %386 = arith.divf %384, %385 : vector<8x1xf32>
    %387 = vector.broadcast %379 : vector<8x1xf32> to vector<8x32xf32>
    %388 = arith.subf %375, %387 : vector<8x32xf32>
    %cst_123 = arith.constant 9.99999974E-6 : f32
    %389 = vector.broadcast %cst_123 : f32 to vector<8x1xf32>
    %390 = arith.addf %386, %389 : vector<8x1xf32>
    %391 = math.rsqrt %390 : vector<8x1xf32>
    %392 = vector.broadcast %391 : vector<8x1xf32> to vector<8x32xf32>
    %393 = arith.mulf %388, %392 : vector<8x32xf32>
    %394 = vector.broadcast %303 : vector<1x32xf32> to vector<8x32xf32>
    %395 = arith.mulf %393, %394 : vector<8x32xf32>
    %396 = vector.broadcast %304 : vector<1x32xf32> to vector<8x32xf32>
    %397 = arith.addf %395, %396 : vector<8x32xf32>
    %398 = arith.truncf %397 : vector<8x32xf32> to vector<8x32xbf16>
    %cst_124 = arith.constant dense<0.000000e+00> : vector<8x32xf32>
    %399 = tpu.matmul %398, %285, %cst_124 {dimension_numbers = #tpu.dot_dimension_numbers<[1], [0], [0], [1], [0, 0, 1, 1], [], []>} : vector<8x32xbf16>, vector<32x32xbf16>, vector<8x32xf32> -> vector<8x32xf32>
    %400 = vector.broadcast %305 : vector<1x32xf32> to vector<8x32xf32>
    %401 = arith.addf %399, %400 : vector<8x32xf32>
    %402 = arith.truncf %279 : vector<8x32xf32> to vector<8x32xbf16>
    %cst_125 = arith.constant dense<0.000000e+00> : vector<8x64xf32>
    %403 = tpu.matmul %402, %287, %cst_125 {dimension_numbers = #tpu.dot_dimension_numbers<[1], [0], [0], [1], [0, 0, 1, 1], [], []>} : vector<8x32xbf16>, vector<32x64xbf16>, vector<8x64xf32> -> vector<8x64xf32>
    %404 = vector.broadcast %299 : vector<1x64xf32> to vector<8x64xf32>
    %405 = arith.addf %403, %404 : vector<8x64xf32>
    %406 = vector.extract_strided_slice %405 {offsets = [0, 0], sizes = [8, 32], strides = [1, 1]} : vector<8x64xf32> to vector<8x32xf32>
    %407 = vector.extract_strided_slice %405 {offsets = [0, 32], sizes = [8, 32], strides = [1, 1]} : vector<8x64xf32> to vector<8x32xf32>
    %408 = vector.extract_strided_slice %401 {offsets = [0, 0], sizes = [8, 8], strides = [1, 1]} : vector<8x32xf32> to vector<8x8xf32>
    %409 = vector.extract_strided_slice %401 {offsets = [0, 8], sizes = [8, 8], strides = [1, 1]} : vector<8x32xf32> to vector<8x8xf32>
    %410 = vector.extract_strided_slice %401 {offsets = [0, 16], sizes = [8, 8], strides = [1, 1]} : vector<8x32xf32> to vector<8x8xf32>
    %411 = vector.extract_strided_slice %401 {offsets = [0, 24], sizes = [8, 8], strides = [1, 1]} : vector<8x32xf32> to vector<8x8xf32>
    %412 = vector.shape_cast %408 : vector<8x8xf32> to vector<1x8x8xf32>
    %413 = vector.shape_cast %409 : vector<8x8xf32> to vector<1x8x8xf32>
    %414 = vector.shape_cast %410 : vector<8x8xf32> to vector<1x8x8xf32>
    %415 = vector.shape_cast %411 : vector<8x8xf32> to vector<1x8x8xf32>
    %416 = tpu.concatenate %412, %413, %414, %415 in 0 : vector<1x8x8xf32>, vector<1x8x8xf32>, vector<1x8x8xf32>, vector<1x8x8xf32> -> vector<4x8x8xf32>
    %417 = arith.truncf %416 : vector<4x8x8xf32> to vector<4x8x8xbf16>
    %418 = vector.extract_strided_slice %406 {offsets = [0, 0], sizes = [8, 8], strides = [1, 1]} : vector<8x32xf32> to vector<8x8xf32>
    %419 = vector.extract_strided_slice %406 {offsets = [0, 8], sizes = [8, 8], strides = [1, 1]} : vector<8x32xf32> to vector<8x8xf32>
    %420 = vector.extract_strided_slice %406 {offsets = [0, 16], sizes = [8, 8], strides = [1, 1]} : vector<8x32xf32> to vector<8x8xf32>
    %421 = vector.extract_strided_slice %406 {offsets = [0, 24], sizes = [8, 8], strides = [1, 1]} : vector<8x32xf32> to vector<8x8xf32>
    %422 = vector.shape_cast %418 : vector<8x8xf32> to vector<1x8x8xf32>
    %423 = vector.shape_cast %419 : vector<8x8xf32> to vector<1x8x8xf32>
    %424 = vector.shape_cast %420 : vector<8x8xf32> to vector<1x8x8xf32>
    %425 = vector.shape_cast %421 : vector<8x8xf32> to vector<1x8x8xf32>
    %426 = tpu.concatenate %422, %423, %424, %425 in 0 : vector<1x8x8xf32>, vector<1x8x8xf32>, vector<1x8x8xf32>, vector<1x8x8xf32> -> vector<4x8x8xf32>
    %427 = arith.truncf %426 : vector<4x8x8xf32> to vector<4x8x8xbf16>
    %428 = vector.extract_strided_slice %407 {offsets = [0, 0], sizes = [8, 8], strides = [1, 1]} : vector<8x32xf32> to vector<8x8xf32>
    %429 = vector.extract_strided_slice %407 {offsets = [0, 8], sizes = [8, 8], strides = [1, 1]} : vector<8x32xf32> to vector<8x8xf32>
    %430 = vector.extract_strided_slice %407 {offsets = [0, 16], sizes = [8, 8], strides = [1, 1]} : vector<8x32xf32> to vector<8x8xf32>
    %431 = vector.extract_strided_slice %407 {offsets = [0, 24], sizes = [8, 8], strides = [1, 1]} : vector<8x32xf32> to vector<8x8xf32>
    %432 = vector.shape_cast %428 : vector<8x8xf32> to vector<1x8x8xf32>
    %433 = vector.shape_cast %429 : vector<8x8xf32> to vector<1x8x8xf32>
    %434 = vector.shape_cast %430 : vector<8x8xf32> to vector<1x8x8xf32>
    %435 = vector.shape_cast %431 : vector<8x8xf32> to vector<1x8x8xf32>
    %436 = tpu.concatenate %432, %433, %434, %435 in 0 : vector<1x8x8xf32>, vector<1x8x8xf32>, vector<1x8x8xf32>, vector<1x8x8xf32> -> vector<4x8x8xf32>
    %437 = arith.truncf %436 : vector<4x8x8xf32> to vector<4x8x8xbf16>
    "tpu.trace_start"() <{level = 10 : i32, message = "hqd,hkd->hqk"}> : () -> ()
    %cst_126 = arith.constant dense<0.000000e+00> : vector<4x8x8xf32>
    %438 = tpu.matmul %417, %427, %cst_126 {dimension_numbers = #tpu.dot_dimension_numbers<[2], [2], [1], [1], [0, 0, 0, 1, 1, 1], [0], [0]>} : vector<4x8x8xbf16>, vector<4x8x8xbf16>, vector<4x8x8xf32> -> vector<4x8x8xf32>
    "tpu.trace_stop"() : () -> ()
    %cst_127 = arith.constant dense<0xFF800000> : vector<4x8xf32>
    %439 = vector.multi_reduction <maximumf>, %438, %cst_127 [2] : vector<4x8x8xf32> to vector<4x8xf32>
    %440 = vector.shape_cast %439 : vector<4x8xf32> to vector<4x8x1xf32>
    %441 = vector.broadcast %440 : vector<4x8x1xf32> to vector<4x8x8xf32>
    %442 = arith.subf %438, %441 : vector<4x8x8xf32>
    %443 = math.exp %442 : vector<4x8x8xf32>
    %cst_128 = arith.constant dense<0.000000e+00> : vector<4x8xf32>
    %444 = vector.multi_reduction <add>, %443, %cst_128 [2] : vector<4x8x8xf32> to vector<4x8xf32>
    %445 = vector.shape_cast %444 : vector<4x8xf32> to vector<4x8x1xf32>
    %446 = tpu.reciprocal %445 {approx = true} : vector<4x8x1xf32> -> vector<4x8x1xf32>
    %447 = vector.broadcast %446 : vector<4x8x1xf32> to vector<4x8x8xf32>
    %448 = arith.mulf %443, %447 : vector<4x8x8xf32>
    %449 = arith.truncf %448 : vector<4x8x8xf32> to vector<4x8x8xbf16>
    "tpu.trace_start"() <{level = 10 : i32, message = "hqk,hkd->hqd"}> : () -> ()
    %cst_129 = arith.constant dense<0.000000e+00> : vector<4x8x8xf32>
    %450 = tpu.matmul %449, %437, %cst_129 {dimension_numbers = #tpu.dot_dimension_numbers<[2], [1], [1], [2], [0, 0, 0, 1, 1, 2], [0], [0]>} : vector<4x8x8xbf16>, vector<4x8x8xbf16>, vector<4x8x8xf32> -> vector<4x8x8xf32>
    "tpu.trace_stop"() : () -> ()
    %451 = vector.extract_strided_slice %450 {offsets = [0, 0, 0], sizes = [1, 8, 8], strides = [1, 1, 1]} : vector<4x8x8xf32> to vector<1x8x8xf32>
    %452 = vector.shape_cast %451 : vector<1x8x8xf32> to vector<8x8xf32>
    %453 = vector.extract_strided_slice %450 {offsets = [1, 0, 0], sizes = [1, 8, 8], strides = [1, 1, 1]} : vector<4x8x8xf32> to vector<1x8x8xf32>
    %454 = vector.shape_cast %453 : vector<1x8x8xf32> to vector<8x8xf32>
    %455 = vector.extract_strided_slice %450 {offsets = [2, 0, 0], sizes = [1, 8, 8], strides = [1, 1, 1]} : vector<4x8x8xf32> to vector<1x8x8xf32>
    %456 = vector.shape_cast %455 : vector<1x8x8xf32> to vector<8x8xf32>
    %457 = vector.extract_strided_slice %450 {offsets = [3, 0, 0], sizes = [1, 8, 8], strides = [1, 1, 1]} : vector<4x8x8xf32> to vector<1x8x8xf32>
    %458 = vector.shape_cast %457 : vector<1x8x8xf32> to vector<8x8xf32>
    %459 = tpu.concatenate %452, %454, %456, %458 in 1 : vector<8x8xf32>, vector<8x8xf32>, vector<8x8xf32>, vector<8x8xf32> -> vector<8x32xf32>
    %460 = arith.truncf %459 : vector<8x32xf32> to vector<8x32xbf16>
    %cst_130 = arith.constant dense<0.000000e+00> : vector<8x32xf32>
    %461 = tpu.matmul %460, %289, %cst_130 {dimension_numbers = #tpu.dot_dimension_numbers<[1], [0], [0], [1], [0, 0, 1, 1], [], []>} : vector<8x32xbf16>, vector<32x32xbf16>, vector<8x32xf32> -> vector<8x32xf32>
    %462 = vector.broadcast %306 : vector<1x32xf32> to vector<8x32xf32>
    %463 = arith.addf %461, %462 : vector<8x32xf32>
    %464 = arith.addf %397, %463 : vector<8x32xf32>
    %cst_131 = arith.constant dense<0.000000e+00> : vector<8xf32>
    %465 = vector.multi_reduction <add>, %464, %cst_131 [1] : vector<8x32xf32> to vector<8xf32>
    %466 = vector.shape_cast %465 : vector<8xf32> to vector<8x1xf32>
    %cst_132 = arith.constant 3.200000e+01 : f32
    %467 = vector.broadcast %cst_132 : f32 to vector<8x1xf32>
    %468 = arith.divf %466, %467 : vector<8x1xf32>
    %469 = vector.broadcast %468 : vector<8x1xf32> to vector<8x32xf32>
    %470 = arith.subf %464, %469 : vector<8x32xf32>
    %471 = arith.mulf %470, %470 : vector<8x32xf32>
    %cst_133 = arith.constant dense<0.000000e+00> : vector<8xf32>
    %472 = vector.multi_reduction <add>, %471, %cst_133 [1] : vector<8x32xf32> to vector<8xf32>
    %473 = vector.shape_cast %472 : vector<8xf32> to vector<8x1xf32>
    %cst_134 = arith.constant 3.200000e+01 : f32
    %474 = vector.broadcast %cst_134 : f32 to vector<8x1xf32>
    %475 = arith.divf %473, %474 : vector<8x1xf32>
    %476 = vector.broadcast %468 : vector<8x1xf32> to vector<8x32xf32>
    %477 = arith.subf %464, %476 : vector<8x32xf32>
    %cst_135 = arith.constant 9.99999974E-6 : f32
    %478 = vector.broadcast %cst_135 : f32 to vector<8x1xf32>
    %479 = arith.addf %475, %478 : vector<8x1xf32>
    %480 = math.rsqrt %479 : vector<8x1xf32>
    %481 = vector.broadcast %480 : vector<8x1xf32> to vector<8x32xf32>
    %482 = arith.mulf %477, %481 : vector<8x32xf32>
    %483 = vector.broadcast %307 : vector<1x32xf32> to vector<8x32xf32>
    %484 = arith.mulf %482, %483 : vector<8x32xf32>
    %485 = vector.broadcast %308 : vector<1x32xf32> to vector<8x32xf32>
    %486 = arith.addf %484, %485 : vector<8x32xf32>
    %487 = arith.truncf %486 : vector<8x32xf32> to vector<8x32xbf16>
    %cst_136 = arith.constant dense<0.000000e+00> : vector<8x64xf32>
    %488 = tpu.matmul %487, %291, %cst_136 {dimension_numbers = #tpu.dot_dimension_numbers<[1], [0], [0], [1], [0, 0, 1, 1], [], []>} : vector<8x32xbf16>, vector<32x64xbf16>, vector<8x64xf32> -> vector<8x64xf32>
    %489 = vector.broadcast %301 : vector<1x64xf32> to vector<8x64xf32>
    %490 = arith.addf %488, %489 : vector<8x64xf32>
    %cst_137 = arith.constant 0.000000e+00 : f32
    %491 = vector.broadcast %cst_137 : f32 to vector<8x64xf32>
    %492 = arith.maximumf %490, %491 : vector<8x64xf32>
    %493 = arith.truncf %492 : vector<8x64xf32> to vector<8x64xbf16>
    %cst_138 = arith.constant dense<0.000000e+00> : vector<8x32xf32>
    %494 = tpu.matmul %493, %293, %cst_138 {dimension_numbers = #tpu.dot_dimension_numbers<[1], [0], [0], [1], [0, 0, 1, 1], [], []>} : vector<8x64xbf16>, vector<64x32xbf16>, vector<8x32xf32> -> vector<8x32xf32>
    %495 = vector.broadcast %309 : vector<1x32xf32> to vector<8x32xf32>
    %496 = arith.addf %494, %495 : vector<8x32xf32>
    %497 = arith.addf %486, %496 : vector<8x32xf32>
    %cst_139 = arith.constant dense<0.000000e+00> : vector<8xf32>
    %498 = vector.multi_reduction <add>, %497, %cst_139 [1] : vector<8x32xf32> to vector<8xf32>
    %499 = vector.shape_cast %498 : vector<8xf32> to vector<8x1xf32>
    %cst_140 = arith.constant 3.200000e+01 : f32
    %500 = vector.broadcast %cst_140 : f32 to vector<8x1xf32>
    %501 = arith.divf %499, %500 : vector<8x1xf32>
    %502 = vector.broadcast %501 : vector<8x1xf32> to vector<8x32xf32>
    %503 = arith.subf %497, %502 : vector<8x32xf32>
    %504 = arith.mulf %503, %503 : vector<8x32xf32>
    %cst_141 = arith.constant dense<0.000000e+00> : vector<8xf32>
    %505 = vector.multi_reduction <add>, %504, %cst_141 [1] : vector<8x32xf32> to vector<8xf32>
    %506 = vector.shape_cast %505 : vector<8xf32> to vector<8x1xf32>
    %cst_142 = arith.constant 3.200000e+01 : f32
    %507 = vector.broadcast %cst_142 : f32 to vector<8x1xf32>
    %508 = arith.divf %506, %507 : vector<8x1xf32>
    %509 = vector.broadcast %501 : vector<8x1xf32> to vector<8x32xf32>
    %510 = arith.subf %497, %509 : vector<8x32xf32>
    %cst_143 = arith.constant 9.99999974E-6 : f32
    %511 = vector.broadcast %cst_143 : f32 to vector<8x1xf32>
    %512 = arith.addf %508, %511 : vector<8x1xf32>
    %513 = math.rsqrt %512 : vector<8x1xf32>
    %514 = vector.broadcast %513 : vector<8x1xf32> to vector<8x32xf32>
    %515 = arith.mulf %510, %514 : vector<8x32xf32>
    %516 = vector.broadcast %310 : vector<1x32xf32> to vector<8x32xf32>
    %517 = arith.mulf %515, %516 : vector<8x32xf32>
    %518 = vector.broadcast %311 : vector<1x32xf32> to vector<8x32xf32>
    %519 = arith.addf %517, %518 : vector<8x32xf32>
    %c1_144 = arith.constant 1 : index
    %c0_145 = arith.constant 0 : index
    %c0_146 = arith.constant 0 : index
    %520 = vector.load %arg9[%c1_144, %c0_145, %c0_146] : memref<2x32x96xbf16, #tpu.memory_space<vmem>>, vector<1x32x96xbf16>
    %521 = vector.shape_cast %520 : vector<1x32x96xbf16> to vector<32x96xbf16>
    %c1_147 = arith.constant 1 : index
    %c0_148 = arith.constant 0 : index
    %c0_149 = arith.constant 0 : index
    %522 = vector.load %arg10[%c1_147, %c0_148, %c0_149] : memref<2x32x32xbf16, #tpu.memory_space<vmem>>, vector<1x32x32xbf16>
    %523 = vector.shape_cast %522 : vector<1x32x32xbf16> to vector<32x32xbf16>
    %c1_150 = arith.constant 1 : index
    %c0_151 = arith.constant 0 : index
    %c0_152 = arith.constant 0 : index
    %524 = vector.load %arg11[%c1_150, %c0_151, %c0_152] : memref<2x32x32xbf16, #tpu.memory_space<vmem>>, vector<1x32x32xbf16>
    %525 = vector.shape_cast %524 : vector<1x32x32xbf16> to vector<32x32xbf16>
    %c1_153 = arith.constant 1 : index
    %c0_154 = arith.constant 0 : index
    %c0_155 = arith.constant 0 : index
    %526 = vector.load %arg12[%c1_153, %c0_154, %c0_155] : memref<2x32x64xbf16, #tpu.memory_space<vmem>>, vector<1x32x64xbf16>
    %527 = vector.shape_cast %526 : vector<1x32x64xbf16> to vector<32x64xbf16>
    %c1_156 = arith.constant 1 : index
    %c0_157 = arith.constant 0 : index
    %c0_158 = arith.constant 0 : index
    %528 = vector.load %arg13[%c1_156, %c0_157, %c0_158] : memref<2x32x32xbf16, #tpu.memory_space<vmem>>, vector<1x32x32xbf16>
    %529 = vector.shape_cast %528 : vector<1x32x32xbf16> to vector<32x32xbf16>
    %c1_159 = arith.constant 1 : index
    %c0_160 = arith.constant 0 : index
    %c0_161 = arith.constant 0 : index
    %530 = vector.load %arg14[%c1_159, %c0_160, %c0_161] : memref<2x32x64xbf16, #tpu.memory_space<vmem>>, vector<1x32x64xbf16>
    %531 = vector.shape_cast %530 : vector<1x32x64xbf16> to vector<32x64xbf16>
    %c1_162 = arith.constant 1 : index
    %c0_163 = arith.constant 0 : index
    %c0_164 = arith.constant 0 : index
    %532 = vector.load %arg15[%c1_162, %c0_163, %c0_164] : memref<2x64x32xbf16, #tpu.memory_space<vmem>>, vector<1x64x32xbf16>
    %533 = vector.shape_cast %532 : vector<1x64x32xbf16> to vector<64x32xbf16>
    %c1_165 = arith.constant 1 : index
    %c0_166 = arith.constant 0 : index
    %c0_167 = arith.constant 0 : index
    %534 = vector.load %arg16[%c1_165, %c0_166, %c0_167] : memref<2x10x32xf32, #tpu.memory_space<vmem>>, vector<1x10x32xf32>
    %535 = vector.shape_cast %534 : vector<1x10x32xf32> to vector<10x32xf32>
    %c1_168 = arith.constant 1 : index
    %c0_169 = arith.constant 0 : index
    %c0_170 = arith.constant 0 : index
    %536 = vector.load %arg17[%c1_168, %c0_169, %c0_170] : memref<2x1x96xf32, #tpu.memory_space<vmem>>, vector<1x1x96xf32>
    %537 = vector.shape_cast %536 : vector<1x1x96xf32> to vector<1x96xf32>
    %c1_171 = arith.constant 1 : index
    %c0_172 = arith.constant 0 : index
    %c0_173 = arith.constant 0 : index
    %538 = vector.load %arg18[%c1_171, %c0_172, %c0_173] : memref<2x1x64xf32, #tpu.memory_space<vmem>>, vector<1x1x64xf32>
    %539 = vector.shape_cast %538 : vector<1x1x64xf32> to vector<1x64xf32>
    %c1_174 = arith.constant 1 : index
    %c0_175 = arith.constant 0 : index
    %c0_176 = arith.constant 0 : index
    %540 = vector.load %arg19[%c1_174, %c0_175, %c0_176] : memref<2x1x64xf32, #tpu.memory_space<vmem>>, vector<1x1x64xf32>
    %541 = vector.shape_cast %540 : vector<1x1x64xf32> to vector<1x64xf32>
    %542 = vector.extract_strided_slice %535 {offsets = [0, 0], sizes = [1, 32], strides = [1, 1]} : vector<10x32xf32> to vector<1x32xf32>
    %543 = vector.extract_strided_slice %535 {offsets = [1, 0], sizes = [1, 32], strides = [1, 1]} : vector<10x32xf32> to vector<1x32xf32>
    %544 = vector.extract_strided_slice %535 {offsets = [2, 0], sizes = [1, 32], strides = [1, 1]} : vector<10x32xf32> to vector<1x32xf32>
    %545 = vector.extract_strided_slice %535 {offsets = [3, 0], sizes = [1, 32], strides = [1, 1]} : vector<10x32xf32> to vector<1x32xf32>
    %546 = vector.extract_strided_slice %535 {offsets = [4, 0], sizes = [1, 32], strides = [1, 1]} : vector<10x32xf32> to vector<1x32xf32>
    %547 = vector.extract_strided_slice %535 {offsets = [5, 0], sizes = [1, 32], strides = [1, 1]} : vector<10x32xf32> to vector<1x32xf32>
    %548 = vector.extract_strided_slice %535 {offsets = [6, 0], sizes = [1, 32], strides = [1, 1]} : vector<10x32xf32> to vector<1x32xf32>
    %549 = vector.extract_strided_slice %535 {offsets = [7, 0], sizes = [1, 32], strides = [1, 1]} : vector<10x32xf32> to vector<1x32xf32>
    %550 = vector.extract_strided_slice %535 {offsets = [8, 0], sizes = [1, 32], strides = [1, 1]} : vector<10x32xf32> to vector<1x32xf32>
    %551 = vector.extract_strided_slice %535 {offsets = [9, 0], sizes = [1, 32], strides = [1, 1]} : vector<10x32xf32> to vector<1x32xf32>
    %552 = arith.truncf %519 : vector<8x32xf32> to vector<8x32xbf16>
    %cst_177 = arith.constant dense<0.000000e+00> : vector<8x96xf32>
    %553 = tpu.matmul %552, %521, %cst_177 {dimension_numbers = #tpu.dot_dimension_numbers<[1], [0], [0], [1], [0, 0, 1, 1], [], []>} : vector<8x32xbf16>, vector<32x96xbf16>, vector<8x96xf32> -> vector<8x96xf32>
    %554 = vector.broadcast %537 : vector<1x96xf32> to vector<8x96xf32>
    %555 = arith.addf %553, %554 : vector<8x96xf32>
    %556 = vector.extract_strided_slice %555 {offsets = [0, 0], sizes = [8, 32], strides = [1, 1]} : vector<8x96xf32> to vector<8x32xf32>
    %557 = vector.extract_strided_slice %555 {offsets = [0, 32], sizes = [8, 32], strides = [1, 1]} : vector<8x96xf32> to vector<8x32xf32>
    %558 = vector.extract_strided_slice %555 {offsets = [0, 64], sizes = [8, 32], strides = [1, 1]} : vector<8x96xf32> to vector<8x32xf32>
    %559 = vector.extract_strided_slice %556 {offsets = [0, 0], sizes = [8, 8], strides = [1, 1]} : vector<8x32xf32> to vector<8x8xf32>
    %560 = vector.extract_strided_slice %556 {offsets = [0, 8], sizes = [8, 8], strides = [1, 1]} : vector<8x32xf32> to vector<8x8xf32>
    %561 = vector.extract_strided_slice %556 {offsets = [0, 16], sizes = [8, 8], strides = [1, 1]} : vector<8x32xf32> to vector<8x8xf32>
    %562 = vector.extract_strided_slice %556 {offsets = [0, 24], sizes = [8, 8], strides = [1, 1]} : vector<8x32xf32> to vector<8x8xf32>
    %563 = vector.shape_cast %559 : vector<8x8xf32> to vector<1x8x8xf32>
    %564 = vector.shape_cast %560 : vector<8x8xf32> to vector<1x8x8xf32>
    %565 = vector.shape_cast %561 : vector<8x8xf32> to vector<1x8x8xf32>
    %566 = vector.shape_cast %562 : vector<8x8xf32> to vector<1x8x8xf32>
    %567 = tpu.concatenate %563, %564, %565, %566 in 0 : vector<1x8x8xf32>, vector<1x8x8xf32>, vector<1x8x8xf32>, vector<1x8x8xf32> -> vector<4x8x8xf32>
    %568 = arith.truncf %567 : vector<4x8x8xf32> to vector<4x8x8xbf16>
    %569 = vector.extract_strided_slice %557 {offsets = [0, 0], sizes = [8, 8], strides = [1, 1]} : vector<8x32xf32> to vector<8x8xf32>
    %570 = vector.extract_strided_slice %557 {offsets = [0, 8], sizes = [8, 8], strides = [1, 1]} : vector<8x32xf32> to vector<8x8xf32>
    %571 = vector.extract_strided_slice %557 {offsets = [0, 16], sizes = [8, 8], strides = [1, 1]} : vector<8x32xf32> to vector<8x8xf32>
    %572 = vector.extract_strided_slice %557 {offsets = [0, 24], sizes = [8, 8], strides = [1, 1]} : vector<8x32xf32> to vector<8x8xf32>
    %573 = vector.shape_cast %569 : vector<8x8xf32> to vector<1x8x8xf32>
    %574 = vector.shape_cast %570 : vector<8x8xf32> to vector<1x8x8xf32>
    %575 = vector.shape_cast %571 : vector<8x8xf32> to vector<1x8x8xf32>
    %576 = vector.shape_cast %572 : vector<8x8xf32> to vector<1x8x8xf32>
    %577 = tpu.concatenate %573, %574, %575, %576 in 0 : vector<1x8x8xf32>, vector<1x8x8xf32>, vector<1x8x8xf32>, vector<1x8x8xf32> -> vector<4x8x8xf32>
    %578 = arith.truncf %577 : vector<4x8x8xf32> to vector<4x8x8xbf16>
    %579 = vector.extract_strided_slice %558 {offsets = [0, 0], sizes = [8, 8], strides = [1, 1]} : vector<8x32xf32> to vector<8x8xf32>
    %580 = vector.extract_strided_slice %558 {offsets = [0, 8], sizes = [8, 8], strides = [1, 1]} : vector<8x32xf32> to vector<8x8xf32>
    %581 = vector.extract_strided_slice %558 {offsets = [0, 16], sizes = [8, 8], strides = [1, 1]} : vector<8x32xf32> to vector<8x8xf32>
    %582 = vector.extract_strided_slice %558 {offsets = [0, 24], sizes = [8, 8], strides = [1, 1]} : vector<8x32xf32> to vector<8x8xf32>
    %583 = vector.shape_cast %579 : vector<8x8xf32> to vector<1x8x8xf32>
    %584 = vector.shape_cast %580 : vector<8x8xf32> to vector<1x8x8xf32>
    %585 = vector.shape_cast %581 : vector<8x8xf32> to vector<1x8x8xf32>
    %586 = vector.shape_cast %582 : vector<8x8xf32> to vector<1x8x8xf32>
    %587 = tpu.concatenate %583, %584, %585, %586 in 0 : vector<1x8x8xf32>, vector<1x8x8xf32>, vector<1x8x8xf32>, vector<1x8x8xf32> -> vector<4x8x8xf32>
    %588 = arith.truncf %587 : vector<4x8x8xf32> to vector<4x8x8xbf16>
    "tpu.trace_start"() <{level = 10 : i32, message = "hqd,hkd->hqk"}> : () -> ()
    %cst_178 = arith.constant dense<0.000000e+00> : vector<4x8x8xf32>
    %589 = tpu.matmul %568, %578, %cst_178 {dimension_numbers = #tpu.dot_dimension_numbers<[2], [2], [1], [1], [0, 0, 0, 1, 1, 1], [0], [0]>} : vector<4x8x8xbf16>, vector<4x8x8xbf16>, vector<4x8x8xf32> -> vector<4x8x8xf32>
    "tpu.trace_stop"() : () -> ()
    %cst_179 = arith.constant dense<0xFF800000> : vector<4x8xf32>
    %590 = vector.multi_reduction <maximumf>, %589, %cst_179 [2] : vector<4x8x8xf32> to vector<4x8xf32>
    %591 = vector.shape_cast %590 : vector<4x8xf32> to vector<4x8x1xf32>
    %592 = vector.broadcast %591 : vector<4x8x1xf32> to vector<4x8x8xf32>
    %593 = arith.subf %589, %592 : vector<4x8x8xf32>
    %594 = math.exp %593 : vector<4x8x8xf32>
    %cst_180 = arith.constant dense<0.000000e+00> : vector<4x8xf32>
    %595 = vector.multi_reduction <add>, %594, %cst_180 [2] : vector<4x8x8xf32> to vector<4x8xf32>
    %596 = vector.shape_cast %595 : vector<4x8xf32> to vector<4x8x1xf32>
    %597 = tpu.reciprocal %596 {approx = true} : vector<4x8x1xf32> -> vector<4x8x1xf32>
    %598 = vector.broadcast %597 : vector<4x8x1xf32> to vector<4x8x8xf32>
    %599 = arith.mulf %594, %598 : vector<4x8x8xf32>
    %600 = arith.truncf %599 : vector<4x8x8xf32> to vector<4x8x8xbf16>
    "tpu.trace_start"() <{level = 10 : i32, message = "hqk,hkd->hqd"}> : () -> ()
    %cst_181 = arith.constant dense<0.000000e+00> : vector<4x8x8xf32>
    %601 = tpu.matmul %600, %588, %cst_181 {dimension_numbers = #tpu.dot_dimension_numbers<[2], [1], [1], [2], [0, 0, 0, 1, 1, 2], [0], [0]>} : vector<4x8x8xbf16>, vector<4x8x8xbf16>, vector<4x8x8xf32> -> vector<4x8x8xf32>
    "tpu.trace_stop"() : () -> ()
    %602 = vector.extract_strided_slice %601 {offsets = [0, 0, 0], sizes = [1, 8, 8], strides = [1, 1, 1]} : vector<4x8x8xf32> to vector<1x8x8xf32>
    %603 = vector.shape_cast %602 : vector<1x8x8xf32> to vector<8x8xf32>
    %604 = vector.extract_strided_slice %601 {offsets = [1, 0, 0], sizes = [1, 8, 8], strides = [1, 1, 1]} : vector<4x8x8xf32> to vector<1x8x8xf32>
    %605 = vector.shape_cast %604 : vector<1x8x8xf32> to vector<8x8xf32>
    %606 = vector.extract_strided_slice %601 {offsets = [2, 0, 0], sizes = [1, 8, 8], strides = [1, 1, 1]} : vector<4x8x8xf32> to vector<1x8x8xf32>
    %607 = vector.shape_cast %606 : vector<1x8x8xf32> to vector<8x8xf32>
    %608 = vector.extract_strided_slice %601 {offsets = [3, 0, 0], sizes = [1, 8, 8], strides = [1, 1, 1]} : vector<4x8x8xf32> to vector<1x8x8xf32>
    %609 = vector.shape_cast %608 : vector<1x8x8xf32> to vector<8x8xf32>
    %610 = tpu.concatenate %603, %605, %607, %609 in 1 : vector<8x8xf32>, vector<8x8xf32>, vector<8x8xf32>, vector<8x8xf32> -> vector<8x32xf32>
    %611 = arith.truncf %610 : vector<8x32xf32> to vector<8x32xbf16>
    %cst_182 = arith.constant dense<0.000000e+00> : vector<8x32xf32>
    %612 = tpu.matmul %611, %523, %cst_182 {dimension_numbers = #tpu.dot_dimension_numbers<[1], [0], [0], [1], [0, 0, 1, 1], [], []>} : vector<8x32xbf16>, vector<32x32xbf16>, vector<8x32xf32> -> vector<8x32xf32>
    %613 = vector.broadcast %542 : vector<1x32xf32> to vector<8x32xf32>
    %614 = arith.addf %612, %613 : vector<8x32xf32>
    %615 = arith.addf %519, %614 : vector<8x32xf32>
    %cst_183 = arith.constant dense<0.000000e+00> : vector<8xf32>
    %616 = vector.multi_reduction <add>, %615, %cst_183 [1] : vector<8x32xf32> to vector<8xf32>
    %617 = vector.shape_cast %616 : vector<8xf32> to vector<8x1xf32>
    %cst_184 = arith.constant 3.200000e+01 : f32
    %618 = vector.broadcast %cst_184 : f32 to vector<8x1xf32>
    %619 = arith.divf %617, %618 : vector<8x1xf32>
    %620 = vector.broadcast %619 : vector<8x1xf32> to vector<8x32xf32>
    %621 = arith.subf %615, %620 : vector<8x32xf32>
    %622 = arith.mulf %621, %621 : vector<8x32xf32>
    %cst_185 = arith.constant dense<0.000000e+00> : vector<8xf32>
    %623 = vector.multi_reduction <add>, %622, %cst_185 [1] : vector<8x32xf32> to vector<8xf32>
    %624 = vector.shape_cast %623 : vector<8xf32> to vector<8x1xf32>
    %cst_186 = arith.constant 3.200000e+01 : f32
    %625 = vector.broadcast %cst_186 : f32 to vector<8x1xf32>
    %626 = arith.divf %624, %625 : vector<8x1xf32>
    %627 = vector.broadcast %619 : vector<8x1xf32> to vector<8x32xf32>
    %628 = arith.subf %615, %627 : vector<8x32xf32>
    %cst_187 = arith.constant 9.99999974E-6 : f32
    %629 = vector.broadcast %cst_187 : f32 to vector<8x1xf32>
    %630 = arith.addf %626, %629 : vector<8x1xf32>
    %631 = math.rsqrt %630 : vector<8x1xf32>
    %632 = vector.broadcast %631 : vector<8x1xf32> to vector<8x32xf32>
    %633 = arith.mulf %628, %632 : vector<8x32xf32>
    %634 = vector.broadcast %543 : vector<1x32xf32> to vector<8x32xf32>
    %635 = arith.mulf %633, %634 : vector<8x32xf32>
    %636 = vector.broadcast %544 : vector<1x32xf32> to vector<8x32xf32>
    %637 = arith.addf %635, %636 : vector<8x32xf32>
    %638 = arith.truncf %637 : vector<8x32xf32> to vector<8x32xbf16>
    %cst_188 = arith.constant dense<0.000000e+00> : vector<8x32xf32>
    %639 = tpu.matmul %638, %525, %cst_188 {dimension_numbers = #tpu.dot_dimension_numbers<[1], [0], [0], [1], [0, 0, 1, 1], [], []>} : vector<8x32xbf16>, vector<32x32xbf16>, vector<8x32xf32> -> vector<8x32xf32>
    %640 = vector.broadcast %545 : vector<1x32xf32> to vector<8x32xf32>
    %641 = arith.addf %639, %640 : vector<8x32xf32>
    %642 = arith.truncf %279 : vector<8x32xf32> to vector<8x32xbf16>
    %cst_189 = arith.constant dense<0.000000e+00> : vector<8x64xf32>
    %643 = tpu.matmul %642, %527, %cst_189 {dimension_numbers = #tpu.dot_dimension_numbers<[1], [0], [0], [1], [0, 0, 1, 1], [], []>} : vector<8x32xbf16>, vector<32x64xbf16>, vector<8x64xf32> -> vector<8x64xf32>
    %644 = vector.broadcast %539 : vector<1x64xf32> to vector<8x64xf32>
    %645 = arith.addf %643, %644 : vector<8x64xf32>
    %646 = vector.extract_strided_slice %645 {offsets = [0, 0], sizes = [8, 32], strides = [1, 1]} : vector<8x64xf32> to vector<8x32xf32>
    %647 = vector.extract_strided_slice %645 {offsets = [0, 32], sizes = [8, 32], strides = [1, 1]} : vector<8x64xf32> to vector<8x32xf32>
    %648 = vector.extract_strided_slice %641 {offsets = [0, 0], sizes = [8, 8], strides = [1, 1]} : vector<8x32xf32> to vector<8x8xf32>
    %649 = vector.extract_strided_slice %641 {offsets = [0, 8], sizes = [8, 8], strides = [1, 1]} : vector<8x32xf32> to vector<8x8xf32>
    %650 = vector.extract_strided_slice %641 {offsets = [0, 16], sizes = [8, 8], strides = [1, 1]} : vector<8x32xf32> to vector<8x8xf32>
    %651 = vector.extract_strided_slice %641 {offsets = [0, 24], sizes = [8, 8], strides = [1, 1]} : vector<8x32xf32> to vector<8x8xf32>
    %652 = vector.shape_cast %648 : vector<8x8xf32> to vector<1x8x8xf32>
    %653 = vector.shape_cast %649 : vector<8x8xf32> to vector<1x8x8xf32>
    %654 = vector.shape_cast %650 : vector<8x8xf32> to vector<1x8x8xf32>
    %655 = vector.shape_cast %651 : vector<8x8xf32> to vector<1x8x8xf32>
    %656 = tpu.concatenate %652, %653, %654, %655 in 0 : vector<1x8x8xf32>, vector<1x8x8xf32>, vector<1x8x8xf32>, vector<1x8x8xf32> -> vector<4x8x8xf32>
    %657 = arith.truncf %656 : vector<4x8x8xf32> to vector<4x8x8xbf16>
    %658 = vector.extract_strided_slice %646 {offsets = [0, 0], sizes = [8, 8], strides = [1, 1]} : vector<8x32xf32> to vector<8x8xf32>
    %659 = vector.extract_strided_slice %646 {offsets = [0, 8], sizes = [8, 8], strides = [1, 1]} : vector<8x32xf32> to vector<8x8xf32>
    %660 = vector.extract_strided_slice %646 {offsets = [0, 16], sizes = [8, 8], strides = [1, 1]} : vector<8x32xf32> to vector<8x8xf32>
    %661 = vector.extract_strided_slice %646 {offsets = [0, 24], sizes = [8, 8], strides = [1, 1]} : vector<8x32xf32> to vector<8x8xf32>
    %662 = vector.shape_cast %658 : vector<8x8xf32> to vector<1x8x8xf32>
    %663 = vector.shape_cast %659 : vector<8x8xf32> to vector<1x8x8xf32>
    %664 = vector.shape_cast %660 : vector<8x8xf32> to vector<1x8x8xf32>
    %665 = vector.shape_cast %661 : vector<8x8xf32> to vector<1x8x8xf32>
    %666 = tpu.concatenate %662, %663, %664, %665 in 0 : vector<1x8x8xf32>, vector<1x8x8xf32>, vector<1x8x8xf32>, vector<1x8x8xf32> -> vector<4x8x8xf32>
    %667 = arith.truncf %666 : vector<4x8x8xf32> to vector<4x8x8xbf16>
    %668 = vector.extract_strided_slice %647 {offsets = [0, 0], sizes = [8, 8], strides = [1, 1]} : vector<8x32xf32> to vector<8x8xf32>
    %669 = vector.extract_strided_slice %647 {offsets = [0, 8], sizes = [8, 8], strides = [1, 1]} : vector<8x32xf32> to vector<8x8xf32>
    %670 = vector.extract_strided_slice %647 {offsets = [0, 16], sizes = [8, 8], strides = [1, 1]} : vector<8x32xf32> to vector<8x8xf32>
    %671 = vector.extract_strided_slice %647 {offsets = [0, 24], sizes = [8, 8], strides = [1, 1]} : vector<8x32xf32> to vector<8x8xf32>
    %672 = vector.shape_cast %668 : vector<8x8xf32> to vector<1x8x8xf32>
    %673 = vector.shape_cast %669 : vector<8x8xf32> to vector<1x8x8xf32>
    %674 = vector.shape_cast %670 : vector<8x8xf32> to vector<1x8x8xf32>
    %675 = vector.shape_cast %671 : vector<8x8xf32> to vector<1x8x8xf32>
    %676 = tpu.concatenate %672, %673, %674, %675 in 0 : vector<1x8x8xf32>, vector<1x8x8xf32>, vector<1x8x8xf32>, vector<1x8x8xf32> -> vector<4x8x8xf32>
    %677 = arith.truncf %676 : vector<4x8x8xf32> to vector<4x8x8xbf16>
    "tpu.trace_start"() <{level = 10 : i32, message = "hqd,hkd->hqk"}> : () -> ()
    %cst_190 = arith.constant dense<0.000000e+00> : vector<4x8x8xf32>
    %678 = tpu.matmul %657, %667, %cst_190 {dimension_numbers = #tpu.dot_dimension_numbers<[2], [2], [1], [1], [0, 0, 0, 1, 1, 1], [0], [0]>} : vector<4x8x8xbf16>, vector<4x8x8xbf16>, vector<4x8x8xf32> -> vector<4x8x8xf32>
    "tpu.trace_stop"() : () -> ()
    %cst_191 = arith.constant dense<0xFF800000> : vector<4x8xf32>
    %679 = vector.multi_reduction <maximumf>, %678, %cst_191 [2] : vector<4x8x8xf32> to vector<4x8xf32>
    %680 = vector.shape_cast %679 : vector<4x8xf32> to vector<4x8x1xf32>
    %681 = vector.broadcast %680 : vector<4x8x1xf32> to vector<4x8x8xf32>
    %682 = arith.subf %678, %681 : vector<4x8x8xf32>
    %683 = math.exp %682 : vector<4x8x8xf32>
    %cst_192 = arith.constant dense<0.000000e+00> : vector<4x8xf32>
    %684 = vector.multi_reduction <add>, %683, %cst_192 [2] : vector<4x8x8xf32> to vector<4x8xf32>
    %685 = vector.shape_cast %684 : vector<4x8xf32> to vector<4x8x1xf32>
    %686 = tpu.reciprocal %685 {approx = true} : vector<4x8x1xf32> -> vector<4x8x1xf32>
    %687 = vector.broadcast %686 : vector<4x8x1xf32> to vector<4x8x8xf32>
    %688 = arith.mulf %683, %687 : vector<4x8x8xf32>
    %689 = arith.truncf %688 : vector<4x8x8xf32> to vector<4x8x8xbf16>
    "tpu.trace_start"() <{level = 10 : i32, message = "hqk,hkd->hqd"}> : () -> ()
    %cst_193 = arith.constant dense<0.000000e+00> : vector<4x8x8xf32>
    %690 = tpu.matmul %689, %677, %cst_193 {dimension_numbers = #tpu.dot_dimension_numbers<[2], [1], [1], [2], [0, 0, 0, 1, 1, 2], [0], [0]>} : vector<4x8x8xbf16>, vector<4x8x8xbf16>, vector<4x8x8xf32> -> vector<4x8x8xf32>
    "tpu.trace_stop"() : () -> ()
    %691 = vector.extract_strided_slice %690 {offsets = [0, 0, 0], sizes = [1, 8, 8], strides = [1, 1, 1]} : vector<4x8x8xf32> to vector<1x8x8xf32>
    %692 = vector.shape_cast %691 : vector<1x8x8xf32> to vector<8x8xf32>
    %693 = vector.extract_strided_slice %690 {offsets = [1, 0, 0], sizes = [1, 8, 8], strides = [1, 1, 1]} : vector<4x8x8xf32> to vector<1x8x8xf32>
    %694 = vector.shape_cast %693 : vector<1x8x8xf32> to vector<8x8xf32>
    %695 = vector.extract_strided_slice %690 {offsets = [2, 0, 0], sizes = [1, 8, 8], strides = [1, 1, 1]} : vector<4x8x8xf32> to vector<1x8x8xf32>
    %696 = vector.shape_cast %695 : vector<1x8x8xf32> to vector<8x8xf32>
    %697 = vector.extract_strided_slice %690 {offsets = [3, 0, 0], sizes = [1, 8, 8], strides = [1, 1, 1]} : vector<4x8x8xf32> to vector<1x8x8xf32>
    %698 = vector.shape_cast %697 : vector<1x8x8xf32> to vector<8x8xf32>
    %699 = tpu.concatenate %692, %694, %696, %698 in 1 : vector<8x8xf32>, vector<8x8xf32>, vector<8x8xf32>, vector<8x8xf32> -> vector<8x32xf32>
    %700 = arith.truncf %699 : vector<8x32xf32> to vector<8x32xbf16>
    %cst_194 = arith.constant dense<0.000000e+00> : vector<8x32xf32>
    %701 = tpu.matmul %700, %529, %cst_194 {dimension_numbers = #tpu.dot_dimension_numbers<[1], [0], [0], [1], [0, 0, 1, 1], [], []>} : vector<8x32xbf16>, vector<32x32xbf16>, vector<8x32xf32> -> vector<8x32xf32>
    %702 = vector.broadcast %546 : vector<1x32xf32> to vector<8x32xf32>
    %703 = arith.addf %701, %702 : vector<8x32xf32>
    %704 = arith.addf %637, %703 : vector<8x32xf32>
    %cst_195 = arith.constant dense<0.000000e+00> : vector<8xf32>
    %705 = vector.multi_reduction <add>, %704, %cst_195 [1] : vector<8x32xf32> to vector<8xf32>
    %706 = vector.shape_cast %705 : vector<8xf32> to vector<8x1xf32>
    %cst_196 = arith.constant 3.200000e+01 : f32
    %707 = vector.broadcast %cst_196 : f32 to vector<8x1xf32>
    %708 = arith.divf %706, %707 : vector<8x1xf32>
    %709 = vector.broadcast %708 : vector<8x1xf32> to vector<8x32xf32>
    %710 = arith.subf %704, %709 : vector<8x32xf32>
    %711 = arith.mulf %710, %710 : vector<8x32xf32>
    %cst_197 = arith.constant dense<0.000000e+00> : vector<8xf32>
    %712 = vector.multi_reduction <add>, %711, %cst_197 [1] : vector<8x32xf32> to vector<8xf32>
    %713 = vector.shape_cast %712 : vector<8xf32> to vector<8x1xf32>
    %cst_198 = arith.constant 3.200000e+01 : f32
    %714 = vector.broadcast %cst_198 : f32 to vector<8x1xf32>
    %715 = arith.divf %713, %714 : vector<8x1xf32>
    %716 = vector.broadcast %708 : vector<8x1xf32> to vector<8x32xf32>
    %717 = arith.subf %704, %716 : vector<8x32xf32>
    %cst_199 = arith.constant 9.99999974E-6 : f32
    %718 = vector.broadcast %cst_199 : f32 to vector<8x1xf32>
    %719 = arith.addf %715, %718 : vector<8x1xf32>
    %720 = math.rsqrt %719 : vector<8x1xf32>
    %721 = vector.broadcast %720 : vector<8x1xf32> to vector<8x32xf32>
    %722 = arith.mulf %717, %721 : vector<8x32xf32>
    %723 = vector.broadcast %547 : vector<1x32xf32> to vector<8x32xf32>
    %724 = arith.mulf %722, %723 : vector<8x32xf32>
    %725 = vector.broadcast %548 : vector<1x32xf32> to vector<8x32xf32>
    %726 = arith.addf %724, %725 : vector<8x32xf32>
    %727 = arith.truncf %726 : vector<8x32xf32> to vector<8x32xbf16>
    %cst_200 = arith.constant dense<0.000000e+00> : vector<8x64xf32>
    %728 = tpu.matmul %727, %531, %cst_200 {dimension_numbers = #tpu.dot_dimension_numbers<[1], [0], [0], [1], [0, 0, 1, 1], [], []>} : vector<8x32xbf16>, vector<32x64xbf16>, vector<8x64xf32> -> vector<8x64xf32>
    %729 = vector.broadcast %541 : vector<1x64xf32> to vector<8x64xf32>
    %730 = arith.addf %728, %729 : vector<8x64xf32>
    %cst_201 = arith.constant 0.000000e+00 : f32
    %731 = vector.broadcast %cst_201 : f32 to vector<8x64xf32>
    %732 = arith.maximumf %730, %731 : vector<8x64xf32>
    %733 = arith.truncf %732 : vector<8x64xf32> to vector<8x64xbf16>
    %cst_202 = arith.constant dense<0.000000e+00> : vector<8x32xf32>
    %734 = tpu.matmul %733, %533, %cst_202 {dimension_numbers = #tpu.dot_dimension_numbers<[1], [0], [0], [1], [0, 0, 1, 1], [], []>} : vector<8x64xbf16>, vector<64x32xbf16>, vector<8x32xf32> -> vector<8x32xf32>
    %735 = vector.broadcast %549 : vector<1x32xf32> to vector<8x32xf32>
    %736 = arith.addf %734, %735 : vector<8x32xf32>
    %737 = arith.addf %726, %736 : vector<8x32xf32>
    %cst_203 = arith.constant dense<0.000000e+00> : vector<8xf32>
    %738 = vector.multi_reduction <add>, %737, %cst_203 [1] : vector<8x32xf32> to vector<8xf32>
    %739 = vector.shape_cast %738 : vector<8xf32> to vector<8x1xf32>
    %cst_204 = arith.constant 3.200000e+01 : f32
    %740 = vector.broadcast %cst_204 : f32 to vector<8x1xf32>
    %741 = arith.divf %739, %740 : vector<8x1xf32>
    %742 = vector.broadcast %741 : vector<8x1xf32> to vector<8x32xf32>
    %743 = arith.subf %737, %742 : vector<8x32xf32>
    %744 = arith.mulf %743, %743 : vector<8x32xf32>
    %cst_205 = arith.constant dense<0.000000e+00> : vector<8xf32>
    %745 = vector.multi_reduction <add>, %744, %cst_205 [1] : vector<8x32xf32> to vector<8xf32>
    %746 = vector.shape_cast %745 : vector<8xf32> to vector<8x1xf32>
    %cst_206 = arith.constant 3.200000e+01 : f32
    %747 = vector.broadcast %cst_206 : f32 to vector<8x1xf32>
    %748 = arith.divf %746, %747 : vector<8x1xf32>
    %749 = vector.broadcast %741 : vector<8x1xf32> to vector<8x32xf32>
    %750 = arith.subf %737, %749 : vector<8x32xf32>
    %cst_207 = arith.constant 9.99999974E-6 : f32
    %751 = vector.broadcast %cst_207 : f32 to vector<8x1xf32>
    %752 = arith.addf %748, %751 : vector<8x1xf32>
    %753 = math.rsqrt %752 : vector<8x1xf32>
    %754 = vector.broadcast %753 : vector<8x1xf32> to vector<8x32xf32>
    %755 = arith.mulf %750, %754 : vector<8x32xf32>
    %756 = vector.broadcast %550 : vector<1x32xf32> to vector<8x32xf32>
    %757 = arith.mulf %755, %756 : vector<8x32xf32>
    %758 = vector.broadcast %551 : vector<1x32xf32> to vector<8x32xf32>
    %759 = arith.addf %757, %758 : vector<8x32xf32>
    %cst_208 = arith.constant 0.000000e+00 : f32
    %760 = vector.broadcast %cst_208 : f32 to vector<8x96xf32>
    %761 = tpu.concatenate %759, %760 in 1 : vector<8x32xf32>, vector<8x96xf32> -> vector<8x128xf32>
    %c0_209 = arith.constant 0 : index
    %c0_210 = arith.constant 0 : index
    %c0_211 = arith.constant 0 : index
    %762 = vector.load %arg20[%c0_209, %c0_210, %c0_211] : memref<1x8x128xf32, #tpu.memory_space<vmem>>, vector<1x8x128xf32>
    %763 = vector.shape_cast %762 : vector<1x8x128xf32> to vector<8x128xf32>
    %764 = vector.shape_cast %761 : vector<8x128xf32> to vector<1x8x128xf32>
    tpu.vector_store %arg20[%c0_209, %c0_210, %c0_211], %764 {strides = array<i32>} : memref<1x8x128xf32, #tpu.memory_space<vmem>>, vector<1x8x128xf32>,
    return
  }
  func.func @transform_0(%arg0: i32) -> (i32, i32, i32) {
    %c0_i32 = arith.constant 0 : i32
    %c0_i32_0 = arith.constant 0 : i32
    %c0_i32_1 = arith.constant 0 : i32
    return %arg0, %c0_i32, %c0_i32_0 : i32, i32, i32
  }
  func.func @transform_1(%arg0: i32) -> (i32, i32, i32) {
    %c0_i32 = arith.constant 0 : i32
    %c0_i32_0 = arith.constant 0 : i32
    %c0_i32_1 = arith.constant 0 : i32
    %c0_i32_2 = arith.constant 0 : i32
    return %c0_i32, %c0_i32_0, %c0_i32_1 : i32, i32, i32
  }
  func.func @transform_2(%arg0: i32) -> (i32, i32, i32) {
    %c0_i32 = arith.constant 0 : i32
    %c0_i32_0 = arith.constant 0 : i32
    %c0_i32_1 = arith.constant 0 : i32
    %c0_i32_2 = arith.constant 0 : i32
    return %c0_i32, %c0_i32_0, %c0_i32_1 : i32, i32, i32
  }
  func.func @transform_3(%arg0: i32) -> (i32, i32, i32) {
    %c0_i32 = arith.constant 0 : i32
    %c0_i32_0 = arith.constant 0 : i32
    %c0_i32_1 = arith.constant 0 : i32
    %c0_i32_2 = arith.constant 0 : i32
    return %c0_i32, %c0_i32_0, %c0_i32_1 : i32, i32, i32
  }
  func.func @transform_4(%arg0: i32) -> (i32, i32, i32) {
    %c0_i32 = arith.constant 0 : i32
    %c0_i32_0 = arith.constant 0 : i32
    %c0_i32_1 = arith.constant 0 : i32
    %c0_i32_2 = arith.constant 0 : i32
    return %c0_i32, %c0_i32_0, %c0_i32_1 : i32, i32, i32
  }
  func.func @transform_5(%arg0: i32) -> (i32, i32, i32) {
    %c0_i32 = arith.constant 0 : i32
    %c0_i32_0 = arith.constant 0 : i32
    %c0_i32_1 = arith.constant 0 : i32
    %c0_i32_2 = arith.constant 0 : i32
    return %c0_i32, %c0_i32_0, %c0_i32_1 : i32, i32, i32
  }
  func.func @transform_6(%arg0: i32) -> (i32, i32, i32) {
    %c0_i32 = arith.constant 0 : i32
    %c0_i32_0 = arith.constant 0 : i32
    %c0_i32_1 = arith.constant 0 : i32
    %c0_i32_2 = arith.constant 0 : i32
    return %c0_i32, %c0_i32_0, %c0_i32_1 : i32, i32, i32
  }
  func.func @transform_7(%arg0: i32) -> (i32, i32, i32) {
    %c0_i32 = arith.constant 0 : i32
    %c0_i32_0 = arith.constant 0 : i32
    %c0_i32_1 = arith.constant 0 : i32
    %c0_i32_2 = arith.constant 0 : i32
    return %c0_i32, %c0_i32_0, %c0_i32_1 : i32, i32, i32
  }
  func.func @transform_8(%arg0: i32) -> (i32, i32, i32) {
    %c0_i32 = arith.constant 0 : i32
    %c0_i32_0 = arith.constant 0 : i32
    %c0_i32_1 = arith.constant 0 : i32
    %c0_i32_2 = arith.constant 0 : i32
    return %c0_i32, %c0_i32_0, %c0_i32_1 : i32, i32, i32
  }
  func.func @transform_9(%arg0: i32) -> (i32, i32, i32) {
    %c0_i32 = arith.constant 0 : i32
    %c0_i32_0 = arith.constant 0 : i32
    %c0_i32_1 = arith.constant 0 : i32
    %c0_i32_2 = arith.constant 0 : i32
    return %c0_i32, %c0_i32_0, %c0_i32_1 : i32, i32, i32
  }
  func.func @transform_10(%arg0: i32) -> (i32, i32, i32) {
    %c0_i32 = arith.constant 0 : i32
    %c0_i32_0 = arith.constant 0 : i32
    %c0_i32_1 = arith.constant 0 : i32
    %c0_i32_2 = arith.constant 0 : i32
    return %c0_i32, %c0_i32_0, %c0_i32_1 : i32, i32, i32
  }
  func.func @transform_11(%arg0: i32) -> (i32, i32, i32) {
    %c0_i32 = arith.constant 0 : i32
    %c0_i32_0 = arith.constant 0 : i32
    %c0_i32_1 = arith.constant 0 : i32
    %c0_i32_2 = arith.constant 0 : i32
    return %c0_i32, %c0_i32_0, %c0_i32_1 : i32, i32, i32
  }
  func.func @transform_12(%arg0: i32) -> (i32, i32, i32) {
    %c0_i32 = arith.constant 0 : i32
    %c0_i32_0 = arith.constant 0 : i32
    %c0_i32_1 = arith.constant 0 : i32
    %c0_i32_2 = arith.constant 0 : i32
    return %c0_i32, %c0_i32_0, %c0_i32_1 : i32, i32, i32
  }
  func.func @transform_13(%arg0: i32) -> (i32, i32, i32) {
    %c0_i32 = arith.constant 0 : i32
    %c0_i32_0 = arith.constant 0 : i32
    %c0_i32_1 = arith.constant 0 : i32
    %c0_i32_2 = arith.constant 0 : i32
    return %c0_i32, %c0_i32_0, %c0_i32_1 : i32, i32, i32
  }
  func.func @transform_14(%arg0: i32) -> (i32, i32, i32) {
    %c0_i32 = arith.constant 0 : i32
    %c0_i32_0 = arith.constant 0 : i32
    %c0_i32_1 = arith.constant 0 : i32
    %c0_i32_2 = arith.constant 0 : i32
    return %c0_i32, %c0_i32_0, %c0_i32_1 : i32, i32, i32
  }
  func.func @transform_15(%arg0: i32) -> (i32, i32, i32) {
    %c0_i32 = arith.constant 0 : i32
    %c0_i32_0 = arith.constant 0 : i32
    %c0_i32_1 = arith.constant 0 : i32
    %c0_i32_2 = arith.constant 0 : i32
    return %c0_i32, %c0_i32_0, %c0_i32_1 : i32, i32, i32
  }
  func.func @transform_16(%arg0: i32) -> (i32, i32, i32) {
    %c0_i32 = arith.constant 0 : i32
    %c0_i32_0 = arith.constant 0 : i32
    %c0_i32_1 = arith.constant 0 : i32
    %c0_i32_2 = arith.constant 0 : i32
    return %c0_i32, %c0_i32_0, %c0_i32_1 : i32, i32, i32
  }
  func.func @transform_17(%arg0: i32) -> (i32, i32, i32) {
    %c0_i32 = arith.constant 0 : i32
    %c0_i32_0 = arith.constant 0 : i32
    %c0_i32_1 = arith.constant 0 : i32
    %c0_i32_2 = arith.constant 0 : i32
    return %c0_i32, %c0_i32_0, %c0_i32_1 : i32, i32, i32
  }
  func.func @transform_18(%arg0: i32) -> (i32, i32, i32) {
    %c0_i32 = arith.constant 0 : i32
    %c0_i32_0 = arith.constant 0 : i32
    %c0_i32_1 = arith.constant 0 : i32
    %c0_i32_2 = arith.constant 0 : i32
    return %c0_i32, %c0_i32_0, %c0_i32_1 : i32, i32, i32
  }
  func.func @transform_19(%arg0: i32) -> (i32, i32, i32) {
    %c0_i32 = arith.constant 0 : i32
    %c0_i32_0 = arith.constant 0 : i32
    %c0_i32_1 = arith.constant 0 : i32
    return %arg0, %c0_i32, %c0_i32_0 : i32, i32, i32
  }
}

</mosaic_0001>

<llo_original>
// kernel: _forward.1
$region0: #{_forward.1}
  #allocation0 [shape = 'u32[]', space=smem, size = 0x4, offset = 0x4, fixed_abs, tag = 'smem constant byte address 0x4 - core index']
  #allocation1 [shape = 'u32[72,128]{1,0:T(1,128)}', space=vmem, size = 0x9000, scoped, tag = 'internal scratch']
  %s0 = inlined_call_operand.vmem [shape: f32[2,8,32], index: 0, kind: input, shape index: {}]
  %s1 = inlined_call_operand.vmem [shape: bf16[2,32,96], index: 1, kind: input, shape index: {}]
  %s2 = inlined_call_operand.vmem [shape: bf16[2,32,32], index: 2, kind: input, shape index: {}]
  %s3 = inlined_call_operand.vmem [shape: bf16[2,32,64], index: 3, kind: input, shape index: {}]
  %s4 = inlined_call_operand.vmem [shape: bf16[2,64,32], index: 4, kind: input, shape index: {}]
  %s5 = inlined_call_operand.vmem [shape: f32[2,6,32], index: 5, kind: input, shape index: {}]
  %s6 = inlined_call_operand.vmem [shape: f32[2,1,96], index: 6, kind: input, shape index: {}]
  %s7 = inlined_call_operand.vmem [shape: f32[2,1,64], index: 7, kind: input, shape index: {}]
  %s8 = inlined_call_operand.vmem [shape: bf16[2,32,96], index: 8, kind: input, shape index: {}]
  %s9 = inlined_call_operand.vmem [shape: bf16[2,32,32], index: 9, kind: input, shape index: {}]
  %s10 = inlined_call_operand.vmem [shape: bf16[2,32,32], index: 10, kind: input, shape index: {}]
  %s11 = inlined_call_operand.vmem [shape: bf16[2,32,64], index: 11, kind: input, shape index: {}]
  %s12 = inlined_call_operand.vmem [shape: bf16[2,32,32], index: 12, kind: input, shape index: {}]
  %s13 = inlined_call_operand.vmem [shape: bf16[2,32,64], index: 13, kind: input, shape index: {}]
  %s14 = inlined_call_operand.vmem [shape: bf16[2,64,32], index: 14, kind: input, shape index: {}]
  %s15 = inlined_call_operand.vmem [shape: f32[2,10,32], index: 15, kind: input, shape index: {}]
  %s16 = inlined_call_operand.vmem [shape: f32[2,1,96], index: 16, kind: input, shape index: {}]
  %s17 = inlined_call_operand.vmem [shape: f32[2,1,64], index: 17, kind: input, shape index: {}]
  %s18 = inlined_call_operand.vmem [shape: f32[2,1,64], index: 18, kind: input, shape index: {}]
  %s19 = inlined_call_operand.hbm [shape: f32[2,8,128], index: 19, kind: output, shape index: {}]
  %s20 = sld [smem:[#allocation0]]
  $region109: #{_forward.1} parent=0
    _
  %s22 = ssub.s32 1, %s20
  %s23 = scalar_select 0, %s22, %s20
  $region1: #{_forward.1} parent=0
    #allocation2 [shape = 'u8[8192]{0}', space=vmem, size = 0x2000, scoped, tag = 'output window, operand 0']
    #allocation3 [shape = 's32[2]{0}', space=sflag, size = 0x8, scoped, tag = 'scoped memory for _forward.1']
    %24 = vsyncpa [#allocation3], 0
    %s25 = scalar_lea.sflag [#allocation3], 1
    %26 = vsyncpa %s25, 0
    loop: start=0, step=1, limit=4
    $region2: #{_forward.1} parent=1 // loop_pre_header
      _
    $region3: #{_forward.1} parent=1 // loop_header
      %s28 = sphi 0, %s32
      %p29 = scmp.ge.s32.totalorder %s28, 4
      %s38 = sphi 0, %s40
      %s41 = sphi 0, %s38
      %s42 = sphi 0, %s41
      %s58 = sphi 0, %s42
      %s62 = sphi 0, %s62
      %s64 = sphi 0, %s62
      %s65 = sphi 0, %s64
      %s79 = sphi 0, %s65
      %s83 = sphi 0, %s83
      %s85 = sphi 0, %s83
      %s86 = sphi 0, %s85
      %s100 = sphi 0, %s86
      %s104 = sphi 0, %s104
      %s106 = sphi 0, %s104
      %s107 = sphi 0, %s106
      %s121 = sphi 0, %s107
      %s125 = sphi 0, %s125
      %s127 = sphi 0, %s125
      %s128 = sphi 0, %s127
      %s142 = sphi 0, %s128
      %s146 = sphi 0, %s146
      %s148 = sphi 0, %s146
      %s149 = sphi 0, %s148
      %s163 = sphi 0, %s149
      %s167 = sphi 0, %s167
      %s169 = sphi 0, %s167
      %s170 = sphi 0, %s169
      %s184 = sphi 0, %s170
      %s188 = sphi 0, %s188
      %s190 = sphi 0, %s188
      %s191 = sphi 0, %s190
      %s205 = sphi 0, %s191
      %s209 = sphi 0, %s209
      %s211 = sphi 0, %s209
      %s212 = sphi 0, %s211
      %s226 = sphi 0, %s212
      %s230 = sphi 0, %s230
      %s232 = sphi 0, %s230
      %s233 = sphi 0, %s232
      %s247 = sphi 0, %s233
      %s251 = sphi 0, %s251
      %s253 = sphi 0, %s251
      %s254 = sphi 0, %s253
      %s268 = sphi 0, %s254
      %s272 = sphi 0, %s272
      %s274 = sphi 0, %s272
      %s275 = sphi 0, %s274
      %s289 = sphi 0, %s275
      %s293 = sphi 0, %s293
      %s295 = sphi 0, %s293
      %s296 = sphi 0, %s295
      %s310 = sphi 0, %s296
      %s314 = sphi 0, %s314
      %s316 = sphi 0, %s314
      %s317 = sphi 0, %s316
      %s331 = sphi 0, %s317
      %s335 = sphi 0, %s335
      %s337 = sphi 0, %s335
      %s338 = sphi 0, %s337
      %s352 = sphi 0, %s338
      %s356 = sphi 0, %s356
      %s358 = sphi 0, %s356
      %s359 = sphi 0, %s358
      %s373 = sphi 0, %s359
      %s377 = sphi 0, %s377
      %s379 = sphi 0, %s377
      %s380 = sphi 0, %s379
      %s394 = sphi 0, %s380
      %s398 = sphi 0, %s398
      %s400 = sphi 0, %s398
      %s401 = sphi 0, %s400
      %s415 = sphi 0, %s401
      %s419 = sphi 0, %s419
      %s421 = sphi 0, %s419
      %s422 = sphi 0, %s421
      %s436 = sphi 0, %s422
      %s442 = sphi 0, %s444
      %s445 = sphi 0, %s442
      %s446 = sphi 0, %s445
      %s462 = sphi 0, %s446
    $region4: #{_forward.1} parent=1 // loop_header_branch
      %31 = sbr.rel (%p29) target = $region8
    $region5: #{_forward.1} parent=1 // loop_body
      %s33 = ssub.s32 %s28, 1
      %s34 = ssub.s32 %s28, 2
      %s35 = sadd.s32 %s28, 1
      %s36 = ssub.s32 %s28, %s35
      %p37 = scmp.eq.s32.totalorder %s36, 0
      %s39 = sadd.s32 %s38, 1
      %s40 = scalar_select %p37, %s38, %s39
      %p43 = pneg %p37
      %p44 = scmp.eq.s32.totalorder %s28, 1
      %p45 = por %p43, %p44
      %p46 = scmp.ne.s32.totalorder %s38, %s41
      %p47 = scmp.eq.s32.totalorder %s28, 0
      %p48 = por %p46, %p47
      %p49 = scmp.ne.s32.totalorder %s38, %s41
      %p50 = scmp.eq.s32.totalorder %s33, 1
      %p51 = por %p49, %p50
      %p52 = scmp.ne.s32.totalorder %s41, %s42
      %p53 = scmp.eq.s32.totalorder %s33, 0
      %p54 = por %p52, %p53
      %p55 = scmp.ne.s32.totalorder %s41, %s42
      %p56 = scmp.eq.s32.totalorder %s34, 1
      %p57 = por %p55, %p56
      %p59 = scmp.ne.s32.totalorder %s42, %s58
      %p60 = scmp.eq.s32.totalorder %s34, 0
      %p61 = por %p59, %p60
      %s63 = sadd.s32 %s62, 1
      %p66 = scmp.eq.s32.totalorder %s28, 1
      %p67 = scmp.ne.s32.totalorder %s62, %s64
      %p68 = scmp.eq.s32.totalorder %s28, 0
      %p69 = por %p67, %p68
      %p70 = scmp.ne.s32.totalorder %s62, %s64
      %p71 = scmp.eq.s32.totalorder %s33, 1
      %p72 = por %p70, %p71
      %p73 = scmp.ne.s32.totalorder %s64, %s65
      %p74 = scmp.eq.s32.totalorder %s33, 0
      %p75 = por %p73, %p74
      %p76 = scmp.ne.s32.totalorder %s64, %s65
      %p77 = scmp.eq.s32.totalorder %s34, 1
      %p78 = por %p76, %p77
      %p80 = scmp.ne.s32.totalorder %s65, %s79
      %p81 = scmp.eq.s32.totalorder %s34, 0
      %p82 = por %p80, %p81
      %s84 = sadd.s32 %s83, 1
      %p87 = scmp.eq.s32.totalorder %s28, 1
      %p88 = scmp.ne.s32.totalorder %s83, %s85
      %p89 = scmp.eq.s32.totalorder %s28, 0
      %p90 = por %p88, %p89
      %p91 = scmp.ne.s32.totalorder %s83, %s85
      %p92 = scmp.eq.s32.totalorder %s33, 1
      %p93 = por %p91, %p92
      %p94 = scmp.ne.s32.totalorder %s85, %s86
      %p95 = scmp.eq.s32.totalorder %s33, 0
      %p96 = por %p94, %p95
      %p97 = scmp.ne.s32.totalorder %s85, %s86
      %p98 = scmp.eq.s32.totalorder %s34, 1
      %p99 = por %p97, %p98
      %p101 = scmp.ne.s32.totalorder %s86, %s100
      %p102 = scmp.eq.s32.totalorder %s34, 0
      %p103 = por %p101, %p102
      %s105 = sadd.s32 %s104, 1
      %p108 = scmp.eq.s32.totalorder %s28, 1
      %p109 = scmp.ne.s32.totalorder %s104, %s106
      %p110 = scmp.eq.s32.totalorder %s28, 0
      %p111 = por %p109, %p110
      %p112 = scmp.ne.s32.totalorder %s104, %s106
      %p113 = scmp.eq.s32.totalorder %s33, 1
      %p114 = por %p112, %p113
      %p115 = scmp.ne.s32.totalorder %s106, %s107
      %p116 = scmp.eq.s32.totalorder %s33, 0
      %p117 = por %p115, %p116
      %p118 = scmp.ne.s32.totalorder %s106, %s107
      %p119 = scmp.eq.s32.totalorder %s34, 1
      %p120 = por %p118, %p119
      %p122 = scmp.ne.s32.totalorder %s107, %s121
      %p123 = scmp.eq.s32.totalorder %s34, 0
      %p124 = por %p122, %p123
      %s126 = sadd.s32 %s125, 1
      %p129 = scmp.eq.s32.totalorder %s28, 1
      %p130 = scmp.ne.s32.totalorder %s125, %s127
      %p131 = scmp.eq.s32.totalorder %s28, 0
      %p132 = por %p130, %p131
      %p133 = scmp.ne.s32.totalorder %s125, %s127
      %p134 = scmp.eq.s32.totalorder %s33, 1
      %p135 = por %p133, %p134
      %p136 = scmp.ne.s32.totalorder %s127, %s128
      %p137 = scmp.eq.s32.totalorder %s33, 0
      %p138 = por %p136, %p137
      %p139 = scmp.ne.s32.totalorder %s127, %s128
      %p140 = scmp.eq.s32.totalorder %s34, 1
      %p141 = por %p139, %p140
      %p143 = scmp.ne.s32.totalorder %s128, %s142
      %p144 = scmp.eq.s32.totalorder %s34, 0
      %p145 = por %p143, %p144
      %s147 = sadd.s32 %s146, 1
      %p150 = scmp.eq.s32.totalorder %s28, 1
      %p151 = scmp.ne.s32.totalorder %s146, %s148
      %p152 = scmp.eq.s32.totalorder %s28, 0
      %p153 = por %p151, %p152
      %p154 = scmp.ne.s32.totalorder %s146, %s148
      %p155 = scmp.eq.s32.totalorder %s33, 1
      %p156 = por %p154, %p155
      %p157 = scmp.ne.s32.totalorder %s148, %s149
      %p158 = scmp.eq.s32.totalorder %s33, 0
      %p159 = por %p157, %p158
      %p160 = scmp.ne.s32.totalorder %s148, %s149
      %p161 = scmp.eq.s32.totalorder %s34, 1
      %p162 = por %p160, %p161
      %p164 = scmp.ne.s32.totalorder %s149, %s163
      %p165 = scmp.eq.s32.totalorder %s34, 0
      %p166 = por %p164, %p165
      %s168 = sadd.s32 %s167, 1
      %p171 = scmp.eq.s32.totalorder %s28, 1
      %p172 = scmp.ne.s32.totalorder %s167, %s169
      %p173 = scmp.eq.s32.totalorder %s28, 0
      %p174 = por %p172, %p173
      %p175 = scmp.ne.s32.totalorder %s167, %s169
      %p176 = scmp.eq.s32.totalorder %s33, 1
      %p177 = por %p175, %p176
      %p178 = scmp.ne.s32.totalorder %s169, %s170
      %p179 = scmp.eq.s32.totalorder %s33, 0
      %p180 = por %p178, %p179
      %p181 = scmp.ne.s32.totalorder %s169, %s170
      %p182 = scmp.eq.s32.totalorder %s34, 1
      %p183 = por %p181, %p182
      %p185 = scmp.ne.s32.totalorder %s170, %s184
      %p186 = scmp.eq.s32.totalorder %s34, 0
      %p187 = por %p185, %p186
      %s189 = sadd.s32 %s188, 1
      %p192 = scmp.eq.s32.totalorder %s28, 1
      %p193 = scmp.ne.s32.totalorder %s188, %s190
      %p194 = scmp.eq.s32.totalorder %s28, 0
      %p195 = por %p193, %p194
      %p196 = scmp.ne.s32.totalorder %s188, %s190
      %p197 = scmp.eq.s32.totalorder %s33, 1
      %p198 = por %p196, %p197
      %p199 = scmp.ne.s32.totalorder %s190, %s191
      %p200 = scmp.eq.s32.totalorder %s33, 0
      %p201 = por %p199, %p200
      %p202 = scmp.ne.s32.totalorder %s190, %s191
      %p203 = scmp.eq.s32.totalorder %s34, 1
      %p204 = por %p202, %p203
      %p206 = scmp.ne.s32.totalorder %s191, %s205
      %p207 = scmp.eq.s32.totalorder %s34, 0
      %p208 = por %p206, %p207
      %s210 = sadd.s32 %s209, 1
      %p213 = scmp.eq.s32.totalorder %s28, 1
      %p214 = scmp.ne.s32.totalorder %s209, %s211
      %p215 = scmp.eq.s32.totalorder %s28, 0
      %p216 = por %p214, %p215
      %p217 = scmp.ne.s32.totalorder %s209, %s211
      %p218 = scmp.eq.s32.totalorder %s33, 1
      %p219 = por %p217, %p218
      %p220 = scmp.ne.s32.totalorder %s211, %s212
      %p221 = scmp.eq.s32.totalorder %s33, 0
      %p222 = por %p220, %p221
      %p223 = scmp.ne.s32.totalorder %s211, %s212
      %p224 = scmp.eq.s32.totalorder %s34, 1
      %p225 = por %p223, %p224
      %p227 = scmp.ne.s32.totalorder %s212, %s226
      %p228 = scmp.eq.s32.totalorder %s34, 0
      %p229 = por %p227, %p228
      %s231 = sadd.s32 %s230, 1
      %p234 = scmp.eq.s32.totalorder %s28, 1
      %p235 = scmp.ne.s32.totalorder %s230, %s232
      %p236 = scmp.eq.s32.totalorder %s28, 0
      %p237 = por %p235, %p236
      %p238 = scmp.ne.s32.totalorder %s230, %s232
      %p239 = scmp.eq.s32.totalorder %s33, 1
      %p240 = por %p238, %p239
      %p241 = scmp.ne.s32.totalorder %s232, %s233
      %p242 = scmp.eq.s32.totalorder %s33, 0
      %p243 = por %p241, %p242
      %p244 = scmp.ne.s32.totalorder %s232, %s233
      %p245 = scmp.eq.s32.totalorder %s34, 1
      %p246 = por %p244, %p245
      %p248 = scmp.ne.s32.totalorder %s233, %s247
      %p249 = scmp.eq.s32.totalorder %s34, 0
      %p250 = por %p248, %p249
      %s252 = sadd.s32 %s251, 1
      %p255 = scmp.eq.s32.totalorder %s28, 1
      %p256 = scmp.ne.s32.totalorder %s251, %s253
      %p257 = scmp.eq.s32.totalorder %s28, 0
      %p258 = por %p256, %p257
      %p259 = scmp.ne.s32.totalorder %s251, %s253
      %p260 = scmp.eq.s32.totalorder %s33, 1
      %p261 = por %p259, %p260
      %p262 = scmp.ne.s32.totalorder %s253, %s254
      %p263 = scmp.eq.s32.totalorder %s33, 0
      %p264 = por %p262, %p263
      %p265 = scmp.ne.s32.totalorder %s253, %s254
      %p266 = scmp.eq.s32.totalorder %s34, 1
      %p267 = por %p265, %p266
      %p269 = scmp.ne.s32.totalorder %s254, %s268
      %p270 = scmp.eq.s32.totalorder %s34, 0
      %p271 = por %p269, %p270
      %s273 = sadd.s32 %s272, 1
      %p276 = scmp.eq.s32.totalorder %s28, 1
      %p277 = scmp.ne.s32.totalorder %s272, %s274
      %p278 = scmp.eq.s32.totalorder %s28, 0
      %p279 = por %p277, %p278
      %p280 = scmp.ne.s32.totalorder %s272, %s274
      %p281 = scmp.eq.s32.totalorder %s33, 1
      %p282 = por %p280, %p281
      %p283 = scmp.ne.s32.totalorder %s274, %s275
      %p284 = scmp.eq.s32.totalorder %s33, 0
      %p285 = por %p283, %p284
      %p286 = scmp.ne.s32.totalorder %s274, %s275
      %p287 = scmp.eq.s32.totalorder %s34, 1
      %p288 = por %p286, %p287
      %p290 = scmp.ne.s32.totalorder %s275, %s289
      %p291 = scmp.eq.s32.totalorder %s34, 0
      %p292 = por %p290, %p291
      %s294 = sadd.s32 %s293, 1
      %p297 = scmp.eq.s32.totalorder %s28, 1
      %p298 = scmp.ne.s32.totalorder %s293, %s295
      %p299 = scmp.eq.s32.totalorder %s28, 0
      %p300 = por %p298, %p299
      %p301 = scmp.ne.s32.totalorder %s293, %s295
      %p302 = scmp.eq.s32.totalorder %s33, 1
      %p303 = por %p301, %p302
      %p304 = scmp.ne.s32.totalorder %s295, %s296
      %p305 = scmp.eq.s32.totalorder %s33, 0
      %p306 = por %p304, %p305
      %p307 = scmp.ne.s32.totalorder %s295, %s296
      %p308 = scmp.eq.s32.totalorder %s34, 1
      %p309 = por %p307, %p308
      %p311 = scmp.ne.s32.totalorder %s296, %s310
      %p312 = scmp.eq.s32.totalorder %s34, 0
      %p313 = por %p311, %p312
      %s315 = sadd.s32 %s314, 1
      %p318 = scmp.eq.s32.totalorder %s28, 1
      %p319 = scmp.ne.s32.totalorder %s314, %s316
      %p320 = scmp.eq.s32.totalorder %s28, 0
      %p321 = por %p319, %p320
      %p322 = scmp.ne.s32.totalorder %s314, %s316
      %p323 = scmp.eq.s32.totalorder %s33, 1
      %p324 = por %p322, %p323
      %p325 = scmp.ne.s32.totalorder %s316, %s317
      %p326 = scmp.eq.s32.totalorder %s33, 0
      %p327 = por %p325, %p326
      %p328 = scmp.ne.s32.totalorder %s316, %s317
      %p329 = scmp.eq.s32.totalorder %s34, 1
      %p330 = por %p328, %p329
      %p332 = scmp.ne.s32.totalorder %s317, %s331
      %p333 = scmp.eq.s32.totalorder %s34, 0
      %p334 = por %p332, %p333
      %s336 = sadd.s32 %s335, 1
      %p339 = scmp.eq.s32.totalorder %s28, 1
      %p340 = scmp.ne.s32.totalorder %s335, %s337
      %p341 = scmp.eq.s32.totalorder %s28, 0
      %p342 = por %p340, %p341
      %p343 = scmp.ne.s32.totalorder %s335, %s337
      %p344 = scmp.eq.s32.totalorder %s33, 1
      %p345 = por %p343, %p344
      %p346 = scmp.ne.s32.totalorder %s337, %s338
      %p347 = scmp.eq.s32.totalorder %s33, 0
      %p348 = por %p346, %p347
      %p349 = scmp.ne.s32.totalorder %s337, %s338
      %p350 = scmp.eq.s32.totalorder %s34, 1
      %p351 = por %p349, %p350
      %p353 = scmp.ne.s32.totalorder %s338, %s352
      %p354 = scmp.eq.s32.totalorder %s34, 0
      %p355 = por %p353, %p354
      %s357 = sadd.s32 %s356, 1
      %p360 = scmp.eq.s32.totalorder %s28, 1
      %p361 = scmp.ne.s32.totalorder %s356, %s358
      %p362 = scmp.eq.s32.totalorder %s28, 0
      %p363 = por %p361, %p362
      %p364 = scmp.ne.s32.totalorder %s356, %s358
      %p365 = scmp.eq.s32.totalorder %s33, 1
      %p366 = por %p364, %p365
      %p367 = scmp.ne.s32.totalorder %s358, %s359
      %p368 = scmp.eq.s32.totalorder %s33, 0
      %p369 = por %p367, %p368
      %p370 = scmp.ne.s32.totalorder %s358, %s359
      %p371 = scmp.eq.s32.totalorder %s34, 1
      %p372 = por %p370, %p371
      %p374 = scmp.ne.s32.totalorder %s359, %s373
      %p375 = scmp.eq.s32.totalorder %s34, 0
      %p376 = por %p374, %p375
      %s378 = sadd.s32 %s377, 1
      %p381 = scmp.eq.s32.totalorder %s28, 1
      %p382 = scmp.ne.s32.totalorder %s377, %s379
      %p383 = scmp.eq.s32.totalorder %s28, 0
      %p384 = por %p382, %p383
      %p385 = scmp.ne.s32.totalorder %s377, %s379
      %p386 = scmp.eq.s32.totalorder %s33, 1
      %p387 = por %p385, %p386
      %p388 = scmp.ne.s32.totalorder %s379, %s380
      %p389 = scmp.eq.s32.totalorder %s33, 0
      %p390 = por %p388, %p389
      %p391 = scmp.ne.s32.totalorder %s379, %s380
      %p392 = scmp.eq.s32.totalorder %s34, 1
      %p393 = por %p391, %p392
      %p395 = scmp.ne.s32.totalorder %s380, %s394
      %p396 = scmp.eq.s32.totalorder %s34, 0
      %p397 = por %p395, %p396
      %s399 = sadd.s32 %s398, 1
      %p402 = scmp.eq.s32.totalorder %s28, 1
      %p403 = scmp.ne.s32.totalorder %s398, %s400
      %p404 = scmp.eq.s32.totalorder %s28, 0
      %p405 = por %p403, %p404
      %p406 = scmp.ne.s32.totalorder %s398, %s400
      %p407 = scmp.eq.s32.totalorder %s33, 1
      %p408 = por %p406, %p407
      %p409 = scmp.ne.s32.totalorder %s400, %s401
      %p410 = scmp.eq.s32.totalorder %s33, 0
      %p411 = por %p409, %p410
      %p412 = scmp.ne.s32.totalorder %s400, %s401
      %p413 = scmp.eq.s32.totalorder %s34, 1
      %p414 = por %p412, %p413
      %p416 = scmp.ne.s32.totalorder %s401, %s415
      %p417 = scmp.eq.s32.totalorder %s34, 0
      %p418 = por %p416, %p417
      %s420 = sadd.s32 %s419, 1
      %p423 = scmp.eq.s32.totalorder %s28, 1
      %p424 = scmp.ne.s32.totalorder %s419, %s421
      %p425 = scmp.eq.s32.totalorder %s28, 0
      %p426 = por %p424, %p425
      %p427 = scmp.ne.s32.totalorder %s419, %s421
      %p428 = scmp.eq.s32.totalorder %s33, 1
      %p429 = por %p427, %p428
      %p430 = scmp.ne.s32.totalorder %s421, %s422
      %p431 = scmp.eq.s32.totalorder %s33, 0
      %p432 = por %p430, %p431
      %p433 = scmp.ne.s32.totalorder %s421, %s422
      %p434 = scmp.eq.s32.totalorder %s34, 1
      %p435 = por %p433, %p434
      %p437 = scmp.ne.s32.totalorder %s422, %s436
      %p438 = scmp.eq.s32.totalorder %s34, 0
      %p439 = por %p437, %p438
      %s440 = ssub.s32 %s28, %s35
      %p441 = scmp.eq.s32.totalorder %s440, 0
      %s443 = sadd.s32 %s442, 1
      %s444 = scalar_select %p441, %s442, %s443
      %p447 = pneg %p441
      %p448 = scmp.eq.s32.totalorder %s28, 1
      %p449 = por %p447, %p448
      %p450 = scmp.ne.s32.totalorder %s442, %s445
      %p451 = scmp.eq.s32.totalorder %s28, 0
      %p452 = por %p450, %p451
      %p453 = scmp.ne.s32.totalorder %s442, %s445
      %p454 = scmp.eq.s32.totalorder %s33, 1
      %p455 = por %p453, %p454
      %p456 = scmp.ne.s32.totalorder %s445, %s446
      %p457 = scmp.eq.s32.totalorder %s33, 0
      %p458 = por %p456, %p457
      %p459 = scmp.ne.s32.totalorder %s445, %s446
      %p460 = scmp.eq.s32.totalorder %s34, 1
      %p461 = por %p459, %p460
      %p463 = scmp.ne.s32.totalorder %s446, %s462
      %p464 = scmp.eq.s32.totalorder %s34, 0
      %p465 = por %p463, %p464
      %p466 = scmp.le.s32.totalorder 1, %s28
      %p467 = scmp.lt.s32.totalorder %s28, 3
      %p468 = pnand %p466, %p467
      %p469 = pneg %p468
      // Predicated region
      $region9: #{_forward.1} parent=5 // pred_check
        _
      $region10: #{_forward.1} parent=5 // pred_check_branch
        %471 = sbr.rel (%p468) target = $region12
      $region11: #{_forward.1} parent=5 // pred_region
        %s472 = ssub.s32 %s28, 1
        // Predicated region
        $region13: #{_forward.1} parent=11 // pred_check
          %p473 = pneg %p75
        $region14: #{_forward.1} parent=11 // pred_check_branch
          %475 = sbr.rel (%p473) target = $region16
        $region15: #{_forward.1} parent=11 // pred_region
          _
        $region16: #{_forward.1} parent=11 // pred_fallthru
          _
        // Predicated region
        $region17: #{_forward.1} parent=11 // pred_check
          %p476 = pneg %p96
        $region18: #{_forward.1} parent=11 // pred_check_branch
          %478 = sbr.rel (%p476) target = $region20
        $region19: #{_forward.1} parent=11 // pred_region
          _
        $region20: #{_forward.1} parent=11 // pred_fallthru
          _
        // Predicated region
        $region21: #{_forward.1} parent=11 // pred_check
          %p479 = pneg %p117
        $region22: #{_forward.1} parent=11 // pred_check_branch
          %481 = sbr.rel (%p479) target = $region24
        $region23: #{_forward.1} parent=11 // pred_region
          _
        $region24: #{_forward.1} parent=11 // pred_fallthru
          _
        // Predicated region
        $region25: #{_forward.1} parent=11 // pred_check
          %p482 = pneg %p138
        $region26: #{_forward.1} parent=11 // pred_check_branch
          %484 = sbr.rel (%p482) target = $region28
        $region27: #{_forward.1} parent=11 // pred_region
          _
        $region28: #{_forward.1} parent=11 // pred_fallthru
          _
        // Predicated region
        $region29: #{_forward.1} parent=11 // pred_check
          %p485 = pneg %p159
        $region30: #{_forward.1} parent=11 // pred_check_branch
          %487 = sbr.rel (%p485) target = $region32
        $region31: #{_forward.1} parent=11 // pred_region
          _
        $region32: #{_forward.1} parent=11 // pred_fallthru
          _
        // Predicated region
        $region33: #{_forward.1} parent=11 // pred_check
          %p488 = pneg %p180
        $region34: #{_forward.1} parent=11 // pred_check_branch
          %490 = sbr.rel (%p488) target = $region36
        $region35: #{_forward.1} parent=11 // pred_region
          _
        $region36: #{_forward.1} parent=11 // pred_fallthru
          _
        // Predicated region
        $region37: #{_forward.1} parent=11 // pred_check
          %p491 = pneg %p201
        $region38: #{_forward.1} parent=11 // pred_check_branch
          %493 = sbr.rel (%p491) target = $region40
        $region39: #{_forward.1} parent=11 // pred_region
          _
        $region40: #{_forward.1} parent=11 // pred_fallthru
          _
        // Predicated region
        $region41: #{_forward.1} parent=11 // pred_check
          %p494 = pneg %p222
        $region42: #{_forward.1} parent=11 // pred_check_branch
          %496 = sbr.rel (%p494) target = $region44
        $region43: #{_forward.1} parent=11 // pred_region
          _
        $region44: #{_forward.1} parent=11 // pred_fallthru
          _
        // Predicated region
        $region45: #{_forward.1} parent=11 // pred_check
          %p497 = pneg %p243
        $region46: #{_forward.1} parent=11 // pred_check_branch
          %499 = sbr.rel (%p497) target = $region48
        $region47: #{_forward.1} parent=11 // pred_region
          _
        $region48: #{_forward.1} parent=11 // pred_fallthru
          _
        // Predicated region
        $region49: #{_forward.1} parent=11 // pred_check
          %p500 = pneg %p264
        $region50: #{_forward.1} parent=11 // pred_check_branch
          %502 = sbr.rel (%p500) target = $region52
        $region51: #{_forward.1} parent=11 // pred_region
          _
        $region52: #{_forward.1} parent=11 // pred_fallthru
          _
        // Predicated region
        $region53: #{_forward.1} parent=11 // pred_check
          %p503 = pneg %p285
        $region54: #{_forward.1} parent=11 // pred_check_branch
          %505 = sbr.rel (%p503) target = $region56
        $region55: #{_forward.1} parent=11 // pred_region
          _
        $region56: #{_forward.1} parent=11 // pred_fallthru
          _
        // Predicated region
        $region57: #{_forward.1} parent=11 // pred_check
          %p506 = pneg %p306
        $region58: #{_forward.1} parent=11 // pred_check_branch
          %508 = sbr.rel (%p506) target = $region60
        $region59: #{_forward.1} parent=11 // pred_region
          _
        $region60: #{_forward.1} parent=11 // pred_fallthru
          _
        // Predicated region
        $region61: #{_forward.1} parent=11 // pred_check
          %p509 = pneg %p327
        $region62: #{_forward.1} parent=11 // pred_check_branch
          %511 = sbr.rel (%p509) target = $region64
        $region63: #{_forward.1} parent=11 // pred_region
          _
        $region64: #{_forward.1} parent=11 // pred_fallthru
          _
        // Predicated region
        $region65: #{_forward.1} parent=11 // pred_check
          %p512 = pneg %p348
        $region66: #{_forward.1} parent=11 // pred_check_branch
          %514 = sbr.rel (%p512) target = $region68
        $region67: #{_forward.1} parent=11 // pred_region
          _
        $region68: #{_forward.1} parent=11 // pred_fallthru
          _
        // Predicated region
        $region69: #{_forward.1} parent=11 // pred_check
          %p515 = pneg %p369
        $region70: #{_forward.1} parent=11 // pred_check_branch
          %517 = sbr.rel (%p515) target = $region72
        $region71: #{_forward.1} parent=11 // pred_region
          _
        $region72: #{_forward.1} parent=11 // pred_fallthru
          _
        // Predicated region
        $region73: #{_forward.1} parent=11 // pred_check
          %p518 = pneg %p390
        $region74: #{_forward.1} parent=11 // pred_check_branch
          %520 = sbr.rel (%p518) target = $region76
        $region75: #{_forward.1} parent=11 // pred_region
          _
        $region76: #{_forward.1} parent=11 // pred_fallthru
          _
        // Predicated region
        $region77: #{_forward.1} parent=11 // pred_check
          %p521 = pneg %p411
        $region78: #{_forward.1} parent=11 // pred_check_branch
          %523 = sbr.rel (%p521) target = $region80
        $region79: #{_forward.1} parent=11 // pred_region
          _
        $region80: #{_forward.1} parent=11 // pred_fallthru
          _
        // Predicated region
        $region81: #{_forward.1} parent=11 // pred_check
          %p524 = pneg %p432
        $region82: #{_forward.1} parent=11 // pred_check_branch
          %526 = sbr.rel (%p524) target = $region84
        $region83: #{_forward.1} parent=11 // pred_region
          _
        $region84: #{_forward.1} parent=11 // pred_fallthru
          _
      $region12: #{_forward.1} parent=5 // pred_fallthru
        _
      %p527 = scmp.lt.s32.totalorder %s28, 2
      // Predicated region
      $region85: #{_forward.1} parent=5 // pred_check
        %p528 = pneg %p527
      $region86: #{_forward.1} parent=5 // pred_check_branch
        %530 = sbr.rel (%p528) target = $region88
      $region87: #{_forward.1} parent=5 // pred_region
        // Predicated region
        $region89: #{_forward.1} parent=87 // pred_check
          %p531 = pneg %p48
        $region90: #{_forward.1} parent=87 // pred_check_branch
          %533 = sbr.rel (%p531) target = $region92
        $region91: #{_forward.1} parent=87 // pred_region
          %p534 = scmp.lt.s32.totalorder %s28, 1
          %s535 = scalar_select %p534, %s28, 1
          %s536 = smul.addr %s535, 8
          %s537 = scalar_lea.vmem %s0, %s536
        $region92: #{_forward.1} parent=87 // pred_fallthru
          _
      $region88: #{_forward.1} parent=5 // pred_fallthru
        _
      %p538 = scmp.le.s32.totalorder 1, %s28
      %p539 = scmp.lt.s32.totalorder %s28, 3
      %p540 = pnand %p538, %p539
      %p541 = pneg %p540
      // Predicated region
      $region93: #{_forward.1} parent=5 // pred_check
        _
      $region94: #{_forward.1} parent=5 // pred_check_branch
        %543 = sbr.rel (%p540) target = $region96
      $region95: #{_forward.1} parent=5 // pred_region
        %s544 = ssub.s32 %s28, 1
        %p545 = scmp.lt.s32.totalorder %s33, 1
        %s546 = scalar_select %p545, %s33, 1
        %s547 = smul.addr %s546, 8
        %s548 = scalar_lea.vmem %s0, %s547
        %p549 = pneg %p54
        %p550 = pneg %p51
        %p551 = pneg %p75
        %p552 = pneg %p72
        %p553 = pneg %p96
        %p554 = pneg %p93
        %p555 = pneg %p117
        %p556 = pneg %p114
        %p557 = pneg %p138
        %p558 = pneg %p135
        %p559 = pneg %p159
        %p560 = pneg %p156
        %p561 = pneg %p180
        %p562 = pneg %p177
        %p563 = pneg %p201
        %p564 = pneg %p198
        %p565 = pneg %p222
        %p566 = pneg %p219
        %p567 = pneg %p243
        %p568 = pneg %p240
        %p569 = pneg %p264
        %p570 = pneg %p261
        %p571 = pneg %p285
        %p572 = pneg %p282
        %p573 = pneg %p306
        %p574 = pneg %p303
        %p575 = pneg %p327
        %p576 = pneg %p324
        %p577 = pneg %p348
        %p578 = pneg %p345
        %p579 = pneg %p369
        %p580 = pneg %p366
        %p581 = pneg %p390
        %p582 = pneg %p387
        %p583 = pneg %p411
        %p584 = pneg %p408
        %p585 = pneg %p432
        %p586 = pneg %p429
        %p587 = pneg %p458
        %p588 = pneg %p455
        %s589 = sand.u32 %s445, 1
        %s590 = scalar_lea.sflag [#allocation3], %s589
        %s591 = sand.u32 %s445, 1
        %s592 = smul.addr %s591, 8
        %s593 = scalar_lea.vmem [#allocation2], %s592
        %p594 = scmp.lt.s32.totalorder %s33, 1
        %s595 = scalar_select %p594, %s33, 1
        %s596 = smul.addr %s595, 8
        %s597 = scalar_lea.vmem %s0, %s596
        %v599 = vld [vmem:[%s597] sm:$0xff]
        %v600 = vld [vmem:[%s1] sm:$0xf]
        %v601 = vld [vmem:[%s1 + $0x4] sm:$0xf]
        %v602 = vld [vmem:[%s1 + $0x8] sm:$0xf]
        %v603 = vld [vmem:[%s1 + $0xc] sm:$0xf]
        %v604 = vld [vmem:[%s2] sm:$0xf]
        %v605 = vld [vmem:[%s2 + $0x4] sm:$0xf]
        %v606 = vld [vmem:[%s2 + $0x8] sm:$0xf]
        %v607 = vld [vmem:[%s2 + $0xc] sm:$0xf]
        %v608 = vld [vmem:[%s3] sm:$0xf]
        %v609 = vld [vmem:[%s3 + $0x4] sm:$0xf]
        %v610 = vld [vmem:[%s3 + $0x8] sm:$0xf]
        %v611 = vld [vmem:[%s3 + $0xc] sm:$0xf]
        %v612 = vld [vmem:[%s4] sm:$0xf]
        %v613 = vld [vmem:[%s4 + $0x4] sm:$0xf]
        %v614 = vld [vmem:[%s4 + $0x8] sm:$0xf]
        %v615 = vld [vmem:[%s4 + $0xc] sm:$0xf]
        %v616 = vld [vmem:[%s4 + $0x10] sm:$0xf]
        %v617 = vld [vmem:[%s4 + $0x14] sm:$0xf]
        %v618 = vld [vmem:[%s4 + $0x18] sm:$0xf]
        %v619 = vld [vmem:[%s4 + $0x1c] sm:$0xf]
        %v620 = vld [vmem:[%s5] sm:$0x3f]
        %v621 = vld [vmem:[%s6] sm:$0x1]
        %v622 = vld [vmem:[%s7] sm:$0x1]
        %v623 = vpack.c.bf16 %v599, %v599
        %v625 = vperm.slane %v621, 0
        %v631 = vunpack.c.l.b16 %v600
        %v632 = vunpack.c.l.b16 %v601
        %v633 = vunpack.c.l.b16 %v602
        %v634 = vunpack.c.l.b16 %v603
        %v635 = vpack.c.b16 %v632, %v631
        %v636 = vpack.c.b16 %v634, %v633
        %vm639 = vcmask 261120
        %v641 = vsel %vm639, %v623, 0
        %643 = vmatpush.bf16.msra.mxu0 0
        %644 = vmatpush.bf16.msra.mxu0 0
        %645 = vmatpush.bf16.msra.mxu0 0
        %646 = vmatpush.bf16.msra.mxu0 0
        %647 = vmatpush.bf16.msra.mxu0 0
        %648 = vmatpush.bf16.msra.mxu0 0
        %649 = vmatpush.bf16.msra.mxu0 %v636
        %650 = vmatpush.bf16.msra.mxu0 %v635
        %651 = vmatmul.bf16.gmra.mxu0 %v641
        %v652 = vpop.f32.mrf.mxu0
        %v653 = vadd.f32 %v625, %v652
        %v654 = vpop.f32.mrf.mxu0
        %655 = vdwg.mxu0
        %657 = vrot.lane.b32.xlu0 %v653, 120
        %v658 = vpop.permute.xlu0 %657
        %660 = vrot.lane.b32.xlu0 %v653, 112
        %v661 = vpop.permute.xlu0 %660
        %663 = vrot.lane.b32.xlu0 %v653, 104
        %v664 = vpop.permute.xlu0 %663
        %v666 = vpack.c.bf16 %v653, %v653
        %v667 = vpack.c.bf16 %v658, %v658
        %v668 = vpack.c.bf16 %v661, %v661
        %v669 = vpack.c.bf16 %v664, %v664
        %v671 = vunpack.c.l.b16 %v666
        %v672 = vpack.c.b16 %v671, %v671
        %673 = vrot.lane.b32.xlu0 %v672, 96
        %v674 = vpop.permute.xlu0 %673
        %vm675 = vcmask 64512
        %v677 = vsel %vm675, %v666, 0
        %v680 = vsel %vm675, %v674, 0
        %682 = vmatpush.bf16.xpose.msra.mxu0 0
        %683 = vmatpush.bf16.xpose.msra.mxu0 0
        %684 = vmatpush.bf16.xpose.msra.mxu0 0
        %685 = vmatpush.bf16.xpose.msra.mxu0 0
        %686 = vmatpush.bf16.xpose.msra.mxu0 0
        %687 = vmatpush.bf16.xpose.msra.mxu0 0
        %688 = vmatpush.bf16.xpose.msra.mxu0 0
        %689 = vmatpush.bf16.xpose.msra.mxu0 %v680
        %690 = vmatmul.bf16.gmra.mxu0 %v677
        %v691 = vpop.f32.mrf.mxu0
        %v692 = vadd.f32 0.0, %v691
        %v693 = vpop.f32.mrf.mxu0
        %694 = vdwg.mxu0
        %v696 = vunpack.c.l.b16 %v667
        %v697 = vpack.c.b16 %v696, %v696
        %698 = vrot.lane.b32.xlu0 %v697, 96
        %v699 = vpop.permute.xlu0 %698
        %v701 = vsel %vm675, %v667, 0
        %v704 = vsel %vm675, %v699, 0
        %706 = vmatpush.bf16.xpose.msra.mxu0 0
        %707 = vmatpush.bf16.xpose.msra.mxu0 0
        %708 = vmatpush.bf16.xpose.msra.mxu0 0
        %709 = vmatpush.bf16.xpose.msra.mxu0 0
        %710 = vmatpush.bf16.xpose.msra.mxu0 0
        %711 = vmatpush.bf16.xpose.msra.mxu0 0
        %712 = vmatpush.bf16.xpose.msra.mxu0 0
        %713 = vmatpush.bf16.xpose.msra.mxu0 %v704
        %714 = vmatmul.bf16.gmra.mxu0 %v701
        %v715 = vpop.f32.mrf.mxu0
        %v716 = vadd.f32 0.0, %v715
        %v717 = vpop.f32.mrf.mxu0
        %718 = vdwg.mxu0
        %v720 = vunpack.c.l.b16 %v668
        %v721 = vpack.c.b16 %v720, %v720
        %722 = vrot.lane.b32.xlu0 %v721, 96
        %v723 = vpop.permute.xlu0 %722
        %v725 = vsel %vm675, %v668, 0
        %v728 = vsel %vm675, %v723, 0
        %730 = vmatpush.bf16.xpose.msra.mxu0 0
        %731 = vmatpush.bf16.xpose.msra.mxu0 0
        %732 = vmatpush.bf16.xpose.msra.mxu0 0
        %733 = vmatpush.bf16.xpose.msra.mxu0 0
        %734 = vmatpush.bf16.xpose.msra.mxu0 0
        %735 = vmatpush.bf16.xpose.msra.mxu0 0
        %736 = vmatpush.bf16.xpose.msra.mxu0 0
        %737 = vmatpush.bf16.xpose.msra.mxu0 %v728
        %738 = vmatmul.bf16.gmra.mxu0 %v725
        %v739 = vpop.f32.mrf.mxu0
        %v740 = vadd.f32 0.0, %v739
        %v741 = vpop.f32.mrf.mxu0
        %742 = vdwg.mxu0
        %v744 = vunpack.c.l.b16 %v669
        %v745 = vpack.c.b16 %v744, %v744
        %746 = vrot.lane.b32.xlu0 %v745, 96
        %v747 = vpop.permute.xlu0 %746
        %v749 = vsel %vm675, %v669, 0
        %v752 = vsel %vm675, %v747, 0
        %754 = vmatpush.bf16.xpose.msra.mxu0 0
        %755 = vmatpush.bf16.xpose.msra.mxu0 0
        %756 = vmatpush.bf16.xpose.msra.mxu0 0
        %757 = vmatpush.bf16.xpose.msra.mxu0 0
        %758 = vmatpush.bf16.xpose.msra.mxu0 0
        %759 = vmatpush.bf16.xpose.msra.mxu0 0
        %760 = vmatpush.bf16.xpose.msra.mxu0 0
        %761 = vmatpush.bf16.xpose.msra.mxu0 %v752
        %762 = vmatmul.bf16.gmra.mxu0 %v749
        %v763 = vpop.f32.mrf.mxu0
        %v764 = vadd.f32 0.0, %v763
        %v765 = vpop.f32.mrf.mxu0
        %766 = vdwg.mxu0
        %v767 = vsel %vm675, %v692, -inf
        %768 = vmax.xlane.f32.xlu0 %v767
        %v769 = vpop.xlane.xlu0 %768
        %v770 = vsel %vm675, %v716, -inf
        %771 = vmax.xlane.f32.xlu0 %v770
        %v772 = vpop.xlane.xlu0 %771
        %v773 = vsel %vm675, %v740, -inf
        %774 = vmax.xlane.f32.xlu0 %v773
        %v775 = vpop.xlane.xlu0 %774
        %v776 = vsel %vm675, %v764, -inf
        %777 = vmax.xlane.f32.xlu0 %v776
        %v778 = vpop.xlane.xlu0 %777
        %v779 = vsub.f32 %v692, %v769
        %v780 = vsub.f32 %v716, %v772
        %v781 = vsub.f32 %v740, %v775
        %v782 = vsub.f32 %v764, %v778
        %v783 = vmul.f32 %v779, 1.442695
        %v784 = vpow.pop %v783
        %v785 = vmul.f32 %v780, 1.442695
        %v786 = vpow.pop %v785
        %v787 = vmul.f32 %v781, 1.442695
        %v788 = vpow.pop %v787
        %v789 = vmul.f32 %v782, 1.442695
        %v790 = vpow.pop %v789
        %v791 = vsel %vm675, %v784, 0.0
        %792 = vadd.xlane.f32.xlu0 %v791
        %v793 = vpop.xlane.xlu0 %792
        %v794 = vsel %vm675, %v786, 0.0
        %795 = vadd.xlane.f32.xlu0 %v794
        %v796 = vpop.xlane.xlu0 %795
        %v797 = vsel %vm675, %v788, 0.0
        %798 = vadd.xlane.f32.xlu0 %v797
        %v799 = vpop.xlane.xlu0 %798
        %v800 = vsel %vm675, %v790, 0.0
        %801 = vadd.xlane.f32.xlu0 %v800
        %v802 = vpop.xlane.xlu0 %801
        %v803 = vrcp.pop %v793
        %v804 = vrcp.pop %v796
        %v805 = vrcp.pop %v799
        %v806 = vrcp.pop %v802
        %v807 = vmul.f32 %v784, %v803
        %v808 = vmul.f32 %v786, %v804
        %v809 = vmul.f32 %v788, %v805
        %v810 = vmul.f32 %v790, %v806
        %v811 = vpack.c.bf16 %v807, %v807
        %v812 = vpack.c.bf16 %v808, %v808
        %v813 = vpack.c.bf16 %v809, %v809
        %v814 = vpack.c.bf16 %v810, %v810
        %815 = vrot.lane.b32.xlu0 %v672, 64
        %v816 = vpop.permute.xlu0 %815
        %v818 = vsel %vm675, %v811, 0
        %vm820 = vcmask 1043456
        %v822 = vsel %vm820, %v816, 0
        %824 = vmatpush.bf16.msra.mxu0 0
        %825 = vmatpush.bf16.msra.mxu0 0
        %826 = vmatpush.bf16.msra.mxu0 0
        %827 = vmatpush.bf16.msra.mxu0 0
        %828 = vmatpush.bf16.msra.mxu0 0
        %829 = vmatpush.bf16.msra.mxu0 0
        %830 = vmatpush.bf16.msra.mxu0 0
        %831 = vmatpush.bf16.msra.mxu0 %v822
        %832 = vmatmul.bf16.gmra.mxu0 %v818
        %v833 = vpop.f32.mrf.mxu0
        %v834 = vadd.f32 0.0, %v833
        %v835 = vpop.f32.mrf.mxu0
        %836 = vdwg.mxu0
        %837 = vrot.lane.b32.xlu0 %v697, 64
        %v838 = vpop.permute.xlu0 %837
        %v840 = vsel %vm675, %v812, 0
        %v843 = vsel %vm820, %v838, 0
        %845 = vmatpush.bf16.msra.mxu0 0
        %846 = vmatpush.bf16.msra.mxu0 0
        %847 = vmatpush.bf16.msra.mxu0 0
        %848 = vmatpush.bf16.msra.mxu0 0
        %849 = vmatpush.bf16.msra.mxu0 0
        %850 = vmatpush.bf16.msra.mxu0 0
        %851 = vmatpush.bf16.msra.mxu0 0
        %852 = vmatpush.bf16.msra.mxu0 %v843
        %853 = vmatmul.bf16.gmra.mxu0 %v840
        %v854 = vpop.f32.mrf.mxu0
        %v855 = vadd.f32 0.0, %v854
        %v856 = vpop.f32.mrf.mxu0
        %857 = vdwg.mxu0
        %858 = vrot.lane.b32.xlu0 %v721, 64
        %v859 = vpop.permute.xlu0 %858
        %v861 = vsel %vm675, %v813, 0
        %v864 = vsel %vm820, %v859, 0
        %866 = vmatpush.bf16.msra.mxu0 0
        %867 = vmatpush.bf16.msra.mxu0 0
        %868 = vmatpush.bf16.msra.mxu0 0
        %869 = vmatpush.bf16.msra.mxu0 0
        %870 = vmatpush.bf16.msra.mxu0 0
        %871 = vmatpush.bf16.msra.mxu0 0
        %872 = vmatpush.bf16.msra.mxu0 0
        %873 = vmatpush.bf16.msra.mxu0 %v864
        %874 = vmatmul.bf16.gmra.mxu0 %v861
        %v875 = vpop.f32.mrf.mxu0
        %v876 = vadd.f32 0.0, %v875
        %v877 = vpop.f32.mrf.mxu0
        %878 = vdwg.mxu0
        %879 = vrot.lane.b32.xlu0 %v745, 64
        %v880 = vpop.permute.xlu0 %879
        %v882 = vsel %vm675, %v814, 0
        %v885 = vsel %vm820, %v880, 0
        %887 = vmatpush.bf16.msra.mxu0 0
        %888 = vmatpush.bf16.msra.mxu0 0
        %889 = vmatpush.bf16.msra.mxu0 0
        %890 = vmatpush.bf16.msra.mxu0 0
        %891 = vmatpush.bf16.msra.mxu0 0
        %892 = vmatpush.bf16.msra.mxu0 0
        %893 = vmatpush.bf16.msra.mxu0 0
        %894 = vmatpush.bf16.msra.mxu0 %v885
        %895 = vmatmul.bf16.gmra.mxu0 %v882
        %v896 = vpop.f32.mrf.mxu0
        %v897 = vadd.f32 0.0, %v896
        %v898 = vpop.f32.mrf.mxu0
        %899 = vdwg.mxu0
        %901 = vrot.lane.b32.xlu0 %v855, 8
        %v902 = vpop.permute.xlu0 %901
        %905 = vrot.lane.b32.xlu0 %v876, 16
        %v906 = vpop.permute.xlu0 %905
        %909 = vrot.lane.b32.xlu0 %v897, 24
        %v910 = vpop.permute.xlu0 %909
        %v912 = vsel %vm675, %v834, %v902
        %vm913 = vcmask 130048
        %v914 = vsel %vm913, %v912, %v906
        %vm915 = vcmask 195584
        %v916 = vsel %vm915, %v914, %v910
        %v917 = vpack.c.bf16 %v916, %v916
        %v918 = vperm.slane %v620, 0
        %v923 = vunpack.c.l.b16 %v604
        %v924 = vunpack.c.l.b16 %v605
        %v925 = vunpack.c.l.b16 %v606
        %v926 = vunpack.c.l.b16 %v607
        %v927 = vpack.c.b16 %v924, %v923
        %v928 = vpack.c.b16 %v926, %v925
        %v932 = vsel %vm639, %v917, 0
        %934 = vmatpush.bf16.msra.mxu0 0
        %935 = vmatpush.bf16.msra.mxu0 0
        %936 = vmatpush.bf16.msra.mxu0 0
        %937 = vmatpush.bf16.msra.mxu0 0
        %938 = vmatpush.bf16.msra.mxu0 0
        %939 = vmatpush.bf16.msra.mxu0 0
        %940 = vmatpush.bf16.msra.mxu0 %v928
        %941 = vmatpush.bf16.msra.mxu0 %v927
        %942 = vmatmul.bf16.gmra.mxu0 %v932
        %v943 = vpop.f32.mrf.mxu0
        %v944 = vadd.f32 %v918, %v943
        %v945 = vpop.f32.mrf.mxu0
        %946 = vdwg.mxu0
        %v947 = vadd.f32 %v599, %v944
        %v948 = vsel %vm639, %v947, 0.0
        %949 = vadd.xlane.f32.xlu0 %v948
        %v950 = vpop.xlane.xlu0 %949
        %v951 = vrcp.pop 32.0
        %v952 = vmul.f32 32.0, %v951
        %v953 = vsub.f32 1.0, %v952
        %v954 = vmul.f32 %v951, %v953
        %v955 = vadd.f32 %v951, %v954
        %vm956 = vweird.f32 %v951
        %v957 = vsel %vm956, %v951, %v955
        %v958 = vmul.f32 %v950, %v957
        %v959 = vsub.f32 %v947, %v958
        %v960 = vmul.f32 %v959, %v959
        %v961 = vsel %vm639, %v960, 0.0
        %962 = vadd.xlane.f32.xlu0 %v961
        %v963 = vpop.xlane.xlu0 %962
        %v964 = vmul.f32 %v963, %v957
        %v965 = vadd.f32 %v964, 1e-05
        %v966 = vrsqrt.pop %v965
        %v967 = vmul.f32 %v966, %v965
        %v968 = vmul.f32 %v967, %v966
        %v969 = vmul.f32 0.5, %v968
        %v970 = vsub.f32 1.5, %v969
        %v971 = vmul.f32 %v966, %v970
        %vm972 = vweird.f32 %v965
        %vm973 = vweird.f32 %v966
        %vm974 = vmor %vm972, %vm973
        %v975 = vsel %vm974, %v966, %v971
        %v976 = vmul.f32 %v959, %v975
        %v977 = vperm.slane %v620, 1
        %v978 = vmul.f32 %v976, %v977
        %v979 = vperm.slane %v620, 2
        %v980 = vadd.f32 %v978, %v979
        %v981 = vpack.c.bf16 %v980, %v980
        %v983 = vperm.slane %v622, 0
        %v989 = vunpack.c.l.b16 %v608
        %v990 = vunpack.c.l.b16 %v609
        %v991 = vunpack.c.l.b16 %v610
        %v992 = vunpack.c.l.b16 %v611
        %v993 = vpack.c.b16 %v990, %v989
        %v994 = vpack.c.b16 %v992, %v991
        %v998 = vsel %vm639, %v981, 0
        %1000 = vmatpush.bf16.msra.mxu0 0
        %1001 = vmatpush.bf16.msra.mxu0 0
        %1002 = vmatpush.bf16.msra.mxu0 0
        %1003 = vmatpush.bf16.msra.mxu0 0
        %1004 = vmatpush.bf16.msra.mxu0 0
        %1005 = vmatpush.bf16.msra.mxu0 0
        %1006 = vmatpush.bf16.msra.mxu0 %v994
        %1007 = vmatpush.bf16.msra.mxu0 %v993
        %1008 = vmatmul.bf16.gmra.mxu0 %v998
        %v1009 = vpop.f32.mrf.mxu0
        %v1010 = vadd.f32 %v983, %v1009
        %v1011 = vpop.f32.mrf.mxu0
        %1012 = vdwg.mxu0
        %v1013 = vmax.f32 %v1010, 0.0
        %v1014 = vpack.c.bf16 %v1013, %v1013
        %v1015 = vperm.slane %v620, 3
        %v1024 = vunpack.c.l.b16 %v612
        %v1025 = vunpack.c.l.b16 %v613
        %v1026 = vunpack.c.l.b16 %v614
        %v1027 = vunpack.c.l.b16 %v615
        %v1028 = vunpack.c.l.b16 %v616
        %v1029 = vunpack.c.l.b16 %v617
        %v1030 = vunpack.c.l.b16 %v618
        %v1031 = vunpack.c.l.b16 %v619
        %v1032 = vpack.c.b16 %v1025, %v1024
        %v1033 = vpack.c.b16 %v1027, %v1026
        %v1034 = vpack.c.b16 %v1029, %v1028
        %v1035 = vpack.c.b16 %v1031, %v1030
        %vm1040 = vcmask 523264
        %v1042 = vsel %vm1040, %v1014, 0
        %1044 = vmatpush.bf16.msra.mxu0 0
        %1045 = vmatpush.bf16.msra.mxu0 0
        %1046 = vmatpush.bf16.msra.mxu0 0
        %1047 = vmatpush.bf16.msra.mxu0 0
        %1048 = vmatpush.bf16.msra.mxu0 %v1035
        %1049 = vmatpush.bf16.msra.mxu0 %v1034
        %1050 = vmatpush.bf16.msra.mxu0 %v1033
        %1051 = vmatpush.bf16.msra.mxu0 %v1032
        %1052 = vmatmul.bf16.gmra.mxu0 %v1042
        %v1053 = vpop.f32.mrf.mxu0
        %v1054 = vadd.f32 %v1015, %v1053
        %v1055 = vpop.f32.mrf.mxu0
        %1056 = vdwg.mxu0
        %v1057 = vadd.f32 %v980, %v1054
        %v1058 = vsel %vm639, %v1057, 0.0
        %1059 = vadd.xlane.f32.xlu0 %v1058
        %v1060 = vpop.xlane.xlu0 %1059
        %v1061 = vmul.f32 %v1060, %v957
        %v1062 = vsub.f32 %v1057, %v1061
        %v1063 = vmul.f32 %v1062, %v1062
        %v1064 = vsel %vm639, %v1063, 0.0
        %1065 = vadd.xlane.f32.xlu0 %v1064
        %v1066 = vpop.xlane.xlu0 %1065
        %v1067 = vmul.f32 %v1066, %v957
        %v1068 = vadd.f32 %v1067, 1e-05
        %v1069 = vrsqrt.pop %v1068
        %v1070 = vmul.f32 %v1069, %v1068
        %v1071 = vmul.f32 %v1070, %v1069
        %v1072 = vmul.f32 0.5, %v1071
        %v1073 = vsub.f32 1.5, %v1072
        %v1074 = vmul.f32 %v1069, %v1073
        %vm1075 = vweird.f32 %v1068
        %vm1076 = vweird.f32 %v1069
        %vm1077 = vmor %vm1075, %vm1076
        %v1078 = vsel %vm1077, %v1069, %v1074
        %v1079 = vmul.f32 %v1062, %v1078
        %v1080 = vperm.slane %v620, 4
        %v1081 = vmul.f32 %v1079, %v1080
        %v1082 = vperm.slane %v620, 5
        %v1083 = vadd.f32 %v1081, %v1082
        %s1084 = scalar_lea.vmem %s1, 16
        %v1085 = vld [vmem:[%s1084] sm:$0xf]
        %v1086 = vld [vmem:[%s1084 + $0x4] sm:$0xf]
        %v1087 = vld [vmem:[%s1084 + $0x8] sm:$0xf]
        %v1088 = vld [vmem:[%s1084 + $0xc] sm:$0xf]
        %s1089 = scalar_lea.vmem %s2, 16
        %v1090 = vld [vmem:[%s1089] sm:$0xf]
        %v1091 = vld [vmem:[%s1089 + $0x4] sm:$0xf]
        %v1092 = vld [vmem:[%s1089 + $0x8] sm:$0xf]
        %v1093 = vld [vmem:[%s1089 + $0xc] sm:$0xf]
        %s1094 = scalar_lea.vmem %s3, 16
        %v1095 = vld [vmem:[%s1094] sm:$0xf]
        %v1096 = vld [vmem:[%s1094 + $0x4] sm:$0xf]
        %v1097 = vld [vmem:[%s1094 + $0x8] sm:$0xf]
        %v1098 = vld [vmem:[%s1094 + $0xc] sm:$0xf]
        %s1099 = scalar_lea.vmem %s4, 32
        %v1100 = vld [vmem:[%s1099] sm:$0xf]
        %v1101 = vld [vmem:[%s1099 + $0x4] sm:$0xf]
        %v1102 = vld [vmem:[%s1099 + $0x8] sm:$0xf]
        %v1103 = vld [vmem:[%s1099 + $0xc] sm:$0xf]
        %v1104 = vld [vmem:[%s1099 + $0x10] sm:$0xf]
        %v1105 = vld [vmem:[%s1099 + $0x14] sm:$0xf]
        %v1106 = vld [vmem:[%s1099 + $0x18] sm:$0xf]
        %v1107 = vld [vmem:[%s1099 + $0x1c] sm:$0xf]
        %s1108 = scalar_lea.vmem %s5, 8
        %v1109 = vld [vmem:[%s1108] sm:$0x3f]
        %s1110 = scalar_lea.vmem %s6, 1
        %v1111 = vld [vmem:[%s1110] sm:$0x1]
        %s1112 = scalar_lea.vmem %s7, 1
        %v1113 = vld [vmem:[%s1112] sm:$0x1]
        %v1114 = vpack.c.bf16 %v1083, %v1083
        %v1116 = vperm.slane %v1111, 0
        %v1122 = vunpack.c.l.b16 %v1085
        %v1123 = vunpack.c.l.b16 %v1086
        %v1124 = vunpack.c.l.b16 %v1087
        %v1125 = vunpack.c.l.b16 %v1088
        %v1126 = vpack.c.b16 %v1123, %v1122
        %v1127 = vpack.c.b16 %v1125, %v1124
        %v1131 = vsel %vm639, %v1114, 0
        %1133 = vmatpush.bf16.msra.mxu0 0
        %1134 = vmatpush.bf16.msra.mxu0 0
        %1135 = vmatpush.bf16.msra.mxu0 0
        %1136 = vmatpush.bf16.msra.mxu0 0
        %1137 = vmatpush.bf16.msra.mxu0 0
        %1138 = vmatpush.bf16.msra.mxu0 0
        %1139 = vmatpush.bf16.msra.mxu0 %v1127
        %1140 = vmatpush.bf16.msra.mxu0 %v1126
        %1141 = vmatmul.bf16.gmra.mxu0 %v1131
        %v1142 = vpop.f32.mrf.mxu0
        %v1143 = vadd.f32 %v1116, %v1142
        %v1144 = vpop.f32.mrf.mxu0
        %1145 = vdwg.mxu0
        %1147 = vrot.lane.b32.xlu0 %v1143, 120
        %v1148 = vpop.permute.xlu0 %1147
        %1150 = vrot.lane.b32.xlu0 %v1143, 112
        %v1151 = vpop.permute.xlu0 %1150
        %1153 = vrot.lane.b32.xlu0 %v1143, 104
        %v1154 = vpop.permute.xlu0 %1153
        %v1156 = vpack.c.bf16 %v1143, %v1143
        %v1157 = vpack.c.bf16 %v1148, %v1148
        %v1158 = vpack.c.bf16 %v1151, %v1151
        %v1159 = vpack.c.bf16 %v1154, %v1154
        %v1161 = vunpack.c.l.b16 %v1156
        %v1162 = vpack.c.b16 %v1161, %v1161
        %1163 = vrot.lane.b32.xlu0 %v1162, 96
        %v1164 = vpop.permute.xlu0 %1163
        %v1166 = vsel %vm675, %v1156, 0
        %v1169 = vsel %vm675, %v1164, 0
        %1171 = vmatpush.bf16.xpose.msra.mxu0 0
        %1172 = vmatpush.bf16.xpose.msra.mxu0 0
        %1173 = vmatpush.bf16.xpose.msra.mxu0 0
        %1174 = vmatpush.bf16.xpose.msra.mxu0 0
        %1175 = vmatpush.bf16.xpose.msra.mxu0 0
        %1176 = vmatpush.bf16.xpose.msra.mxu0 0
        %1177 = vmatpush.bf16.xpose.msra.mxu0 0
        %1178 = vmatpush.bf16.xpose.msra.mxu0 %v1169
        %1179 = vmatmul.bf16.gmra.mxu0 %v1166
        %v1180 = vpop.f32.mrf.mxu0
        %v1181 = vadd.f32 0.0, %v1180
        %v1182 = vpop.f32.mrf.mxu0
        %1183 = vdwg.mxu0
        %v1185 = vunpack.c.l.b16 %v1157
        %v1186 = vpack.c.b16 %v1185, %v1185
        %1187 = vrot.lane.b32.xlu0 %v1186, 96
        %v1188 = vpop.permute.xlu0 %1187
        %v1190 = vsel %vm675, %v1157, 0
        %v1193 = vsel %vm675, %v1188, 0
        %1195 = vmatpush.bf16.xpose.msra.mxu0 0
        %1196 = vmatpush.bf16.xpose.msra.mxu0 0
        %1197 = vmatpush.bf16.xpose.msra.mxu0 0
        %1198 = vmatpush.bf16.xpose.msra.mxu0 0
        %1199 = vmatpush.bf16.xpose.msra.mxu0 0
        %1200 = vmatpush.bf16.xpose.msra.mxu0 0
        %1201 = vmatpush.bf16.xpose.msra.mxu0 0
        %1202 = vmatpush.bf16.xpose.msra.mxu0 %v1193
        %1203 = vmatmul.bf16.gmra.mxu0 %v1190
        %v1204 = vpop.f32.mrf.mxu0
        %v1205 = vadd.f32 0.0, %v1204
        %v1206 = vpop.f32.mrf.mxu0
        %1207 = vdwg.mxu0
        %v1209 = vunpack.c.l.b16 %v1158
        %v1210 = vpack.c.b16 %v1209, %v1209
        %1211 = vrot.lane.b32.xlu0 %v1210, 96
        %v1212 = vpop.permute.xlu0 %1211
        %v1214 = vsel %vm675, %v1158, 0
        %v1217 = vsel %vm675, %v1212, 0
        %1219 = vmatpush.bf16.xpose.msra.mxu0 0
        %1220 = vmatpush.bf16.xpose.msra.mxu0 0
        %1221 = vmatpush.bf16.xpose.msra.mxu0 0
        %1222 = vmatpush.bf16.xpose.msra.mxu0 0
        %1223 = vmatpush.bf16.xpose.msra.mxu0 0
        %1224 = vmatpush.bf16.xpose.msra.mxu0 0
        %1225 = vmatpush.bf16.xpose.msra.mxu0 0
        %1226 = vmatpush.bf16.xpose.msra.mxu0 %v1217
        %1227 = vmatmul.bf16.gmra.mxu0 %v1214
        %v1228 = vpop.f32.mrf.mxu0
        %v1229 = vadd.f32 0.0, %v1228
        %v1230 = vpop.f32.mrf.mxu0
        %1231 = vdwg.mxu0
        %v1233 = vunpack.c.l.b16 %v1159
        %v1234 = vpack.c.b16 %v1233, %v1233
        %1235 = vrot.lane.b32.xlu0 %v1234, 96
        %v1236 = vpop.permute.xlu0 %1235
        %v1238 = vsel %vm675, %v1159, 0
        %v1241 = vsel %vm675, %v1236, 0
        %1243 = vmatpush.bf16.xpose.msra.mxu0 0
        %1244 = vmatpush.bf16.xpose.msra.mxu0 0
        %1245 = vmatpush.bf16.xpose.msra.mxu0 0
        %1246 = vmatpush.bf16.xpose.msra.mxu0 0
        %1247 = vmatpush.bf16.xpose.msra.mxu0 0
        %1248 = vmatpush.bf16.xpose.msra.mxu0 0
        %1249 = vmatpush.bf16.xpose.msra.mxu0 0
        %1250 = vmatpush.bf16.xpose.msra.mxu0 %v1241
        %1251 = vmatmul.bf16.gmra.mxu0 %v1238
        %v1252 = vpop.f32.mrf.mxu0
        %v1253 = vadd.f32 0.0, %v1252
        %v1254 = vpop.f32.mrf.mxu0
        %1255 = vdwg.mxu0
        %v1256 = vsel %vm675, %v1181, -inf
        %1257 = vmax.xlane.f32.xlu0 %v1256
        %v1258 = vpop.xlane.xlu0 %1257
        %v1259 = vsel %vm675, %v1205, -inf
        %1260 = vmax.xlane.f32.xlu0 %v1259
        %v1261 = vpop.xlane.xlu0 %1260
        %v1262 = vsel %vm675, %v1229, -inf
        %1263 = vmax.xlane.f32.xlu0 %v1262
        %v1264 = vpop.xlane.xlu0 %1263
        %v1265 = vsel %vm675, %v1253, -inf
        %1266 = vmax.xlane.f32.xlu0 %v1265
        %v1267 = vpop.xlane.xlu0 %1266
        %v1268 = vsub.f32 %v1181, %v1258
        %v1269 = vsub.f32 %v1205, %v1261
        %v1270 = vsub.f32 %v1229, %v1264
        %v1271 = vsub.f32 %v1253, %v1267
        %v1272 = vmul.f32 %v1268, 1.442695
        %v1273 = vpow.pop %v1272
        %v1274 = vmul.f32 %v1269, 1.442695
        %v1275 = vpow.pop %v1274
        %v1276 = vmul.f32 %v1270, 1.442695
        %v1277 = vpow.pop %v1276
        %v1278 = vmul.f32 %v1271, 1.442695
        %v1279 = vpow.pop %v1278
        %v1280 = vsel %vm675, %v1273, 0.0
        %1281 = vadd.xlane.f32.xlu0 %v1280
        %v1282 = vpop.xlane.xlu0 %1281
        %v1283 = vsel %vm675, %v1275, 0.0
        %1284 = vadd.xlane.f32.xlu0 %v1283
        %v1285 = vpop.xlane.xlu0 %1284
        %v1286 = vsel %vm675, %v1277, 0.0
        %1287 = vadd.xlane.f32.xlu0 %v1286
        %v1288 = vpop.xlane.xlu0 %1287
        %v1289 = vsel %vm675, %v1279, 0.0
        %1290 = vadd.xlane.f32.xlu0 %v1289
        %v1291 = vpop.xlane.xlu0 %1290
        %v1292 = vrcp.pop %v1282
        %v1293 = vrcp.pop %v1285
        %v1294 = vrcp.pop %v1288
        %v1295 = vrcp.pop %v1291
        %v1296 = vmul.f32 %v1273, %v1292
        %v1297 = vmul.f32 %v1275, %v1293
        %v1298 = vmul.f32 %v1277, %v1294
        %v1299 = vmul.f32 %v1279, %v1295
        %v1300 = vpack.c.bf16 %v1296, %v1296
        %v1301 = vpack.c.bf16 %v1297, %v1297
        %v1302 = vpack.c.bf16 %v1298, %v1298
        %v1303 = vpack.c.bf16 %v1299, %v1299
        %1304 = vrot.lane.b32.xlu0 %v1162, 64
        %v1305 = vpop.permute.xlu0 %1304
        %v1307 = vsel %vm675, %v1300, 0
        %v1310 = vsel %vm820, %v1305, 0
        %1312 = vmatpush.bf16.msra.mxu0 0
        %1313 = vmatpush.bf16.msra.mxu0 0
        %1314 = vmatpush.bf16.msra.mxu0 0
        %1315 = vmatpush.bf16.msra.mxu0 0
        %1316 = vmatpush.bf16.msra.mxu0 0
        %1317 = vmatpush.bf16.msra.mxu0 0
        %1318 = vmatpush.bf16.msra.mxu0 0
        %1319 = vmatpush.bf16.msra.mxu0 %v1310
        %1320 = vmatmul.bf16.gmra.mxu0 %v1307
        %v1321 = vpop.f32.mrf.mxu0
        %v1322 = vadd.f32 0.0, %v1321
        %v1323 = vpop.f32.mrf.mxu0
        %1324 = vdwg.mxu0
        %1325 = vrot.lane.b32.xlu0 %v1186, 64
        %v1326 = vpop.permute.xlu0 %1325
        %v1328 = vsel %vm675, %v1301, 0
        %v1331 = vsel %vm820, %v1326, 0
        %1333 = vmatpush.bf16.msra.mxu0 0
        %1334 = vmatpush.bf16.msra.mxu0 0
        %1335 = vmatpush.bf16.msra.mxu0 0
        %1336 = vmatpush.bf16.msra.mxu0 0
        %1337 = vmatpush.bf16.msra.mxu0 0
        %1338 = vmatpush.bf16.msra.mxu0 0
        %1339 = vmatpush.bf16.msra.mxu0 0
        %1340 = vmatpush.bf16.msra.mxu0 %v1331
        %1341 = vmatmul.bf16.gmra.mxu0 %v1328
        %v1342 = vpop.f32.mrf.mxu0
        %v1343 = vadd.f32 0.0, %v1342
        %v1344 = vpop.f32.mrf.mxu0
        %1345 = vdwg.mxu0
        %1346 = vrot.lane.b32.xlu0 %v1210, 64
        %v1347 = vpop.permute.xlu0 %1346
        %v1349 = vsel %vm675, %v1302, 0
        %v1352 = vsel %vm820, %v1347, 0
        %1354 = vmatpush.bf16.msra.mxu0 0
        %1355 = vmatpush.bf16.msra.mxu0 0
        %1356 = vmatpush.bf16.msra.mxu0 0
        %1357 = vmatpush.bf16.msra.mxu0 0
        %1358 = vmatpush.bf16.msra.mxu0 0
        %1359 = vmatpush.bf16.msra.mxu0 0
        %1360 = vmatpush.bf16.msra.mxu0 0
        %1361 = vmatpush.bf16.msra.mxu0 %v1352
        %1362 = vmatmul.bf16.gmra.mxu0 %v1349
        %v1363 = vpop.f32.mrf.mxu0
        %v1364 = vadd.f32 0.0, %v1363
        %v1365 = vpop.f32.mrf.mxu0
        %1366 = vdwg.mxu0
        %1367 = vrot.lane.b32.xlu0 %v1234, 64
        %v1368 = vpop.permute.xlu0 %1367
        %v1370 = vsel %vm675, %v1303, 0
        %v1373 = vsel %vm820, %v1368, 0
        %1375 = vmatpush.bf16.msra.mxu0 0
        %1376 = vmatpush.bf16.msra.mxu0 0
        %1377 = vmatpush.bf16.msra.mxu0 0
        %1378 = vmatpush.bf16.msra.mxu0 0
        %1379 = vmatpush.bf16.msra.mxu0 0
        %1380 = vmatpush.bf16.msra.mxu0 0
        %1381 = vmatpush.bf16.msra.mxu0 0
        %1382 = vmatpush.bf16.msra.mxu0 %v1373
        %1383 = vmatmul.bf16.gmra.mxu0 %v1370
        %v1384 = vpop.f32.mrf.mxu0
        %v1385 = vadd.f32 0.0, %v1384
        %v1386 = vpop.f32.mrf.mxu0
        %1387 = vdwg.mxu0
        %1389 = vrot.lane.b32.xlu0 %v1343, 8
        %v1390 = vpop.permute.xlu0 %1389
        %1393 = vrot.lane.b32.xlu0 %v1364, 16
        %v1394 = vpop.permute.xlu0 %1393
        %1397 = vrot.lane.b32.xlu0 %v1385, 24
        %v1398 = vpop.permute.xlu0 %1397
        %v1400 = vsel %vm675, %v1322, %v1390
        %v1401 = vsel %vm913, %v1400, %v1394
        %v1402 = vsel %vm915, %v1401, %v1398
        %v1403 = vpack.c.bf16 %v1402, %v1402
        %v1404 = vperm.slane %v1109, 0
        %v1409 = vunpack.c.l.b16 %v1090
        %v1410 = vunpack.c.l.b16 %v1091
        %v1411 = vunpack.c.l.b16 %v1092
        %v1412 = vunpack.c.l.b16 %v1093
        %v1413 = vpack.c.b16 %v1410, %v1409
        %v1414 = vpack.c.b16 %v1412, %v1411
        %v1418 = vsel %vm639, %v1403, 0
        %1420 = vmatpush.bf16.msra.mxu0 0
        %1421 = vmatpush.bf16.msra.mxu0 0
        %1422 = vmatpush.bf16.msra.mxu0 0
        %1423 = vmatpush.bf16.msra.mxu0 0
        %1424 = vmatpush.bf16.msra.mxu0 0
        %1425 = vmatpush.bf16.msra.mxu0 0
        %1426 = vmatpush.bf16.msra.mxu0 %v1414
        %1427 = vmatpush.bf16.msra.mxu0 %v1413
        %1428 = vmatmul.bf16.gmra.mxu0 %v1418
        %v1429 = vpop.f32.mrf.mxu0
        %v1430 = vadd.f32 %v1404, %v1429
        %v1431 = vpop.f32.mrf.mxu0
        %1432 = vdwg.mxu0
        %v1433 = vadd.f32 %v1083, %v1430
        %v1434 = vsel %vm639, %v1433, 0.0
        %1435 = vadd.xlane.f32.xlu0 %v1434
        %v1436 = vpop.xlane.xlu0 %1435
        %v1437 = vmul.f32 %v1436, %v957
        %v1438 = vsub.f32 %v1433, %v1437
        %v1439 = vmul.f32 %v1438, %v1438
        %v1440 = vsel %vm639, %v1439, 0.0
        %1441 = vadd.xlane.f32.xlu0 %v1440
        %v1442 = vpop.xlane.xlu0 %1441
        %v1443 = vmul.f32 %v1442, %v957
        %v1444 = vadd.f32 %v1443, 1e-05
        %v1445 = vrsqrt.pop %v1444
        %v1446 = vmul.f32 %v1445, %v1444
        %v1447 = vmul.f32 %v1446, %v1445
        %v1448 = vmul.f32 0.5, %v1447
        %v1449 = vsub.f32 1.5, %v1448
        %v1450 = vmul.f32 %v1445, %v1449
        %vm1451 = vweird.f32 %v1444
        %vm1452 = vweird.f32 %v1445
        %vm1453 = vmor %vm1451, %vm1452
        %v1454 = vsel %vm1453, %v1445, %v1450
        %v1455 = vmul.f32 %v1438, %v1454
        %v1456 = vperm.slane %v1109, 1
        %v1457 = vmul.f32 %v1455, %v1456
        %v1458 = vperm.slane %v1109, 2
        %v1459 = vadd.f32 %v1457, %v1458
        %v1460 = vpack.c.bf16 %v1459, %v1459
        %v1462 = vperm.slane %v1113, 0
        %v1468 = vunpack.c.l.b16 %v1095
        %v1469 = vunpack.c.l.b16 %v1096
        %v1470 = vunpack.c.l.b16 %v1097
        %v1471 = vunpack.c.l.b16 %v1098
        %v1472 = vpack.c.b16 %v1469, %v1468
        %v1473 = vpack.c.b16 %v1471, %v1470
        %v1477 = vsel %vm639, %v1460, 0
        %1479 = vmatpush.bf16.msra.mxu0 0
        %1480 = vmatpush.bf16.msra.mxu0 0
        %1481 = vmatpush.bf16.msra.mxu0 0
        %1482 = vmatpush.bf16.msra.mxu0 0
        %1483 = vmatpush.bf16.msra.mxu0 0
        %1484 = vmatpush.bf16.msra.mxu0 0
        %1485 = vmatpush.bf16.msra.mxu0 %v1473
        %1486 = vmatpush.bf16.msra.mxu0 %v1472
        %1487 = vmatmul.bf16.gmra.mxu0 %v1477
        %v1488 = vpop.f32.mrf.mxu0
        %v1489 = vadd.f32 %v1462, %v1488
        %v1490 = vpop.f32.mrf.mxu0
        %1491 = vdwg.mxu0
        %v1492 = vmax.f32 %v1489, 0.0
        %v1493 = vpack.c.bf16 %v1492, %v1492
        %v1494 = vperm.slane %v1109, 3
        %v1503 = vunpack.c.l.b16 %v1100
        %v1504 = vunpack.c.l.b16 %v1101
        %v1505 = vunpack.c.l.b16 %v1102
        %v1506 = vunpack.c.l.b16 %v1103
        %v1507 = vunpack.c.l.b16 %v1104
        %v1508 = vunpack.c.l.b16 %v1105
        %v1509 = vunpack.c.l.b16 %v1106
        %v1510 = vunpack.c.l.b16 %v1107
        %v1511 = vpack.c.b16 %v1504, %v1503
        %v1512 = vpack.c.b16 %v1506, %v1505
        %v1513 = vpack.c.b16 %v1508, %v1507
        %v1514 = vpack.c.b16 %v1510, %v1509
        %v1520 = vsel %vm1040, %v1493, 0
        %1522 = vmatpush.bf16.msra.mxu0 0
        %1523 = vmatpush.bf16.msra.mxu0 0
        %1524 = vmatpush.bf16.msra.mxu0 0
        %1525 = vmatpush.bf16.msra.mxu0 0
        %1526 = vmatpush.bf16.msra.mxu0 %v1514
        %1527 = vmatpush.bf16.msra.mxu0 %v1513
        %1528 = vmatpush.bf16.msra.mxu0 %v1512
        %1529 = vmatpush.bf16.msra.mxu0 %v1511
        %1530 = vmatmul.bf16.gmra.mxu0 %v1520
        %v1531 = vpop.f32.mrf.mxu0
        %v1532 = vadd.f32 %v1494, %v1531
        %v1533 = vpop.f32.mrf.mxu0
        %1534 = vdwg.mxu0
        %v1535 = vadd.f32 %v1459, %v1532
        %v1536 = vsel %vm639, %v1535, 0.0
        %1537 = vadd.xlane.f32.xlu0 %v1536
        %v1538 = vpop.xlane.xlu0 %1537
        %v1539 = vmul.f32 %v1538, %v957
        %v1540 = vsub.f32 %v1535, %v1539
        %v1541 = vmul.f32 %v1540, %v1540
        %v1542 = vsel %vm639, %v1541, 0.0
        %1543 = vadd.xlane.f32.xlu0 %v1542
        %v1544 = vpop.xlane.xlu0 %1543
        %v1545 = vmul.f32 %v1544, %v957
        %v1546 = vadd.f32 %v1545, 1e-05
        %v1547 = vrsqrt.pop %v1546
        %v1548 = vmul.f32 %v1547, %v1546
        %v1549 = vmul.f32 %v1548, %v1547
        %v1550 = vmul.f32 0.5, %v1549
        %v1551 = vsub.f32 1.5, %v1550
        %v1552 = vmul.f32 %v1547, %v1551
        %vm1553 = vweird.f32 %v1546
        %vm1554 = vweird.f32 %v1547
        %vm1555 = vmor %vm1553, %vm1554
        %v1556 = vsel %vm1555, %v1547, %v1552
        %v1557 = vmul.f32 %v1540, %v1556
        %v1558 = vperm.slane %v1109, 4
        %v1559 = vmul.f32 %v1557, %v1558
        %v1560 = vperm.slane %v1109, 5
        %v1561 = vadd.f32 %v1559, %v1560
        %v1562 = vld [vmem:[%s8] sm:$0xf]
        %v1563 = vld [vmem:[%s8 + $0x4] sm:$0xf]
        %v1564 = vld [vmem:[%s8 + $0x8] sm:$0xf]
        %v1565 = vld [vmem:[%s8 + $0xc] sm:$0xf]
        %v1566 = vld [vmem:[%s9] sm:$0xf]
        %v1567 = vld [vmem:[%s9 + $0x4] sm:$0xf]
        %v1568 = vld [vmem:[%s9 + $0x8] sm:$0xf]
        %v1569 = vld [vmem:[%s9 + $0xc] sm:$0xf]
        %v1570 = vld [vmem:[%s10] sm:$0xf]
        %v1571 = vld [vmem:[%s10 + $0x4] sm:$0xf]
        %v1572 = vld [vmem:[%s10 + $0x8] sm:$0xf]
        %v1573 = vld [vmem:[%s10 + $0xc] sm:$0xf]
        %v1574 = vld [vmem:[%s11] sm:$0xf]
        %v1575 = vld [vmem:[%s11 + $0x4] sm:$0xf]
        %v1576 = vld [vmem:[%s11 + $0x8] sm:$0xf]
        %v1577 = vld [vmem:[%s11 + $0xc] sm:$0xf]
        %v1578 = vld [vmem:[%s12] sm:$0xf]
        %v1579 = vld [vmem:[%s12 + $0x4] sm:$0xf]
        %v1580 = vld [vmem:[%s12 + $0x8] sm:$0xf]
        %v1581 = vld [vmem:[%s12 + $0xc] sm:$0xf]
        %v1582 = vld [vmem:[%s13] sm:$0xf]
        %v1583 = vld [vmem:[%s13 + $0x4] sm:$0xf]
        %v1584 = vld [vmem:[%s13 + $0x8] sm:$0xf]
        %v1585 = vld [vmem:[%s13 + $0xc] sm:$0xf]
        %v1586 = vld [vmem:[%s14] sm:$0xf]
        %v1587 = vld [vmem:[%s14 + $0x4] sm:$0xf]
        %v1588 = vld [vmem:[%s14 + $0x8] sm:$0xf]
        %v1589 = vld [vmem:[%s14 + $0xc] sm:$0xf]
        %v1590 = vld [vmem:[%s14 + $0x10] sm:$0xf]
        %v1591 = vld [vmem:[%s14 + $0x14] sm:$0xf]
        %v1592 = vld [vmem:[%s14 + $0x18] sm:$0xf]
        %v1593 = vld [vmem:[%s14 + $0x1c] sm:$0xf]
        %v1594 = vld [vmem:[%s15] sm:$0xff]
        %v1595 = vld [vmem:[%s15 + $0x8] sm:$0x3]
        %v1596 = vld [vmem:[%s16] sm:$0x1]
        %v1597 = vld [vmem:[%s17] sm:$0x1]
        %v1598 = vld [vmem:[%s18] sm:$0x1]
        %v1599 = vpack.c.bf16 %v1561, %v1561
        %v1601 = vperm.slane %v1596, 0
        %v1607 = vunpack.c.l.b16 %v1562
        %v1608 = vunpack.c.l.b16 %v1563
        %v1609 = vunpack.c.l.b16 %v1564
        %v1610 = vunpack.c.l.b16 %v1565
        %v1611 = vpack.c.b16 %v1608, %v1607
        %v1612 = vpack.c.b16 %v1610, %v1609
        %v1616 = vsel %vm639, %v1599, 0
        %1618 = vmatpush.bf16.msra.mxu0 0
        %1619 = vmatpush.bf16.msra.mxu0 0
        %1620 = vmatpush.bf16.msra.mxu0 0
        %1621 = vmatpush.bf16.msra.mxu0 0
        %1622 = vmatpush.bf16.msra.mxu0 0
        %1623 = vmatpush.bf16.msra.mxu0 0
        %1624 = vmatpush.bf16.msra.mxu0 %v1612
        %1625 = vmatpush.bf16.msra.mxu0 %v1611
        %1626 = vmatmul.bf16.gmra.mxu0 %v1616
        %v1627 = vpop.f32.mrf.mxu0
        %v1628 = vadd.f32 %v1601, %v1627
        %v1629 = vpop.f32.mrf.mxu0
        %1630 = vdwg.mxu0
        %1632 = vrot.lane.b32.xlu0 %v1628, 120
        %v1633 = vpop.permute.xlu0 %1632
        %1635 = vrot.lane.b32.xlu0 %v1628, 112
        %v1636 = vpop.permute.xlu0 %1635
        %1638 = vrot.lane.b32.xlu0 %v1628, 104
        %v1639 = vpop.permute.xlu0 %1638
        %v1641 = vpack.c.bf16 %v1628, %v1628
        %v1642 = vpack.c.bf16 %v1633, %v1633
        %v1643 = vpack.c.bf16 %v1636, %v1636
        %v1644 = vpack.c.bf16 %v1639, %v1639
        %v1646 = vunpack.c.l.b16 %v1641
        %v1647 = vpack.c.b16 %v1646, %v1646
        %1648 = vrot.lane.b32.xlu0 %v1647, 96
        %v1649 = vpop.permute.xlu0 %1648
        %v1651 = vsel %vm675, %v1641, 0
        %v1654 = vsel %vm675, %v1649, 0
        %1656 = vmatpush.bf16.xpose.msra.mxu0 0
        %1657 = vmatpush.bf16.xpose.msra.mxu0 0
        %1658 = vmatpush.bf16.xpose.msra.mxu0 0
        %1659 = vmatpush.bf16.xpose.msra.mxu0 0
        %1660 = vmatpush.bf16.xpose.msra.mxu0 0
        %1661 = vmatpush.bf16.xpose.msra.mxu0 0
        %1662 = vmatpush.bf16.xpose.msra.mxu0 0
        %1663 = vmatpush.bf16.xpose.msra.mxu0 %v1654
        %1664 = vmatmul.bf16.gmra.mxu0 %v1651
        %v1665 = vpop.f32.mrf.mxu0
        %v1666 = vadd.f32 0.0, %v1665
        %v1667 = vpop.f32.mrf.mxu0
        %1668 = vdwg.mxu0
        %v1670 = vunpack.c.l.b16 %v1642
        %v1671 = vpack.c.b16 %v1670, %v1670
        %1672 = vrot.lane.b32.xlu0 %v1671, 96
        %v1673 = vpop.permute.xlu0 %1672
        %v1675 = vsel %vm675, %v1642, 0
        %v1678 = vsel %vm675, %v1673, 0
        %1680 = vmatpush.bf16.xpose.msra.mxu0 0
        %1681 = vmatpush.bf16.xpose.msra.mxu0 0
        %1682 = vmatpush.bf16.xpose.msra.mxu0 0
        %1683 = vmatpush.bf16.xpose.msra.mxu0 0
        %1684 = vmatpush.bf16.xpose.msra.mxu0 0
        %1685 = vmatpush.bf16.xpose.msra.mxu0 0
        %1686 = vmatpush.bf16.xpose.msra.mxu0 0
        %1687 = vmatpush.bf16.xpose.msra.mxu0 %v1678
        %1688 = vmatmul.bf16.gmra.mxu0 %v1675
        %v1689 = vpop.f32.mrf.mxu0
        %v1690 = vadd.f32 0.0, %v1689
        %v1691 = vpop.f32.mrf.mxu0
        %1692 = vdwg.mxu0
        %v1694 = vunpack.c.l.b16 %v1643
        %v1695 = vpack.c.b16 %v1694, %v1694
        %1696 = vrot.lane.b32.xlu0 %v1695, 96
        %v1697 = vpop.permute.xlu0 %1696
        %v1699 = vsel %vm675, %v1643, 0
        %v1702 = vsel %vm675, %v1697, 0
        %1704 = vmatpush.bf16.xpose.msra.mxu0 0
        %1705 = vmatpush.bf16.xpose.msra.mxu0 0
        %1706 = vmatpush.bf16.xpose.msra.mxu0 0
        %1707 = vmatpush.bf16.xpose.msra.mxu0 0
        %1708 = vmatpush.bf16.xpose.msra.mxu0 0
        %1709 = vmatpush.bf16.xpose.msra.mxu0 0
        %1710 = vmatpush.bf16.xpose.msra.mxu0 0
        %1711 = vmatpush.bf16.xpose.msra.mxu0 %v1702
        %1712 = vmatmul.bf16.gmra.mxu0 %v1699
        %v1713 = vpop.f32.mrf.mxu0
        %v1714 = vadd.f32 0.0, %v1713
        %v1715 = vpop.f32.mrf.mxu0
        %1716 = vdwg.mxu0
        %v1718 = vunpack.c.l.b16 %v1644
        %v1719 = vpack.c.b16 %v1718, %v1718
        %1720 = vrot.lane.b32.xlu0 %v1719, 96
        %v1721 = vpop.permute.xlu0 %1720
        %v1723 = vsel %vm675, %v1644, 0
        %v1726 = vsel %vm675, %v1721, 0
        %1728 = vmatpush.bf16.xpose.msra.mxu0 0
        %1729 = vmatpush.bf16.xpose.msra.mxu0 0
        %1730 = vmatpush.bf16.xpose.msra.mxu0 0
        %1731 = vmatpush.bf16.xpose.msra.mxu0 0
        %1732 = vmatpush.bf16.xpose.msra.mxu0 0
        %1733 = vmatpush.bf16.xpose.msra.mxu0 0
        %1734 = vmatpush.bf16.xpose.msra.mxu0 0
        %1735 = vmatpush.bf16.xpose.msra.mxu0 %v1726
        %1736 = vmatmul.bf16.gmra.mxu0 %v1723
        %v1737 = vpop.f32.mrf.mxu0
        %v1738 = vadd.f32 0.0, %v1737
        %v1739 = vpop.f32.mrf.mxu0
        %1740 = vdwg.mxu0
        %v1741 = vsel %vm675, %v1666, -inf
        %1742 = vmax.xlane.f32.xlu0 %v1741
        %v1743 = vpop.xlane.xlu0 %1742
        %v1744 = vsel %vm675, %v1690, -inf
        %1745 = vmax.xlane.f32.xlu0 %v1744
        %v1746 = vpop.xlane.xlu0 %1745
        %v1747 = vsel %vm675, %v1714, -inf
        %1748 = vmax.xlane.f32.xlu0 %v1747
        %v1749 = vpop.xlane.xlu0 %1748
        %v1750 = vsel %vm675, %v1738, -inf
        %1751 = vmax.xlane.f32.xlu0 %v1750
        %v1752 = vpop.xlane.xlu0 %1751
        %v1753 = vsub.f32 %v1666, %v1743
        %v1754 = vsub.f32 %v1690, %v1746
        %v1755 = vsub.f32 %v1714, %v1749
        %v1756 = vsub.f32 %v1738, %v1752
        %v1757 = vmul.f32 %v1753, 1.442695
        %v1758 = vpow.pop %v1757
        %v1759 = vmul.f32 %v1754, 1.442695
        %v1760 = vpow.pop %v1759
        %v1761 = vmul.f32 %v1755, 1.442695
        %v1762 = vpow.pop %v1761
        %v1763 = vmul.f32 %v1756, 1.442695
        %v1764 = vpow.pop %v1763
        %v1765 = vsel %vm675, %v1758, 0.0
        %1766 = vadd.xlane.f32.xlu0 %v1765
        %v1767 = vpop.xlane.xlu0 %1766
        %v1768 = vsel %vm675, %v1760, 0.0
        %1769 = vadd.xlane.f32.xlu0 %v1768
        %v1770 = vpop.xlane.xlu0 %1769
        %v1771 = vsel %vm675, %v1762, 0.0
        %1772 = vadd.xlane.f32.xlu0 %v1771
        %v1773 = vpop.xlane.xlu0 %1772
        %v1774 = vsel %vm675, %v1764, 0.0
        %1775 = vadd.xlane.f32.xlu0 %v1774
        %v1776 = vpop.xlane.xlu0 %1775
        %v1777 = vrcp.pop %v1767
        %v1778 = vrcp.pop %v1770
        %v1779 = vrcp.pop %v1773
        %v1780 = vrcp.pop %v1776
        %v1781 = vmul.f32 %v1758, %v1777
        %v1782 = vmul.f32 %v1760, %v1778
        %v1783 = vmul.f32 %v1762, %v1779
        %v1784 = vmul.f32 %v1764, %v1780
        %v1785 = vpack.c.bf16 %v1781, %v1781
        %v1786 = vpack.c.bf16 %v1782, %v1782
        %v1787 = vpack.c.bf16 %v1783, %v1783
        %v1788 = vpack.c.bf16 %v1784, %v1784
        %1789 = vrot.lane.b32.xlu0 %v1647, 64
        %v1790 = vpop.permute.xlu0 %1789
        %v1792 = vsel %vm675, %v1785, 0
        %v1795 = vsel %vm820, %v1790, 0
        %1797 = vmatpush.bf16.msra.mxu0 0
        %1798 = vmatpush.bf16.msra.mxu0 0
        %1799 = vmatpush.bf16.msra.mxu0 0
        %1800 = vmatpush.bf16.msra.mxu0 0
        %1801 = vmatpush.bf16.msra.mxu0 0
        %1802 = vmatpush.bf16.msra.mxu0 0
        %1803 = vmatpush.bf16.msra.mxu0 0
        %1804 = vmatpush.bf16.msra.mxu0 %v1795
        %1805 = vmatmul.bf16.gmra.mxu0 %v1792
        %v1806 = vpop.f32.mrf.mxu0
        %v1807 = vadd.f32 0.0, %v1806
        %v1808 = vpop.f32.mrf.mxu0
        %1809 = vdwg.mxu0
        %1810 = vrot.lane.b32.xlu0 %v1671, 64
        %v1811 = vpop.permute.xlu0 %1810
        %v1813 = vsel %vm675, %v1786, 0
        %v1816 = vsel %vm820, %v1811, 0
        %1818 = vmatpush.bf16.msra.mxu0 0
        %1819 = vmatpush.bf16.msra.mxu0 0
        %1820 = vmatpush.bf16.msra.mxu0 0
        %1821 = vmatpush.bf16.msra.mxu0 0
        %1822 = vmatpush.bf16.msra.mxu0 0
        %1823 = vmatpush.bf16.msra.mxu0 0
        %1824 = vmatpush.bf16.msra.mxu0 0
        %1825 = vmatpush.bf16.msra.mxu0 %v1816
        %1826 = vmatmul.bf16.gmra.mxu0 %v1813
        %v1827 = vpop.f32.mrf.mxu0
        %v1828 = vadd.f32 0.0, %v1827
        %v1829 = vpop.f32.mrf.mxu0
        %1830 = vdwg.mxu0
        %1831 = vrot.lane.b32.xlu0 %v1695, 64
        %v1832 = vpop.permute.xlu0 %1831
        %v1834 = vsel %vm675, %v1787, 0
        %v1837 = vsel %vm820, %v1832, 0
        %1839 = vmatpush.bf16.msra.mxu0 0
        %1840 = vmatpush.bf16.msra.mxu0 0
        %1841 = vmatpush.bf16.msra.mxu0 0
        %1842 = vmatpush.bf16.msra.mxu0 0
        %1843 = vmatpush.bf16.msra.mxu0 0
        %1844 = vmatpush.bf16.msra.mxu0 0
        %1845 = vmatpush.bf16.msra.mxu0 0
        %1846 = vmatpush.bf16.msra.mxu0 %v1837
        %1847 = vmatmul.bf16.gmra.mxu0 %v1834
        %v1848 = vpop.f32.mrf.mxu0
        %v1849 = vadd.f32 0.0, %v1848
        %v1850 = vpop.f32.mrf.mxu0
        %1851 = vdwg.mxu0
        %1852 = vrot.lane.b32.xlu0 %v1719, 64
        %v1853 = vpop.permute.xlu0 %1852
        %v1855 = vsel %vm675, %v1788, 0
        %v1858 = vsel %vm820, %v1853, 0
        %1860 = vmatpush.bf16.msra.mxu0 0
        %1861 = vmatpush.bf16.msra.mxu0 0
        %1862 = vmatpush.bf16.msra.mxu0 0
        %1863 = vmatpush.bf16.msra.mxu0 0
        %1864 = vmatpush.bf16.msra.mxu0 0
        %1865 = vmatpush.bf16.msra.mxu0 0
        %1866 = vmatpush.bf16.msra.mxu0 0
        %1867 = vmatpush.bf16.msra.mxu0 %v1858
        %1868 = vmatmul.bf16.gmra.mxu0 %v1855
        %v1869 = vpop.f32.mrf.mxu0
        %v1870 = vadd.f32 0.0, %v1869
        %v1871 = vpop.f32.mrf.mxu0
        %1872 = vdwg.mxu0
        %1874 = vrot.lane.b32.xlu0 %v1828, 8
        %v1875 = vpop.permute.xlu0 %1874
        %1878 = vrot.lane.b32.xlu0 %v1849, 16
        %v1879 = vpop.permute.xlu0 %1878
        %1882 = vrot.lane.b32.xlu0 %v1870, 24
        %v1883 = vpop.permute.xlu0 %1882
        %v1885 = vsel %vm675, %v1807, %v1875
        %v1886 = vsel %vm913, %v1885, %v1879
        %v1887 = vsel %vm915, %v1886, %v1883
        %v1888 = vpack.c.bf16 %v1887, %v1887
        %v1889 = vperm.slane %v1594, 0
        %v1894 = vunpack.c.l.b16 %v1566
        %v1895 = vunpack.c.l.b16 %v1567
        %v1896 = vunpack.c.l.b16 %v1568
        %v1897 = vunpack.c.l.b16 %v1569
        %v1898 = vpack.c.b16 %v1895, %v1894
        %v1899 = vpack.c.b16 %v1897, %v1896
        %v1903 = vsel %vm639, %v1888, 0
        %1905 = vmatpush.bf16.msra.mxu0 0
        %1906 = vmatpush.bf16.msra.mxu0 0
        %1907 = vmatpush.bf16.msra.mxu0 0
        %1908 = vmatpush.bf16.msra.mxu0 0
        %1909 = vmatpush.bf16.msra.mxu0 0
        %1910 = vmatpush.bf16.msra.mxu0 0
        %1911 = vmatpush.bf16.msra.mxu0 %v1899
        %1912 = vmatpush.bf16.msra.mxu0 %v1898
        %1913 = vmatmul.bf16.gmra.mxu0 %v1903
        %v1914 = vpop.f32.mrf.mxu0
        %v1915 = vadd.f32 %v1889, %v1914
        %v1916 = vpop.f32.mrf.mxu0
        %1917 = vdwg.mxu0
        %v1918 = vadd.f32 %v1561, %v1915
        %v1919 = vsel %vm639, %v1918, 0.0
        %1920 = vadd.xlane.f32.xlu0 %v1919
        %v1921 = vpop.xlane.xlu0 %1920
        %v1922 = vmul.f32 %v1921, %v957
        %v1923 = vsub.f32 %v1918, %v1922
        %v1924 = vmul.f32 %v1923, %v1923
        %v1925 = vsel %vm639, %v1924, 0.0
        %1926 = vadd.xlane.f32.xlu0 %v1925
        %v1927 = vpop.xlane.xlu0 %1926
        %v1928 = vmul.f32 %v1927, %v957
        %v1929 = vadd.f32 %v1928, 1e-05
        %v1930 = vrsqrt.pop %v1929
        %v1931 = vmul.f32 %v1930, %v1929
        %v1932 = vmul.f32 %v1931, %v1930
        %v1933 = vmul.f32 0.5, %v1932
        %v1934 = vsub.f32 1.5, %v1933
        %v1935 = vmul.f32 %v1930, %v1934
        %vm1936 = vweird.f32 %v1929
        %vm1937 = vweird.f32 %v1930
        %vm1938 = vmor %vm1936, %vm1937
        %v1939 = vsel %vm1938, %v1930, %v1935
        %v1940 = vmul.f32 %v1923, %v1939
        %v1941 = vperm.slane %v1594, 1
        %v1942 = vmul.f32 %v1940, %v1941
        %v1943 = vperm.slane %v1594, 2
        %v1944 = vadd.f32 %v1942, %v1943
        %v1945 = vpack.c.bf16 %v1944, %v1944
        %v1946 = vperm.slane %v1594, 3
        %v1951 = vunpack.c.l.b16 %v1570
        %v1952 = vunpack.c.l.b16 %v1571
        %v1953 = vunpack.c.l.b16 %v1572
        %v1954 = vunpack.c.l.b16 %v1573
        %v1955 = vpack.c.b16 %v1952, %v1951
        %v1956 = vpack.c.b16 %v1954, %v1953
        %v1960 = vsel %vm639, %v1945, 0
        %1962 = vmatpush.bf16.msra.mxu0 0
        %1963 = vmatpush.bf16.msra.mxu0 0
        %1964 = vmatpush.bf16.msra.mxu0 0
        %1965 = vmatpush.bf16.msra.mxu0 0
        %1966 = vmatpush.bf16.msra.mxu0 0
        %1967 = vmatpush.bf16.msra.mxu0 0
        %1968 = vmatpush.bf16.msra.mxu0 %v1956
        %1969 = vmatpush.bf16.msra.mxu0 %v1955
        %1970 = vmatmul.bf16.gmra.mxu0 %v1960
        %v1971 = vpop.f32.mrf.mxu0
        %v1972 = vadd.f32 %v1946, %v1971
        %v1973 = vpop.f32.mrf.mxu0
        %1974 = vdwg.mxu0
        %v1976 = vperm.slane %v1597, 0
        %v1982 = vunpack.c.l.b16 %v1574
        %v1983 = vunpack.c.l.b16 %v1575
        %v1984 = vunpack.c.l.b16 %v1576
        %v1985 = vunpack.c.l.b16 %v1577
        %v1986 = vpack.c.b16 %v1983, %v1982
        %v1987 = vpack.c.b16 %v1985, %v1984
        %1990 = vmatpush.bf16.msra.mxu0 0
        %1991 = vmatpush.bf16.msra.mxu0 0
        %1992 = vmatpush.bf16.msra.mxu0 0
        %1993 = vmatpush.bf16.msra.mxu0 0
        %1994 = vmatpush.bf16.msra.mxu0 0
        %1995 = vmatpush.bf16.msra.mxu0 0
        %1996 = vmatpush.bf16.msra.mxu0 %v1987
        %1997 = vmatpush.bf16.msra.mxu0 %v1986
        %1998 = vmatmul.bf16.gmra.mxu0 %v1616
        %v1999 = vpop.f32.mrf.mxu0
        %v2000 = vadd.f32 %v1976, %v1999
        %v2001 = vpop.f32.mrf.mxu0
        %2002 = vdwg.mxu0
        %2004 = vrot.lane.b32.xlu0 %v1972, 120
        %v2005 = vpop.permute.xlu0 %2004
        %2007 = vrot.lane.b32.xlu0 %v1972, 112
        %v2008 = vpop.permute.xlu0 %2007
        %2010 = vrot.lane.b32.xlu0 %v1972, 104
        %v2011 = vpop.permute.xlu0 %2010
        %v2013 = vpack.c.bf16 %v1972, %v1972
        %v2014 = vpack.c.bf16 %v2005, %v2005
        %v2015 = vpack.c.bf16 %v2008, %v2008
        %v2016 = vpack.c.bf16 %v2011, %v2011
        %2018 = vrot.lane.b32.xlu0 %v2000, 120
        %v2019 = vpop.permute.xlu0 %2018
        %2021 = vrot.lane.b32.xlu0 %v2000, 112
        %v2022 = vpop.permute.xlu0 %2021
        %2024 = vrot.lane.b32.xlu0 %v2000, 104
        %v2025 = vpop.permute.xlu0 %2024
        %v2027 = vpack.c.bf16 %v2000, %v2000
        %v2028 = vpack.c.bf16 %v2019, %v2019
        %v2029 = vpack.c.bf16 %v2022, %v2022
        %v2030 = vpack.c.bf16 %v2025, %v2025
        %v2032 = vsel %vm675, %v2013, 0
        %v2035 = vsel %vm675, %v2027, 0
        %2037 = vmatpush.bf16.xpose.msra.mxu0 0
        %2038 = vmatpush.bf16.xpose.msra.mxu0 0
        %2039 = vmatpush.bf16.xpose.msra.mxu0 0
        %2040 = vmatpush.bf16.xpose.msra.mxu0 0
        %2041 = vmatpush.bf16.xpose.msra.mxu0 0
        %2042 = vmatpush.bf16.xpose.msra.mxu0 0
        %2043 = vmatpush.bf16.xpose.msra.mxu0 0
        %2044 = vmatpush.bf16.xpose.msra.mxu0 %v2035
        %2045 = vmatmul.bf16.gmra.mxu0 %v2032
        %v2046 = vpop.f32.mrf.mxu0
        %v2047 = vadd.f32 0.0, %v2046
        %v2048 = vpop.f32.mrf.mxu0
        %2049 = vdwg.mxu0
        %v2051 = vsel %vm675, %v2014, 0
        %v2054 = vsel %vm675, %v2028, 0
        %2056 = vmatpush.bf16.xpose.msra.mxu0 0
        %2057 = vmatpush.bf16.xpose.msra.mxu0 0
        %2058 = vmatpush.bf16.xpose.msra.mxu0 0
        %2059 = vmatpush.bf16.xpose.msra.mxu0 0
        %2060 = vmatpush.bf16.xpose.msra.mxu0 0
        %2061 = vmatpush.bf16.xpose.msra.mxu0 0
        %2062 = vmatpush.bf16.xpose.msra.mxu0 0
        %2063 = vmatpush.bf16.xpose.msra.mxu0 %v2054
        %2064 = vmatmul.bf16.gmra.mxu0 %v2051
        %v2065 = vpop.f32.mrf.mxu0
        %v2066 = vadd.f32 0.0, %v2065
        %v2067 = vpop.f32.mrf.mxu0
        %2068 = vdwg.mxu0
        %v2070 = vsel %vm675, %v2015, 0
        %v2073 = vsel %vm675, %v2029, 0
        %2075 = vmatpush.bf16.xpose.msra.mxu0 0
        %2076 = vmatpush.bf16.xpose.msra.mxu0 0
        %2077 = vmatpush.bf16.xpose.msra.mxu0 0
        %2078 = vmatpush.bf16.xpose.msra.mxu0 0
        %2079 = vmatpush.bf16.xpose.msra.mxu0 0
        %2080 = vmatpush.bf16.xpose.msra.mxu0 0
        %2081 = vmatpush.bf16.xpose.msra.mxu0 0
        %2082 = vmatpush.bf16.xpose.msra.mxu0 %v2073
        %2083 = vmatmul.bf16.gmra.mxu0 %v2070
        %v2084 = vpop.f32.mrf.mxu0
        %v2085 = vadd.f32 0.0, %v2084
        %v2086 = vpop.f32.mrf.mxu0
        %2087 = vdwg.mxu0
        %v2089 = vsel %vm675, %v2016, 0
        %v2092 = vsel %vm675, %v2030, 0
        %2094 = vmatpush.bf16.xpose.msra.mxu0 0
        %2095 = vmatpush.bf16.xpose.msra.mxu0 0
        %2096 = vmatpush.bf16.xpose.msra.mxu0 0
        %2097 = vmatpush.bf16.xpose.msra.mxu0 0
        %2098 = vmatpush.bf16.xpose.msra.mxu0 0
        %2099 = vmatpush.bf16.xpose.msra.mxu0 0
        %2100 = vmatpush.bf16.xpose.msra.mxu0 0
        %2101 = vmatpush.bf16.xpose.msra.mxu0 %v2092
        %2102 = vmatmul.bf16.gmra.mxu0 %v2089
        %v2103 = vpop.f32.mrf.mxu0
        %v2104 = vadd.f32 0.0, %v2103
        %v2105 = vpop.f32.mrf.mxu0
        %2106 = vdwg.mxu0
        %v2107 = vsel %vm675, %v2047, -inf
        %2108 = vmax.xlane.f32.xlu0 %v2107
        %v2109 = vpop.xlane.xlu0 %2108
        %v2110 = vsel %vm675, %v2066, -inf
        %2111 = vmax.xlane.f32.xlu0 %v2110
        %v2112 = vpop.xlane.xlu0 %2111
        %v2113 = vsel %vm675, %v2085, -inf
        %2114 = vmax.xlane.f32.xlu0 %v2113
        %v2115 = vpop.xlane.xlu0 %2114
        %v2116 = vsel %vm675, %v2104, -inf
        %2117 = vmax.xlane.f32.xlu0 %v2116
        %v2118 = vpop.xlane.xlu0 %2117
        %v2119 = vsub.f32 %v2047, %v2109
        %v2120 = vsub.f32 %v2066, %v2112
        %v2121 = vsub.f32 %v2085, %v2115
        %v2122 = vsub.f32 %v2104, %v2118
        %v2123 = vmul.f32 %v2119, 1.442695
        %v2124 = vpow.pop %v2123
        %v2125 = vmul.f32 %v2120, 1.442695
        %v2126 = vpow.pop %v2125
        %v2127 = vmul.f32 %v2121, 1.442695
        %v2128 = vpow.pop %v2127
        %v2129 = vmul.f32 %v2122, 1.442695
        %v2130 = vpow.pop %v2129
        %v2131 = vsel %vm675, %v2124, 0.0
        %2132 = vadd.xlane.f32.xlu0 %v2131
        %v2133 = vpop.xlane.xlu0 %2132
        %v2134 = vsel %vm675, %v2126, 0.0
        %2135 = vadd.xlane.f32.xlu0 %v2134
        %v2136 = vpop.xlane.xlu0 %2135
        %v2137 = vsel %vm675, %v2128, 0.0
        %2138 = vadd.xlane.f32.xlu0 %v2137
        %v2139 = vpop.xlane.xlu0 %2138
        %v2140 = vsel %vm675, %v2130, 0.0
        %2141 = vadd.xlane.f32.xlu0 %v2140
        %v2142 = vpop.xlane.xlu0 %2141
        %v2143 = vrcp.pop %v2133
        %v2144 = vrcp.pop %v2136
        %v2145 = vrcp.pop %v2139
        %v2146 = vrcp.pop %v2142
        %v2147 = vmul.f32 %v2124, %v2143
        %v2148 = vmul.f32 %v2126, %v2144
        %v2149 = vmul.f32 %v2128, %v2145
        %v2150 = vmul.f32 %v2130, %v2146
        %v2151 = vpack.c.bf16 %v2147, %v2147
        %v2152 = vpack.c.bf16 %v2148, %v2148
        %v2153 = vpack.c.bf16 %v2149, %v2149
        %v2154 = vpack.c.bf16 %v2150, %v2150
        %v2156 = vunpack.c.l.b16 %v2027
        %v2157 = vpack.c.b16 %v2156, %v2156
        %2158 = vrot.lane.b32.xlu0 %v2157, 96
        %v2159 = vpop.permute.xlu0 %2158
        %v2161 = vsel %vm675, %v2151, 0
        %v2164 = vsel %vm820, %v2159, 0
        %2166 = vmatpush.bf16.msra.mxu0 0
        %2167 = vmatpush.bf16.msra.mxu0 0
        %2168 = vmatpush.bf16.msra.mxu0 0
        %2169 = vmatpush.bf16.msra.mxu0 0
        %2170 = vmatpush.bf16.msra.mxu0 0
        %2171 = vmatpush.bf16.msra.mxu0 0
        %2172 = vmatpush.bf16.msra.mxu0 0
        %2173 = vmatpush.bf16.msra.mxu0 %v2164
        %2174 = vmatmul.bf16.gmra.mxu0 %v2161
        %v2175 = vpop.f32.mrf.mxu0
        %v2176 = vadd.f32 0.0, %v2175
        %v2177 = vpop.f32.mrf.mxu0
        %2178 = vdwg.mxu0
        %v2180 = vunpack.c.l.b16 %v2028
        %v2181 = vpack.c.b16 %v2180, %v2180
        %2182 = vrot.lane.b32.xlu0 %v2181, 96
        %v2183 = vpop.permute.xlu0 %2182
        %v2185 = vsel %vm675, %v2152, 0
        %v2188 = vsel %vm820, %v2183, 0
        %2190 = vmatpush.bf16.msra.mxu0 0
        %2191 = vmatpush.bf16.msra.mxu0 0
        %2192 = vmatpush.bf16.msra.mxu0 0
        %2193 = vmatpush.bf16.msra.mxu0 0
        %2194 = vmatpush.bf16.msra.mxu0 0
        %2195 = vmatpush.bf16.msra.mxu0 0
        %2196 = vmatpush.bf16.msra.mxu0 0
        %2197 = vmatpush.bf16.msra.mxu0 %v2188
        %2198 = vmatmul.bf16.gmra.mxu0 %v2185
        %v2199 = vpop.f32.mrf.mxu0
        %v2200 = vadd.f32 0.0, %v2199
        %v2201 = vpop.f32.mrf.mxu0
        %2202 = vdwg.mxu0
        %v2204 = vunpack.c.l.b16 %v2029
        %v2205 = vpack.c.b16 %v2204, %v2204
        %2206 = vrot.lane.b32.xlu0 %v2205, 96
        %v2207 = vpop.permute.xlu0 %2206
        %v2209 = vsel %vm675, %v2153, 0
        %v2212 = vsel %vm820, %v2207, 0
        %2214 = vmatpush.bf16.msra.mxu0 0
        %2215 = vmatpush.bf16.msra.mxu0 0
        %2216 = vmatpush.bf16.msra.mxu0 0
        %2217 = vmatpush.bf16.msra.mxu0 0
        %2218 = vmatpush.bf16.msra.mxu0 0
        %2219 = vmatpush.bf16.msra.mxu0 0
        %2220 = vmatpush.bf16.msra.mxu0 0
        %2221 = vmatpush.bf16.msra.mxu0 %v2212
        %2222 = vmatmul.bf16.gmra.mxu0 %v2209
        %v2223 = vpop.f32.mrf.mxu0
        %v2224 = vadd.f32 0.0, %v2223
        %v2225 = vpop.f32.mrf.mxu0
        %2226 = vdwg.mxu0
        %v2228 = vunpack.c.l.b16 %v2030
        %v2229 = vpack.c.b16 %v2228, %v2228
        %2230 = vrot.lane.b32.xlu0 %v2229, 96
        %v2231 = vpop.permute.xlu0 %2230
        %v2233 = vsel %vm675, %v2154, 0
        %v2236 = vsel %vm820, %v2231, 0
        %2238 = vmatpush.bf16.msra.mxu0 0
        %2239 = vmatpush.bf16.msra.mxu0 0
        %2240 = vmatpush.bf16.msra.mxu0 0
        %2241 = vmatpush.bf16.msra.mxu0 0
        %2242 = vmatpush.bf16.msra.mxu0 0
        %2243 = vmatpush.bf16.msra.mxu0 0
        %2244 = vmatpush.bf16.msra.mxu0 0
        %2245 = vmatpush.bf16.msra.mxu0 %v2236
        %2246 = vmatmul.bf16.gmra.mxu0 %v2233
        %v2247 = vpop.f32.mrf.mxu0
        %v2248 = vadd.f32 0.0, %v2247
        %v2249 = vpop.f32.mrf.mxu0
        %2250 = vdwg.mxu0
        %2252 = vrot.lane.b32.xlu0 %v2200, 8
        %v2253 = vpop.permute.xlu0 %2252
        %2256 = vrot.lane.b32.xlu0 %v2224, 16
        %v2257 = vpop.permute.xlu0 %2256
        %2260 = vrot.lane.b32.xlu0 %v2248, 24
        %v2261 = vpop.permute.xlu0 %2260
        %v2263 = vsel %vm675, %v2176, %v2253
        %v2264 = vsel %vm913, %v2263, %v2257
        %v2265 = vsel %vm915, %v2264, %v2261
        %v2266 = vpack.c.bf16 %v2265, %v2265
        %v2267 = vperm.slane %v1594, 4
        %v2272 = vunpack.c.l.b16 %v1578
        %v2273 = vunpack.c.l.b16 %v1579
        %v2274 = vunpack.c.l.b16 %v1580
        %v2275 = vunpack.c.l.b16 %v1581
        %v2276 = vpack.c.b16 %v2273, %v2272
        %v2277 = vpack.c.b16 %v2275, %v2274
        %v2281 = vsel %vm639, %v2266, 0
        %2283 = vmatpush.bf16.msra.mxu0 0
        %2284 = vmatpush.bf16.msra.mxu0 0
        %2285 = vmatpush.bf16.msra.mxu0 0
        %2286 = vmatpush.bf16.msra.mxu0 0
        %2287 = vmatpush.bf16.msra.mxu0 0
        %2288 = vmatpush.bf16.msra.mxu0 0
        %2289 = vmatpush.bf16.msra.mxu0 %v2277
        %2290 = vmatpush.bf16.msra.mxu0 %v2276
        %2291 = vmatmul.bf16.gmra.mxu0 %v2281
        %v2292 = vpop.f32.mrf.mxu0
        %v2293 = vadd.f32 %v2267, %v2292
        %v2294 = vpop.f32.mrf.mxu0
        %2295 = vdwg.mxu0
        %v2296 = vadd.f32 %v1944, %v2293
        %v2297 = vsel %vm639, %v2296, 0.0
        %2298 = vadd.xlane.f32.xlu0 %v2297
        %v2299 = vpop.xlane.xlu0 %2298
        %v2300 = vmul.f32 %v2299, %v957
        %v2301 = vsub.f32 %v2296, %v2300
        %v2302 = vmul.f32 %v2301, %v2301
        %v2303 = vsel %vm639, %v2302, 0.0
        %2304 = vadd.xlane.f32.xlu0 %v2303
        %v2305 = vpop.xlane.xlu0 %2304
        %v2306 = vmul.f32 %v2305, %v957
        %v2307 = vadd.f32 %v2306, 1e-05
        %v2308 = vrsqrt.pop %v2307
        %v2309 = vmul.f32 %v2308, %v2307
        %v2310 = vmul.f32 %v2309, %v2308
        %v2311 = vmul.f32 0.5, %v2310
        %v2312 = vsub.f32 1.5, %v2311
        %v2313 = vmul.f32 %v2308, %v2312
        %vm2314 = vweird.f32 %v2307
        %vm2315 = vweird.f32 %v2308
        %vm2316 = vmor %vm2314, %vm2315
        %v2317 = vsel %vm2316, %v2308, %v2313
        %v2318 = vmul.f32 %v2301, %v2317
        %v2319 = vperm.slane %v1594, 5
        %v2320 = vmul.f32 %v2318, %v2319
        %v2321 = vperm.slane %v1594, 6
        %v2322 = vadd.f32 %v2320, %v2321
        %v2323 = vpack.c.bf16 %v2322, %v2322
        %v2325 = vperm.slane %v1598, 0
        %v2331 = vunpack.c.l.b16 %v1582
        %v2332 = vunpack.c.l.b16 %v1583
        %v2333 = vunpack.c.l.b16 %v1584
        %v2334 = vunpack.c.l.b16 %v1585
        %v2335 = vpack.c.b16 %v2332, %v2331
        %v2336 = vpack.c.b16 %v2334, %v2333
        %v2340 = vsel %vm639, %v2323, 0
        %2342 = vmatpush.bf16.msra.mxu0 0
        %2343 = vmatpush.bf16.msra.mxu0 0
        %2344 = vmatpush.bf16.msra.mxu0 0
        %2345 = vmatpush.bf16.msra.mxu0 0
        %2346 = vmatpush.bf16.msra.mxu0 0
        %2347 = vmatpush.bf16.msra.mxu0 0
        %2348 = vmatpush.bf16.msra.mxu0 %v2336
        %2349 = vmatpush.bf16.msra.mxu0 %v2335
        %2350 = vmatmul.bf16.gmra.mxu0 %v2340
        %v2351 = vpop.f32.mrf.mxu0
        %v2352 = vadd.f32 %v2325, %v2351
        %v2353 = vpop.f32.mrf.mxu0
        %2354 = vdwg.mxu0
        %v2355 = vmax.f32 %v2352, 0.0
        %v2356 = vpack.c.bf16 %v2355, %v2355
        %v2357 = vperm.slane %v1594, 7
        %v2366 = vunpack.c.l.b16 %v1586
        %v2367 = vunpack.c.l.b16 %v1587
        %v2368 = vunpack.c.l.b16 %v1588
        %v2369 = vunpack.c.l.b16 %v1589
        %v2370 = vunpack.c.l.b16 %v1590
        %v2371 = vunpack.c.l.b16 %v1591
        %v2372 = vunpack.c.l.b16 %v1592
        %v2373 = vunpack.c.l.b16 %v1593
        %v2374 = vpack.c.b16 %v2367, %v2366
        %v2375 = vpack.c.b16 %v2369, %v2368
        %v2376 = vpack.c.b16 %v2371, %v2370
        %v2377 = vpack.c.b16 %v2373, %v2372
        %v2383 = vsel %vm1040, %v2356, 0
        %2385 = vmatpush.bf16.msra.mxu0 0
        %2386 = vmatpush.bf16.msra.mxu0 0
        %2387 = vmatpush.bf16.msra.mxu0 0
        %2388 = vmatpush.bf16.msra.mxu0 0
        %2389 = vmatpush.bf16.msra.mxu0 %v2377
        %2390 = vmatpush.bf16.msra.mxu0 %v2376
        %2391 = vmatpush.bf16.msra.mxu0 %v2375
        %2392 = vmatpush.bf16.msra.mxu0 %v2374
        %2393 = vmatmul.bf16.gmra.mxu0 %v2383
        %v2394 = vpop.f32.mrf.mxu0
        %v2395 = vadd.f32 %v2357, %v2394
        %v2396 = vpop.f32.mrf.mxu0
        %2397 = vdwg.mxu0
        %v2398 = vadd.f32 %v2322, %v2395
        %v2399 = vsel %vm639, %v2398, 0.0
        %2400 = vadd.xlane.f32.xlu0 %v2399
        %v2401 = vpop.xlane.xlu0 %2400
        %v2402 = vmul.f32 %v2401, %v957
        %v2403 = vsub.f32 %v2398, %v2402
        %v2404 = vmul.f32 %v2403, %v2403
        %v2405 = vsel %vm639, %v2404, 0.0
        %2406 = vadd.xlane.f32.xlu0 %v2405
        %v2407 = vpop.xlane.xlu0 %2406
        %v2408 = vmul.f32 %v2407, %v957
        %v2409 = vadd.f32 %v2408, 1e-05
        %v2410 = vrsqrt.pop %v2409
        %v2411 = vmul.f32 %v2410, %v2409
        %v2412 = vmul.f32 %v2411, %v2410
        %v2413 = vmul.f32 0.5, %v2412
        %v2414 = vsub.f32 1.5, %v2413
        %v2415 = vmul.f32 %v2410, %v2414
        %vm2416 = vweird.f32 %v2409
        %vm2417 = vweird.f32 %v2410
        %vm2418 = vmor %vm2416, %vm2417
        %v2419 = vsel %vm2418, %v2410, %v2415
        %v2420 = vmul.f32 %v2403, %v2419
        %v2421 = vperm.slane %v1595, 0
        %v2422 = vmul.f32 %v2420, %v2421
        %v2423 = vperm.slane %v1595, 1
        %v2424 = vadd.f32 %v2422, %v2423
        %s2425 = scalar_lea.vmem %s8, 16
        %v2426 = vld [vmem:[%s2425] sm:$0xf]
        %v2427 = vld [vmem:[%s2425 + $0x4] sm:$0xf]
        %v2428 = vld [vmem:[%s2425 + $0x8] sm:$0xf]
        %v2429 = vld [vmem:[%s2425 + $0xc] sm:$0xf]
        %s2430 = scalar_lea.vmem %s9, 16
        %v2431 = vld [vmem:[%s2430] sm:$0xf]
        %v2432 = vld [vmem:[%s2430 + $0x4] sm:$0xf]
        %v2433 = vld [vmem:[%s2430 + $0x8] sm:$0xf]
        %v2434 = vld [vmem:[%s2430 + $0xc] sm:$0xf]
        %s2435 = scalar_lea.vmem %s10, 16
        %v2436 = vld [vmem:[%s2435] sm:$0xf]
        %v2437 = vld [vmem:[%s2435 + $0x4] sm:$0xf]
        %v2438 = vld [vmem:[%s2435 + $0x8] sm:$0xf]
        %v2439 = vld [vmem:[%s2435 + $0xc] sm:$0xf]
        %s2440 = scalar_lea.vmem %s11, 16
        %v2441 = vld [vmem:[%s2440] sm:$0xf]
        %v2442 = vld [vmem:[%s2440 + $0x4] sm:$0xf]
        %v2443 = vld [vmem:[%s2440 + $0x8] sm:$0xf]
        %v2444 = vld [vmem:[%s2440 + $0xc] sm:$0xf]
        %s2445 = scalar_lea.vmem %s12, 16
        %v2446 = vld [vmem:[%s2445] sm:$0xf]
        %v2447 = vld [vmem:[%s2445 + $0x4] sm:$0xf]
        %v2448 = vld [vmem:[%s2445 + $0x8] sm:$0xf]
        %v2449 = vld [vmem:[%s2445 + $0xc] sm:$0xf]
        %s2450 = scalar_lea.vmem %s13, 16
        %v2451 = vld [vmem:[%s2450] sm:$0xf]
        %v2452 = vld [vmem:[%s2450 + $0x4] sm:$0xf]
        %v2453 = vld [vmem:[%s2450 + $0x8] sm:$0xf]
        %v2454 = vld [vmem:[%s2450 + $0xc] sm:$0xf]
        %s2455 = scalar_lea.vmem %s14, 32
        %v2456 = vld [vmem:[%s2455] sm:$0xf]
        %v2457 = vld [vmem:[%s2455 + $0x4] sm:$0xf]
        %v2458 = vld [vmem:[%s2455 + $0x8] sm:$0xf]
        %v2459 = vld [vmem:[%s2455 + $0xc] sm:$0xf]
        %v2460 = vld [vmem:[%s2455 + $0x10] sm:$0xf]
        %v2461 = vld [vmem:[%s2455 + $0x14] sm:$0xf]
        %v2462 = vld [vmem:[%s2455 + $0x18] sm:$0xf]
        %v2463 = vld [vmem:[%s2455 + $0x1c] sm:$0xf]
        %s2464 = scalar_lea.vmem %s15, 16
        %v2465 = vld [vmem:[%s2464] sm:$0xff]
        %v2466 = vld [vmem:[%s2464 + $0x8] sm:$0x3]
        %s2467 = scalar_lea.vmem %s16, 1
        %v2468 = vld [vmem:[%s2467] sm:$0x1]
        %s2469 = scalar_lea.vmem %s17, 1
        %v2470 = vld [vmem:[%s2469] sm:$0x1]
        %s2471 = scalar_lea.vmem %s18, 1
        %v2472 = vld [vmem:[%s2471] sm:$0x1]
        %v2473 = vpack.c.bf16 %v2424, %v2424
        %v2475 = vperm.slane %v2468, 0
        %v2481 = vunpack.c.l.b16 %v2426
        %v2482 = vunpack.c.l.b16 %v2427
        %v2483 = vunpack.c.l.b16 %v2428
        %v2484 = vunpack.c.l.b16 %v2429
        %v2485 = vpack.c.b16 %v2482, %v2481
        %v2486 = vpack.c.b16 %v2484, %v2483
        %v2490 = vsel %vm639, %v2473, 0
        %2492 = vmatpush.bf16.msra.mxu0 0
        %2493 = vmatpush.bf16.msra.mxu0 0
        %2494 = vmatpush.bf16.msra.mxu0 0
        %2495 = vmatpush.bf16.msra.mxu0 0
        %2496 = vmatpush.bf16.msra.mxu0 0
        %2497 = vmatpush.bf16.msra.mxu0 0
        %2498 = vmatpush.bf16.msra.mxu0 %v2486
        %2499 = vmatpush.bf16.msra.mxu0 %v2485
        %2500 = vmatmul.bf16.gmra.mxu0 %v2490
        %v2501 = vpop.f32.mrf.mxu0
        %v2502 = vadd.f32 %v2475, %v2501
        %v2503 = vpop.f32.mrf.mxu0
        %2504 = vdwg.mxu0
        %2506 = vrot.lane.b32.xlu0 %v2502, 120
        %v2507 = vpop.permute.xlu0 %2506
        %2509 = vrot.lane.b32.xlu0 %v2502, 112
        %v2510 = vpop.permute.xlu0 %2509
        %2512 = vrot.lane.b32.xlu0 %v2502, 104
        %v2513 = vpop.permute.xlu0 %2512
        %v2515 = vpack.c.bf16 %v2502, %v2502
        %v2516 = vpack.c.bf16 %v2507, %v2507
        %v2517 = vpack.c.bf16 %v2510, %v2510
        %v2518 = vpack.c.bf16 %v2513, %v2513
        %v2520 = vunpack.c.l.b16 %v2515
        %v2521 = vpack.c.b16 %v2520, %v2520
        %2522 = vrot.lane.b32.xlu0 %v2521, 96
        %v2523 = vpop.permute.xlu0 %2522
        %v2525 = vsel %vm675, %v2515, 0
        %v2528 = vsel %vm675, %v2523, 0
        %2530 = vmatpush.bf16.xpose.msra.mxu0 0
        %2531 = vmatpush.bf16.xpose.msra.mxu0 0
        %2532 = vmatpush.bf16.xpose.msra.mxu0 0
        %2533 = vmatpush.bf16.xpose.msra.mxu0 0
        %2534 = vmatpush.bf16.xpose.msra.mxu0 0
        %2535 = vmatpush.bf16.xpose.msra.mxu0 0
        %2536 = vmatpush.bf16.xpose.msra.mxu0 0
        %2537 = vmatpush.bf16.xpose.msra.mxu0 %v2528
        %2538 = vmatmul.bf16.gmra.mxu0 %v2525
        %v2539 = vpop.f32.mrf.mxu0
        %v2540 = vadd.f32 0.0, %v2539
        %v2541 = vpop.f32.mrf.mxu0
        %2542 = vdwg.mxu0
        %v2544 = vunpack.c.l.b16 %v2516
        %v2545 = vpack.c.b16 %v2544, %v2544
        %2546 = vrot.lane.b32.xlu0 %v2545, 96
        %v2547 = vpop.permute.xlu0 %2546
        %v2549 = vsel %vm675, %v2516, 0
        %v2552 = vsel %vm675, %v2547, 0
        %2554 = vmatpush.bf16.xpose.msra.mxu0 0
        %2555 = vmatpush.bf16.xpose.msra.mxu0 0
        %2556 = vmatpush.bf16.xpose.msra.mxu0 0
        %2557 = vmatpush.bf16.xpose.msra.mxu0 0
        %2558 = vmatpush.bf16.xpose.msra.mxu0 0
        %2559 = vmatpush.bf16.xpose.msra.mxu0 0
        %2560 = vmatpush.bf16.xpose.msra.mxu0 0
        %2561 = vmatpush.bf16.xpose.msra.mxu0 %v2552
        %2562 = vmatmul.bf16.gmra.mxu0 %v2549
        %v2563 = vpop.f32.mrf.mxu0
        %v2564 = vadd.f32 0.0, %v2563
        %v2565 = vpop.f32.mrf.mxu0
        %2566 = vdwg.mxu0
        %v2568 = vunpack.c.l.b16 %v2517
        %v2569 = vpack.c.b16 %v2568, %v2568
        %2570 = vrot.lane.b32.xlu0 %v2569, 96
        %v2571 = vpop.permute.xlu0 %2570
        %v2573 = vsel %vm675, %v2517, 0
        %v2576 = vsel %vm675, %v2571, 0
        %2578 = vmatpush.bf16.xpose.msra.mxu0 0
        %2579 = vmatpush.bf16.xpose.msra.mxu0 0
        %2580 = vmatpush.bf16.xpose.msra.mxu0 0
        %2581 = vmatpush.bf16.xpose.msra.mxu0 0
        %2582 = vmatpush.bf16.xpose.msra.mxu0 0
        %2583 = vmatpush.bf16.xpose.msra.mxu0 0
        %2584 = vmatpush.bf16.xpose.msra.mxu0 0
        %2585 = vmatpush.bf16.xpose.msra.mxu0 %v2576
        %2586 = vmatmul.bf16.gmra.mxu0 %v2573
        %v2587 = vpop.f32.mrf.mxu0
        %v2588 = vadd.f32 0.0, %v2587
        %v2589 = vpop.f32.mrf.mxu0
        %2590 = vdwg.mxu0
        %v2592 = vunpack.c.l.b16 %v2518
        %v2593 = vpack.c.b16 %v2592, %v2592
        %2594 = vrot.lane.b32.xlu0 %v2593, 96
        %v2595 = vpop.permute.xlu0 %2594
        %v2597 = vsel %vm675, %v2518, 0
        %v2600 = vsel %vm675, %v2595, 0
        %2602 = vmatpush.bf16.xpose.msra.mxu0 0
        %2603 = vmatpush.bf16.xpose.msra.mxu0 0
        %2604 = vmatpush.bf16.xpose.msra.mxu0 0
        %2605 = vmatpush.bf16.xpose.msra.mxu0 0
        %2606 = vmatpush.bf16.xpose.msra.mxu0 0
        %2607 = vmatpush.bf16.xpose.msra.mxu0 0
        %2608 = vmatpush.bf16.xpose.msra.mxu0 0
        %2609 = vmatpush.bf16.xpose.msra.mxu0 %v2600
        %2610 = vmatmul.bf16.gmra.mxu0 %v2597
        %v2611 = vpop.f32.mrf.mxu0
        %v2612 = vadd.f32 0.0, %v2611
        %v2613 = vpop.f32.mrf.mxu0
        %2614 = vdwg.mxu0
        %v2615 = vsel %vm675, %v2540, -inf
        %2616 = vmax.xlane.f32.xlu0 %v2615
        %v2617 = vpop.xlane.xlu0 %2616
        %v2618 = vsel %vm675, %v2564, -inf
        %2619 = vmax.xlane.f32.xlu0 %v2618
        %v2620 = vpop.xlane.xlu0 %2619
        %v2621 = vsel %vm675, %v2588, -inf
        %2622 = vmax.xlane.f32.xlu0 %v2621
        %v2623 = vpop.xlane.xlu0 %2622
        %v2624 = vsel %vm675, %v2612, -inf
        %2625 = vmax.xlane.f32.xlu0 %v2624
        %v2626 = vpop.xlane.xlu0 %2625
        %v2627 = vsub.f32 %v2540, %v2617
        %v2628 = vsub.f32 %v2564, %v2620
        %v2629 = vsub.f32 %v2588, %v2623
        %v2630 = vsub.f32 %v2612, %v2626
        %v2631 = vmul.f32 %v2627, 1.442695
        %v2632 = vpow.pop %v2631
        %v2633 = vmul.f32 %v2628, 1.442695
        %v2634 = vpow.pop %v2633
        %v2635 = vmul.f32 %v2629, 1.442695
        %v2636 = vpow.pop %v2635
        %v2637 = vmul.f32 %v2630, 1.442695
        %v2638 = vpow.pop %v2637
        %v2639 = vsel %vm675, %v2632, 0.0
        %2640 = vadd.xlane.f32.xlu0 %v2639
        %v2641 = vpop.xlane.xlu0 %2640
        %v2642 = vsel %vm675, %v2634, 0.0
        %2643 = vadd.xlane.f32.xlu0 %v2642
        %v2644 = vpop.xlane.xlu0 %2643
        %v2645 = vsel %vm675, %v2636, 0.0
        %2646 = vadd.xlane.f32.xlu0 %v2645
        %v2647 = vpop.xlane.xlu0 %2646
        %v2648 = vsel %vm675, %v2638, 0.0
        %2649 = vadd.xlane.f32.xlu0 %v2648
        %v2650 = vpop.xlane.xlu0 %2649
        %v2651 = vrcp.pop %v2641
        %v2652 = vrcp.pop %v2644
        %v2653 = vrcp.pop %v2647
        %v2654 = vrcp.pop %v2650
        %v2655 = vmul.f32 %v2632, %v2651
        %v2656 = vmul.f32 %v2634, %v2652
        %v2657 = vmul.f32 %v2636, %v2653
        %v2658 = vmul.f32 %v2638, %v2654
        %v2659 = vpack.c.bf16 %v2655, %v2655
        %v2660 = vpack.c.bf16 %v2656, %v2656
        %v2661 = vpack.c.bf16 %v2657, %v2657
        %v2662 = vpack.c.bf16 %v2658, %v2658
        %2663 = vrot.lane.b32.xlu0 %v2521, 64
        %v2664 = vpop.permute.xlu0 %2663
        %v2666 = vsel %vm675, %v2659, 0
        %v2669 = vsel %vm820, %v2664, 0
        %2671 = vmatpush.bf16.msra.mxu0 0
        %2672 = vmatpush.bf16.msra.mxu0 0
        %2673 = vmatpush.bf16.msra.mxu0 0
        %2674 = vmatpush.bf16.msra.mxu0 0
        %2675 = vmatpush.bf16.msra.mxu0 0
        %2676 = vmatpush.bf16.msra.mxu0 0
        %2677 = vmatpush.bf16.msra.mxu0 0
        %2678 = vmatpush.bf16.msra.mxu0 %v2669
        %2679 = vmatmul.bf16.gmra.mxu0 %v2666
        %v2680 = vpop.f32.mrf.mxu0
        %v2681 = vadd.f32 0.0, %v2680
        %v2682 = vpop.f32.mrf.mxu0
        %2683 = vdwg.mxu0
        %2684 = vrot.lane.b32.xlu0 %v2545, 64
        %v2685 = vpop.permute.xlu0 %2684
        %v2687 = vsel %vm675, %v2660, 0
        %v2690 = vsel %vm820, %v2685, 0
        %2692 = vmatpush.bf16.msra.mxu0 0
        %2693 = vmatpush.bf16.msra.mxu0 0
        %2694 = vmatpush.bf16.msra.mxu0 0
        %2695 = vmatpush.bf16.msra.mxu0 0
        %2696 = vmatpush.bf16.msra.mxu0 0
        %2697 = vmatpush.bf16.msra.mxu0 0
        %2698 = vmatpush.bf16.msra.mxu0 0
        %2699 = vmatpush.bf16.msra.mxu0 %v2690
        %2700 = vmatmul.bf16.gmra.mxu0 %v2687
        %v2701 = vpop.f32.mrf.mxu0
        %v2702 = vadd.f32 0.0, %v2701
        %v2703 = vpop.f32.mrf.mxu0
        %2704 = vdwg.mxu0
        %2705 = vrot.lane.b32.xlu0 %v2569, 64
        %v2706 = vpop.permute.xlu0 %2705
        %v2708 = vsel %vm675, %v2661, 0
        %v2711 = vsel %vm820, %v2706, 0
        %2713 = vmatpush.bf16.msra.mxu0 0
        %2714 = vmatpush.bf16.msra.mxu0 0
        %2715 = vmatpush.bf16.msra.mxu0 0
        %2716 = vmatpush.bf16.msra.mxu0 0
        %2717 = vmatpush.bf16.msra.mxu0 0
        %2718 = vmatpush.bf16.msra.mxu0 0
        %2719 = vmatpush.bf16.msra.mxu0 0
        %2720 = vmatpush.bf16.msra.mxu0 %v2711
        %2721 = vmatmul.bf16.gmra.mxu0 %v2708
        %v2722 = vpop.f32.mrf.mxu0
        %v2723 = vadd.f32 0.0, %v2722
        %v2724 = vpop.f32.mrf.mxu0
        %2725 = vdwg.mxu0
        %2726 = vrot.lane.b32.xlu0 %v2593, 64
        %v2727 = vpop.permute.xlu0 %2726
        %v2729 = vsel %vm675, %v2662, 0
        %v2732 = vsel %vm820, %v2727, 0
        %2734 = vmatpush.bf16.msra.mxu0 0
        %2735 = vmatpush.bf16.msra.mxu0 0
        %2736 = vmatpush.bf16.msra.mxu0 0
        %2737 = vmatpush.bf16.msra.mxu0 0
        %2738 = vmatpush.bf16.msra.mxu0 0
        %2739 = vmatpush.bf16.msra.mxu0 0
        %2740 = vmatpush.bf16.msra.mxu0 0
        %2741 = vmatpush.bf16.msra.mxu0 %v2732
        %2742 = vmatmul.bf16.gmra.mxu0 %v2729
        %v2743 = vpop.f32.mrf.mxu0
        %v2744 = vadd.f32 0.0, %v2743
        %v2745 = vpop.f32.mrf.mxu0
        %2746 = vdwg.mxu0
        %2748 = vrot.lane.b32.xlu0 %v2702, 8
        %v2749 = vpop.permute.xlu0 %2748
        %2752 = vrot.lane.b32.xlu0 %v2723, 16
        %v2753 = vpop.permute.xlu0 %2752
        %2756 = vrot.lane.b32.xlu0 %v2744, 24
        %v2757 = vpop.permute.xlu0 %2756
        %v2759 = vsel %vm675, %v2681, %v2749
        %v2760 = vsel %vm913, %v2759, %v2753
        %v2761 = vsel %vm915, %v2760, %v2757
        %v2762 = vpack.c.bf16 %v2761, %v2761
        %v2763 = vperm.slane %v2465, 0
        %v2768 = vunpack.c.l.b16 %v2431
        %v2769 = vunpack.c.l.b16 %v2432
        %v2770 = vunpack.c.l.b16 %v2433
        %v2771 = vunpack.c.l.b16 %v2434
        %v2772 = vpack.c.b16 %v2769, %v2768
        %v2773 = vpack.c.b16 %v2771, %v2770
        %v2777 = vsel %vm639, %v2762, 0
        %2779 = vmatpush.bf16.msra.mxu0 0
        %2780 = vmatpush.bf16.msra.mxu0 0
        %2781 = vmatpush.bf16.msra.mxu0 0
        %2782 = vmatpush.bf16.msra.mxu0 0
        %2783 = vmatpush.bf16.msra.mxu0 0
        %2784 = vmatpush.bf16.msra.mxu0 0
        %2785 = vmatpush.bf16.msra.mxu0 %v2773
        %2786 = vmatpush.bf16.msra.mxu0 %v2772
        %2787 = vmatmul.bf16.gmra.mxu0 %v2777
        %v2788 = vpop.f32.mrf.mxu0
        %v2789 = vadd.f32 %v2763, %v2788
        %v2790 = vpop.f32.mrf.mxu0
        %2791 = vdwg.mxu0
        %v2792 = vadd.f32 %v2424, %v2789
        %v2793 = vsel %vm639, %v2792, 0.0
        %2794 = vadd.xlane.f32.xlu0 %v2793
        %v2795 = vpop.xlane.xlu0 %2794
        %v2796 = vmul.f32 %v2795, %v957
        %v2797 = vsub.f32 %v2792, %v2796
        %v2798 = vmul.f32 %v2797, %v2797
        %v2799 = vsel %vm639, %v2798, 0.0
        %2800 = vadd.xlane.f32.xlu0 %v2799
        %v2801 = vpop.xlane.xlu0 %2800
        %v2802 = vmul.f32 %v2801, %v957
        %v2803 = vadd.f32 %v2802, 1e-05
        %v2804 = vrsqrt.pop %v2803
        %v2805 = vmul.f32 %v2804, %v2803
        %v2806 = vmul.f32 %v2805, %v2804
        %v2807 = vmul.f32 0.5, %v2806
        %v2808 = vsub.f32 1.5, %v2807
        %v2809 = vmul.f32 %v2804, %v2808
        %vm2810 = vweird.f32 %v2803
        %vm2811 = vweird.f32 %v2804
        %vm2812 = vmor %vm2810, %vm2811
        %v2813 = vsel %vm2812, %v2804, %v2809
        %v2814 = vmul.f32 %v2797, %v2813
        %v2815 = vperm.slane %v2465, 1
        %v2816 = vmul.f32 %v2814, %v2815
        %v2817 = vperm.slane %v2465, 2
        %v2818 = vadd.f32 %v2816, %v2817
        %v2819 = vpack.c.bf16 %v2818, %v2818
        %v2820 = vperm.slane %v2465, 3
        %v2825 = vunpack.c.l.b16 %v2436
        %v2826 = vunpack.c.l.b16 %v2437
        %v2827 = vunpack.c.l.b16 %v2438
        %v2828 = vunpack.c.l.b16 %v2439
        %v2829 = vpack.c.b16 %v2826, %v2825
        %v2830 = vpack.c.b16 %v2828, %v2827
        %v2834 = vsel %vm639, %v2819, 0
        %2836 = vmatpush.bf16.msra.mxu0 0
        %2837 = vmatpush.bf16.msra.mxu0 0
        %2838 = vmatpush.bf16.msra.mxu0 0
        %2839 = vmatpush.bf16.msra.mxu0 0
        %2840 = vmatpush.bf16.msra.mxu0 0
        %2841 = vmatpush.bf16.msra.mxu0 0
        %2842 = vmatpush.bf16.msra.mxu0 %v2830
        %2843 = vmatpush.bf16.msra.mxu0 %v2829
        %2844 = vmatmul.bf16.gmra.mxu0 %v2834
        %v2845 = vpop.f32.mrf.mxu0
        %v2846 = vadd.f32 %v2820, %v2845
        %v2847 = vpop.f32.mrf.mxu0
        %2848 = vdwg.mxu0
        %v2850 = vperm.slane %v2470, 0
        %v2856 = vunpack.c.l.b16 %v2441
        %v2857 = vunpack.c.l.b16 %v2442
        %v2858 = vunpack.c.l.b16 %v2443
        %v2859 = vunpack.c.l.b16 %v2444
        %v2860 = vpack.c.b16 %v2857, %v2856
        %v2861 = vpack.c.b16 %v2859, %v2858
        %2864 = vmatpush.bf16.msra.mxu0 0
        %2865 = vmatpush.bf16.msra.mxu0 0
        %2866 = vmatpush.bf16.msra.mxu0 0
        %2867 = vmatpush.bf16.msra.mxu0 0
        %2868 = vmatpush.bf16.msra.mxu0 0
        %2869 = vmatpush.bf16.msra.mxu0 0
        %2870 = vmatpush.bf16.msra.mxu0 %v2861
        %2871 = vmatpush.bf16.msra.mxu0 %v2860
        %2872 = vmatmul.bf16.gmra.mxu0 %v1616
        %v2873 = vpop.f32.mrf.mxu0
        %v2874 = vadd.f32 %v2850, %v2873
        %v2875 = vpop.f32.mrf.mxu0
        %2876 = vdwg.mxu0
        %2878 = vrot.lane.b32.xlu0 %v2846, 120
        %v2879 = vpop.permute.xlu0 %2878
        %2881 = vrot.lane.b32.xlu0 %v2846, 112
        %v2882 = vpop.permute.xlu0 %2881
        %2884 = vrot.lane.b32.xlu0 %v2846, 104
        %v2885 = vpop.permute.xlu0 %2884
        %v2887 = vpack.c.bf16 %v2846, %v2846
        %v2888 = vpack.c.bf16 %v2879, %v2879
        %v2889 = vpack.c.bf16 %v2882, %v2882
        %v2890 = vpack.c.bf16 %v2885, %v2885
        %2892 = vrot.lane.b32.xlu0 %v2874, 120
        %v2893 = vpop.permute.xlu0 %2892
        %2895 = vrot.lane.b32.xlu0 %v2874, 112
        %v2896 = vpop.permute.xlu0 %2895
        %2898 = vrot.lane.b32.xlu0 %v2874, 104
        %v2899 = vpop.permute.xlu0 %2898
        %v2901 = vpack.c.bf16 %v2874, %v2874
        %v2902 = vpack.c.bf16 %v2893, %v2893
        %v2903 = vpack.c.bf16 %v2896, %v2896
        %v2904 = vpack.c.bf16 %v2899, %v2899
        %v2906 = vsel %vm675, %v2887, 0
        %v2909 = vsel %vm675, %v2901, 0
        %2911 = vmatpush.bf16.xpose.msra.mxu0 0
        %2912 = vmatpush.bf16.xpose.msra.mxu0 0
        %2913 = vmatpush.bf16.xpose.msra.mxu0 0
        %2914 = vmatpush.bf16.xpose.msra.mxu0 0
        %2915 = vmatpush.bf16.xpose.msra.mxu0 0
        %2916 = vmatpush.bf16.xpose.msra.mxu0 0
        %2917 = vmatpush.bf16.xpose.msra.mxu0 0
        %2918 = vmatpush.bf16.xpose.msra.mxu0 %v2909
        %2919 = vmatmul.bf16.gmra.mxu0 %v2906
        %v2920 = vpop.f32.mrf.mxu0
        %v2921 = vadd.f32 0.0, %v2920
        %v2922 = vpop.f32.mrf.mxu0
        %2923 = vdwg.mxu0
        %v2925 = vsel %vm675, %v2888, 0
        %v2928 = vsel %vm675, %v2902, 0
        %2930 = vmatpush.bf16.xpose.msra.mxu0 0
        %2931 = vmatpush.bf16.xpose.msra.mxu0 0
        %2932 = vmatpush.bf16.xpose.msra.mxu0 0
        %2933 = vmatpush.bf16.xpose.msra.mxu0 0
        %2934 = vmatpush.bf16.xpose.msra.mxu0 0
        %2935 = vmatpush.bf16.xpose.msra.mxu0 0
        %2936 = vmatpush.bf16.xpose.msra.mxu0 0
        %2937 = vmatpush.bf16.xpose.msra.mxu0 %v2928
        %2938 = vmatmul.bf16.gmra.mxu0 %v2925
        %v2939 = vpop.f32.mrf.mxu0
        %v2940 = vadd.f32 0.0, %v2939
        %v2941 = vpop.f32.mrf.mxu0
        %2942 = vdwg.mxu0
        %v2944 = vsel %vm675, %v2889, 0
        %v2947 = vsel %vm675, %v2903, 0
        %2949 = vmatpush.bf16.xpose.msra.mxu0 0
        %2950 = vmatpush.bf16.xpose.msra.mxu0 0
        %2951 = vmatpush.bf16.xpose.msra.mxu0 0
        %2952 = vmatpush.bf16.xpose.msra.mxu0 0
        %2953 = vmatpush.bf16.xpose.msra.mxu0 0
        %2954 = vmatpush.bf16.xpose.msra.mxu0 0
        %2955 = vmatpush.bf16.xpose.msra.mxu0 0
        %2956 = vmatpush.bf16.xpose.msra.mxu0 %v2947
        %2957 = vmatmul.bf16.gmra.mxu0 %v2944
        %v2958 = vpop.f32.mrf.mxu0
        %v2959 = vadd.f32 0.0, %v2958
        %v2960 = vpop.f32.mrf.mxu0
        %2961 = vdwg.mxu0
        %v2963 = vsel %vm675, %v2890, 0
        %v2966 = vsel %vm675, %v2904, 0
        %2968 = vmatpush.bf16.xpose.msra.mxu0 0
        %2969 = vmatpush.bf16.xpose.msra.mxu0 0
        %2970 = vmatpush.bf16.xpose.msra.mxu0 0
        %2971 = vmatpush.bf16.xpose.msra.mxu0 0
        %2972 = vmatpush.bf16.xpose.msra.mxu0 0
        %2973 = vmatpush.bf16.xpose.msra.mxu0 0
        %2974 = vmatpush.bf16.xpose.msra.mxu0 0
        %2975 = vmatpush.bf16.xpose.msra.mxu0 %v2966
        %2976 = vmatmul.bf16.gmra.mxu0 %v2963
        %v2977 = vpop.f32.mrf.mxu0
        %v2978 = vadd.f32 0.0, %v2977
        %v2979 = vpop.f32.mrf.mxu0
        %2980 = vdwg.mxu0
        %v2981 = vsel %vm675, %v2921, -inf
        %2982 = vmax.xlane.f32.xlu0 %v2981
        %v2983 = vpop.xlane.xlu0 %2982
        %v2984 = vsel %vm675, %v2940, -inf
        %2985 = vmax.xlane.f32.xlu0 %v2984
        %v2986 = vpop.xlane.xlu0 %2985
        %v2987 = vsel %vm675, %v2959, -inf
        %2988 = vmax.xlane.f32.xlu0 %v2987
        %v2989 = vpop.xlane.xlu0 %2988
        %v2990 = vsel %vm675, %v2978, -inf
        %2991 = vmax.xlane.f32.xlu0 %v2990
        %v2992 = vpop.xlane.xlu0 %2991
        %v2993 = vsub.f32 %v2921, %v2983
        %v2994 = vsub.f32 %v2940, %v2986
        %v2995 = vsub.f32 %v2959, %v2989
        %v2996 = vsub.f32 %v2978, %v2992
        %v2997 = vmul.f32 %v2993, 1.442695
        %v2998 = vpow.pop %v2997
        %v2999 = vmul.f32 %v2994, 1.442695
        %v3000 = vpow.pop %v2999
        %v3001 = vmul.f32 %v2995, 1.442695
        %v3002 = vpow.pop %v3001
        %v3003 = vmul.f32 %v2996, 1.442695
        %v3004 = vpow.pop %v3003
        %v3005 = vsel %vm675, %v2998, 0.0
        %3006 = vadd.xlane.f32.xlu0 %v3005
        %v3007 = vpop.xlane.xlu0 %3006
        %v3008 = vsel %vm675, %v3000, 0.0
        %3009 = vadd.xlane.f32.xlu0 %v3008
        %v3010 = vpop.xlane.xlu0 %3009
        %v3011 = vsel %vm675, %v3002, 0.0
        %3012 = vadd.xlane.f32.xlu0 %v3011
        %v3013 = vpop.xlane.xlu0 %3012
        %v3014 = vsel %vm675, %v3004, 0.0
        %3015 = vadd.xlane.f32.xlu0 %v3014
        %v3016 = vpop.xlane.xlu0 %3015
        %v3017 = vrcp.pop %v3007
        %v3018 = vrcp.pop %v3010
        %v3019 = vrcp.pop %v3013
        %v3020 = vrcp.pop %v3016
        %v3021 = vmul.f32 %v2998, %v3017
        %v3022 = vmul.f32 %v3000, %v3018
        %v3023 = vmul.f32 %v3002, %v3019
        %v3024 = vmul.f32 %v3004, %v3020
        %v3025 = vpack.c.bf16 %v3021, %v3021
        %v3026 = vpack.c.bf16 %v3022, %v3022
        %v3027 = vpack.c.bf16 %v3023, %v3023
        %v3028 = vpack.c.bf16 %v3024, %v3024
        %v3030 = vunpack.c.l.b16 %v2901
        %v3031 = vpack.c.b16 %v3030, %v3030
        %3032 = vrot.lane.b32.xlu0 %v3031, 96
        %v3033 = vpop.permute.xlu0 %3032
        %v3035 = vsel %vm675, %v3025, 0
        %v3038 = vsel %vm820, %v3033, 0
        %3040 = vmatpush.bf16.msra.mxu0 0
        %3041 = vmatpush.bf16.msra.mxu0 0
        %3042 = vmatpush.bf16.msra.mxu0 0
        %3043 = vmatpush.bf16.msra.mxu0 0
        %3044 = vmatpush.bf16.msra.mxu0 0
        %3045 = vmatpush.bf16.msra.mxu0 0
        %3046 = vmatpush.bf16.msra.mxu0 0
        %3047 = vmatpush.bf16.msra.mxu0 %v3038
        %3048 = vmatmul.bf16.gmra.mxu0 %v3035
        %v3049 = vpop.f32.mrf.mxu0
        %v3050 = vadd.f32 0.0, %v3049
        %v3051 = vpop.f32.mrf.mxu0
        %3052 = vdwg.mxu0
        %v3054 = vunpack.c.l.b16 %v2902
        %v3055 = vpack.c.b16 %v3054, %v3054
        %3056 = vrot.lane.b32.xlu0 %v3055, 96
        %v3057 = vpop.permute.xlu0 %3056
        %v3059 = vsel %vm675, %v3026, 0
        %v3062 = vsel %vm820, %v3057, 0
        %3064 = vmatpush.bf16.msra.mxu0 0
        %3065 = vmatpush.bf16.msra.mxu0 0
        %3066 = vmatpush.bf16.msra.mxu0 0
        %3067 = vmatpush.bf16.msra.mxu0 0
        %3068 = vmatpush.bf16.msra.mxu0 0
        %3069 = vmatpush.bf16.msra.mxu0 0
        %3070 = vmatpush.bf16.msra.mxu0 0
        %3071 = vmatpush.bf16.msra.mxu0 %v3062
        %3072 = vmatmul.bf16.gmra.mxu0 %v3059
        %v3073 = vpop.f32.mrf.mxu0
        %v3074 = vadd.f32 0.0, %v3073
        %v3075 = vpop.f32.mrf.mxu0
        %3076 = vdwg.mxu0
        %v3078 = vunpack.c.l.b16 %v2903
        %v3079 = vpack.c.b16 %v3078, %v3078
        %3080 = vrot.lane.b32.xlu0 %v3079, 96
        %v3081 = vpop.permute.xlu0 %3080
        %v3083 = vsel %vm675, %v3027, 0
        %v3086 = vsel %vm820, %v3081, 0
        %3088 = vmatpush.bf16.msra.mxu0 0
        %3089 = vmatpush.bf16.msra.mxu0 0
        %3090 = vmatpush.bf16.msra.mxu0 0
        %3091 = vmatpush.bf16.msra.mxu0 0
        %3092 = vmatpush.bf16.msra.mxu0 0
        %3093 = vmatpush.bf16.msra.mxu0 0
        %3094 = vmatpush.bf16.msra.mxu0 0
        %3095 = vmatpush.bf16.msra.mxu0 %v3086
        %3096 = vmatmul.bf16.gmra.mxu0 %v3083
        %v3097 = vpop.f32.mrf.mxu0
        %v3098 = vadd.f32 0.0, %v3097
        %v3099 = vpop.f32.mrf.mxu0
        %3100 = vdwg.mxu0
        %v3102 = vunpack.c.l.b16 %v2904
        %v3103 = vpack.c.b16 %v3102, %v3102
        %3104 = vrot.lane.b32.xlu0 %v3103, 96
        %v3105 = vpop.permute.xlu0 %3104
        %v3107 = vsel %vm675, %v3028, 0
        %v3110 = vsel %vm820, %v3105, 0
        %3112 = vmatpush.bf16.msra.mxu0 0
        %3113 = vmatpush.bf16.msra.mxu0 0
        %3114 = vmatpush.bf16.msra.mxu0 0
        %3115 = vmatpush.bf16.msra.mxu0 0
        %3116 = vmatpush.bf16.msra.mxu0 0
        %3117 = vmatpush.bf16.msra.mxu0 0
        %3118 = vmatpush.bf16.msra.mxu0 0
        %3119 = vmatpush.bf16.msra.mxu0 %v3110
        %3120 = vmatmul.bf16.gmra.mxu0 %v3107
        %v3121 = vpop.f32.mrf.mxu0
        %v3122 = vadd.f32 0.0, %v3121
        %v3123 = vpop.f32.mrf.mxu0
        %3124 = vdwg.mxu0
        %3126 = vrot.lane.b32.xlu0 %v3074, 8
        %v3127 = vpop.permute.xlu0 %3126
        %3130 = vrot.lane.b32.xlu0 %v3098, 16
        %v3131 = vpop.permute.xlu0 %3130
        %3134 = vrot.lane.b32.xlu0 %v3122, 24
        %v3135 = vpop.permute.xlu0 %3134
        %v3137 = vsel %vm675, %v3050, %v3127
        %v3138 = vsel %vm913, %v3137, %v3131
        %v3139 = vsel %vm915, %v3138, %v3135
        %v3140 = vpack.c.bf16 %v3139, %v3139
        %v3141 = vperm.slane %v2465, 4
        %v3146 = vunpack.c.l.b16 %v2446
        %v3147 = vunpack.c.l.b16 %v2447
        %v3148 = vunpack.c.l.b16 %v2448
        %v3149 = vunpack.c.l.b16 %v2449
        %v3150 = vpack.c.b16 %v3147, %v3146
        %v3151 = vpack.c.b16 %v3149, %v3148
        %v3155 = vsel %vm639, %v3140, 0
        %3157 = vmatpush.bf16.msra.mxu0 0
        %3158 = vmatpush.bf16.msra.mxu0 0
        %3159 = vmatpush.bf16.msra.mxu0 0
        %3160 = vmatpush.bf16.msra.mxu0 0
        %3161 = vmatpush.bf16.msra.mxu0 0
        %3162 = vmatpush.bf16.msra.mxu0 0
        %3163 = vmatpush.bf16.msra.mxu0 %v3151
        %3164 = vmatpush.bf16.msra.mxu0 %v3150
        %3165 = vmatmul.bf16.gmra.mxu0 %v3155
        %v3166 = vpop.f32.mrf.mxu0
        %v3167 = vadd.f32 %v3141, %v3166
        %v3168 = vpop.f32.mrf.mxu0
        %3169 = vdwg.mxu0
        %v3170 = vadd.f32 %v2818, %v3167
        %v3171 = vsel %vm639, %v3170, 0.0
        %3172 = vadd.xlane.f32.xlu0 %v3171
        %v3173 = vpop.xlane.xlu0 %3172
        %v3174 = vmul.f32 %v3173, %v957
        %v3175 = vsub.f32 %v3170, %v3174
        %v3176 = vmul.f32 %v3175, %v3175
        %v3177 = vsel %vm639, %v3176, 0.0
        %3178 = vadd.xlane.f32.xlu0 %v3177
        %v3179 = vpop.xlane.xlu0 %3178
        %v3180 = vmul.f32 %v3179, %v957
        %v3181 = vadd.f32 %v3180, 1e-05
        %v3182 = vrsqrt.pop %v3181
        %v3183 = vmul.f32 %v3182, %v3181
        %v3184 = vmul.f32 %v3183, %v3182
        %v3185 = vmul.f32 0.5, %v3184
        %v3186 = vsub.f32 1.5, %v3185
        %v3187 = vmul.f32 %v3182, %v3186
        %vm3188 = vweird.f32 %v3181
        %vm3189 = vweird.f32 %v3182
        %vm3190 = vmor %vm3188, %vm3189
        %v3191 = vsel %vm3190, %v3182, %v3187
        %v3192 = vmul.f32 %v3175, %v3191
        %v3193 = vperm.slane %v2465, 5
        %v3194 = vmul.f32 %v3192, %v3193
        %v3195 = vperm.slane %v2465, 6
        %v3196 = vadd.f32 %v3194, %v3195
        %v3197 = vpack.c.bf16 %v3196, %v3196
        %v3199 = vperm.slane %v2472, 0
        %v3205 = vunpack.c.l.b16 %v2451
        %v3206 = vunpack.c.l.b16 %v2452
        %v3207 = vunpack.c.l.b16 %v2453
        %v3208 = vunpack.c.l.b16 %v2454
        %v3209 = vpack.c.b16 %v3206, %v3205
        %v3210 = vpack.c.b16 %v3208, %v3207
        %v3214 = vsel %vm639, %v3197, 0
        %3216 = vmatpush.bf16.msra.mxu0 0
        %3217 = vmatpush.bf16.msra.mxu0 0
        %3218 = vmatpush.bf16.msra.mxu0 0
        %3219 = vmatpush.bf16.msra.mxu0 0
        %3220 = vmatpush.bf16.msra.mxu0 0
        %3221 = vmatpush.bf16.msra.mxu0 0
        %3222 = vmatpush.bf16.msra.mxu0 %v3210
        %3223 = vmatpush.bf16.msra.mxu0 %v3209
        %3224 = vmatmul.bf16.gmra.mxu0 %v3214
        %v3225 = vpop.f32.mrf.mxu0
        %v3226 = vadd.f32 %v3199, %v3225
        %v3227 = vpop.f32.mrf.mxu0
        %3228 = vdwg.mxu0
        %v3229 = vmax.f32 %v3226, 0.0
        %v3230 = vpack.c.bf16 %v3229, %v3229
        %v3231 = vperm.slane %v2465, 7
        %v3240 = vunpack.c.l.b16 %v2456
        %v3241 = vunpack.c.l.b16 %v2457
        %v3242 = vunpack.c.l.b16 %v2458
        %v3243 = vunpack.c.l.b16 %v2459
        %v3244 = vunpack.c.l.b16 %v2460
        %v3245 = vunpack.c.l.b16 %v2461
        %v3246 = vunpack.c.l.b16 %v2462
        %v3247 = vunpack.c.l.b16 %v2463
        %v3248 = vpack.c.b16 %v3241, %v3240
        %v3249 = vpack.c.b16 %v3243, %v3242
        %v3250 = vpack.c.b16 %v3245, %v3244
        %v3251 = vpack.c.b16 %v3247, %v3246
        %v3257 = vsel %vm1040, %v3230, 0
        %3259 = vmatpush.bf16.msra.mxu0 0
        %3260 = vmatpush.bf16.msra.mxu0 0
        %3261 = vmatpush.bf16.msra.mxu0 0
        %3262 = vmatpush.bf16.msra.mxu0 0
        %3263 = vmatpush.bf16.msra.mxu0 %v3251
        %3264 = vmatpush.bf16.msra.mxu0 %v3250
        %3265 = vmatpush.bf16.msra.mxu0 %v3249
        %3266 = vmatpush.bf16.msra.mxu0 %v3248
        %3267 = vmatmul.bf16.gmra.mxu0 %v3257
        %v3268 = vpop.f32.mrf.mxu0
        %v3269 = vadd.f32 %v3231, %v3268
        %v3270 = vpop.f32.mrf.mxu0
        %3271 = vdwg.mxu0
        %v3272 = vadd.f32 %v3196, %v3269
        %v3273 = vsel %vm639, %v3272, 0.0
        %3274 = vadd.xlane.f32.xlu0 %v3273
        %v3275 = vpop.xlane.xlu0 %3274
        %v3276 = vmul.f32 %v3275, %v957
        %v3277 = vsub.f32 %v3272, %v3276
        %v3278 = vmul.f32 %v3277, %v3277
        %v3279 = vsel %vm639, %v3278, 0.0
        %3280 = vadd.xlane.f32.xlu0 %v3279
        %v3281 = vpop.xlane.xlu0 %3280
        %v3282 = vmul.f32 %v3281, %v957
        %v3283 = vadd.f32 %v3282, 1e-05
        %v3284 = vrsqrt.pop %v3283
        %v3285 = vmul.f32 %v3284, %v3283
        %v3286 = vmul.f32 %v3285, %v3284
        %v3287 = vmul.f32 0.5, %v3286
        %v3288 = vsub.f32 1.5, %v3287
        %v3289 = vmul.f32 %v3284, %v3288
        %vm3290 = vweird.f32 %v3283
        %vm3291 = vweird.f32 %v3284
        %vm3292 = vmor %vm3290, %vm3291
        %v3293 = vsel %vm3292, %v3284, %v3289
        %v3294 = vmul.f32 %v3277, %v3293
        %v3295 = vperm.slane %v2466, 0
        %v3296 = vmul.f32 %v3294, %v3295
        %v3297 = vperm.slane %v2466, 1
        %v3298 = vadd.f32 %v3296, %v3297
        %v3299 = vsel %vm639, %v3298, 0.0
        %3300 = vst [vmem:[%s593] sm:$0xff] %v3299
        %s3301 = sand.u32 %s445, 1
        %s3302 = scalar_lea.sflag [#allocation3], %s3301
        %s3303 = sand.u32 %s445, 1
        %s3304 = smul.addr %s3303, 8
        %s3305 = scalar_lea.vmem [#allocation2], %s3304
        // Predicated region
        $region97: #{_forward.1} parent=95 // pred_check
          %p3306 = pneg %p455
        $region98: #{_forward.1} parent=95 // pred_check_branch
          %3308 = sbr.rel (%p3306) target = $region100
        $region99: #{_forward.1} parent=95 // pred_region
          %3310 = vsyncadd %s3302, 0
          %s3311 = smul.addr %s33, 8
          %s3312 = scalar_lea.hbm %s19, %s3311
          %s3314 = sshll.u32 %s3305, 4
          %s3315 = int_to_ptr.vmem [resolvable:$true] %s3314
          %s3316 = sshll.u32 %s3312, 4
          %s3317 = int_to_ptr.hbm [resolvable:$true] %s3316
          %3319 = dma.vmem_to_hbm [thread:$0]  %s3315, 128, %s3317, %s3302
        $region100: #{_forward.1} parent=95 // pred_fallthru
          _
      $region96: #{_forward.1} parent=5 // pred_fallthru
        _
      %p3320 = scmp.le.s32.totalorder 2, %s28
      // Predicated region
      $region101: #{_forward.1} parent=5 // pred_check
        %p3321 = pneg %p3320
      $region102: #{_forward.1} parent=5 // pred_check_branch
        %3323 = sbr.rel (%p3321) target = $region104
      $region103: #{_forward.1} parent=5 // pred_region
        %s3324 = ssub.s32 %s28, 2
        // Predicated region
        $region105: #{_forward.1} parent=103 // pred_check
          %p3325 = pneg %p461
        $region106: #{_forward.1} parent=103 // pred_check_branch
          %3327 = sbr.rel (%p3325) target = $region108
        $region107: #{_forward.1} parent=103 // pred_region
          %s3328 = sand.u32 %s446, 1
          %s3329 = scalar_lea.sflag [#allocation3], %s3328
          %s3330 = sand.u32 %s446, 1
          %s3331 = smul.addr %s3330, 8
          %s3332 = scalar_lea.vmem [#allocation2], %s3331
          %3334 = dma.done %s3329, 128
        $region108: #{_forward.1} parent=103 // pred_fallthru
          _
      $region104: #{_forward.1} parent=5 // pred_fallthru
        _
    $region6: #{_forward.1} parent=1 // loop_footer
      %s32 = sadd.s32 1, %s28
    $region7: #{_forward.1} parent=1 // loop_footer_branch
      %27 = sbr.rel target = $region3
    $region8: #{_forward.1} parent=1 // loop_exit
      _
    %3335 = vsyncpa [#allocation3], 1
    %s3336 = scalar_lea.sflag [#allocation3], 1
    %3337 = vsyncpa %s3336, 1

// kernel: _forward.1
$region0: #{_forward.1}
  #allocation0 [shape = 'u32[]', space=smem, size = 0x4, offset = 0x4, fixed_abs, tag = 'smem constant byte address 0x4 - core index']
  #allocation1 [shape = 'u32[72,128]{1,0:T(1,128)}', space=vmem, size = 0x9000, scoped, tag = 'internal scratch']
  %s0 = inlined_call_operand.vmem [shape: f32[2,8,32], index: 0, kind: input, shape index: {}]
  %s1 = inlined_call_operand.vmem [shape: bf16[2,32,96], index: 1, kind: input, shape index: {}]
  %s2 = inlined_call_operand.vmem [shape: bf16[2,32,32], index: 2, kind: input, shape index: {}]
  %s3 = inlined_call_operand.vmem [shape: bf16[2,32,64], index: 3, kind: input, shape index: {}]
  %s4 = inlined_call_operand.vmem [shape: bf16[2,64,32], index: 4, kind: input, shape index: {}]
  %s5 = inlined_call_operand.vmem [shape: f32[2,6,32], index: 5, kind: input, shape index: {}]
  %s6 = inlined_call_operand.vmem [shape: f32[2,1,96], index: 6, kind: input, shape index: {}]
  %s7 = inlined_call_operand.vmem [shape: f32[2,1,64], index: 7, kind: input, shape index: {}]
  %s8 = inlined_call_operand.vmem [shape: bf16[2,32,96], index: 8, kind: input, shape index: {}]
  %s9 = inlined_call_operand.vmem [shape: bf16[2,32,32], index: 9, kind: input, shape index: {}]
  %s10 = inlined_call_operand.vmem [shape: bf16[2,32,32], index: 10, kind: input, shape index: {}]
  %s11 = inlined_call_operand.vmem [shape: bf16[2,32,64], index: 11, kind: input, shape index: {}]
  %s12 = inlined_call_operand.vmem [shape: bf16[2,32,32], index: 12, kind: input, shape index: {}]
  %s13 = inlined_call_operand.vmem [shape: bf16[2,32,64], index: 13, kind: input, shape index: {}]
  %s14 = inlined_call_operand.vmem [shape: bf16[2,64,32], index: 14, kind: input, shape index: {}]
  %s15 = inlined_call_operand.vmem [shape: f32[2,10,32], index: 15, kind: input, shape index: {}]
  %s16 = inlined_call_operand.vmem [shape: f32[2,1,96], index: 16, kind: input, shape index: {}]
  %s17 = inlined_call_operand.vmem [shape: f32[2,1,64], index: 17, kind: input, shape index: {}]
  %s18 = inlined_call_operand.vmem [shape: f32[2,1,64], index: 18, kind: input, shape index: {}]
  %s19 = inlined_call_operand.hbm [shape: f32[2,8,128], index: 19, kind: output, shape index: {}]
  %s20 = sld [smem:[#allocation0]]
  $region109: #{_forward.1} parent=0
    _
  %s22 = ssub.s32 1, %s20
  %s23 = scalar_select 0, %s22, %s20
  $region1: #{_forward.1} parent=0
    #allocation2 [shape = 'u8[8192]{0}', space=vmem, size = 0x2000, scoped, tag = 'output window, operand 0']
    #allocation3 [shape = 's32[2]{0}', space=sflag, size = 0x8, scoped, tag = 'scoped memory for _forward.1']
    %24 = vsyncpa [#allocation3], 0
    %s25 = scalar_lea.sflag [#allocation3], 1
    %26 = vsyncpa %s25, 0
    loop: start=0, step=1, limit=4
    $region2: #{_forward.1} parent=1 // loop_pre_header
      _
    $region3: #{_forward.1} parent=1 // loop_header
      %s28 = sphi 0, %s32
      %p29 = scmp.ge.s32.totalorder %s28, 4
      %s38 = sphi 0, %s40
      %s41 = sphi 0, %s38
      %s42 = sphi 0, %s41
      %s58 = sphi 0, %s42
      %s62 = sphi 0, %s62
      %s64 = sphi 0, %s62
      %s65 = sphi 0, %s64
      %s79 = sphi 0, %s65
      %s83 = sphi 0, %s83
      %s85 = sphi 0, %s83
      %s86 = sphi 0, %s85
      %s100 = sphi 0, %s86
      %s104 = sphi 0, %s104
      %s106 = sphi 0, %s104
      %s107 = sphi 0, %s106
      %s121 = sphi 0, %s107
      %s125 = sphi 0, %s125
      %s127 = sphi 0, %s125
      %s128 = sphi 0, %s127
      %s142 = sphi 0, %s128
      %s146 = sphi 0, %s146
      %s148 = sphi 0, %s146
      %s149 = sphi 0, %s148
      %s163 = sphi 0, %s149
      %s167 = sphi 0, %s167
      %s169 = sphi 0, %s167
      %s170 = sphi 0, %s169
      %s184 = sphi 0, %s170
      %s188 = sphi 0, %s188
      %s190 = sphi 0, %s188
      %s191 = sphi 0, %s190
      %s205 = sphi 0, %s191
      %s209 = sphi 0, %s209
      %s211 = sphi 0, %s209
      %s212 = sphi 0, %s211
      %s226 = sphi 0, %s212
      %s230 = sphi 0, %s230
      %s232 = sphi 0, %s230
      %s233 = sphi 0, %s232
      %s247 = sphi 0, %s233
      %s251 = sphi 0, %s251
      %s253 = sphi 0, %s251
      %s254 = sphi 0, %s253
      %s268 = sphi 0, %s254
      %s272 = sphi 0, %s272
      %s274 = sphi 0, %s272
      %s275 = sphi 0, %s274
      %s289 = sphi 0, %s275
      %s293 = sphi 0, %s293
      %s295 = sphi 0, %s293
      %s296 = sphi 0, %s295
      %s310 = sphi 0, %s296
      %s314 = sphi 0, %s314
      %s316 = sphi 0, %s314
      %s317 = sphi 0, %s316
      %s331 = sphi 0, %s317
      %s335 = sphi 0, %s335
      %s337 = sphi 0, %s335
      %s338 = sphi 0, %s337
      %s352 = sphi 0, %s338
      %s356 = sphi 0, %s356
      %s358 = sphi 0, %s356
      %s359 = sphi 0, %s358
      %s373 = sphi 0, %s359
      %s377 = sphi 0, %s377
      %s379 = sphi 0, %s377
      %s380 = sphi 0, %s379
      %s394 = sphi 0, %s380
      %s398 = sphi 0, %s398
      %s400 = sphi 0, %s398
      %s401 = sphi 0, %s400
      %s415 = sphi 0, %s401
      %s419 = sphi 0, %s419
      %s421 = sphi 0, %s419
      %s422 = sphi 0, %s421
      %s436 = sphi 0, %s422
      %s442 = sphi 0, %s444
      %s445 = sphi 0, %s442
      %s446 = sphi 0, %s445
      %s462 = sphi 0, %s446
    $region4: #{_forward.1} parent=1 // loop_header_branch
      %31 = sbr.rel (%p29) target = $region8
    $region5: #{_forward.1} parent=1 // loop_body
      %s33 = ssub.s32 %s28, 1
      %s34 = ssub.s32 %s28, 2
      %s35 = sadd.s32 %s28, 1
      %s36 = ssub.s32 %s28, %s35
      %p37 = scmp.eq.s32.totalorder %s36, 0
      %s39 = sadd.s32 %s38, 1
      %s40 = scalar_select %p37, %s38, %s39
      %p43 = pneg %p37
      %p44 = scmp.eq.s32.totalorder %s28, 1
      %p45 = por %p43, %p44
      %p46 = scmp.ne.s32.totalorder %s38, %s41
      %p47 = scmp.eq.s32.totalorder %s28, 0
      %p48 = por %p46, %p47
      %p49 = scmp.ne.s32.totalorder %s38, %s41
      %p50 = scmp.eq.s32.totalorder %s33, 1
      %p51 = por %p49, %p50
      %p52 = scmp.ne.s32.totalorder %s41, %s42
      %p53 = scmp.eq.s32.totalorder %s33, 0
      %p54 = por %p52, %p53
      %p55 = scmp.ne.s32.totalorder %s41, %s42
      %p56 = scmp.eq.s32.totalorder %s34, 1
      %p57 = por %p55, %p56
      %p59 = scmp.ne.s32.totalorder %s42, %s58
      %p60 = scmp.eq.s32.totalorder %s34, 0
      %p61 = por %p59, %p60
      %s63 = sadd.s32 %s62, 1
      %p66 = scmp.eq.s32.totalorder %s28, 1
      %p67 = scmp.ne.s32.totalorder %s62, %s64
      %p68 = scmp.eq.s32.totalorder %s28, 0
      %p69 = por %p67, %p68
      %p70 = scmp.ne.s32.totalorder %s62, %s64
      %p71 = scmp.eq.s32.totalorder %s33, 1
      %p72 = por %p70, %p71
      %p73 = scmp.ne.s32.totalorder %s64, %s65
      %p74 = scmp.eq.s32.totalorder %s33, 0
      %p75 = por %p73, %p74
      %p76 = scmp.ne.s32.totalorder %s64, %s65
      %p77 = scmp.eq.s32.totalorder %s34, 1
      %p78 = por %p76, %p77
      %p80 = scmp.ne.s32.totalorder %s65, %s79
      %p81 = scmp.eq.s32.totalorder %s34, 0
      %p82 = por %p80, %p81
      %s84 = sadd.s32 %s83, 1
      %p87 = scmp.eq.s32.totalorder %s28, 1
      %p88 = scmp.ne.s32.totalorder %s83, %s85
      %p89 = scmp.eq.s32.totalorder %s28, 0
      %p90 = por %p88, %p89
      %p91 = scmp.ne.s32.totalorder %s83, %s85
      %p92 = scmp.eq.s32.totalorder %s33, 1
      %p93 = por %p91, %p92
      %p94 = scmp.ne.s32.totalorder %s85, %s86
      %p95 = scmp.eq.s32.totalorder %s33, 0
      %p96 = por %p94, %p95
      %p97 = scmp.ne.s32.totalorder %s85, %s86
      %p98 = scmp.eq.s32.totalorder %s34, 1
      %p99 = por %p97, %p98
      %p101 = scmp.ne.s32.totalorder %s86, %s100
      %p102 = scmp.eq.s32.totalorder %s34, 0
      %p103 = por %p101, %p102
      %s105 = sadd.s32 %s104, 1
      %p108 = scmp.eq.s32.totalorder %s28, 1
      %p109 = scmp.ne.s32.totalorder %s104, %s106
      %p110 = scmp.eq.s32.totalorder %s28, 0
      %p111 = por %p109, %p110
      %p112 = scmp.ne.s32.totalorder %s104, %s106
      %p113 = scmp.eq.s32.totalorder %s33, 1
      %p114 = por %p112, %p113
      %p115 = scmp.ne.s32.totalorder %s106, %s107
      %p116 = scmp.eq.s32.totalorder %s33, 0
      %p117 = por %p115, %p116
      %p118 = scmp.ne.s32.totalorder %s106, %s107
      %p119 = scmp.eq.s32.totalorder %s34, 1
      %p120 = por %p118, %p119
      %p122 = scmp.ne.s32.totalorder %s107, %s121
      %p123 = scmp.eq.s32.totalorder %s34, 0
      %p124 = por %p122, %p123
      %s126 = sadd.s32 %s125, 1
      %p129 = scmp.eq.s32.totalorder %s28, 1
      %p130 = scmp.ne.s32.totalorder %s125, %s127
      %p131 = scmp.eq.s32.totalorder %s28, 0
      %p132 = por %p130, %p131
      %p133 = scmp.ne.s32.totalorder %s125, %s127
      %p134 = scmp.eq.s32.totalorder %s33, 1
      %p135 = por %p133, %p134
      %p136 = scmp.ne.s32.totalorder %s127, %s128
      %p137 = scmp.eq.s32.totalorder %s33, 0
      %p138 = por %p136, %p137
      %p139 = scmp.ne.s32.totalorder %s127, %s128
      %p140 = scmp.eq.s32.totalorder %s34, 1
      %p141 = por %p139, %p140
      %p143 = scmp.ne.s32.totalorder %s128, %s142
      %p144 = scmp.eq.s32.totalorder %s34, 0
      %p145 = por %p143, %p144
      %s147 = sadd.s32 %s146, 1
      %p150 = scmp.eq.s32.totalorder %s28, 1
      %p151 = scmp.ne.s32.totalorder %s146, %s148
      %p152 = scmp.eq.s32.totalorder %s28, 0
      %p153 = por %p151, %p152
      %p154 = scmp.ne.s32.totalorder %s146, %s148
      %p155 = scmp.eq.s32.totalorder %s33, 1
      %p156 = por %p154, %p155
      %p157 = scmp.ne.s32.totalorder %s148, %s149
      %p158 = scmp.eq.s32.totalorder %s33, 0
      %p159 = por %p157, %p158
      %p160 = scmp.ne.s32.totalorder %s148, %s149
      %p161 = scmp.eq.s32.totalorder %s34, 1
      %p162 = por %p160, %p161
      %p164 = scmp.ne.s32.totalorder %s149, %s163
      %p165 = scmp.eq.s32.totalorder %s34, 0
      %p166 = por %p164, %p165
      %s168 = sadd.s32 %s167, 1
      %p171 = scmp.eq.s32.totalorder %s28, 1
      %p172 = scmp.ne.s32.totalorder %s167, %s169
      %p173 = scmp.eq.s32.totalorder %s28, 0
      %p174 = por %p172, %p173
      %p175 = scmp.ne.s32.totalorder %s167, %s169
      %p176 = scmp.eq.s32.totalorder %s33, 1
      %p177 = por %p175, %p176
      %p178 = scmp.ne.s32.totalorder %s169, %s170
      %p179 = scmp.eq.s32.totalorder %s33, 0
      %p180 = por %p178, %p179
      %p181 = scmp.ne.s32.totalorder %s169, %s170
      %p182 = scmp.eq.s32.totalorder %s34, 1
      %p183 = por %p181, %p182
      %p185 = scmp.ne.s32.totalorder %s170, %s184
      %p186 = scmp.eq.s32.totalorder %s34, 0
      %p187 = por %p185, %p186
      %s189 = sadd.s32 %s188, 1
      %p192 = scmp.eq.s32.totalorder %s28, 1
      %p193 = scmp.ne.s32.totalorder %s188, %s190
      %p194 = scmp.eq.s32.totalorder %s28, 0
      %p195 = por %p193, %p194
      %p196 = scmp.ne.s32.totalorder %s188, %s190
      %p197 = scmp.eq.s32.totalorder %s33, 1
      %p198 = por %p196, %p197
      %p199 = scmp.ne.s32.totalorder %s190, %s191
      %p200 = scmp.eq.s32.totalorder %s33, 0
      %p201 = por %p199, %p200
      %p202 = scmp.ne.s32.totalorder %s190, %s191
      %p203 = scmp.eq.s32.totalorder %s34, 1
      %p204 = por %p202, %p203
      %p206 = scmp.ne.s32.totalorder %s191, %s205
      %p207 = scmp.eq.s32.totalorder %s34, 0
      %p208 = por %p206, %p207
      %s210 = sadd.s32 %s209, 1
      %p213 = scmp.eq.s32.totalorder %s28, 1
      %p214 = scmp.ne.s32.totalorder %s209, %s211
      %p215 = scmp.eq.s32.totalorder %s28, 0
      %p216 = por %p214, %p215
      %p217 = scmp.ne.s32.totalorder %s209, %s211
      %p218 = scmp.eq.s32.totalorder %s33, 1
      %p219 = por %p217, %p218
      %p220 = scmp.ne.s32.totalorder %s211, %s212
      %p221 = scmp.eq.s32.totalorder %s33, 0
      %p222 = por %p220, %p221
      %p223 = scmp.ne.s32.totalorder %s211, %s212
      %p224 = scmp.eq.s32.totalorder %s34, 1
      %p225 = por %p223, %p224
      %p227 = scmp.ne.s32.totalorder %s212, %s226
      %p228 = scmp.eq.s32.totalorder %s34, 0
      %p229 = por %p227, %p228
      %s231 = sadd.s32 %s230, 1
      %p234 = scmp.eq.s32.totalorder %s28, 1
      %p235 = scmp.ne.s32.totalorder %s230, %s232
      %p236 = scmp.eq.s32.totalorder %s28, 0
      %p237 = por %p235, %p236
      %p238 = scmp.ne.s32.totalorder %s230, %s232
      %p239 = scmp.eq.s32.totalorder %s33, 1
      %p240 = por %p238, %p239
      %p241 = scmp.ne.s32.totalorder %s232, %s233
      %p242 = scmp.eq.s32.totalorder %s33, 0
      %p243 = por %p241, %p242
      %p244 = scmp.ne.s32.totalorder %s232, %s233
      %p245 = scmp.eq.s32.totalorder %s34, 1
      %p246 = por %p244, %p245
      %p248 = scmp.ne.s32.totalorder %s233, %s247
      %p249 = scmp.eq.s32.totalorder %s34, 0
      %p250 = por %p248, %p249
      %s252 = sadd.s32 %s251, 1
      %p255 = scmp.eq.s32.totalorder %s28, 1
      %p256 = scmp.ne.s32.totalorder %s251, %s253
      %p257 = scmp.eq.s32.totalorder %s28, 0
      %p258 = por %p256, %p257
      %p259 = scmp.ne.s32.totalorder %s251, %s253
      %p260 = scmp.eq.s32.totalorder %s33, 1
      %p261 = por %p259, %p260
      %p262 = scmp.ne.s32.totalorder %s253, %s254
      %p263 = scmp.eq.s32.totalorder %s33, 0
      %p264 = por %p262, %p263
      %p265 = scmp.ne.s32.totalorder %s253, %s254
      %p266 = scmp.eq.s32.totalorder %s34, 1
      %p267 = por %p265, %p266
      %p269 = scmp.ne.s32.totalorder %s254, %s268
      %p270 = scmp.eq.s32.totalorder %s34, 0
      %p271 = por %p269, %p270
      %s273 = sadd.s32 %s272, 1
      %p276 = scmp.eq.s32.totalorder %s28, 1
      %p277 = scmp.ne.s32.totalorder %s272, %s274
      %p278 = scmp.eq.s32.totalorder %s28, 0
      %p279 = por %p277, %p278
      %p280 = scmp.ne.s32.totalorder %s272, %s274
      %p281 = scmp.eq.s32.totalorder %s33, 1
      %p282 = por %p280, %p281
      %p283 = scmp.ne.s32.totalorder %s274, %s275
      %p284 = scmp.eq.s32.totalorder %s33, 0
      %p285 = por %p283, %p284
      %p286 = scmp.ne.s32.totalorder %s274, %s275
      %p287 = scmp.eq.s32.totalorder %s34, 1
      %p288 = por %p286, %p287
      %p290 = scmp.ne.s32.totalorder %s275, %s289
      %p291 = scmp.eq.s32.totalorder %s34, 0
      %p292 = por %p290, %p291
      %s294 = sadd.s32 %s293, 1
      %p297 = scmp.eq.s32.totalorder %s28, 1
      %p298 = scmp.ne.s32.totalorder %s293, %s295
      %p299 = scmp.eq.s32.totalorder %s28, 0
      %p300 = por %p298, %p299
      %p301 = scmp.ne.s32.totalorder %s293, %s295
      %p302 = scmp.eq.s32.totalorder %s33, 1
      %p303 = por %p301, %p302
      %p304 = scmp.ne.s32.totalorder %s295, %s296
      %p305 = scmp.eq.s32.totalorder %s33, 0
      %p306 = por %p304, %p305
      %p307 = scmp.ne.s32.totalorder %s295, %s296
      %p308 = scmp.eq.s32.totalorder %s34, 1
      %p309 = por %p307, %p308
      %p311 = scmp.ne.s32.totalorder %s296, %s310
      %p312 = scmp.eq.s32.totalorder %s34, 0
      %p313 = por %p311, %p312
      %s315 = sadd.s32 %s314, 1
      %p318 = scmp.eq.s32.totalorder %s28, 1
      %p319 = scmp.ne.s32.totalorder %s314, %s316
      %p320 = scmp.eq.s32.totalorder %s28, 0
      %p321 = por %p319, %p320
      %p322 = scmp.ne.s32.totalorder %s314, %s316
      %p323 = scmp.eq.s32.totalorder %s33, 1
      %p324 = por %p322, %p323
      %p325 = scmp.ne.s32.totalorder %s316, %s317
      %p326 = scmp.eq.s32.totalorder %s33, 0
      %p327 = por %p325, %p326
      %p328 = scmp.ne.s32.totalorder %s316, %s317
      %p329 = scmp.eq.s32.totalorder %s34, 1
      %p330 = por %p328, %p329
      %p332 = scmp.ne.s32.totalorder %s317, %s331
      %p333 = scmp.eq.s32.totalorder %s34, 0
      %p334 = por %p332, %p333
      %s336 = sadd.s32 %s335, 1
      %p339 = scmp.eq.s32.totalorder %s28, 1
      %p340 = scmp.ne.s32.totalorder %s335, %s337
      %p341 = scmp.eq.s32.totalorder %s28, 0
      %p342 = por %p340, %p341
      %p343 = scmp.ne.s32.totalorder %s335, %s337
      %p344 = scmp.eq.s32.totalorder %s33, 1
      %p345 = por %p343, %p344
      %p346 = scmp.ne.s32.totalorder %s337, %s338
      %p347 = scmp.eq.s32.totalorder %s33, 0
      %p348 = por %p346, %p347
      %p349 = scmp.ne.s32.totalorder %s337, %s338
      %p350 = scmp.eq.s32.totalorder %s34, 1
      %p351 = por %p349, %p350
      %p353 = scmp.ne.s32.totalorder %s338, %s352
      %p354 = scmp.eq.s32.totalorder %s34, 0
      %p355 = por %p353, %p354
      %s357 = sadd.s32 %s356, 1
      %p360 = scmp.eq.s32.totalorder %s28, 1
      %p361 = scmp.ne.s32.totalorder %s356, %s358
      %p362 = scmp.eq.s32.totalorder %s28, 0
      %p363 = por %p361, %p362
      %p364 = scmp.ne.s32.totalorder %s356, %s358
      %p365 = scmp.eq.s32.totalorder %s33, 1
      %p366 = por %p364, %p365
      %p367 = scmp.ne.s32.totalorder %s358, %s359
      %p368 = scmp.eq.s32.totalorder %s33, 0
      %p369 = por %p367, %p368
      %p370 = scmp.ne.s32.totalorder %s358, %s359
      %p371 = scmp.eq.s32.totalorder %s34, 1
      %p372 = por %p370, %p371
      %p374 = scmp.ne.s32.totalorder %s359, %s373
      %p375 = scmp.eq.s32.totalorder %s34, 0
      %p376 = por %p374, %p375
      %s378 = sadd.s32 %s377, 1
      %p381 = scmp.eq.s32.totalorder %s28, 1
      %p382 = scmp.ne.s32.totalorder %s377, %s379
      %p383 = scmp.eq.s32.totalorder %s28, 0
      %p384 = por %p382, %p383
      %p385 = scmp.ne.s32.totalorder %s377, %s379
      %p386 = scmp.eq.s32.totalorder %s33, 1
      %p387 = por %p385, %p386
      %p388 = scmp.ne.s32.totalorder %s379, %s380
      %p389 = scmp.eq.s32.totalorder %s33, 0
      %p390 = por %p388, %p389
      %p391 = scmp.ne.s32.totalorder %s379, %s380
      %p392 = scmp.eq.s32.totalorder %s34, 1
      %p393 = por %p391, %p392
      %p395 = scmp.ne.s32.totalorder %s380, %s394
      %p396 = scmp.eq.s32.totalorder %s34, 0
      %p397 = por %p395, %p396
      %s399 = sadd.s32 %s398, 1
      %p402 = scmp.eq.s32.totalorder %s28, 1
      %p403 = scmp.ne.s32.totalorder %s398, %s400
      %p404 = scmp.eq.s32.totalorder %s28, 0
      %p405 = por %p403, %p404
      %p406 = scmp.ne.s32.totalorder %s398, %s400
      %p407 = scmp.eq.s32.totalorder %s33, 1
      %p408 = por %p406, %p407
      %p409 = scmp.ne.s32.totalorder %s400, %s401
      %p410 = scmp.eq.s32.totalorder %s33, 0
      %p411 = por %p409, %p410
      %p412 = scmp.ne.s32.totalorder %s400, %s401
      %p413 = scmp.eq.s32.totalorder %s34, 1
      %p414 = por %p412, %p413
      %p416 = scmp.ne.s32.totalorder %s401, %s415
      %p417 = scmp.eq.s32.totalorder %s34, 0
      %p418 = por %p416, %p417
      %s420 = sadd.s32 %s419, 1
      %p423 = scmp.eq.s32.totalorder %s28, 1
      %p424 = scmp.ne.s32.totalorder %s419, %s421
      %p425 = scmp.eq.s32.totalorder %s28, 0
      %p426 = por %p424, %p425
      %p427 = scmp.ne.s32.totalorder %s419, %s421
      %p428 = scmp.eq.s32.totalorder %s33, 1
      %p429 = por %p427, %p428
      %p430 = scmp.ne.s32.totalorder %s421, %s422
      %p431 = scmp.eq.s32.totalorder %s33, 0
      %p432 = por %p430, %p431
      %p433 = scmp.ne.s32.totalorder %s421, %s422
      %p434 = scmp.eq.s32.totalorder %s34, 1
      %p435 = por %p433, %p434
      %p437 = scmp.ne.s32.totalorder %s422, %s436
      %p438 = scmp.eq.s32.totalorder %s34, 0
      %p439 = por %p437, %p438
      %s440 = ssub.s32 %s28, %s35
      %p441 = scmp.eq.s32.totalorder %s440, 0
      %s443 = sadd.s32 %s442, 1
      %s444 = scalar_select %p441, %s442, %s443
      %p447 = pneg %p441
      %p448 = scmp.eq.s32.totalorder %s28, 1
      %p449 = por %p447, %p448
      %p450 = scmp.ne.s32.totalorder %s442, %s445
      %p451 = scmp.eq.s32.totalorder %s28, 0
      %p452 = por %p450, %p451
      %p453 = scmp.ne.s32.totalorder %s442, %s445
      %p454 = scmp.eq.s32.totalorder %s33, 1
      %p455 = por %p453, %p454
      %p456 = scmp.ne.s32.totalorder %s445, %s446
      %p457 = scmp.eq.s32.totalorder %s33, 0
      %p458 = por %p456, %p457
      %p459 = scmp.ne.s32.totalorder %s445, %s446
      %p460 = scmp.eq.s32.totalorder %s34, 1
      %p461 = por %p459, %p460
      %p463 = scmp.ne.s32.totalorder %s446, %s462
      %p464 = scmp.eq.s32.totalorder %s34, 0
      %p465 = por %p463, %p464
      %p466 = scmp.le.s32.totalorder 1, %s28
      %p467 = scmp.lt.s32.totalorder %s28, 3
      %p468 = pnand %p466, %p467
      %p469 = pneg %p468
      // Predicated region
      $region9: #{_forward.1} parent=5 // pred_check
        _
      $region10: #{_forward.1} parent=5 // pred_check_branch
        %471 = sbr.rel (%p468) target = $region12
      $region11: #{_forward.1} parent=5 // pred_region
        %s472 = ssub.s32 %s28, 1
        // Predicated region
        $region13: #{_forward.1} parent=11 // pred_check
          %p473 = pneg %p75
        $region14: #{_forward.1} parent=11 // pred_check_branch
          %475 = sbr.rel (%p473) target = $region16
        $region15: #{_forward.1} parent=11 // pred_region
          _
        $region16: #{_forward.1} parent=11 // pred_fallthru
          _
        // Predicated region
        $region17: #{_forward.1} parent=11 // pred_check
          %p476 = pneg %p96
        $region18: #{_forward.1} parent=11 // pred_check_branch
          %478 = sbr.rel (%p476) target = $region20
        $region19: #{_forward.1} parent=11 // pred_region
          _
        $region20: #{_forward.1} parent=11 // pred_fallthru
          _
        // Predicated region
        $region21: #{_forward.1} parent=11 // pred_check
          %p479 = pneg %p117
        $region22: #{_forward.1} parent=11 // pred_check_branch
          %481 = sbr.rel (%p479) target = $region24
        $region23: #{_forward.1} parent=11 // pred_region
          _
        $region24: #{_forward.1} parent=11 // pred_fallthru
          _
        // Predicated region
        $region25: #{_forward.1} parent=11 // pred_check
          %p482 = pneg %p138
        $region26: #{_forward.1} parent=11 // pred_check_branch
          %484 = sbr.rel (%p482) target = $region28
        $region27: #{_forward.1} parent=11 // pred_region
          _
        $region28: #{_forward.1} parent=11 // pred_fallthru
          _
        // Predicated region
        $region29: #{_forward.1} parent=11 // pred_check
          %p485 = pneg %p159
        $region30: #{_forward.1} parent=11 // pred_check_branch
          %487 = sbr.rel (%p485) target = $region32
        $region31: #{_forward.1} parent=11 // pred_region
          _
        $region32: #{_forward.1} parent=11 // pred_fallthru
          _
        // Predicated region
        $region33: #{_forward.1} parent=11 // pred_check
          %p488 = pneg %p180
        $region34: #{_forward.1} parent=11 // pred_check_branch
          %490 = sbr.rel (%p488) target = $region36
        $region35: #{_forward.1} parent=11 // pred_region
          _
        $region36: #{_forward.1} parent=11 // pred_fallthru
          _
        // Predicated region
        $region37: #{_forward.1} parent=11 // pred_check
          %p491 = pneg %p201
        $region38: #{_forward.1} parent=11 // pred_check_branch
          %493 = sbr.rel (%p491) target = $region40
        $region39: #{_forward.1} parent=11 // pred_region
          _
        $region40: #{_forward.1} parent=11 // pred_fallthru
          _
        // Predicated region
        $region41: #{_forward.1} parent=11 // pred_check
          %p494 = pneg %p222
        $region42: #{_forward.1} parent=11 // pred_check_branch
          %496 = sbr.rel (%p494) target = $region44
        $region43: #{_forward.1} parent=11 // pred_region
          _
        $region44: #{_forward.1} parent=11 // pred_fallthru
          _
        // Predicated region
        $region45: #{_forward.1} parent=11 // pred_check
          %p497 = pneg %p243
        $region46: #{_forward.1} parent=11 // pred_check_branch
          %499 = sbr.rel (%p497) target = $region48
        $region47: #{_forward.1} parent=11 // pred_region
          _
        $region48: #{_forward.1} parent=11 // pred_fallthru
          _
        // Predicated region
        $region49: #{_forward.1} parent=11 // pred_check
          %p500 = pneg %p264
        $region50: #{_forward.1} parent=11 // pred_check_branch
          %502 = sbr.rel (%p500) target = $region52
        $region51: #{_forward.1} parent=11 // pred_region
          _
        $region52: #{_forward.1} parent=11 // pred_fallthru
          _
        // Predicated region
        $region53: #{_forward.1} parent=11 // pred_check
          %p503 = pneg %p285
        $region54: #{_forward.1} parent=11 // pred_check_branch
          %505 = sbr.rel (%p503) target = $region56
        $region55: #{_forward.1} parent=11 // pred_region
          _
        $region56: #{_forward.1} parent=11 // pred_fallthru
          _
        // Predicated region
        $region57: #{_forward.1} parent=11 // pred_check
          %p506 = pneg %p306
        $region58: #{_forward.1} parent=11 // pred_check_branch
          %508 = sbr.rel (%p506) target = $region60
        $region59: #{_forward.1} parent=11 // pred_region
          _
        $region60: #{_forward.1} parent=11 // pred_fallthru
          _
        // Predicated region
        $region61: #{_forward.1} parent=11 // pred_check
          %p509 = pneg %p327
        $region62: #{_forward.1} parent=11 // pred_check_branch
          %511 = sbr.rel (%p509) target = $region64
        $region63: #{_forward.1} parent=11 // pred_region
          _
        $region64: #{_forward.1} parent=11 // pred_fallthru
          _
        // Predicated region
        $region65: #{_forward.1} parent=11 // pred_check
          %p512 = pneg %p348
        $region66: #{_forward.1} parent=11 // pred_check_branch
          %514 = sbr.rel (%p512) target = $region68
        $region67: #{_forward.1} parent=11 // pred_region
          _
        $region68: #{_forward.1} parent=11 // pred_fallthru
          _
        // Predicated region
        $region69: #{_forward.1} parent=11 // pred_check
          %p515 = pneg %p369
        $region70: #{_forward.1} parent=11 // pred_check_branch
          %517 = sbr.rel (%p515) target = $region72
        $region71: #{_forward.1} parent=11 // pred_region
          _
        $region72: #{_forward.1} parent=11 // pred_fallthru
          _
        // Predicated region
        $region73: #{_forward.1} parent=11 // pred_check
          %p518 = pneg %p390
        $region74: #{_forward.1} parent=11 // pred_check_branch
          %520 = sbr.rel (%p518) target = $region76
        $region75: #{_forward.1} parent=11 // pred_region
          _
        $region76: #{_forward.1} parent=11 // pred_fallthru
          _
        // Predicated region
        $region77: #{_forward.1} parent=11 // pred_check
          %p521 = pneg %p411
        $region78: #{_forward.1} parent=11 // pred_check_branch
          %523 = sbr.rel (%p521) target = $region80
        $region79: #{_forward.1} parent=11 // pred_region
          _
        $region80: #{_forward.1} parent=11 // pred_fallthru
          _
        // Predicated region
        $region81: #{_forward.1} parent=11 // pred_check
          %p524 = pneg %p432
        $region82: #{_forward.1} parent=11 // pred_check_branch
          %526 = sbr.rel (%p524) target = $region84
        $region83: #{_forward.1} parent=11 // pred_region
          _
        $region84: #{_forward.1} parent=11 // pred_fallthru
          _
      $region12: #{_forward.1} parent=5 // pred_fallthru
        _
      %p527 = scmp.lt.s32.totalorder %s28, 2
      // Predicated region
      $region85: #{_forward.1} parent=5 // pred_check
        %p528 = pneg %p527
      $region86: #{_forward.1} parent=5 // pred_check_branch
        %530 = sbr.rel (%p528) target = $region88
      $region87: #{_forward.1} parent=5 // pred_region
        // Predicated region
        $region89: #{_forward.1} parent=87 // pred_check
          %p531 = pneg %p48
        $region90: #{_forward.1} parent=87 // pred_check_branch
          %533 = sbr.rel (%p531) target = $region92
        $region91: #{_forward.1} parent=87 // pred_region
          %p534 = scmp.lt.s32.totalorder %s28, 1
          %s535 = scalar_select %p534, %s28, 1
          %s536 = smul.addr %s535, 8
          %s537 = scalar_lea.vmem %s0, %s536
        $region92: #{_forward.1} parent=87 // pred_fallthru
          _
      $region88: #{_forward.1} parent=5 // pred_fallthru
        _
      %p538 = scmp.le.s32.totalorder 1, %s28
      %p539 = scmp.lt.s32.totalorder %s28, 3
      %p540 = pnand %p538, %p539
      %p541 = pneg %p540
      // Predicated region
      $region93: #{_forward.1} parent=5 // pred_check
        _
      $region94: #{_forward.1} parent=5 // pred_check_branch
        %543 = sbr.rel (%p540) target = $region96
      $region95: #{_forward.1} parent=5 // pred_region
        %s544 = ssub.s32 %s28, 1
        %p545 = scmp.lt.s32.totalorder %s33, 1
        %s546 = scalar_select %p545, %s33, 1
        %s547 = smul.addr %s546, 8
        %s548 = scalar_lea.vmem %s0, %s547
        %p549 = pneg %p54
        %p550 = pneg %p51
        %p551 = pneg %p75
        %p552 = pneg %p72
        %p553 = pneg %p96
        %p554 = pneg %p93
        %p555 = pneg %p117
        %p556 = pneg %p114
        %p557 = pneg %p138
        %p558 = pneg %p135
        %p559 = pneg %p159
        %p560 = pneg %p156
        %p561 = pneg %p180
        %p562 = pneg %p177
        %p563 = pneg %p201
        %p564 = pneg %p198
        %p565 = pneg %p222
        %p566 = pneg %p219
        %p567 = pneg %p243
        %p568 = pneg %p240
        %p569 = pneg %p264
        %p570 = pneg %p261
        %p571 = pneg %p285
        %p572 = pneg %p282
        %p573 = pneg %p306
        %p574 = pneg %p303
        %p575 = pneg %p327
        %p576 = pneg %p324
        %p577 = pneg %p348
        %p578 = pneg %p345
        %p579 = pneg %p369
        %p580 = pneg %p366
        %p581 = pneg %p390
        %p582 = pneg %p387
        %p583 = pneg %p411
        %p584 = pneg %p408
        %p585 = pneg %p432
        %p586 = pneg %p429
        %p587 = pneg %p458
        %p588 = pneg %p455
        %s589 = sand.u32 %s445, 1
        %s590 = scalar_lea.sflag [#allocation3], %s589
        %s591 = sand.u32 %s445, 1
        %s592 = smul.addr %s591, 8
        %s593 = scalar_lea.vmem [#allocation2], %s592
        %p594 = scmp.lt.s32.totalorder %s33, 1
        %s595 = scalar_select %p594, %s33, 1
        %s596 = smul.addr %s595, 8
        %s597 = scalar_lea.vmem %s0, %s596
        %v599 = vld [vmem:[%s597] sm:$0xff]
        %v600 = vld [vmem:[%s1] sm:$0xf]
        %v601 = vld [vmem:[%s1 + $0x4] sm:$0xf]
        %v602 = vld [vmem:[%s1 + $0x8] sm:$0xf]
        %v603 = vld [vmem:[%s1 + $0xc] sm:$0xf]
        %v604 = vld [vmem:[%s2] sm:$0xf]
        %v605 = vld [vmem:[%s2 + $0x4] sm:$0xf]
        %v606 = vld [vmem:[%s2 + $0x8] sm:$0xf]
        %v607 = vld [vmem:[%s2 + $0xc] sm:$0xf]
        %v608 = vld [vmem:[%s3] sm:$0xf]
        %v609 = vld [vmem:[%s3 + $0x4] sm:$0xf]
        %v610 = vld [vmem:[%s3 + $0x8] sm:$0xf]
        %v611 = vld [vmem:[%s3 + $0xc] sm:$0xf]
        %v612 = vld [vmem:[%s4] sm:$0xf]
        %v613 = vld [vmem:[%s4 + $0x4] sm:$0xf]
        %v614 = vld [vmem:[%s4 + $0x8] sm:$0xf]
        %v615 = vld [vmem:[%s4 + $0xc] sm:$0xf]
        %v616 = vld [vmem:[%s4 + $0x10] sm:$0xf]
        %v617 = vld [vmem:[%s4 + $0x14] sm:$0xf]
        %v618 = vld [vmem:[%s4 + $0x18] sm:$0xf]
        %v619 = vld [vmem:[%s4 + $0x1c] sm:$0xf]
        %v620 = vld [vmem:[%s5] sm:$0x3f]
        %v621 = vld [vmem:[%s6] sm:$0x1]
        %v622 = vld [vmem:[%s7] sm:$0x1]
        %v623 = vpack.c.bf16 %v599, %v599
        %v625 = vperm.slane %v621, 0
        %v631 = vunpack.c.l.b16 %v600
        %v632 = vunpack.c.l.b16 %v601
        %v633 = vunpack.c.l.b16 %v602
        %v634 = vunpack.c.l.b16 %v603
        %v635 = vpack.c.b16 %v632, %v631
        %v636 = vpack.c.b16 %v634, %v633
        %vm639 = vcmask 261120
        %v641 = vsel %vm639, %v623, 0
        %643 = vmatpush.bf16.msra.mxu0 0
        %644 = vmatpush.bf16.msra.mxu0 0
        %645 = vmatpush.bf16.msra.mxu0 0
        %646 = vmatpush.bf16.msra.mxu0 0
        %647 = vmatpush.bf16.msra.mxu0 0
        %648 = vmatpush.bf16.msra.mxu0 0
        %649 = vmatpush.bf16.msra.mxu0 %v636
        %650 = vmatpush.bf16.msra.mxu0 %v635
        %651 = vmatmul.bf16.gmra.mxu0 %v641
        %v652 = vpop.f32.mrf.mxu0
        %v653 = vadd.f32 %v625, %v652
        %v654 = vpop.f32.mrf.mxu0
        %655 = vdwg.mxu0
        %657 = vrot.lane.b32.xlu0 %v653, 120
        %v658 = vpop.permute.xlu0 %657
        %660 = vrot.lane.b32.xlu0 %v653, 112
        %v661 = vpop.permute.xlu0 %660
        %663 = vrot.lane.b32.xlu0 %v653, 104
        %v664 = vpop.permute.xlu0 %663
        %v666 = vpack.c.bf16 %v653, %v653
        %v667 = vpack.c.bf16 %v658, %v658
        %v668 = vpack.c.bf16 %v661, %v661
        %v669 = vpack.c.bf16 %v664, %v664
        %v671 = vunpack.c.l.b16 %v666
        %v672 = vpack.c.b16 %v671, %v671
        %673 = vrot.lane.b32.xlu0 %v672, 96
        %v674 = vpop.permute.xlu0 %673
        %vm675 = vcmask 64512
        %v677 = vsel %vm675, %v666, 0
        %v680 = vsel %vm675, %v674, 0
        %682 = vmatpush.bf16.xpose.msra.mxu0 0
        %683 = vmatpush.bf16.xpose.msra.mxu0 0
        %684 = vmatpush.bf16.xpose.msra.mxu0 0
        %685 = vmatpush.bf16.xpose.msra.mxu0 0
        %686 = vmatpush.bf16.xpose.msra.mxu0 0
        %687 = vmatpush.bf16.xpose.msra.mxu0 0
        %688 = vmatpush.bf16.xpose.msra.mxu0 0
        %689 = vmatpush.bf16.xpose.msra.mxu0 %v680
        %690 = vmatmul.bf16.gmra.mxu0 %v677
        %v691 = vpop.f32.mrf.mxu0
        %v692 = vadd.f32 0.0, %v691
        %v693 = vpop.f32.mrf.mxu0
        %694 = vdwg.mxu0
        %v696 = vunpack.c.l.b16 %v667
        %v697 = vpack.c.b16 %v696, %v696
        %698 = vrot.lane.b32.xlu0 %v697, 96
        %v699 = vpop.permute.xlu0 %698
        %v701 = vsel %vm675, %v667, 0
        %v704 = vsel %vm675, %v699, 0
        %706 = vmatpush.bf16.xpose.msra.mxu0 0
        %707 = vmatpush.bf16.xpose.msra.mxu0 0
        %708 = vmatpush.bf16.xpose.msra.mxu0 0
        %709 = vmatpush.bf16.xpose.msra.mxu0 0
        %710 = vmatpush.bf16.xpose.msra.mxu0 0
        %711 = vmatpush.bf16.xpose.msra.mxu0 0
        %712 = vmatpush.bf16.xpose.msra.mxu0 0
        %713 = vmatpush.bf16.xpose.msra.mxu0 %v704
        %714 = vmatmul.bf16.gmra.mxu0 %v701
        %v715 = vpop.f32.mrf.mxu0
        %v716 = vadd.f32 0.0, %v715
        %v717 = vpop.f32.mrf.mxu0
        %718 = vdwg.mxu0
        %v720 = vunpack.c.l.b16 %v668
        %v721 = vpack.c.b16 %v720, %v720
        %722 = vrot.lane.b32.xlu0 %v721, 96
        %v723 = vpop.permute.xlu0 %722
        %v725 = vsel %vm675, %v668, 0
        %v728 = vsel %vm675, %v723, 0
        %730 = vmatpush.bf16.xpose.msra.mxu0 0
        %731 = vmatpush.bf16.xpose.msra.mxu0 0
        %732 = vmatpush.bf16.xpose.msra.mxu0 0
        %733 = vmatpush.bf16.xpose.msra.mxu0 0
        %734 = vmatpush.bf16.xpose.msra.mxu0 0
        %735 = vmatpush.bf16.xpose.msra.mxu0 0
        %736 = vmatpush.bf16.xpose.msra.mxu0 0
        %737 = vmatpush.bf16.xpose.msra.mxu0 %v728
        %738 = vmatmul.bf16.gmra.mxu0 %v725
        %v739 = vpop.f32.mrf.mxu0
        %v740 = vadd.f32 0.0, %v739
        %v741 = vpop.f32.mrf.mxu0
        %742 = vdwg.mxu0
        %v744 = vunpack.c.l.b16 %v669
        %v745 = vpack.c.b16 %v744, %v744
        %746 = vrot.lane.b32.xlu0 %v745, 96
        %v747 = vpop.permute.xlu0 %746
        %v749 = vsel %vm675, %v669, 0
        %v752 = vsel %vm675, %v747, 0
        %754 = vmatpush.bf16.xpose.msra.mxu0 0
        %755 = vmatpush.bf16.xpose.msra.mxu0 0
        %756 = vmatpush.bf16.xpose.msra.mxu0 0
        %757 = vmatpush.bf16.xpose.msra.mxu0 0
        %758 = vmatpush.bf16.xpose.msra.mxu0 0
        %759 = vmatpush.bf16.xpose.msra.mxu0 0
        %760 = vmatpush.bf16.xpose.msra.mxu0 0
        %761 = vmatpush.bf16.xpose.msra.mxu0 %v752
        %762 = vmatmul.bf16.gmra.mxu0 %v749
        %v763 = vpop.f32.mrf.mxu0
        %v764 = vadd.f32 0.0, %v763
        %v765 = vpop.f32.mrf.mxu0
        %766 = vdwg.mxu0
        %v767 = vsel %vm675, %v692, -inf
        %768 = vmax.xlane.f32.xlu0 %v767
        %v769 = vpop.xlane.xlu0 %768
        %v770 = vsel %vm675, %v716, -inf
        %771 = vmax.xlane.f32.xlu0 %v770
        %v772 = vpop.xlane.xlu0 %771
        %v773 = vsel %vm675, %v740, -inf
        %774 = vmax.xlane.f32.xlu0 %v773
        %v775 = vpop.xlane.xlu0 %774
        %v776 = vsel %vm675, %v764, -inf
        %777 = vmax.xlane.f32.xlu0 %v776
        %v778 = vpop.xlane.xlu0 %777
        %v779 = vsub.f32 %v692, %v769
        %v780 = vsub.f32 %v716, %v772
        %v781 = vsub.f32 %v740, %v775
        %v782 = vsub.f32 %v764, %v778
        %v783 = vmul.f32 %v779, 1.442695
        %v784 = vpow.pop %v783
        %v785 = vmul.f32 %v780, 1.442695
        %v786 = vpow.pop %v785
        %v787 = vmul.f32 %v781, 1.442695
        %v788 = vpow.pop %v787
        %v789 = vmul.f32 %v782, 1.442695
        %v790 = vpow.pop %v789
        %v791 = vsel %vm675, %v784, 0.0
        %792 = vadd.xlane.f32.xlu0 %v791
        %v793 = vpop.xlane.xlu0 %792
        %v794 = vsel %vm675, %v786, 0.0
        %795 = vadd.xlane.f32.xlu0 %v794
        %v796 = vpop.xlane.xlu0 %795
        %v797 = vsel %vm675, %v788, 0.0
        %798 = vadd.xlane.f32.xlu0 %v797
        %v799 = vpop.xlane.xlu0 %798
        %v800 = vsel %vm675, %v790, 0.0
        %801 = vadd.xlane.f32.xlu0 %v800
        %v802 = vpop.xlane.xlu0 %801
        %v803 = vrcp.pop %v793
        %v804 = vrcp.pop %v796
        %v805 = vrcp.pop %v799
        %v806 = vrcp.pop %v802
        %v807 = vmul.f32 %v784, %v803
        %v808 = vmul.f32 %v786, %v804
        %v809 = vmul.f32 %v788, %v805
        %v810 = vmul.f32 %v790, %v806
        %v811 = vpack.c.bf16 %v807, %v807
        %v812 = vpack.c.bf16 %v808, %v808
        %v813 = vpack.c.bf16 %v809, %v809
        %v814 = vpack.c.bf16 %v810, %v810
        %815 = vrot.lane.b32.xlu0 %v672, 64
        %v816 = vpop.permute.xlu0 %815
        %v818 = vsel %vm675, %v811, 0
        %vm820 = vcmask 1043456
        %v822 = vsel %vm820, %v816, 0
        %824 = vmatpush.bf16.msra.mxu0 0
        %825 = vmatpush.bf16.msra.mxu0 0
        %826 = vmatpush.bf16.msra.mxu0 0
        %827 = vmatpush.bf16.msra.mxu0 0
        %828 = vmatpush.bf16.msra.mxu0 0
        %829 = vmatpush.bf16.msra.mxu0 0
        %830 = vmatpush.bf16.msra.mxu0 0
        %831 = vmatpush.bf16.msra.mxu0 %v822
        %832 = vmatmul.bf16.gmra.mxu0 %v818
        %v833 = vpop.f32.mrf.mxu0
        %v834 = vadd.f32 0.0, %v833
        %v835 = vpop.f32.mrf.mxu0
        %836 = vdwg.mxu0
        %837 = vrot.lane.b32.xlu0 %v697, 64
        %v838 = vpop.permute.xlu0 %837
        %v840 = vsel %vm675, %v812, 0
        %v843 = vsel %vm820, %v838, 0
        %845 = vmatpush.bf16.msra.mxu0 0
        %846 = vmatpush.bf16.msra.mxu0 0
        %847 = vmatpush.bf16.msra.mxu0 0
        %848 = vmatpush.bf16.msra.mxu0 0
        %849 = vmatpush.bf16.msra.mxu0 0
        %850 = vmatpush.bf16.msra.mxu0 0
        %851 = vmatpush.bf16.msra.mxu0 0
        %852 = vmatpush.bf16.msra.mxu0 %v843
        %853 = vmatmul.bf16.gmra.mxu0 %v840
        %v854 = vpop.f32.mrf.mxu0
        %v855 = vadd.f32 0.0, %v854
        %v856 = vpop.f32.mrf.mxu0
        %857 = vdwg.mxu0
        %858 = vrot.lane.b32.xlu0 %v721, 64
        %v859 = vpop.permute.xlu0 %858
        %v861 = vsel %vm675, %v813, 0
        %v864 = vsel %vm820, %v859, 0
        %866 = vmatpush.bf16.msra.mxu0 0
        %867 = vmatpush.bf16.msra.mxu0 0
        %868 = vmatpush.bf16.msra.mxu0 0
        %869 = vmatpush.bf16.msra.mxu0 0
        %870 = vmatpush.bf16.msra.mxu0 0
        %871 = vmatpush.bf16.msra.mxu0 0
        %872 = vmatpush.bf16.msra.mxu0 0
        %873 = vmatpush.bf16.msra.mxu0 %v864
        %874 = vmatmul.bf16.gmra.mxu0 %v861
        %v875 = vpop.f32.mrf.mxu0
        %v876 = vadd.f32 0.0, %v875
        %v877 = vpop.f32.mrf.mxu0
        %878 = vdwg.mxu0
        %879 = vrot.lane.b32.xlu0 %v745, 64
        %v880 = vpop.permute.xlu0 %879
        %v882 = vsel %vm675, %v814, 0
        %v885 = vsel %vm820, %v880, 0
        %887 = vmatpush.bf16.msra.mxu0 0
        %888 = vmatpush.bf16.msra.mxu0 0
        %889 = vmatpush.bf16.msra.mxu0 0
        %890 = vmatpush.bf16.msra.mxu0 0
        %891 = vmatpush.bf16.msra.mxu0 0
        %892 = vmatpush.bf16.msra.mxu0 0
        %893 = vmatpush.bf16.msra.mxu0 0
        %894 = vmatpush.bf16.msra.mxu0 %v885
        %895 = vmatmul.bf16.gmra.mxu0 %v882
        %v896 = vpop.f32.mrf.mxu0
        %v897 = vadd.f32 0.0, %v896
        %v898 = vpop.f32.mrf.mxu0
        %899 = vdwg.mxu0
        %901 = vrot.lane.b32.xlu0 %v855, 8
        %v902 = vpop.permute.xlu0 %901
        %905 = vrot.lane.b32.xlu0 %v876, 16
        %v906 = vpop.permute.xlu0 %905
        %909 = vrot.lane.b32.xlu0 %v897, 24
        %v910 = vpop.permute.xlu0 %909
        %v912 = vsel %vm675, %v834, %v902
        %vm913 = vcmask 130048
        %v914 = vsel %vm913, %v912, %v906
        %vm915 = vcmask 195584
        %v916 = vsel %vm915, %v914, %v910
        %v917 = vpack.c.bf16 %v916, %v916
        %v918 = vperm.slane %v620, 0
        %v923 = vunpack.c.l.b16 %v604
        %v924 = vunpack.c.l.b16 %v605
        %v925 = vunpack.c.l.b16 %v606
        %v926 = vunpack.c.l.b16 %v607
        %v927 = vpack.c.b16 %v924, %v923
        %v928 = vpack.c.b16 %v926, %v925
        %v932 = vsel %vm639, %v917, 0
        %934 = vmatpush.bf16.msra.mxu0 0
        %935 = vmatpush.bf16.msra.mxu0 0
        %936 = vmatpush.bf16.msra.mxu0 0
        %937 = vmatpush.bf16.msra.mxu0 0
        %938 = vmatpush.bf16.msra.mxu0 0
        %939 = vmatpush.bf16.msra.mxu0 0
        %940 = vmatpush.bf16.msra.mxu0 %v928
        %941 = vmatpush.bf16.msra.mxu0 %v927
        %942 = vmatmul.bf16.gmra.mxu0 %v932
        %v943 = vpop.f32.mrf.mxu0
        %v944 = vadd.f32 %v918, %v943
        %v945 = vpop.f32.mrf.mxu0
        %946 = vdwg.mxu0
        %v947 = vadd.f32 %v599, %v944
        %v948 = vsel %vm639, %v947, 0.0
        %949 = vadd.xlane.f32.xlu0 %v948
        %v950 = vpop.xlane.xlu0 %949
        %v951 = vrcp.pop 32.0
        %v952 = vmul.f32 32.0, %v951
        %v953 = vsub.f32 1.0, %v952
        %v954 = vmul.f32 %v951, %v953
        %v955 = vadd.f32 %v951, %v954
        %vm956 = vweird.f32 %v951
        %v957 = vsel %vm956, %v951, %v955
        %v958 = vmul.f32 %v950, %v957
        %v959 = vsub.f32 %v947, %v958
        %v960 = vmul.f32 %v959, %v959
        %v961 = vsel %vm639, %v960, 0.0
        %962 = vadd.xlane.f32.xlu0 %v961
        %v963 = vpop.xlane.xlu0 %962
        %v964 = vmul.f32 %v963, %v957
        %v965 = vadd.f32 %v964, 1e-05
        %v966 = vrsqrt.pop %v965
        %v967 = vmul.f32 %v966, %v965
        %v968 = vmul.f32 %v967, %v966
        %v969 = vmul.f32 0.5, %v968
        %v970 = vsub.f32 1.5, %v969
        %v971 = vmul.f32 %v966, %v970
        %vm972 = vweird.f32 %v965
        %vm973 = vweird.f32 %v966
        %vm974 = vmor %vm972, %vm973
        %v975 = vsel %vm974, %v966, %v971
        %v976 = vmul.f32 %v959, %v975
        %v977 = vperm.slane %v620, 1
        %v978 = vmul.f32 %v976, %v977
        %v979 = vperm.slane %v620, 2
        %v980 = vadd.f32 %v978, %v979
        %v981 = vpack.c.bf16 %v980, %v980
        %v983 = vperm.slane %v622, 0
        %v989 = vunpack.c.l.b16 %v608
        %v990 = vunpack.c.l.b16 %v609
        %v991 = vunpack.c.l.b16 %v610
        %v992 = vunpack.c.l.b16 %v611
        %v993 = vpack.c.b16 %v990, %v989
        %v994 = vpack.c.b16 %v992, %v991
        %v998 = vsel %vm639, %v981, 0
        %1000 = vmatpush.bf16.msra.mxu0 0
        %1001 = vmatpush.bf16.msra.mxu0 0
        %1002 = vmatpush.bf16.msra.mxu0 0
        %1003 = vmatpush.bf16.msra.mxu0 0
        %1004 = vmatpush.bf16.msra.mxu0 0
        %1005 = vmatpush.bf16.msra.mxu0 0
        %1006 = vmatpush.bf16.msra.mxu0 %v994
        %1007 = vmatpush.bf16.msra.mxu0 %v993
        %1008 = vmatmul.bf16.gmra.mxu0 %v998
        %v1009 = vpop.f32.mrf.mxu0
        %v1010 = vadd.f32 %v983, %v1009
        %v1011 = vpop.f32.mrf.mxu0
        %1012 = vdwg.mxu0
        %v1013 = vmax.f32 %v1010, 0.0
        %v1014 = vpack.c.bf16 %v1013, %v1013
        %v1015 = vperm.slane %v620, 3
        %v1024 = vunpack.c.l.b16 %v612
        %v1025 = vunpack.c.l.b16 %v613
        %v1026 = vunpack.c.l.b16 %v614
        %v1027 = vunpack.c.l.b16 %v615
        %v1028 = vunpack.c.l.b16 %v616
        %v1029 = vunpack.c.l.b16 %v617
        %v1030 = vunpack.c.l.b16 %v618
        %v1031 = vunpack.c.l.b16 %v619
        %v1032 = vpack.c.b16 %v1025, %v1024
        %v1033 = vpack.c.b16 %v1027, %v1026
        %v1034 = vpack.c.b16 %v1029, %v1028
        %v1035 = vpack.c.b16 %v1031, %v1030
        %vm1040 = vcmask 523264
        %v1042 = vsel %vm1040, %v1014, 0
        %1044 = vmatpush.bf16.msra.mxu0 0
        %1045 = vmatpush.bf16.msra.mxu0 0
        %1046 = vmatpush.bf16.msra.mxu0 0
        %1047 = vmatpush.bf16.msra.mxu0 0
        %1048 = vmatpush.bf16.msra.mxu0 %v1035
        %1049 = vmatpush.bf16.msra.mxu0 %v1034
        %1050 = vmatpush.bf16.msra.mxu0 %v1033
        %1051 = vmatpush.bf16.msra.mxu0 %v1032
        %1052 = vmatmul.bf16.gmra.mxu0 %v1042
        %v1053 = vpop.f32.mrf.mxu0
        %v1054 = vadd.f32 %v1015, %v1053
        %v1055 = vpop.f32.mrf.mxu0
        %1056 = vdwg.mxu0
        %v1057 = vadd.f32 %v980, %v1054
        %v1058 = vsel %vm639, %v1057, 0.0
        %1059 = vadd.xlane.f32.xlu0 %v1058
        %v1060 = vpop.xlane.xlu0 %1059
        %v1061 = vmul.f32 %v1060, %v957
        %v1062 = vsub.f32 %v1057, %v1061
        %v1063 = vmul.f32 %v1062, %v1062
        %v1064 = vsel %vm639, %v1063, 0.0
        %1065 = vadd.xlane.f32.xlu0 %v1064
        %v1066 = vpop.xlane.xlu0 %1065
        %v1067 = vmul.f32 %v1066, %v957
        %v1068 = vadd.f32 %v1067, 1e-05
        %v1069 = vrsqrt.pop %v1068
        %v1070 = vmul.f32 %v1069, %v1068
        %v1071 = vmul.f32 %v1070, %v1069
        %v1072 = vmul.f32 0.5, %v1071
        %v1073 = vsub.f32 1.5, %v1072
        %v1074 = vmul.f32 %v1069, %v1073
        %vm1075 = vweird.f32 %v1068
        %vm1076 = vweird.f32 %v1069
        %vm1077 = vmor %vm1075, %vm1076
        %v1078 = vsel %vm1077, %v1069, %v1074
        %v1079 = vmul.f32 %v1062, %v1078
        %v1080 = vperm.slane %v620, 4
        %v1081 = vmul.f32 %v1079, %v1080
        %v1082 = vperm.slane %v620, 5
        %v1083 = vadd.f32 %v1081, %v1082
        %s1084 = scalar_lea.vmem %s1, 16
        %v1085 = vld [vmem:[%s1084] sm:$0xf]
        %v1086 = vld [vmem:[%s1084 + $0x4] sm:$0xf]
        %v1087 = vld [vmem:[%s1084 + $0x8] sm:$0xf]
        %v1088 = vld [vmem:[%s1084 + $0xc] sm:$0xf]
        %s1089 = scalar_lea.vmem %s2, 16
        %v1090 = vld [vmem:[%s1089] sm:$0xf]
        %v1091 = vld [vmem:[%s1089 + $0x4] sm:$0xf]
        %v1092 = vld [vmem:[%s1089 + $0x8] sm:$0xf]
        %v1093 = vld [vmem:[%s1089 + $0xc] sm:$0xf]
        %s1094 = scalar_lea.vmem %s3, 16
        %v1095 = vld [vmem:[%s1094] sm:$0xf]
        %v1096 = vld [vmem:[%s1094 + $0x4] sm:$0xf]
        %v1097 = vld [vmem:[%s1094 + $0x8] sm:$0xf]
        %v1098 = vld [vmem:[%s1094 + $0xc] sm:$0xf]
        %s1099 = scalar_lea.vmem %s4, 32
        %v1100 = vld [vmem:[%s1099] sm:$0xf]
        %v1101 = vld [vmem:[%s1099 + $0x4] sm:$0xf]
        %v1102 = vld [vmem:[%s1099 + $0x8] sm:$0xf]
        %v1103 = vld [vmem:[%s1099 + $0xc] sm:$0xf]
        %v1104 = vld [vmem:[%s1099 + $0x10] sm:$0xf]
        %v1105 = vld [vmem:[%s1099 + $0x14] sm:$0xf]
        %v1106 = vld [vmem:[%s1099 + $0x18] sm:$0xf]
        %v1107 = vld [vmem:[%s1099 + $0x1c] sm:$0xf]
        %s1108 = scalar_lea.vmem %s5, 8
        %v1109 = vld [vmem:[%s1108] sm:$0x3f]
        %s1110 = scalar_lea.vmem %s6, 1
        %v1111 = vld [vmem:[%s1110] sm:$0x1]
        %s1112 = scalar_lea.vmem %s7, 1
        %v1113 = vld [vmem:[%s1112] sm:$0x1]
        %v1114 = vpack.c.bf16 %v1083, %v1083
        %v1116 = vperm.slane %v1111, 0
        %v1122 = vunpack.c.l.b16 %v1085
        %v1123 = vunpack.c.l.b16 %v1086
        %v1124 = vunpack.c.l.b16 %v1087
        %v1125 = vunpack.c.l.b16 %v1088
        %v1126 = vpack.c.b16 %v1123, %v1122
        %v1127 = vpack.c.b16 %v1125, %v1124
        %v1131 = vsel %vm639, %v1114, 0
        %1133 = vmatpush.bf16.msra.mxu0 0
        %1134 = vmatpush.bf16.msra.mxu0 0
        %1135 = vmatpush.bf16.msra.mxu0 0
        %1136 = vmatpush.bf16.msra.mxu0 0
        %1137 = vmatpush.bf16.msra.mxu0 0
        %1138 = vmatpush.bf16.msra.mxu0 0
        %1139 = vmatpush.bf16.msra.mxu0 %v1127
        %1140 = vmatpush.bf16.msra.mxu0 %v1126
        %1141 = vmatmul.bf16.gmra.mxu0 %v1131
        %v1142 = vpop.f32.mrf.mxu0
        %v1143 = vadd.f32 %v1116, %v1142
        %v1144 = vpop.f32.mrf.mxu0
        %1145 = vdwg.mxu0
        %1147 = vrot.lane.b32.xlu0 %v1143, 120
        %v1148 = vpop.permute.xlu0 %1147
        %1150 = vrot.lane.b32.xlu0 %v1143, 112
        %v1151 = vpop.permute.xlu0 %1150
        %1153 = vrot.lane.b32.xlu0 %v1143, 104
        %v1154 = vpop.permute.xlu0 %1153
        %v1156 = vpack.c.bf16 %v1143, %v1143
        %v1157 = vpack.c.bf16 %v1148, %v1148
        %v1158 = vpack.c.bf16 %v1151, %v1151
        %v1159 = vpack.c.bf16 %v1154, %v1154
        %v1161 = vunpack.c.l.b16 %v1156
        %v1162 = vpack.c.b16 %v1161, %v1161
        %1163 = vrot.lane.b32.xlu0 %v1162, 96
        %v1164 = vpop.permute.xlu0 %1163
        %v1166 = vsel %vm675, %v1156, 0
        %v1169 = vsel %vm675, %v1164, 0
        %1171 = vmatpush.bf16.xpose.msra.mxu0 0
        %1172 = vmatpush.bf16.xpose.msra.mxu0 0
        %1173 = vmatpush.bf16.xpose.msra.mxu0 0
        %1174 = vmatpush.bf16.xpose.msra.mxu0 0
        %1175 = vmatpush.bf16.xpose.msra.mxu0 0
        %1176 = vmatpush.bf16.xpose.msra.mxu0 0
        %1177 = vmatpush.bf16.xpose.msra.mxu0 0
        %1178 = vmatpush.bf16.xpose.msra.mxu0 %v1169
        %1179 = vmatmul.bf16.gmra.mxu0 %v1166
        %v1180 = vpop.f32.mrf.mxu0
        %v1181 = vadd.f32 0.0, %v1180
        %v1182 = vpop.f32.mrf.mxu0
        %1183 = vdwg.mxu0
        %v1185 = vunpack.c.l.b16 %v1157
        %v1186 = vpack.c.b16 %v1185, %v1185
        %1187 = vrot.lane.b32.xlu0 %v1186, 96
        %v1188 = vpop.permute.xlu0 %1187
        %v1190 = vsel %vm675, %v1157, 0
        %v1193 = vsel %vm675, %v1188, 0
        %1195 = vmatpush.bf16.xpose.msra.mxu0 0
        %1196 = vmatpush.bf16.xpose.msra.mxu0 0
        %1197 = vmatpush.bf16.xpose.msra.mxu0 0
        %1198 = vmatpush.bf16.xpose.msra.mxu0 0
        %1199 = vmatpush.bf16.xpose.msra.mxu0 0
        %1200 = vmatpush.bf16.xpose.msra.mxu0 0
        %1201 = vmatpush.bf16.xpose.msra.mxu0 0
        %1202 = vmatpush.bf16.xpose.msra.mxu0 %v1193
        %1203 = vmatmul.bf16.gmra.mxu0 %v1190
        %v1204 = vpop.f32.mrf.mxu0
        %v1205 = vadd.f32 0.0, %v1204
        %v1206 = vpop.f32.mrf.mxu0
        %1207 = vdwg.mxu0
        %v1209 = vunpack.c.l.b16 %v1158
        %v1210 = vpack.c.b16 %v1209, %v1209
        %1211 = vrot.lane.b32.xlu0 %v1210, 96
        %v1212 = vpop.permute.xlu0 %1211
        %v1214 = vsel %vm675, %v1158, 0
        %v1217 = vsel %vm675, %v1212, 0
        %1219 = vmatpush.bf16.xpose.msra.mxu0 0
        %1220 = vmatpush.bf16.xpose.msra.mxu0 0
        %1221 = vmatpush.bf16.xpose.msra.mxu0 0
        %1222 = vmatpush.bf16.xpose.msra.mxu0 0
        %1223 = vmatpush.bf16.xpose.msra.mxu0 0
        %1224 = vmatpush.bf16.xpose.msra.mxu0 0
        %1225 = vmatpush.bf16.xpose.msra.mxu0 0
        %1226 = vmatpush.bf16.xpose.msra.mxu0 %v1217
        %1227 = vmatmul.bf16.gmra.mxu0 %v1214
        %v1228 = vpop.f32.mrf.mxu0
        %v1229 = vadd.f32 0.0, %v1228
        %v1230 = vpop.f32.mrf.mxu0
        %1231 = vdwg.mxu0
        %v1233 = vunpack.c.l.b16 %v1159
        %v1234 = vpack.c.b16 %v1233, %v1233
        %1235 = vrot.lane.b32.xlu0 %v1234, 96
        %v1236 = vpop.permute.xlu0 %1235
        %v1238 = vsel %vm675, %v1159, 0
        %v1241 = vsel %vm675, %v1236, 0
        %1243 = vmatpush.bf16.xpose.msra.mxu0 0
        %1244 = vmatpush.bf16.xpose.msra.mxu0 0
        %1245 = vmatpush.bf16.xpose.msra.mxu0 0
        %1246 = vmatpush.bf16.xpose.msra.mxu0 0
        %1247 = vmatpush.bf16.xpose.msra.mxu0 0
        %1248 = vmatpush.bf16.xpose.msra.mxu0 0
        %1249 = vmatpush.bf16.xpose.msra.mxu0 0
        %1250 = vmatpush.bf16.xpose.msra.mxu0 %v1241
        %1251 = vmatmul.bf16.gmra.mxu0 %v1238
        %v1252 = vpop.f32.mrf.mxu0
        %v1253 = vadd.f32 0.0, %v1252
        %v1254 = vpop.f32.mrf.mxu0
        %1255 = vdwg.mxu0
        %v1256 = vsel %vm675, %v1181, -inf
        %1257 = vmax.xlane.f32.xlu0 %v1256
        %v1258 = vpop.xlane.xlu0 %1257
        %v1259 = vsel %vm675, %v1205, -inf
        %1260 = vmax.xlane.f32.xlu0 %v1259
        %v1261 = vpop.xlane.xlu0 %1260
        %v1262 = vsel %vm675, %v1229, -inf
        %1263 = vmax.xlane.f32.xlu0 %v1262
        %v1264 = vpop.xlane.xlu0 %1263
        %v1265 = vsel %vm675, %v1253, -inf
        %1266 = vmax.xlane.f32.xlu0 %v1265
        %v1267 = vpop.xlane.xlu0 %1266
        %v1268 = vsub.f32 %v1181, %v1258
        %v1269 = vsub.f32 %v1205, %v1261
        %v1270 = vsub.f32 %v1229, %v1264
        %v1271 = vsub.f32 %v1253, %v1267
        %v1272 = vmul.f32 %v1268, 1.442695
        %v1273 = vpow.pop %v1272
        %v1274 = vmul.f32 %v1269, 1.442695
        %v1275 = vpow.pop %v1274
        %v1276 = vmul.f32 %v1270, 1.442695
        %v1277 = vpow.pop %v1276
        %v1278 = vmul.f32 %v1271, 1.442695
        %v1279 = vpow.pop %v1278
        %v1280 = vsel %vm675, %v1273, 0.0
        %1281 = vadd.xlane.f32.xlu0 %v1280
        %v1282 = vpop.xlane.xlu0 %1281
        %v1283 = vsel %vm675, %v1275, 0.0
        %1284 = vadd.xlane.f32.xlu0 %v1283
        %v1285 = vpop.xlane.xlu0 %1284
        %v1286 = vsel %vm675, %v1277, 0.0
        %1287 = vadd.xlane.f32.xlu0 %v1286
        %v1288 = vpop.xlane.xlu0 %1287
        %v1289 = vsel %vm675, %v1279, 0.0
        %1290 = vadd.xlane.f32.xlu0 %v1289
        %v1291 = vpop.xlane.xlu0 %1290
        %v1292 = vrcp.pop %v1282
        %v1293 = vrcp.pop %v1285
        %v1294 = vrcp.pop %v1288
        %v1295 = vrcp.pop %v1291
        %v1296 = vmul.f32 %v1273, %v1292
        %v1297 = vmul.f32 %v1275, %v1293
        %v1298 = vmul.f32 %v1277, %v1294
        %v1299 = vmul.f32 %v1279, %v1295
        %v1300 = vpack.c.bf16 %v1296, %v1296
        %v1301 = vpack.c.bf16 %v1297, %v1297
        %v1302 = vpack.c.bf16 %v1298, %v1298
        %v1303 = vpack.c.bf16 %v1299, %v1299
        %1304 = vrot.lane.b32.xlu0 %v1162, 64
        %v1305 = vpop.permute.xlu0 %1304
        %v1307 = vsel %vm675, %v1300, 0
        %v1310 = vsel %vm820, %v1305, 0
        %1312 = vmatpush.bf16.msra.mxu0 0
        %1313 = vmatpush.bf16.msra.mxu0 0
        %1314 = vmatpush.bf16.msra.mxu0 0
        %1315 = vmatpush.bf16.msra.mxu0 0
        %1316 = vmatpush.bf16.msra.mxu0 0
        %1317 = vmatpush.bf16.msra.mxu0 0
        %1318 = vmatpush.bf16.msra.mxu0 0
        %1319 = vmatpush.bf16.msra.mxu0 %v1310
        %1320 = vmatmul.bf16.gmra.mxu0 %v1307
        %v1321 = vpop.f32.mrf.mxu0
        %v1322 = vadd.f32 0.0, %v1321
        %v1323 = vpop.f32.mrf.mxu0
        %1324 = vdwg.mxu0
        %1325 = vrot.lane.b32.xlu0 %v1186, 64
        %v1326 = vpop.permute.xlu0 %1325
        %v1328 = vsel %vm675, %v1301, 0
        %v1331 = vsel %vm820, %v1326, 0
        %1333 = vmatpush.bf16.msra.mxu0 0
        %1334 = vmatpush.bf16.msra.mxu0 0
        %1335 = vmatpush.bf16.msra.mxu0 0
        %1336 = vmatpush.bf16.msra.mxu0 0
        %1337 = vmatpush.bf16.msra.mxu0 0
        %1338 = vmatpush.bf16.msra.mxu0 0
        %1339 = vmatpush.bf16.msra.mxu0 0
        %1340 = vmatpush.bf16.msra.mxu0 %v1331
        %1341 = vmatmul.bf16.gmra.mxu0 %v1328
        %v1342 = vpop.f32.mrf.mxu0
        %v1343 = vadd.f32 0.0, %v1342
        %v1344 = vpop.f32.mrf.mxu0
        %1345 = vdwg.mxu0
        %1346 = vrot.lane.b32.xlu0 %v1210, 64
        %v1347 = vpop.permute.xlu0 %1346
        %v1349 = vsel %vm675, %v1302, 0
        %v1352 = vsel %vm820, %v1347, 0
        %1354 = vmatpush.bf16.msra.mxu0 0
        %1355 = vmatpush.bf16.msra.mxu0 0
        %1356 = vmatpush.bf16.msra.mxu0 0
        %1357 = vmatpush.bf16.msra.mxu0 0
        %1358 = vmatpush.bf16.msra.mxu0 0
        %1359 = vmatpush.bf16.msra.mxu0 0
        %1360 = vmatpush.bf16.msra.mxu0 0
        %1361 = vmatpush.bf16.msra.mxu0 %v1352
        %1362 = vmatmul.bf16.gmra.mxu0 %v1349
        %v1363 = vpop.f32.mrf.mxu0
        %v1364 = vadd.f32 0.0, %v1363
        %v1365 = vpop.f32.mrf.mxu0
        %1366 = vdwg.mxu0
        %1367 = vrot.lane.b32.xlu0 %v1234, 64
        %v1368 = vpop.permute.xlu0 %1367
        %v1370 = vsel %vm675, %v1303, 0
        %v1373 = vsel %vm820, %v1368, 0
        %1375 = vmatpush.bf16.msra.mxu0 0
        %1376 = vmatpush.bf16.msra.mxu0 0
        %1377 = vmatpush.bf16.msra.mxu0 0
        %1378 = vmatpush.bf16.msra.mxu0 0
        %1379 = vmatpush.bf16.msra.mxu0 0
        %1380 = vmatpush.bf16.msra.mxu0 0
        %1381 = vmatpush.bf16.msra.mxu0 0
        %1382 = vmatpush.bf16.msra.mxu0 %v1373
        %1383 = vmatmul.bf16.gmra.mxu0 %v1370
        %v1384 = vpop.f32.mrf.mxu0
        %v1385 = vadd.f32 0.0, %v1384
        %v1386 = vpop.f32.mrf.mxu0
        %1387 = vdwg.mxu0
        %1389 = vrot.lane.b32.xlu0 %v1343, 8
        %v1390 = vpop.permute.xlu0 %1389
        %1393 = vrot.lane.b32.xlu0 %v1364, 16
        %v1394 = vpop.permute.xlu0 %1393
        %1397 = vrot.lane.b32.xlu0 %v1385, 24
        %v1398 = vpop.permute.xlu0 %1397
        %v1400 = vsel %vm675, %v1322, %v1390
        %v1401 = vsel %vm913, %v1400, %v1394
        %v1402 = vsel %vm915, %v1401, %v1398
        %v1403 = vpack.c.bf16 %v1402, %v1402
        %v1404 = vperm.slane %v1109, 0
        %v1409 = vunpack.c.l.b16 %v1090
        %v1410 = vunpack.c.l.b16 %v1091
        %v1411 = vunpack.c.l.b16 %v1092
        %v1412 = vunpack.c.l.b16 %v1093
        %v1413 = vpack.c.b16 %v1410, %v1409
        %v1414 = vpack.c.b16 %v1412, %v1411
        %v1418 = vsel %vm639, %v1403, 0
        %1420 = vmatpush.bf16.msra.mxu0 0
        %1421 = vmatpush.bf16.msra.mxu0 0
        %1422 = vmatpush.bf16.msra.mxu0 0
        %1423 = vmatpush.bf16.msra.mxu0 0
        %1424 = vmatpush.bf16.msra.mxu0 0
        %1425 = vmatpush.bf16.msra.mxu0 0
        %1426 = vmatpush.bf16.msra.mxu0 %v1414
        %1427 = vmatpush.bf16.msra.mxu0 %v1413
        %1428 = vmatmul.bf16.gmra.mxu0 %v1418
        %v1429 = vpop.f32.mrf.mxu0
        %v1430 = vadd.f32 %v1404, %v1429
        %v1431 = vpop.f32.mrf.mxu0
        %1432 = vdwg.mxu0
        %v1433 = vadd.f32 %v1083, %v1430
        %v1434 = vsel %vm639, %v1433, 0.0
        %1435 = vadd.xlane.f32.xlu0 %v1434
        %v1436 = vpop.xlane.xlu0 %1435
        %v1437 = vmul.f32 %v1436, %v957
        %v1438 = vsub.f32 %v1433, %v1437
        %v1439 = vmul.f32 %v1438, %v1438
        %v1440 = vsel %vm639, %v1439, 0.0
        %1441 = vadd.xlane.f32.xlu0 %v1440
        %v1442 = vpop.xlane.xlu0 %1441
        %v1443 = vmul.f32 %v1442, %v957
        %v1444 = vadd.f32 %v1443, 1e-05
        %v1445 = vrsqrt.pop %v1444
        %v1446 = vmul.f32 %v1445, %v1444
        %v1447 = vmul.f32 %v1446, %v1445
        %v1448 = vmul.f32 0.5, %v1447
        %v1449 = vsub.f32 1.5, %v1448
        %v1450 = vmul.f32 %v1445, %v1449
        %vm1451 = vweird.f32 %v1444
        %vm1452 = vweird.f32 %v1445
        %vm1453 = vmor %vm1451, %vm1452
        %v1454 = vsel %vm1453, %v1445, %v1450
        %v1455 = vmul.f32 %v1438, %v1454
        %v1456 = vperm.slane %v1109, 1
        %v1457 = vmul.f32 %v1455, %v1456
        %v1458 = vperm.slane %v1109, 2
        %v1459 = vadd.f32 %v1457, %v1458
        %v1460 = vpack.c.bf16 %v1459, %v1459
        %v1462 = vperm.slane %v1113, 0
        %v1468 = vunpack.c.l.b16 %v1095
        %v1469 = vunpack.c.l.b16 %v1096
        %v1470 = vunpack.c.l.b16 %v1097
        %v1471 = vunpack.c.l.b16 %v1098
        %v1472 = vpack.c.b16 %v1469, %v1468
        %v1473 = vpack.c.b16 %v1471, %v1470
        %v1477 = vsel %vm639, %v1460, 0
        %1479 = vmatpush.bf16.msra.mxu0 0
        %1480 = vmatpush.bf16.msra.mxu0 0
        %1481 = vmatpush.bf16.msra.mxu0 0
        %1482 = vmatpush.bf16.msra.mxu0 0
        %1483 = vmatpush.bf16.msra.mxu0 0
        %1484 = vmatpush.bf16.msra.mxu0 0
        %1485 = vmatpush.bf16.msra.mxu0 %v1473
        %1486 = vmatpush.bf16.msra.mxu0 %v1472
        %1487 = vmatmul.bf16.gmra.mxu0 %v1477
        %v1488 = vpop.f32.mrf.mxu0
        %v1489 = vadd.f32 %v1462, %v1488
        %v1490 = vpop.f32.mrf.mxu0
        %1491 = vdwg.mxu0
        %v1492 = vmax.f32 %v1489, 0.0
        %v1493 = vpack.c.bf16 %v1492, %v1492
        %v1494 = vperm.slane %v1109, 3
        %v1503 = vunpack.c.l.b16 %v1100
        %v1504 = vunpack.c.l.b16 %v1101
        %v1505 = vunpack.c.l.b16 %v1102
        %v1506 = vunpack.c.l.b16 %v1103
        %v1507 = vunpack.c.l.b16 %v1104
        %v1508 = vunpack.c.l.b16 %v1105
        %v1509 = vunpack.c.l.b16 %v1106
        %v1510 = vunpack.c.l.b16 %v1107
        %v1511 = vpack.c.b16 %v1504, %v1503
        %v1512 = vpack.c.b16 %v1506, %v1505
        %v1513 = vpack.c.b16 %v1508, %v1507
        %v1514 = vpack.c.b16 %v1510, %v1509
        %v1520 = vsel %vm1040, %v1493, 0
        %1522 = vmatpush.bf16.msra.mxu0 0
        %1523 = vmatpush.bf16.msra.mxu0 0
        %1524 = vmatpush.bf16.msra.mxu0 0
        %1525 = vmatpush.bf16.msra.mxu0 0
        %1526 = vmatpush.bf16.msra.mxu0 %v1514
        %1527 = vmatpush.bf16.msra.mxu0 %v1513
        %1528 = vmatpush.bf16.msra.mxu0 %v1512
        %1529 = vmatpush.bf16.msra.mxu0 %v1511
        %1530 = vmatmul.bf16.gmra.mxu0 %v1520
        %v1531 = vpop.f32.mrf.mxu0
        %v1532 = vadd.f32 %v1494, %v1531
        %v1533 = vpop.f32.mrf.mxu0
        %1534 = vdwg.mxu0
        %v1535 = vadd.f32 %v1459, %v1532
        %v1536 = vsel %vm639, %v1535, 0.0
        %1537 = vadd.xlane.f32.xlu0 %v1536
        %v1538 = vpop.xlane.xlu0 %1537
        %v1539 = vmul.f32 %v1538, %v957
        %v1540 = vsub.f32 %v1535, %v1539
        %v1541 = vmul.f32 %v1540, %v1540
        %v1542 = vsel %vm639, %v1541, 0.0
        %1543 = vadd.xlane.f32.xlu0 %v1542
        %v1544 = vpop.xlane.xlu0 %1543
        %v1545 = vmul.f32 %v1544, %v957
        %v1546 = vadd.f32 %v1545, 1e-05
        %v1547 = vrsqrt.pop %v1546
        %v1548 = vmul.f32 %v1547, %v1546
        %v1549 = vmul.f32 %v1548, %v1547
        %v1550 = vmul.f32 0.5, %v1549
        %v1551 = vsub.f32 1.5, %v1550
        %v1552 = vmul.f32 %v1547, %v1551
        %vm1553 = vweird.f32 %v1546
        %vm1554 = vweird.f32 %v1547
        %vm1555 = vmor %vm1553, %vm1554
        %v1556 = vsel %vm1555, %v1547, %v1552
        %v1557 = vmul.f32 %v1540, %v1556
        %v1558 = vperm.slane %v1109, 4
        %v1559 = vmul.f32 %v1557, %v1558
        %v1560 = vperm.slane %v1109, 5
        %v1561 = vadd.f32 %v1559, %v1560
        %v1562 = vld [vmem:[%s8] sm:$0xf]
        %v1563 = vld [vmem:[%s8 + $0x4] sm:$0xf]
        %v1564 = vld [vmem:[%s8 + $0x8] sm:$0xf]
        %v1565 = vld [vmem:[%s8 + $0xc] sm:$0xf]
        %v1566 = vld [vmem:[%s9] sm:$0xf]
        %v1567 = vld [vmem:[%s9 + $0x4] sm:$0xf]
        %v1568 = vld [vmem:[%s9 + $0x8] sm:$0xf]
        %v1569 = vld [vmem:[%s9 + $0xc] sm:$0xf]
        %v1570 = vld [vmem:[%s10] sm:$0xf]
        %v1571 = vld [vmem:[%s10 + $0x4] sm:$0xf]
        %v1572 = vld [vmem:[%s10 + $0x8] sm:$0xf]
        %v1573 = vld [vmem:[%s10 + $0xc] sm:$0xf]
        %v1574 = vld [vmem:[%s11] sm:$0xf]
        %v1575 = vld [vmem:[%s11 + $0x4] sm:$0xf]
        %v1576 = vld [vmem:[%s11 + $0x8] sm:$0xf]
        %v1577 = vld [vmem:[%s11 + $0xc] sm:$0xf]
        %v1578 = vld [vmem:[%s12] sm:$0xf]
        %v1579 = vld [vmem:[%s12 + $0x4] sm:$0xf]
        %v1580 = vld [vmem:[%s12 + $0x8] sm:$0xf]
        %v1581 = vld [vmem:[%s12 + $0xc] sm:$0xf]
        %v1582 = vld [vmem:[%s13] sm:$0xf]
        %v1583 = vld [vmem:[%s13 + $0x4] sm:$0xf]
        %v1584 = vld [vmem:[%s13 + $0x8] sm:$0xf]
        %v1585 = vld [vmem:[%s13 + $0xc] sm:$0xf]
        %v1586 = vld [vmem:[%s14] sm:$0xf]
        %v1587 = vld [vmem:[%s14 + $0x4] sm:$0xf]
        %v1588 = vld [vmem:[%s14 + $0x8] sm:$0xf]
        %v1589 = vld [vmem:[%s14 + $0xc] sm:$0xf]
        %v1590 = vld [vmem:[%s14 + $0x10] sm:$0xf]
        %v1591 = vld [vmem:[%s14 + $0x14] sm:$0xf]
        %v1592 = vld [vmem:[%s14 + $0x18] sm:$0xf]
        %v1593 = vld [vmem:[%s14 + $0x1c] sm:$0xf]
        %v1594 = vld [vmem:[%s15] sm:$0xff]
        %v1595 = vld [vmem:[%s15 + $0x8] sm:$0x3]
        %v1596 = vld [vmem:[%s16] sm:$0x1]
        %v1597 = vld [vmem:[%s17] sm:$0x1]
        %v1598 = vld [vmem:[%s18] sm:$0x1]
        %v1599 = vpack.c.bf16 %v1561, %v1561
        %v1601 = vperm.slane %v1596, 0
        %v1607 = vunpack.c.l.b16 %v1562
        %v1608 = vunpack.c.l.b16 %v1563
        %v1609 = vunpack.c.l.b16 %v1564
        %v1610 = vunpack.c.l.b16 %v1565
        %v1611 = vpack.c.b16 %v1608, %v1607
        %v1612 = vpack.c.b16 %v1610, %v1609
        %v1616 = vsel %vm639, %v1599, 0
        %1618 = vmatpush.bf16.msra.mxu0 0
        %1619 = vmatpush.bf16.msra.mxu0 0
        %1620 = vmatpush.bf16.msra.mxu0 0
        %1621 = vmatpush.bf16.msra.mxu0 0
        %1622 = vmatpush.bf16.msra.mxu0 0
        %1623 = vmatpush.bf16.msra.mxu0 0
        %1624 = vmatpush.bf16.msra.mxu0 %v1612
        %1625 = vmatpush.bf16.msra.mxu0 %v1611
        %1626 = vmatmul.bf16.gmra.mxu0 %v1616
        %v1627 = vpop.f32.mrf.mxu0
        %v1628 = vadd.f32 %v1601, %v1627
        %v1629 = vpop.f32.mrf.mxu0
        %1630 = vdwg.mxu0
        %1632 = vrot.lane.b32.xlu0 %v1628, 120
        %v1633 = vpop.permute.xlu0 %1632
        %1635 = vrot.lane.b32.xlu0 %v1628, 112
        %v1636 = vpop.permute.xlu0 %1635
        %1638 = vrot.lane.b32.xlu0 %v1628, 104
        %v1639 = vpop.permute.xlu0 %1638
        %v1641 = vpack.c.bf16 %v1628, %v1628
        %v1642 = vpack.c.bf16 %v1633, %v1633
        %v1643 = vpack.c.bf16 %v1636, %v1636
        %v1644 = vpack.c.bf16 %v1639, %v1639
        %v1646 = vunpack.c.l.b16 %v1641
        %v1647 = vpack.c.b16 %v1646, %v1646
        %1648 = vrot.lane.b32.xlu0 %v1647, 96
        %v1649 = vpop.permute.xlu0 %1648
        %v1651 = vsel %vm675, %v1641, 0
        %v1654 = vsel %vm675, %v1649, 0
        %1656 = vmatpush.bf16.xpose.msra.mxu0 0
        %1657 = vmatpush.bf16.xpose.msra.mxu0 0
        %1658 = vmatpush.bf16.xpose.msra.mxu0 0
        %1659 = vmatpush.bf16.xpose.msra.mxu0 0
        %1660 = vmatpush.bf16.xpose.msra.mxu0 0
        %1661 = vmatpush.bf16.xpose.msra.mxu0 0
        %1662 = vmatpush.bf16.xpose.msra.mxu0 0
        %1663 = vmatpush.bf16.xpose.msra.mxu0 %v1654
        %1664 = vmatmul.bf16.gmra.mxu0 %v1651
        %v1665 = vpop.f32.mrf.mxu0
        %v1666 = vadd.f32 0.0, %v1665
        %v1667 = vpop.f32.mrf.mxu0
        %1668 = vdwg.mxu0
        %v1670 = vunpack.c.l.b16 %v1642
        %v1671 = vpack.c.b16 %v1670, %v1670
        %1672 = vrot.lane.b32.xlu0 %v1671, 96
        %v1673 = vpop.permute.xlu0 %1672
        %v1675 = vsel %vm675, %v1642, 0
        %v1678 = vsel %vm675, %v1673, 0
        %1680 = vmatpush.bf16.xpose.msra.mxu0 0
        %1681 = vmatpush.bf16.xpose.msra.mxu0 0
        %1682 = vmatpush.bf16.xpose.msra.mxu0 0
        %1683 = vmatpush.bf16.xpose.msra.mxu0 0
        %1684 = vmatpush.bf16.xpose.msra.mxu0 0
        %1685 = vmatpush.bf16.xpose.msra.mxu0 0
        %1686 = vmatpush.bf16.xpose.msra.mxu0 0
        %1687 = vmatpush.bf16.xpose.msra.mxu0 %v1678
        %1688 = vmatmul.bf16.gmra.mxu0 %v1675
        %v1689 = vpop.f32.mrf.mxu0
        %v1690 = vadd.f32 0.0, %v1689
        %v1691 = vpop.f32.mrf.mxu0
        %1692 = vdwg.mxu0
        %v1694 = vunpack.c.l.b16 %v1643
        %v1695 = vpack.c.b16 %v1694, %v1694
        %1696 = vrot.lane.b32.xlu0 %v1695, 96
        %v1697 = vpop.permute.xlu0 %1696
        %v1699 = vsel %vm675, %v1643, 0
        %v1702 = vsel %vm675, %v1697, 0
        %1704 = vmatpush.bf16.xpose.msra.mxu0 0
        %1705 = vmatpush.bf16.xpose.msra.mxu0 0
        %1706 = vmatpush.bf16.xpose.msra.mxu0 0
        %1707 = vmatpush.bf16.xpose.msra.mxu0 0
        %1708 = vmatpush.bf16.xpose.msra.mxu0 0
        %1709 = vmatpush.bf16.xpose.msra.mxu0 0
        %1710 = vmatpush.bf16.xpose.msra.mxu0 0
        %1711 = vmatpush.bf16.xpose.msra.mxu0 %v1702
        %1712 = vmatmul.bf16.gmra.mxu0 %v1699
        %v1713 = vpop.f32.mrf.mxu0
        %v1714 = vadd.f32 0.0, %v1713
        %v1715 = vpop.f32.mrf.mxu0
        %1716 = vdwg.mxu0
        %v1718 = vunpack.c.l.b16 %v1644
        %v1719 = vpack.c.b16 %v1718, %v1718
        %1720 = vrot.lane.b32.xlu0 %v1719, 96
        %v1721 = vpop.permute.xlu0 %1720
        %v1723 = vsel %vm675, %v1644, 0
        %v1726 = vsel %vm675, %v1721, 0
        %1728 = vmatpush.bf16.xpose.msra.mxu0 0
        %1729 = vmatpush.bf16.xpose.msra.mxu0 0
        %1730 = vmatpush.bf16.xpose.msra.mxu0 0
        %1731 = vmatpush.bf16.xpose.msra.mxu0 0
        %1732 = vmatpush.bf16.xpose.msra.mxu0 0
        %1733 = vmatpush.bf16.xpose.msra.mxu0 0
        %1734 = vmatpush.bf16.xpose.msra.mxu0 0
        %1735 = vmatpush.bf16.xpose.msra.mxu0 %v1726
        %1736 = vmatmul.bf16.gmra.mxu0 %v1723
        %v1737 = vpop.f32.mrf.mxu0
        %v1738 = vadd.f32 0.0, %v1737
        %v1739 = vpop.f32.mrf.mxu0
        %1740 = vdwg.mxu0
        %v1741 = vsel %vm675, %v1666, -inf
        %1742 = vmax.xlane.f32.xlu0 %v1741
        %v1743 = vpop.xlane.xlu0 %1742
        %v1744 = vsel %vm675, %v1690, -inf
        %1745 = vmax.xlane.f32.xlu0 %v1744
        %v1746 = vpop.xlane.xlu0 %1745
        %v1747 = vsel %vm675, %v1714, -inf
        %1748 = vmax.xlane.f32.xlu0 %v1747
        %v1749 = vpop.xlane.xlu0 %1748
        %v1750 = vsel %vm675, %v1738, -inf
        %1751 = vmax.xlane.f32.xlu0 %v1750
        %v1752 = vpop.xlane.xlu0 %1751
        %v1753 = vsub.f32 %v1666, %v1743
        %v1754 = vsub.f32 %v1690, %v1746
        %v1755 = vsub.f32 %v1714, %v1749
        %v1756 = vsub.f32 %v1738, %v1752
        %v1757 = vmul.f32 %v1753, 1.442695
        %v1758 = vpow.pop %v1757
        %v1759 = vmul.f32 %v1754, 1.442695
        %v1760 = vpow.pop %v1759
        %v1761 = vmul.f32 %v1755, 1.442695
        %v1762 = vpow.pop %v1761
        %v1763 = vmul.f32 %v1756, 1.442695
        %v1764 = vpow.pop %v1763
        %v1765 = vsel %vm675, %v1758, 0.0
        %1766 = vadd.xlane.f32.xlu0 %v1765
        %v1767 = vpop.xlane.xlu0 %1766
        %v1768 = vsel %vm675, %v1760, 0.0
        %1769 = vadd.xlane.f32.xlu0 %v1768
        %v1770 = vpop.xlane.xlu0 %1769
        %v1771 = vsel %vm675, %v1762, 0.0
        %1772 = vadd.xlane.f32.xlu0 %v1771
        %v1773 = vpop.xlane.xlu0 %1772
        %v1774 = vsel %vm675, %v1764, 0.0
        %1775 = vadd.xlane.f32.xlu0 %v1774
        %v1776 = vpop.xlane.xlu0 %1775
        %v1777 = vrcp.pop %v1767
        %v1778 = vrcp.pop %v1770
        %v1779 = vrcp.pop %v1773
        %v1780 = vrcp.pop %v1776
        %v1781 = vmul.f32 %v1758, %v1777
        %v1782 = vmul.f32 %v1760, %v1778
        %v1783 = vmul.f32 %v1762, %v1779
        %v1784 = vmul.f32 %v1764, %v1780
        %v1785 = vpack.c.bf16 %v1781, %v1781
        %v1786 = vpack.c.bf16 %v1782, %v1782
        %v1787 = vpack.c.bf16 %v1783, %v1783
        %v1788 = vpack.c.bf16 %v1784, %v1784
        %1789 = vrot.lane.b32.xlu0 %v1647, 64
        %v1790 = vpop.permute.xlu0 %1789
        %v1792 = vsel %vm675, %v1785, 0
        %v1795 = vsel %vm820, %v1790, 0
        %1797 = vmatpush.bf16.msra.mxu0 0
        %1798 = vmatpush.bf16.msra.mxu0 0
        %1799 = vmatpush.bf16.msra.mxu0 0
        %1800 = vmatpush.bf16.msra.mxu0 0
        %1801 = vmatpush.bf16.msra.mxu0 0
        %1802 = vmatpush.bf16.msra.mxu0 0
        %1803 = vmatpush.bf16.msra.mxu0 0
        %1804 = vmatpush.bf16.msra.mxu0 %v1795
        %1805 = vmatmul.bf16.gmra.mxu0 %v1792
        %v1806 = vpop.f32.mrf.mxu0
        %v1807 = vadd.f32 0.0, %v1806
        %v1808 = vpop.f32.mrf.mxu0
        %1809 = vdwg.mxu0
        %1810 = vrot.lane.b32.xlu0 %v1671, 64
        %v1811 = vpop.permute.xlu0 %1810
        %v1813 = vsel %vm675, %v1786, 0
        %v1816 = vsel %vm820, %v1811, 0
        %1818 = vmatpush.bf16.msra.mxu0 0
        %1819 = vmatpush.bf16.msra.mxu0 0
        %1820 = vmatpush.bf16.msra.mxu0 0
        %1821 = vmatpush.bf16.msra.mxu0 0
        %1822 = vmatpush.bf16.msra.mxu0 0
        %1823 = vmatpush.bf16.msra.mxu0 0
        %1824 = vmatpush.bf16.msra.mxu0 0
        %1825 = vmatpush.bf16.msra.mxu0 %v1816
        %1826 = vmatmul.bf16.gmra.mxu0 %v1813
        %v1827 = vpop.f32.mrf.mxu0
        %v1828 = vadd.f32 0.0, %v1827
        %v1829 = vpop.f32.mrf.mxu0
        %1830 = vdwg.mxu0
        %1831 = vrot.lane.b32.xlu0 %v1695, 64
        %v1832 = vpop.permute.xlu0 %1831
        %v1834 = vsel %vm675, %v1787, 0
        %v1837 = vsel %vm820, %v1832, 0
        %1839 = vmatpush.bf16.msra.mxu0 0
        %1840 = vmatpush.bf16.msra.mxu0 0
        %1841 = vmatpush.bf16.msra.mxu0 0
        %1842 = vmatpush.bf16.msra.mxu0 0
        %1843 = vmatpush.bf16.msra.mxu0 0
        %1844 = vmatpush.bf16.msra.mxu0 0
        %1845 = vmatpush.bf16.msra.mxu0 0
        %1846 = vmatpush.bf16.msra.mxu0 %v1837
        %1847 = vmatmul.bf16.gmra.mxu0 %v1834
        %v1848 = vpop.f32.mrf.mxu0
        %v1849 = vadd.f32 0.0, %v1848
        %v1850 = vpop.f32.mrf.mxu0
        %1851 = vdwg.mxu0
        %1852 = vrot.lane.b32.xlu0 %v1719, 64
        %v1853 = vpop.permute.xlu0 %1852
        %v1855 = vsel %vm675, %v1788, 0
        %v1858 = vsel %vm820, %v1853, 0
        %1860 = vmatpush.bf16.msra.mxu0 0
        %1861 = vmatpush.bf16.msra.mxu0 0
        %1862 = vmatpush.bf16.msra.mxu0 0
        %1863 = vmatpush.bf16.msra.mxu0 0
        %1864 = vmatpush.bf16.msra.mxu0 0
        %1865 = vmatpush.bf16.msra.mxu0 0
        %1866 = vmatpush.bf16.msra.mxu0 0
        %1867 = vmatpush.bf16.msra.mxu0 %v1858
        %1868 = vmatmul.bf16.gmra.mxu0 %v1855
        %v1869 = vpop.f32.mrf.mxu0
        %v1870 = vadd.f32 0.0, %v1869
        %v1871 = vpop.f32.mrf.mxu0
        %1872 = vdwg.mxu0
        %1874 = vrot.lane.b32.xlu0 %v1828, 8
        %v1875 = vpop.permute.xlu0 %1874
        %1878 = vrot.lane.b32.xlu0 %v1849, 16
        %v1879 = vpop.permute.xlu0 %1878
        %1882 = vrot.lane.b32.xlu0 %v1870, 24
        %v1883 = vpop.permute.xlu0 %1882
        %v1885 = vsel %vm675, %v1807, %v1875
        %v1886 = vsel %vm913, %v1885, %v1879
        %v1887 = vsel %vm915, %v1886, %v1883
        %v1888 = vpack.c.bf16 %v1887, %v1887
        %v1889 = vperm.slane %v1594, 0
        %v1894 = vunpack.c.l.b16 %v1566
        %v1895 = vunpack.c.l.b16 %v1567
        %v1896 = vunpack.c.l.b16 %v1568
        %v1897 = vunpack.c.l.b16 %v1569
        %v1898 = vpack.c.b16 %v1895, %v1894
        %v1899 = vpack.c.b16 %v1897, %v1896
        %v1903 = vsel %vm639, %v1888, 0
        %1905 = vmatpush.bf16.msra.mxu0 0
        %1906 = vmatpush.bf16.msra.mxu0 0
        %1907 = vmatpush.bf16.msra.mxu0 0
        %1908 = vmatpush.bf16.msra.mxu0 0
        %1909 = vmatpush.bf16.msra.mxu0 0
        %1910 = vmatpush.bf16.msra.mxu0 0
        %1911 = vmatpush.bf16.msra.mxu0 %v1899
        %1912 = vmatpush.bf16.msra.mxu0 %v1898
        %1913 = vmatmul.bf16.gmra.mxu0 %v1903
        %v1914 = vpop.f32.mrf.mxu0
        %v1915 = vadd.f32 %v1889, %v1914
        %v1916 = vpop.f32.mrf.mxu0
        %1917 = vdwg.mxu0
        %v1918 = vadd.f32 %v1561, %v1915
        %v1919 = vsel %vm639, %v1918, 0.0
        %1920 = vadd.xlane.f32.xlu0 %v1919
        %v1921 = vpop.xlane.xlu0 %1920
        %v1922 = vmul.f32 %v1921, %v957
        %v1923 = vsub.f32 %v1918, %v1922
        %v1924 = vmul.f32 %v1923, %v1923
        %v1925 = vsel %vm639, %v1924, 0.0
        %1926 = vadd.xlane.f32.xlu0 %v1925
        %v1927 = vpop.xlane.xlu0 %1926
        %v1928 = vmul.f32 %v1927, %v957
        %v1929 = vadd.f32 %v1928, 1e-05
        %v1930 = vrsqrt.pop %v1929
        %v1931 = vmul.f32 %v1930, %v1929
        %v1932 = vmul.f32 %v1931, %v1930
        %v1933 = vmul.f32 0.5, %v1932
        %v1934 = vsub.f32 1.5, %v1933
        %v1935 = vmul.f32 %v1930, %v1934
        %vm1936 = vweird.f32 %v1929
        %vm1937 = vweird.f32 %v1930
        %vm1938 = vmor %vm1936, %vm1937
        %v1939 = vsel %vm1938, %v1930, %v1935
        %v1940 = vmul.f32 %v1923, %v1939
        %v1941 = vperm.slane %v1594, 1
        %v1942 = vmul.f32 %v1940, %v1941
        %v1943 = vperm.slane %v1594, 2
        %v1944 = vadd.f32 %v1942, %v1943
        %v1945 = vpack.c.bf16 %v1944, %v1944
        %v1946 = vperm.slane %v1594, 3
        %v1951 = vunpack.c.l.b16 %v1570
        %v1952 = vunpack.c.l.b16 %v1571
        %v1953 = vunpack.c.l.b16 %v1572
        %v1954 = vunpack.c.l.b16 %v1573
        %v1955 = vpack.c.b16 %v1952, %v1951
        %v1956 = vpack.c.b16 %v1954, %v1953
        %v1960 = vsel %vm639, %v1945, 0
        %1962 = vmatpush.bf16.msra.mxu0 0
        %1963 = vmatpush.bf16.msra.mxu0 0
        %1964 = vmatpush.bf16.msra.mxu0 0
        %1965 = vmatpush.bf16.msra.mxu0 0
        %1966 = vmatpush.bf16.msra.mxu0 0
        %1967 = vmatpush.bf16.msra.mxu0 0
        %1968 = vmatpush.bf16.msra.mxu0 %v1956
        %1969 = vmatpush.bf16.msra.mxu0 %v1955
        %1970 = vmatmul.bf16.gmra.mxu0 %v1960
        %v1971 = vpop.f32.mrf.mxu0
        %v1972 = vadd.f32 %v1946, %v1971
        %v1973 = vpop.f32.mrf.mxu0
        %1974 = vdwg.mxu0
        %v1976 = vperm.slane %v1597, 0
        %v1982 = vunpack.c.l.b16 %v1574
        %v1983 = vunpack.c.l.b16 %v1575
        %v1984 = vunpack.c.l.b16 %v1576
        %v1985 = vunpack.c.l.b16 %v1577
        %v1986 = vpack.c.b16 %v1983, %v1982
        %v1987 = vpack.c.b16 %v1985, %v1984
        %1990 = vmatpush.bf16.msra.mxu0 0
        %1991 = vmatpush.bf16.msra.mxu0 0
        %1992 = vmatpush.bf16.msra.mxu0 0
        %1993 = vmatpush.bf16.msra.mxu0 0
        %1994 = vmatpush.bf16.msra.mxu0 0
        %1995 = vmatpush.bf16.msra.mxu0 0
        %1996 = vmatpush.bf16.msra.mxu0 %v1987
        %1997 = vmatpush.bf16.msra.mxu0 %v1986
        %1998 = vmatmul.bf16.gmra.mxu0 %v1616
        %v1999 = vpop.f32.mrf.mxu0
        %v2000 = vadd.f32 %v1976, %v1999
        %v2001 = vpop.f32.mrf.mxu0
        %2002 = vdwg.mxu0
        %2004 = vrot.lane.b32.xlu0 %v1972, 120
        %v2005 = vpop.permute.xlu0 %2004
        %2007 = vrot.lane.b32.xlu0 %v1972, 112
        %v2008 = vpop.permute.xlu0 %2007
        %2010 = vrot.lane.b32.xlu0 %v1972, 104
        %v2011 = vpop.permute.xlu0 %2010
        %v2013 = vpack.c.bf16 %v1972, %v1972
        %v2014 = vpack.c.bf16 %v2005, %v2005
        %v2015 = vpack.c.bf16 %v2008, %v2008
        %v2016 = vpack.c.bf16 %v2011, %v2011
        %2018 = vrot.lane.b32.xlu0 %v2000, 120
        %v2019 = vpop.permute.xlu0 %2018
        %2021 = vrot.lane.b32.xlu0 %v2000, 112
        %v2022 = vpop.permute.xlu0 %2021
        %2024 = vrot.lane.b32.xlu0 %v2000, 104
        %v2025 = vpop.permute.xlu0 %2024
        %v2027 = vpack.c.bf16 %v2000, %v2000
        %v2028 = vpack.c.bf16 %v2019, %v2019
        %v2029 = vpack.c.bf16 %v2022, %v2022
        %v2030 = vpack.c.bf16 %v2025, %v2025
        %v2032 = vsel %vm675, %v2013, 0
        %v2035 = vsel %vm675, %v2027, 0
        %2037 = vmatpush.bf16.xpose.msra.mxu0 0
        %2038 = vmatpush.bf16.xpose.msra.mxu0 0
        %2039 = vmatpush.bf16.xpose.msra.mxu0 0
        %2040 = vmatpush.bf16.xpose.msra.mxu0 0
        %2041 = vmatpush.bf16.xpose.msra.mxu0 0
        %2042 = vmatpush.bf16.xpose.msra.mxu0 0
        %2043 = vmatpush.bf16.xpose.msra.mxu0 0
        %2044 = vmatpush.bf16.xpose.msra.mxu0 %v2035
        %2045 = vmatmul.bf16.gmra.mxu0 %v2032
        %v2046 = vpop.f32.mrf.mxu0
        %v2047 = vadd.f32 0.0, %v2046
        %v2048 = vpop.f32.mrf.mxu0
        %2049 = vdwg.mxu0
        %v2051 = vsel %vm675, %v2014, 0
        %v2054 = vsel %vm675, %v2028, 0
        %2056 = vmatpush.bf16.xpose.msra.mxu0 0
        %2057 = vmatpush.bf16.xpose.msra.mxu0 0
        %2058 = vmatpush.bf16.xpose.msra.mxu0 0
        %2059 = vmatpush.bf16.xpose.msra.mxu0 0
        %2060 = vmatpush.bf16.xpose.msra.mxu0 0
        %2061 = vmatpush.bf16.xpose.msra.mxu0 0
        %2062 = vmatpush.bf16.xpose.msra.mxu0 0
        %2063 = vmatpush.bf16.xpose.msra.mxu0 %v2054
        %2064 = vmatmul.bf16.gmra.mxu0 %v2051
        %v2065 = vpop.f32.mrf.mxu0
        %v2066 = vadd.f32 0.0, %v2065
        %v2067 = vpop.f32.mrf.mxu0
        %2068 = vdwg.mxu0
        %v2070 = vsel %vm675, %v2015, 0
        %v2073 = vsel %vm675, %v2029, 0
        %2075 = vmatpush.bf16.xpose.msra.mxu0 0
        %2076 = vmatpush.bf16.xpose.msra.mxu0 0
        %2077 = vmatpush.bf16.xpose.msra.mxu0 0
        %2078 = vmatpush.bf16.xpose.msra.mxu0 0
        %2079 = vmatpush.bf16.xpose.msra.mxu0 0
        %2080 = vmatpush.bf16.xpose.msra.mxu0 0
        %2081 = vmatpush.bf16.xpose.msra.mxu0 0
        %2082 = vmatpush.bf16.xpose.msra.mxu0 %v2073
        %2083 = vmatmul.bf16.gmra.mxu0 %v2070
        %v2084 = vpop.f32.mrf.mxu0
        %v2085 = vadd.f32 0.0, %v2084
        %v2086 = vpop.f32.mrf.mxu0
        %2087 = vdwg.mxu0
        %v2089 = vsel %vm675, %v2016, 0
        %v2092 = vsel %vm675, %v2030, 0
        %2094 = vmatpush.bf16.xpose.msra.mxu0 0
        %2095 = vmatpush.bf16.xpose.msra.mxu0 0
        %2096 = vmatpush.bf16.xpose.msra.mxu0 0
        %2097 = vmatpush.bf16.xpose.msra.mxu0 0
        %2098 = vmatpush.bf16.xpose.msra.mxu0 0
        %2099 = vmatpush.bf16.xpose.msra.mxu0 0
        %2100 = vmatpush.bf16.xpose.msra.mxu0 0
        %2101 = vmatpush.bf16.xpose.msra.mxu0 %v2092
        %2102 = vmatmul.bf16.gmra.mxu0 %v2089
        %v2103 = vpop.f32.mrf.mxu0
        %v2104 = vadd.f32 0.0, %v2103
        %v2105 = vpop.f32.mrf.mxu0
        %2106 = vdwg.mxu0
        %v2107 = vsel %vm675, %v2047, -inf
        %2108 = vmax.xlane.f32.xlu0 %v2107
        %v2109 = vpop.xlane.xlu0 %2108
        %v2110 = vsel %vm675, %v2066, -inf
        %2111 = vmax.xlane.f32.xlu0 %v2110
        %v2112 = vpop.xlane.xlu0 %2111
        %v2113 = vsel %vm675, %v2085, -inf
        %2114 = vmax.xlane.f32.xlu0 %v2113
        %v2115 = vpop.xlane.xlu0 %2114
        %v2116 = vsel %vm675, %v2104, -inf
        %2117 = vmax.xlane.f32.xlu0 %v2116
        %v2118 = vpop.xlane.xlu0 %2117
        %v2119 = vsub.f32 %v2047, %v2109
        %v2120 = vsub.f32 %v2066, %v2112
        %v2121 = vsub.f32 %v2085, %v2115
        %v2122 = vsub.f32 %v2104, %v2118
        %v2123 = vmul.f32 %v2119, 1.442695
        %v2124 = vpow.pop %v2123
        %v2125 = vmul.f32 %v2120, 1.442695
        %v2126 = vpow.pop %v2125
        %v2127 = vmul.f32 %v2121, 1.442695
        %v2128 = vpow.pop %v2127
        %v2129 = vmul.f32 %v2122, 1.442695
        %v2130 = vpow.pop %v2129
        %v2131 = vsel %vm675, %v2124, 0.0
        %2132 = vadd.xlane.f32.xlu0 %v2131
        %v2133 = vpop.xlane.xlu0 %2132
        %v2134 = vsel %vm675, %v2126, 0.0
        %2135 = vadd.xlane.f32.xlu0 %v2134
        %v2136 = vpop.xlane.xlu0 %2135
        %v2137 = vsel %vm675, %v2128, 0.0
        %2138 = vadd.xlane.f32.xlu0 %v2137
        %v2139 = vpop.xlane.xlu0 %2138
        %v2140 = vsel %vm675, %v2130, 0.0
        %2141 = vadd.xlane.f32.xlu0 %v2140
        %v2142 = vpop.xlane.xlu0 %2141
        %v2143 = vrcp.pop %v2133
        %v2144 = vrcp.pop %v2136
        %v2145 = vrcp.pop %v2139
        %v2146 = vrcp.pop %v2142
        %v2147 = vmul.f32 %v2124, %v2143
        %v2148 = vmul.f32 %v2126, %v2144
        %v2149 = vmul.f32 %v2128, %v2145
        %v2150 = vmul.f32 %v2130, %v2146
        %v2151 = vpack.c.bf16 %v2147, %v2147
        %v2152 = vpack.c.bf16 %v2148, %v2148
        %v2153 = vpack.c.bf16 %v2149, %v2149
        %v2154 = vpack.c.bf16 %v2150, %v2150
        %v2156 = vunpack.c.l.b16 %v2027
        %v2157 = vpack.c.b16 %v2156, %v2156
        %2158 = vrot.lane.b32.xlu0 %v2157, 96
        %v2159 = vpop.permute.xlu0 %2158
        %v2161 = vsel %vm675, %v2151, 0
        %v2164 = vsel %vm820, %v2159, 0
        %2166 = vmatpush.bf16.msra.mxu0 0
        %2167 = vmatpush.bf16.msra.mxu0 0
        %2168 = vmatpush.bf16.msra.mxu0 0
        %2169 = vmatpush.bf16.msra.mxu0 0
        %2170 = vmatpush.bf16.msra.mxu0 0
        %2171 = vmatpush.bf16.msra.mxu0 0
        %2172 = vmatpush.bf16.msra.mxu0 0
        %2173 = vmatpush.bf16.msra.mxu0 %v2164
        %2174 = vmatmul.bf16.gmra.mxu0 %v2161
        %v2175 = vpop.f32.mrf.mxu0
        %v2176 = vadd.f32 0.0, %v2175
        %v2177 = vpop.f32.mrf.mxu0
        %2178 = vdwg.mxu0
        %v2180 = vunpack.c.l.b16 %v2028
        %v2181 = vpack.c.b16 %v2180, %v2180
        %2182 = vrot.lane.b32.xlu0 %v2181, 96
        %v2183 = vpop.permute.xlu0 %2182
        %v2185 = vsel %vm675, %v2152, 0
        %v2188 = vsel %vm820, %v2183, 0
        %2190 = vmatpush.bf16.msra.mxu0 0
        %2191 = vmatpush.bf16.msra.mxu0 0
        %2192 = vmatpush.bf16.msra.mxu0 0
        %2193 = vmatpush.bf16.msra.mxu0 0
        %2194 = vmatpush.bf16.msra.mxu0 0
        %2195 = vmatpush.bf16.msra.mxu0 0
        %2196 = vmatpush.bf16.msra.mxu0 0
        %2197 = vmatpush.bf16.msra.mxu0 %v2188
        %2198 = vmatmul.bf16.gmra.mxu0 %v2185
        %v2199 = vpop.f32.mrf.mxu0
        %v2200 = vadd.f32 0.0, %v2199
        %v2201 = vpop.f32.mrf.mxu0
        %2202 = vdwg.mxu0
        %v2204 = vunpack.c.l.b16 %v2029
        %v2205 = vpack.c.b16 %v2204, %v2204
        %2206 = vrot.lane.b32.xlu0 %v2205, 96
        %v2207 = vpop.permute.xlu0 %2206
        %v2209 = vsel %vm675, %v2153, 0
        %v2212 = vsel %vm820, %v2207, 0
        %2214 = vmatpush.bf16.msra.mxu0 0
        %2215 = vmatpush.bf16.msra.mxu0 0
        %2216 = vmatpush.bf16.msra.mxu0 0
        %2217 = vmatpush.bf16.msra.mxu0 0
        %2218 = vmatpush.bf16.msra.mxu0 0
        %2219 = vmatpush.bf16.msra.mxu0 0
        %2220 = vmatpush.bf16.msra.mxu0 0
        %2221 = vmatpush.bf16.msra.mxu0 %v2212
        %2222 = vmatmul.bf16.gmra.mxu0 %v2209
        %v2223 = vpop.f32.mrf.mxu0
        %v2224 = vadd.f32 0.0, %v2223
        %v2225 = vpop.f32.mrf.mxu0
        %2226 = vdwg.mxu0
        %v2228 = vunpack.c.l.b16 %v2030
        %v2229 = vpack.c.b16 %v2228, %v2228
        %2230 = vrot.lane.b32.xlu0 %v2229, 96
        %v2231 = vpop.permute.xlu0 %2230
        %v2233 = vsel %vm675, %v2154, 0
        %v2236 = vsel %vm820, %v2231, 0
        %2238 = vmatpush.bf16.msra.mxu0 0
        %2239 = vmatpush.bf16.msra.mxu0 0
        %2240 = vmatpush.bf16.msra.mxu0 0
        %2241 = vmatpush.bf16.msra.mxu0 0
        %2242 = vmatpush.bf16.msra.mxu0 0
        %2243 = vmatpush.bf16.msra.mxu0 0
        %2244 = vmatpush.bf16.msra.mxu0 0
        %2245 = vmatpush.bf16.msra.mxu0 %v2236
        %2246 = vmatmul.bf16.gmra.mxu0 %v2233
        %v2247 = vpop.f32.mrf.mxu0
        %v2248 = vadd.f32 0.0, %v2247
        %v2249 = vpop.f32.mrf.mxu0
        %2250 = vdwg.mxu0
        %2252 = vrot.lane.b32.xlu0 %v2200, 8
        %v2253 = vpop.permute.xlu0 %2252
        %2256 = vrot.lane.b32.xlu0 %v2224, 16
        %v2257 = vpop.permute.xlu0 %2256
        %2260 = vrot.lane.b32.xlu0 %v2248, 24
        %v2261 = vpop.permute.xlu0 %2260
        %v2263 = vsel %vm675, %v2176, %v2253
        %v2264 = vsel %vm913, %v2263, %v2257
        %v2265 = vsel %vm915, %v2264, %v2261
        %v2266 = vpack.c.bf16 %v2265, %v2265
        %v2267 = vperm.slane %v1594, 4
        %v2272 = vunpack.c.l.b16 %v1578
        %v2273 = vunpack.c.l.b16 %v1579
        %v2274 = vunpack.c.l.b16 %v1580
        %v2275 = vunpack.c.l.b16 %v1581
        %v2276 = vpack.c.b16 %v2273, %v2272
        %v2277 = vpack.c.b16 %v2275, %v2274
        %v2281 = vsel %vm639, %v2266, 0
        %2283 = vmatpush.bf16.msra.mxu0 0
        %2284 = vmatpush.bf16.msra.mxu0 0
        %2285 = vmatpush.bf16.msra.mxu0 0
        %2286 = vmatpush.bf16.msra.mxu0 0
        %2287 = vmatpush.bf16.msra.mxu0 0
        %2288 = vmatpush.bf16.msra.mxu0 0
        %2289 = vmatpush.bf16.msra.mxu0 %v2277
        %2290 = vmatpush.bf16.msra.mxu0 %v2276
        %2291 = vmatmul.bf16.gmra.mxu0 %v2281
        %v2292 = vpop.f32.mrf.mxu0
        %v2293 = vadd.f32 %v2267, %v2292
        %v2294 = vpop.f32.mrf.mxu0
        %2295 = vdwg.mxu0
        %v2296 = vadd.f32 %v1944, %v2293
        %v2297 = vsel %vm639, %v2296, 0.0
        %2298 = vadd.xlane.f32.xlu0 %v2297
        %v2299 = vpop.xlane.xlu0 %2298
        %v2300 = vmul.f32 %v2299, %v957
        %v2301 = vsub.f32 %v2296, %v2300
        %v2302 = vmul.f32 %v2301, %v2301
        %v2303 = vsel %vm639, %v2302, 0.0
        %2304 = vadd.xlane.f32.xlu0 %v2303
        %v2305 = vpop.xlane.xlu0 %2304
        %v2306 = vmul.f32 %v2305, %v957
        %v2307 = vadd.f32 %v2306, 1e-05
        %v2308 = vrsqrt.pop %v2307
        %v2309 = vmul.f32 %v2308, %v2307
        %v2310 = vmul.f32 %v2309, %v2308
        %v2311 = vmul.f32 0.5, %v2310
        %v2312 = vsub.f32 1.5, %v2311
        %v2313 = vmul.f32 %v2308, %v2312
        %vm2314 = vweird.f32 %v2307
        %vm2315 = vweird.f32 %v2308
        %vm2316 = vmor %vm2314, %vm2315
        %v2317 = vsel %vm2316, %v2308, %v2313
        %v2318 = vmul.f32 %v2301, %v2317
        %v2319 = vperm.slane %v1594, 5
        %v2320 = vmul.f32 %v2318, %v2319
        %v2321 = vperm.slane %v1594, 6
        %v2322 = vadd.f32 %v2320, %v2321
        %v2323 = vpack.c.bf16 %v2322, %v2322
        %v2325 = vperm.slane %v1598, 0
        %v2331 = vunpack.c.l.b16 %v1582
        %v2332 = vunpack.c.l.b16 %v1583
        %v2333 = vunpack.c.l.b16 %v1584
        %v2334 = vunpack.c.l.b16 %v1585
        %v2335 = vpack.c.b16 %v2332, %v2331
        %v2336 = vpack.c.b16 %v2334, %v2333
        %v2340 = vsel %vm639, %v2323, 0
        %2342 = vmatpush.bf16.msra.mxu0 0
        %2343 = vmatpush.bf16.msra.mxu0 0
        %2344 = vmatpush.bf16.msra.mxu0 0
        %2345 = vmatpush.bf16.msra.mxu0 0
        %2346 = vmatpush.bf16.msra.mxu0 0
        %2347 = vmatpush.bf16.msra.mxu0 0
        %2348 = vmatpush.bf16.msra.mxu0 %v2336
        %2349 = vmatpush.bf16.msra.mxu0 %v2335
        %2350 = vmatmul.bf16.gmra.mxu0 %v2340
        %v2351 = vpop.f32.mrf.mxu0
        %v2352 = vadd.f32 %v2325, %v2351
        %v2353 = vpop.f32.mrf.mxu0
        %2354 = vdwg.mxu0
        %v2355 = vmax.f32 %v2352, 0.0
        %v2356 = vpack.c.bf16 %v2355, %v2355
        %v2357 = vperm.slane %v1594, 7
        %v2366 = vunpack.c.l.b16 %v1586
        %v2367 = vunpack.c.l.b16 %v1587
        %v2368 = vunpack.c.l.b16 %v1588
        %v2369 = vunpack.c.l.b16 %v1589
        %v2370 = vunpack.c.l.b16 %v1590
        %v2371 = vunpack.c.l.b16 %v1591
        %v2372 = vunpack.c.l.b16 %v1592
        %v2373 = vunpack.c.l.b16 %v1593
        %v2374 = vpack.c.b16 %v2367, %v2366
        %v2375 = vpack.c.b16 %v2369, %v2368
        %v2376 = vpack.c.b16 %v2371, %v2370
        %v2377 = vpack.c.b16 %v2373, %v2372
        %v2383 = vsel %vm1040, %v2356, 0
        %2385 = vmatpush.bf16.msra.mxu0 0
        %2386 = vmatpush.bf16.msra.mxu0 0
        %2387 = vmatpush.bf16.msra.mxu0 0
        %2388 = vmatpush.bf16.msra.mxu0 0
        %2389 = vmatpush.bf16.msra.mxu0 %v2377
        %2390 = vmatpush.bf16.msra.mxu0 %v2376
        %2391 = vmatpush.bf16.msra.mxu0 %v2375
        %2392 = vmatpush.bf16.msra.mxu0 %v2374
        %2393 = vmatmul.bf16.gmra.mxu0 %v2383
        %v2394 = vpop.f32.mrf.mxu0
        %v2395 = vadd.f32 %v2357, %v2394
        %v2396 = vpop.f32.mrf.mxu0
        %2397 = vdwg.mxu0
        %v2398 = vadd.f32 %v2322, %v2395
        %v2399 = vsel %vm639, %v2398, 0.0
        %2400 = vadd.xlane.f32.xlu0 %v2399
        %v2401 = vpop.xlane.xlu0 %2400
        %v2402 = vmul.f32 %v2401, %v957
        %v2403 = vsub.f32 %v2398, %v2402
        %v2404 = vmul.f32 %v2403, %v2403
        %v2405 = vsel %vm639, %v2404, 0.0
        %2406 = vadd.xlane.f32.xlu0 %v2405
        %v2407 = vpop.xlane.xlu0 %2406
        %v2408 = vmul.f32 %v2407, %v957
        %v2409 = vadd.f32 %v2408, 1e-05
        %v2410 = vrsqrt.pop %v2409
        %v2411 = vmul.f32 %v2410, %v2409
        %v2412 = vmul.f32 %v2411, %v2410
        %v2413 = vmul.f32 0.5, %v2412
        %v2414 = vsub.f32 1.5, %v2413
        %v2415 = vmul.f32 %v2410, %v2414
        %vm2416 = vweird.f32 %v2409
        %vm2417 = vweird.f32 %v2410
        %vm2418 = vmor %vm2416, %vm2417
        %v2419 = vsel %vm2418, %v2410, %v2415
        %v2420 = vmul.f32 %v2403, %v2419
        %v2421 = vperm.slane %v1595, 0
        %v2422 = vmul.f32 %v2420, %v2421
        %v2423 = vperm.slane %v1595, 1
        %v2424 = vadd.f32 %v2422, %v2423
        %s2425 = scalar_lea.vmem %s8, 16
        %v2426 = vld [vmem:[%s2425] sm:$0xf]
        %v2427 = vld [vmem:[%s2425 + $0x4] sm:$0xf]
        %v2428 = vld [vmem:[%s2425 + $0x8] sm:$0xf]
        %v2429 = vld [vmem:[%s2425 + $0xc] sm:$0xf]
        %s2430 = scalar_lea.vmem %s9, 16
        %v2431 = vld [vmem:[%s2430] sm:$0xf]
        %v2432 = vld [vmem:[%s2430 + $0x4] sm:$0xf]
        %v2433 = vld [vmem:[%s2430 + $0x8] sm:$0xf]
        %v2434 = vld [vmem:[%s2430 + $0xc] sm:$0xf]
        %s2435 = scalar_lea.vmem %s10, 16
        %v2436 = vld [vmem:[%s2435] sm:$0xf]
        %v2437 = vld [vmem:[%s2435 + $0x4] sm:$0xf]
        %v2438 = vld [vmem:[%s2435 + $0x8] sm:$0xf]
        %v2439 = vld [vmem:[%s2435 + $0xc] sm:$0xf]
        %s2440 = scalar_lea.vmem %s11, 16
        %v2441 = vld [vmem:[%s2440] sm:$0xf]
        %v2442 = vld [vmem:[%s2440 + $0x4] sm:$0xf]
        %v2443 = vld [vmem:[%s2440 + $0x8] sm:$0xf]
        %v2444 = vld [vmem:[%s2440 + $0xc] sm:$0xf]
        %s2445 = scalar_lea.vmem %s12, 16
        %v2446 = vld [vmem:[%s2445] sm:$0xf]
        %v2447 = vld [vmem:[%s2445 + $0x4] sm:$0xf]
        %v2448 = vld [vmem:[%s2445 + $0x8] sm:$0xf]
        %v2449 = vld [vmem:[%s2445 + $0xc] sm:$0xf]
        %s2450 = scalar_lea.vmem %s13, 16
        %v2451 = vld [vmem:[%s2450] sm:$0xf]
        %v2452 = vld [vmem:[%s2450 + $0x4] sm:$0xf]
        %v2453 = vld [vmem:[%s2450 + $0x8] sm:$0xf]
        %v2454 = vld [vmem:[%s2450 + $0xc] sm:$0xf]
        %s2455 = scalar_lea.vmem %s14, 32
        %v2456 = vld [vmem:[%s2455] sm:$0xf]
        %v2457 = vld [vmem:[%s2455 + $0x4] sm:$0xf]
        %v2458 = vld [vmem:[%s2455 + $0x8] sm:$0xf]
        %v2459 = vld [vmem:[%s2455 + $0xc] sm:$0xf]
        %v2460 = vld [vmem:[%s2455 + $0x10] sm:$0xf]
        %v2461 = vld [vmem:[%s2455 + $0x14] sm:$0xf]
        %v2462 = vld [vmem:[%s2455 + $0x18] sm:$0xf]
        %v2463 = vld [vmem:[%s2455 + $0x1c] sm:$0xf]
        %s2464 = scalar_lea.vmem %s15, 16
        %v2465 = vld [vmem:[%s2464] sm:$0xff]
        %v2466 = vld [vmem:[%s2464 + $0x8] sm:$0x3]
        %s2467 = scalar_lea.vmem %s16, 1
        %v2468 = vld [vmem:[%s2467] sm:$0x1]
        %s2469 = scalar_lea.vmem %s17, 1
        %v2470 = vld [vmem:[%s2469] sm:$0x1]
        %s2471 = scalar_lea.vmem %s18, 1
        %v2472 = vld [vmem:[%s2471] sm:$0x1]
        %v2473 = vpack.c.bf16 %v2424, %v2424
        %v2475 = vperm.slane %v2468, 0
        %v2481 = vunpack.c.l.b16 %v2426
        %v2482 = vunpack.c.l.b16 %v2427
        %v2483 = vunpack.c.l.b16 %v2428
        %v2484 = vunpack.c.l.b16 %v2429
        %v2485 = vpack.c.b16 %v2482, %v2481
        %v2486 = vpack.c.b16 %v2484, %v2483
        %v2490 = vsel %vm639, %v2473, 0
        %2492 = vmatpush.bf16.msra.mxu0 0
        %2493 = vmatpush.bf16.msra.mxu0 0
        %2494 = vmatpush.bf16.msra.mxu0 0
        %2495 = vmatpush.bf16.msra.mxu0 0
        %2496 = vmatpush.bf16.msra.mxu0 0
        %2497 = vmatpush.bf16.msra.mxu0 0
        %2498 = vmatpush.bf16.msra.mxu0 %v2486
        %2499 = vmatpush.bf16.msra.mxu0 %v2485
        %2500 = vmatmul.bf16.gmra.mxu0 %v2490
        %v2501 = vpop.f32.mrf.mxu0
        %v2502 = vadd.f32 %v2475, %v2501
        %v2503 = vpop.f32.mrf.mxu0
        %2504 = vdwg.mxu0
        %2506 = vrot.lane.b32.xlu0 %v2502, 120
        %v2507 = vpop.permute.xlu0 %2506
        %2509 = vrot.lane.b32.xlu0 %v2502, 112
        %v2510 = vpop.permute.xlu0 %2509
        %2512 = vrot.lane.b32.xlu0 %v2502, 104
        %v2513 = vpop.permute.xlu0 %2512
        %v2515 = vpack.c.bf16 %v2502, %v2502
        %v2516 = vpack.c.bf16 %v2507, %v2507
        %v2517 = vpack.c.bf16 %v2510, %v2510
        %v2518 = vpack.c.bf16 %v2513, %v2513
        %v2520 = vunpack.c.l.b16 %v2515
        %v2521 = vpack.c.b16 %v2520, %v2520
        %2522 = vrot.lane.b32.xlu0 %v2521, 96
        %v2523 = vpop.permute.xlu0 %2522
        %v2525 = vsel %vm675, %v2515, 0
        %v2528 = vsel %vm675, %v2523, 0
        %2530 = vmatpush.bf16.xpose.msra.mxu0 0
        %2531 = vmatpush.bf16.xpose.msra.mxu0 0
        %2532 = vmatpush.bf16.xpose.msra.mxu0 0
        %2533 = vmatpush.bf16.xpose.msra.mxu0 0
        %2534 = vmatpush.bf16.xpose.msra.mxu0 0
        %2535 = vmatpush.bf16.xpose.msra.mxu0 0
        %2536 = vmatpush.bf16.xpose.msra.mxu0 0
        %2537 = vmatpush.bf16.xpose.msra.mxu0 %v2528
        %2538 = vmatmul.bf16.gmra.mxu0 %v2525
        %v2539 = vpop.f32.mrf.mxu0
        %v2540 = vadd.f32 0.0, %v2539
        %v2541 = vpop.f32.mrf.mxu0
        %2542 = vdwg.mxu0
        %v2544 = vunpack.c.l.b16 %v2516
        %v2545 = vpack.c.b16 %v2544, %v2544
        %2546 = vrot.lane.b32.xlu0 %v2545, 96
        %v2547 = vpop.permute.xlu0 %2546
        %v2549 = vsel %vm675, %v2516, 0
        %v2552 = vsel %vm675, %v2547, 0
        %2554 = vmatpush.bf16.xpose.msra.mxu0 0
        %2555 = vmatpush.bf16.xpose.msra.mxu0 0
        %2556 = vmatpush.bf16.xpose.msra.mxu0 0
        %2557 = vmatpush.bf16.xpose.msra.mxu0 0
        %2558 = vmatpush.bf16.xpose.msra.mxu0 0
        %2559 = vmatpush.bf16.xpose.msra.mxu0 0
        %2560 = vmatpush.bf16.xpose.msra.mxu0 0
        %2561 = vmatpush.bf16.xpose.msra.mxu0 %v2552
        %2562 = vmatmul.bf16.gmra.mxu0 %v2549
        %v2563 = vpop.f32.mrf.mxu0
        %v2564 = vadd.f32 0.0, %v2563
        %v2565 = vpop.f32.mrf.mxu0
        %2566 = vdwg.mxu0
        %v2568 = vunpack.c.l.b16 %v2517
        %v2569 = vpack.c.b16 %v2568, %v2568
        %2570 = vrot.lane.b32.xlu0 %v2569, 96
        %v2571 = vpop.permute.xlu0 %2570
        %v2573 = vsel %vm675, %v2517, 0
        %v2576 = vsel %vm675, %v2571, 0
        %2578 = vmatpush.bf16.xpose.msra.mxu0 0
        %2579 = vmatpush.bf16.xpose.msra.mxu0 0
        %2580 = vmatpush.bf16.xpose.msra.mxu0 0
        %2581 = vmatpush.bf16.xpose.msra.mxu0 0
        %2582 = vmatpush.bf16.xpose.msra.mxu0 0
        %2583 = vmatpush.bf16.xpose.msra.mxu0 0
        %2584 = vmatpush.bf16.xpose.msra.mxu0 0
        %2585 = vmatpush.bf16.xpose.msra.mxu0 %v2576
        %2586 = vmatmul.bf16.gmra.mxu0 %v2573
        %v2587 = vpop.f32.mrf.mxu0
        %v2588 = vadd.f32 0.0, %v2587
        %v2589 = vpop.f32.mrf.mxu0
        %2590 = vdwg.mxu0
        %v2592 = vunpack.c.l.b16 %v2518
        %v2593 = vpack.c.b16 %v2592, %v2592
        %2594 = vrot.lane.b32.xlu0 %v2593, 96
        %v2595 = vpop.permute.xlu0 %2594
        %v2597 = vsel %vm675, %v2518, 0
        %v2600 = vsel %vm675, %v2595, 0
        %2602 = vmatpush.bf16.xpose.msra.mxu0 0
        %2603 = vmatpush.bf16.xpose.msra.mxu0 0
        %2604 = vmatpush.bf16.xpose.msra.mxu0 0
        %2605 = vmatpush.bf16.xpose.msra.mxu0 0
        %2606 = vmatpush.bf16.xpose.msra.mxu0 0
        %2607 = vmatpush.bf16.xpose.msra.mxu0 0
        %2608 = vmatpush.bf16.xpose.msra.mxu0 0
        %2609 = vmatpush.bf16.xpose.msra.mxu0 %v2600
        %2610 = vmatmul.bf16.gmra.mxu0 %v2597
        %v2611 = vpop.f32.mrf.mxu0
        %v2612 = vadd.f32 0.0, %v2611
        %v2613 = vpop.f32.mrf.mxu0
        %2614 = vdwg.mxu0
        %v2615 = vsel %vm675, %v2540, -inf
        %2616 = vmax.xlane.f32.xlu0 %v2615
        %v2617 = vpop.xlane.xlu0 %2616
        %v2618 = vsel %vm675, %v2564, -inf
        %2619 = vmax.xlane.f32.xlu0 %v2618
        %v2620 = vpop.xlane.xlu0 %2619
        %v2621 = vsel %vm675, %v2588, -inf
        %2622 = vmax.xlane.f32.xlu0 %v2621
        %v2623 = vpop.xlane.xlu0 %2622
        %v2624 = vsel %vm675, %v2612, -inf
        %2625 = vmax.xlane.f32.xlu0 %v2624
        %v2626 = vpop.xlane.xlu0 %2625
        %v2627 = vsub.f32 %v2540, %v2617
        %v2628 = vsub.f32 %v2564, %v2620
        %v2629 = vsub.f32 %v2588, %v2623
        %v2630 = vsub.f32 %v2612, %v2626
        %v2631 = vmul.f32 %v2627, 1.442695
        %v2632 = vpow.pop %v2631
        %v2633 = vmul.f32 %v2628, 1.442695
        %v2634 = vpow.pop %v2633
        %v2635 = vmul.f32 %v2629, 1.442695
        %v2636 = vpow.pop %v2635
        %v2637 = vmul.f32 %v2630, 1.442695
        %v2638 = vpow.pop %v2637
        %v2639 = vsel %vm675, %v2632, 0.0
        %2640 = vadd.xlane.f32.xlu0 %v2639
        %v2641 = vpop.xlane.xlu0 %2640
        %v2642 = vsel %vm675, %v2634, 0.0
        %2643 = vadd.xlane.f32.xlu0 %v2642
        %v2644 = vpop.xlane.xlu0 %2643
        %v2645 = vsel %vm675, %v2636, 0.0
        %2646 = vadd.xlane.f32.xlu0 %v2645
        %v2647 = vpop.xlane.xlu0 %2646
        %v2648 = vsel %vm675, %v2638, 0.0
        %2649 = vadd.xlane.f32.xlu0 %v2648
        %v2650 = vpop.xlane.xlu0 %2649
        %v2651 = vrcp.pop %v2641
        %v2652 = vrcp.pop %v2644
        %v2653 = vrcp.pop %v2647
        %v2654 = vrcp.pop %v2650
        %v2655 = vmul.f32 %v2632, %v2651
        %v2656 = vmul.f32 %v2634, %v2652
        %v2657 = vmul.f32 %v2636, %v2653
        %v2658 = vmul.f32 %v2638, %v2654
        %v2659 = vpack.c.bf16 %v2655, %v2655
        %v2660 = vpack.c.bf16 %v2656, %v2656
        %v2661 = vpack.c.bf16 %v2657, %v2657
        %v2662 = vpack.c.bf16 %v2658, %v2658
        %2663 = vrot.lane.b32.xlu0 %v2521, 64
        %v2664 = vpop.permute.xlu0 %2663
        %v2666 = vsel %vm675, %v2659, 0
        %v2669 = vsel %vm820, %v2664, 0
        %2671 = vmatpush.bf16.msra.mxu0 0
        %2672 = vmatpush.bf16.msra.mxu0 0
        %2673 = vmatpush.bf16.msra.mxu0 0
        %2674 = vmatpush.bf16.msra.mxu0 0
        %2675 = vmatpush.bf16.msra.mxu0 0
        %2676 = vmatpush.bf16.msra.mxu0 0
        %2677 = vmatpush.bf16.msra.mxu0 0
        %2678 = vmatpush.bf16.msra.mxu0 %v2669
        %2679 = vmatmul.bf16.gmra.mxu0 %v2666
        %v2680 = vpop.f32.mrf.mxu0
        %v2681 = vadd.f32 0.0, %v2680
        %v2682 = vpop.f32.mrf.mxu0
        %2683 = vdwg.mxu0
        %2684 = vrot.lane.b32.xlu0 %v2545, 64
        %v2685 = vpop.permute.xlu0 %2684
        %v2687 = vsel %vm675, %v2660, 0
        %v2690 = vsel %vm820, %v2685, 0
        %2692 = vmatpush.bf16.msra.mxu0 0
        %2693 = vmatpush.bf16.msra.mxu0 0
        %2694 = vmatpush.bf16.msra.mxu0 0
        %2695 = vmatpush.bf16.msra.mxu0 0
        %2696 = vmatpush.bf16.msra.mxu0 0
        %2697 = vmatpush.bf16.msra.mxu0 0
        %2698 = vmatpush.bf16.msra.mxu0 0
        %2699 = vmatpush.bf16.msra.mxu0 %v2690
        %2700 = vmatmul.bf16.gmra.mxu0 %v2687
        %v2701 = vpop.f32.mrf.mxu0
        %v2702 = vadd.f32 0.0, %v2701
        %v2703 = vpop.f32.mrf.mxu0
        %2704 = vdwg.mxu0
        %2705 = vrot.lane.b32.xlu0 %v2569, 64
        %v2706 = vpop.permute.xlu0 %2705
        %v2708 = vsel %vm675, %v2661, 0
        %v2711 = vsel %vm820, %v2706, 0
        %2713 = vmatpush.bf16.msra.mxu0 0
        %2714 = vmatpush.bf16.msra.mxu0 0
        %2715 = vmatpush.bf16.msra.mxu0 0
        %2716 = vmatpush.bf16.msra.mxu0 0
        %2717 = vmatpush.bf16.msra.mxu0 0
        %2718 = vmatpush.bf16.msra.mxu0 0
        %2719 = vmatpush.bf16.msra.mxu0 0
        %2720 = vmatpush.bf16.msra.mxu0 %v2711
        %2721 = vmatmul.bf16.gmra.mxu0 %v2708
        %v2722 = vpop.f32.mrf.mxu0
        %v2723 = vadd.f32 0.0, %v2722
        %v2724 = vpop.f32.mrf.mxu0
        %2725 = vdwg.mxu0
        %2726 = vrot.lane.b32.xlu0 %v2593, 64
        %v2727 = vpop.permute.xlu0 %2726
        %v2729 = vsel %vm675, %v2662, 0
        %v2732 = vsel %vm820, %v2727, 0
        %2734 = vmatpush.bf16.msra.mxu0 0
        %2735 = vmatpush.bf16.msra.mxu0 0
        %2736 = vmatpush.bf16.msra.mxu0 0
        %2737 = vmatpush.bf16.msra.mxu0 0
        %2738 = vmatpush.bf16.msra.mxu0 0
        %2739 = vmatpush.bf16.msra.mxu0 0
        %2740 = vmatpush.bf16.msra.mxu0 0
        %2741 = vmatpush.bf16.msra.mxu0 %v2732
        %2742 = vmatmul.bf16.gmra.mxu0 %v2729
        %v2743 = vpop.f32.mrf.mxu0
        %v2744 = vadd.f32 0.0, %v2743
        %v2745 = vpop.f32.mrf.mxu0
        %2746 = vdwg.mxu0
        %2748 = vrot.lane.b32.xlu0 %v2702, 8
        %v2749 = vpop.permute.xlu0 %2748
        %2752 = vrot.lane.b32.xlu0 %v2723, 16
        %v2753 = vpop.permute.xlu0 %2752
        %2756 = vrot.lane.b32.xlu0 %v2744, 24
        %v2757 = vpop.permute.xlu0 %2756
        %v2759 = vsel %vm675, %v2681, %v2749
        %v2760 = vsel %vm913, %v2759, %v2753
        %v2761 = vsel %vm915, %v2760, %v2757
        %v2762 = vpack.c.bf16 %v2761, %v2761
        %v2763 = vperm.slane %v2465, 0
        %v2768 = vunpack.c.l.b16 %v2431
        %v2769 = vunpack.c.l.b16 %v2432
        %v2770 = vunpack.c.l.b16 %v2433
        %v2771 = vunpack.c.l.b16 %v2434
        %v2772 = vpack.c.b16 %v2769, %v2768
        %v2773 = vpack.c.b16 %v2771, %v2770
        %v2777 = vsel %vm639, %v2762, 0
        %2779 = vmatpush.bf16.msra.mxu0 0
        %2780 = vmatpush.bf16.msra.mxu0 0
        %2781 = vmatpush.bf16.msra.mxu0 0
        %2782 = vmatpush.bf16.msra.mxu0 0
        %2783 = vmatpush.bf16.msra.mxu0 0
        %2784 = vmatpush.bf16.msra.mxu0 0
        %2785 = vmatpush.bf16.msra.mxu0 %v2773
        %2786 = vmatpush.bf16.msra.mxu0 %v2772
        %2787 = vmatmul.bf16.gmra.mxu0 %v2777
        %v2788 = vpop.f32.mrf.mxu0
        %v2789 = vadd.f32 %v2763, %v2788
        %v2790 = vpop.f32.mrf.mxu0
        %2791 = vdwg.mxu0
        %v2792 = vadd.f32 %v2424, %v2789
        %v2793 = vsel %vm639, %v2792, 0.0
        %2794 = vadd.xlane.f32.xlu0 %v2793
        %v2795 = vpop.xlane.xlu0 %2794
        %v2796 = vmul.f32 %v2795, %v957
        %v2797 = vsub.f32 %v2792, %v2796
        %v2798 = vmul.f32 %v2797, %v2797
        %v2799 = vsel %vm639, %v2798, 0.0
        %2800 = vadd.xlane.f32.xlu0 %v2799
        %v2801 = vpop.xlane.xlu0 %2800
        %v2802 = vmul.f32 %v2801, %v957
        %v2803 = vadd.f32 %v2802, 1e-05
        %v2804 = vrsqrt.pop %v2803
        %v2805 = vmul.f32 %v2804, %v2803
        %v2806 = vmul.f32 %v2805, %v2804
        %v2807 = vmul.f32 0.5, %v2806
        %v2808 = vsub.f32 1.5, %v2807
        %v2809 = vmul.f32 %v2804, %v2808
        %vm2810 = vweird.f32 %v2803
        %vm2811 = vweird.f32 %v2804
        %vm2812 = vmor %vm2810, %vm2811
        %v2813 = vsel %vm2812, %v2804, %v2809
        %v2814 = vmul.f32 %v2797, %v2813
        %v2815 = vperm.slane %v2465, 1
        %v2816 = vmul.f32 %v2814, %v2815
        %v2817 = vperm.slane %v2465, 2
        %v2818 = vadd.f32 %v2816, %v2817
        %v2819 = vpack.c.bf16 %v2818, %v2818
        %v2820 = vperm.slane %v2465, 3
        %v2825 = vunpack.c.l.b16 %v2436
        %v2826 = vunpack.c.l.b16 %v2437
        %v2827 = vunpack.c.l.b16 %v2438
        %v2828 = vunpack.c.l.b16 %v2439
        %v2829 = vpack.c.b16 %v2826, %v2825
        %v2830 = vpack.c.b16 %v2828, %v2827
        %v2834 = vsel %vm639, %v2819, 0
        %2836 = vmatpush.bf16.msra.mxu0 0
        %2837 = vmatpush.bf16.msra.mxu0 0
        %2838 = vmatpush.bf16.msra.mxu0 0
        %2839 = vmatpush.bf16.msra.mxu0 0
        %2840 = vmatpush.bf16.msra.mxu0 0
        %2841 = vmatpush.bf16.msra.mxu0 0
        %2842 = vmatpush.bf16.msra.mxu0 %v2830
        %2843 = vmatpush.bf16.msra.mxu0 %v2829
        %2844 = vmatmul.bf16.gmra.mxu0 %v2834
        %v2845 = vpop.f32.mrf.mxu0
        %v2846 = vadd.f32 %v2820, %v2845
        %v2847 = vpop.f32.mrf.mxu0
        %2848 = vdwg.mxu0
        %v2850 = vperm.slane %v2470, 0
        %v2856 = vunpack.c.l.b16 %v2441
        %v2857 = vunpack.c.l.b16 %v2442
        %v2858 = vunpack.c.l.b16 %v2443
        %v2859 = vunpack.c.l.b16 %v2444
        %v2860 = vpack.c.b16 %v2857, %v2856
        %v2861 = vpack.c.b16 %v2859, %v2858
        %2864 = vmatpush.bf16.msra.mxu0 0
        %2865 = vmatpush.bf16.msra.mxu0 0
        %2866 = vmatpush.bf16.msra.mxu0 0
        %2867 = vmatpush.bf16.msra.mxu0 0
        %2868 = vmatpush.bf16.msra.mxu0 0
        %2869 = vmatpush.bf16.msra.mxu0 0
        %2870 = vmatpush.bf16.msra.mxu0 %v2861
        %2871 = vmatpush.bf16.msra.mxu0 %v2860
        %2872 = vmatmul.bf16.gmra.mxu0 %v1616
        %v2873 = vpop.f32.mrf.mxu0
        %v2874 = vadd.f32 %v2850, %v2873
        %v2875 = vpop.f32.mrf.mxu0
        %2876 = vdwg.mxu0
        %2878 = vrot.lane.b32.xlu0 %v2846, 120
        %v2879 = vpop.permute.xlu0 %2878
        %2881 = vrot.lane.b32.xlu0 %v2846, 112
        %v2882 = vpop.permute.xlu0 %2881
        %2884 = vrot.lane.b32.xlu0 %v2846, 104
        %v2885 = vpop.permute.xlu0 %2884
        %v2887 = vpack.c.bf16 %v2846, %v2846
        %v2888 = vpack.c.bf16 %v2879, %v2879
        %v2889 = vpack.c.bf16 %v2882, %v2882
        %v2890 = vpack.c.bf16 %v2885, %v2885
        %2892 = vrot.lane.b32.xlu0 %v2874, 120
        %v2893 = vpop.permute.xlu0 %2892
        %2895 = vrot.lane.b32.xlu0 %v2874, 112
        %v2896 = vpop.permute.xlu0 %2895
        %2898 = vrot.lane.b32.xlu0 %v2874, 104
        %v2899 = vpop.permute.xlu0 %2898
        %v2901 = vpack.c.bf16 %v2874, %v2874
        %v2902 = vpack.c.bf16 %v2893, %v2893
        %v2903 = vpack.c.bf16 %v2896, %v2896
        %v2904 = vpack.c.bf16 %v2899, %v2899
        %v2906 = vsel %vm675, %v2887, 0
        %v2909 = vsel %vm675, %v2901, 0
        %2911 = vmatpush.bf16.xpose.msra.mxu0 0
        %2912 = vmatpush.bf16.xpose.msra.mxu0 0
        %2913 = vmatpush.bf16.xpose.msra.mxu0 0
        %2914 = vmatpush.bf16.xpose.msra.mxu0 0
        %2915 = vmatpush.bf16.xpose.msra.mxu0 0
        %2916 = vmatpush.bf16.xpose.msra.mxu0 0
        %2917 = vmatpush.bf16.xpose.msra.mxu0 0
        %2918 = vmatpush.bf16.xpose.msra.mxu0 %v2909
        %2919 = vmatmul.bf16.gmra.mxu0 %v2906
        %v2920 = vpop.f32.mrf.mxu0
        %v2921 = vadd.f32 0.0, %v2920
        %v2922 = vpop.f32.mrf.mxu0
        %2923 = vdwg.mxu0
        %v2925 = vsel %vm675, %v2888, 0
        %v2928 = vsel %vm675, %v2902, 0
        %2930 = vmatpush.bf16.xpose.msra.mxu0 0
        %2931 = vmatpush.bf16.xpose.msra.mxu0 0
        %2932 = vmatpush.bf16.xpose.msra.mxu0 0
        %2933 = vmatpush.bf16.xpose.msra.mxu0 0
        %2934 = vmatpush.bf16.xpose.msra.mxu0 0
        %2935 = vmatpush.bf16.xpose.msra.mxu0 0
        %2936 = vmatpush.bf16.xpose.msra.mxu0 0
        %2937 = vmatpush.bf16.xpose.msra.mxu0 %v2928
        %2938 = vmatmul.bf16.gmra.mxu0 %v2925
        %v2939 = vpop.f32.mrf.mxu0
        %v2940 = vadd.f32 0.0, %v2939
        %v2941 = vpop.f32.mrf.mxu0
        %2942 = vdwg.mxu0
        %v2944 = vsel %vm675, %v2889, 0
        %v2947 = vsel %vm675, %v2903, 0
        %2949 = vmatpush.bf16.xpose.msra.mxu0 0
        %2950 = vmatpush.bf16.xpose.msra.mxu0 0
        %2951 = vmatpush.bf16.xpose.msra.mxu0 0
        %2952 = vmatpush.bf16.xpose.msra.mxu0 0
        %2953 = vmatpush.bf16.xpose.msra.mxu0 0
        %2954 = vmatpush.bf16.xpose.msra.mxu0 0
        %2955 = vmatpush.bf16.xpose.msra.mxu0 0
        %2956 = vmatpush.bf16.xpose.msra.mxu0 %v2947
        %2957 = vmatmul.bf16.gmra.mxu0 %v2944
        %v2958 = vpop.f32.mrf.mxu0
        %v2959 = vadd.f32 0.0, %v2958
        %v2960 = vpop.f32.mrf.mxu0
        %2961 = vdwg.mxu0
        %v2963 = vsel %vm675, %v2890, 0
        %v2966 = vsel %vm675, %v2904, 0
        %2968 = vmatpush.bf16.xpose.msra.mxu0 0
        %2969 = vmatpush.bf16.xpose.msra.mxu0 0
        %2970 = vmatpush.bf16.xpose.msra.mxu0 0
        %2971 = vmatpush.bf16.xpose.msra.mxu0 0
        %2972 = vmatpush.bf16.xpose.msra.mxu0 0
        %2973 = vmatpush.bf16.xpose.msra.mxu0 0
        %2974 = vmatpush.bf16.xpose.msra.mxu0 0
        %2975 = vmatpush.bf16.xpose.msra.mxu0 %v2966
        %2976 = vmatmul.bf16.gmra.mxu0 %v2963
        %v2977 = vpop.f32.mrf.mxu0
        %v2978 = vadd.f32 0.0, %v2977
        %v2979 = vpop.f32.mrf.mxu0
        %2980 = vdwg.mxu0
        %v2981 = vsel %vm675, %v2921, -inf
        %2982 = vmax.xlane.f32.xlu0 %v2981
        %v2983 = vpop.xlane.xlu0 %2982
        %v2984 = vsel %vm675, %v2940, -inf
        %2985 = vmax.xlane.f32.xlu0 %v2984
        %v2986 = vpop.xlane.xlu0 %2985
        %v2987 = vsel %vm675, %v2959, -inf
        %2988 = vmax.xlane.f32.xlu0 %v2987
        %v2989 = vpop.xlane.xlu0 %2988
        %v2990 = vsel %vm675, %v2978, -inf
        %2991 = vmax.xlane.f32.xlu0 %v2990
        %v2992 = vpop.xlane.xlu0 %2991
        %v2993 = vsub.f32 %v2921, %v2983
        %v2994 = vsub.f32 %v2940, %v2986
        %v2995 = vsub.f32 %v2959, %v2989
        %v2996 = vsub.f32 %v2978, %v2992
        %v2997 = vmul.f32 %v2993, 1.442695
        %v2998 = vpow.pop %v2997
        %v2999 = vmul.f32 %v2994, 1.442695
        %v3000 = vpow.pop %v2999
        %v3001 = vmul.f32 %v2995, 1.442695
        %v3002 = vpow.pop %v3001
        %v3003 = vmul.f32 %v2996, 1.442695
        %v3004 = vpow.pop %v3003
        %v3005 = vsel %vm675, %v2998, 0.0
        %3006 = vadd.xlane.f32.xlu0 %v3005
        %v3007 = vpop.xlane.xlu0 %3006
        %v3008 = vsel %vm675, %v3000, 0.0
        %3009 = vadd.xlane.f32.xlu0 %v3008
        %v3010 = vpop.xlane.xlu0 %3009
        %v3011 = vsel %vm675, %v3002, 0.0
        %3012 = vadd.xlane.f32.xlu0 %v3011
        %v3013 = vpop.xlane.xlu0 %3012
        %v3014 = vsel %vm675, %v3004, 0.0
        %3015 = vadd.xlane.f32.xlu0 %v3014
        %v3016 = vpop.xlane.xlu0 %3015
        %v3017 = vrcp.pop %v3007
        %v3018 = vrcp.pop %v3010
        %v3019 = vrcp.pop %v3013
        %v3020 = vrcp.pop %v3016
        %v3021 = vmul.f32 %v2998, %v3017
        %v3022 = vmul.f32 %v3000, %v3018
        %v3023 = vmul.f32 %v3002, %v3019
        %v3024 = vmul.f32 %v3004, %v3020
        %v3025 = vpack.c.bf16 %v3021, %v3021
        %v3026 = vpack.c.bf16 %v3022, %v3022
        %v3027 = vpack.c.bf16 %v3023, %v3023
        %v3028 = vpack.c.bf16 %v3024, %v3024
        %v3030 = vunpack.c.l.b16 %v2901
        %v3031 = vpack.c.b16 %v3030, %v3030
        %3032 = vrot.lane.b32.xlu0 %v3031, 96
        %v3033 = vpop.permute.xlu0 %3032
        %v3035 = vsel %vm675, %v3025, 0
        %v3038 = vsel %vm820, %v3033, 0
        %3040 = vmatpush.bf16.msra.mxu0 0
        %3041 = vmatpush.bf16.msra.mxu0 0
        %3042 = vmatpush.bf16.msra.mxu0 0
        %3043 = vmatpush.bf16.msra.mxu0 0
        %3044 = vmatpush.bf16.msra.mxu0 0
        %3045 = vmatpush.bf16.msra.mxu0 0
        %3046 = vmatpush.bf16.msra.mxu0 0
        %3047 = vmatpush.bf16.msra.mxu0 %v3038
        %3048 = vmatmul.bf16.gmra.mxu0 %v3035
        %v3049 = vpop.f32.mrf.mxu0
        %v3050 = vadd.f32 0.0, %v3049
        %v3051 = vpop.f32.mrf.mxu0
        %3052 = vdwg.mxu0
        %v3054 = vunpack.c.l.b16 %v2902
        %v3055 = vpack.c.b16 %v3054, %v3054
        %3056 = vrot.lane.b32.xlu0 %v3055, 96
        %v3057 = vpop.permute.xlu0 %3056
        %v3059 = vsel %vm675, %v3026, 0
        %v3062 = vsel %vm820, %v3057, 0
        %3064 = vmatpush.bf16.msra.mxu0 0
        %3065 = vmatpush.bf16.msra.mxu0 0
        %3066 = vmatpush.bf16.msra.mxu0 0
        %3067 = vmatpush.bf16.msra.mxu0 0
        %3068 = vmatpush.bf16.msra.mxu0 0
        %3069 = vmatpush.bf16.msra.mxu0 0
        %3070 = vmatpush.bf16.msra.mxu0 0
        %3071 = vmatpush.bf16.msra.mxu0 %v3062
        %3072 = vmatmul.bf16.gmra.mxu0 %v3059
        %v3073 = vpop.f32.mrf.mxu0
        %v3074 = vadd.f32 0.0, %v3073
        %v3075 = vpop.f32.mrf.mxu0
        %3076 = vdwg.mxu0
        %v3078 = vunpack.c.l.b16 %v2903
        %v3079 = vpack.c.b16 %v3078, %v3078
        %3080 = vrot.lane.b32.xlu0 %v3079, 96
        %v3081 = vpop.permute.xlu0 %3080
        %v3083 = vsel %vm675, %v3027, 0
        %v3086 = vsel %vm820, %v3081, 0
        %3088 = vmatpush.bf16.msra.mxu0 0
        %3089 = vmatpush.bf16.msra.mxu0 0
        %3090 = vmatpush.bf16.msra.mxu0 0
        %3091 = vmatpush.bf16.msra.mxu0 0
        %3092 = vmatpush.bf16.msra.mxu0 0
        %3093 = vmatpush.bf16.msra.mxu0 0
        %3094 = vmatpush.bf16.msra.mxu0 0
        %3095 = vmatpush.bf16.msra.mxu0 %v3086
        %3096 = vmatmul.bf16.gmra.mxu0 %v3083
        %v3097 = vpop.f32.mrf.mxu0
        %v3098 = vadd.f32 0.0, %v3097
        %v3099 = vpop.f32.mrf.mxu0
        %3100 = vdwg.mxu0
        %v3102 = vunpack.c.l.b16 %v2904
        %v3103 = vpack.c.b16 %v3102, %v3102
        %3104 = vrot.lane.b32.xlu0 %v3103, 96
        %v3105 = vpop.permute.xlu0 %3104
        %v3107 = vsel %vm675, %v3028, 0
        %v3110 = vsel %vm820, %v3105, 0
        %3112 = vmatpush.bf16.msra.mxu0 0
        %3113 = vmatpush.bf16.msra.mxu0 0
        %3114 = vmatpush.bf16.msra.mxu0 0
        %3115 = vmatpush.bf16.msra.mxu0 0
        %3116 = vmatpush.bf16.msra.mxu0 0
        %3117 = vmatpush.bf16.msra.mxu0 0
        %3118 = vmatpush.bf16.msra.mxu0 0
        %3119 = vmatpush.bf16.msra.mxu0 %v3110
        %3120 = vmatmul.bf16.gmra.mxu0 %v3107
        %v3121 = vpop.f32.mrf.mxu0
        %v3122 = vadd.f32 0.0, %v3121
        %v3123 = vpop.f32.mrf.mxu0
        %3124 = vdwg.mxu0
        %3126 = vrot.lane.b32.xlu0 %v3074, 8
        %v3127 = vpop.permute.xlu0 %3126
        %3130 = vrot.lane.b32.xlu0 %v3098, 16
        %v3131 = vpop.permute.xlu0 %3130
        %3134 = vrot.lane.b32.xlu0 %v3122, 24
        %v3135 = vpop.permute.xlu0 %3134
        %v3137 = vsel %vm675, %v3050, %v3127
        %v3138 = vsel %vm913, %v3137, %v3131
        %v3139 = vsel %vm915, %v3138, %v3135
        %v3140 = vpack.c.bf16 %v3139, %v3139
        %v3141 = vperm.slane %v2465, 4
        %v3146 = vunpack.c.l.b16 %v2446
        %v3147 = vunpack.c.l.b16 %v2447
        %v3148 = vunpack.c.l.b16 %v2448
        %v3149 = vunpack.c.l.b16 %v2449
        %v3150 = vpack.c.b16 %v3147, %v3146
        %v3151 = vpack.c.b16 %v3149, %v3148
        %v3155 = vsel %vm639, %v3140, 0
        %3157 = vmatpush.bf16.msra.mxu0 0
        %3158 = vmatpush.bf16.msra.mxu0 0
        %3159 = vmatpush.bf16.msra.mxu0 0
        %3160 = vmatpush.bf16.msra.mxu0 0
        %3161 = vmatpush.bf16.msra.mxu0 0
        %3162 = vmatpush.bf16.msra.mxu0 0
        %3163 = vmatpush.bf16.msra.mxu0 %v3151
        %3164 = vmatpush.bf16.msra.mxu0 %v3150
        %3165 = vmatmul.bf16.gmra.mxu0 %v3155
        %v3166 = vpop.f32.mrf.mxu0
        %v3167 = vadd.f32 %v3141, %v3166
        %v3168 = vpop.f32.mrf.mxu0
        %3169 = vdwg.mxu0
        %v3170 = vadd.f32 %v2818, %v3167
        %v3171 = vsel %vm639, %v3170, 0.0
        %3172 = vadd.xlane.f32.xlu0 %v3171
        %v3173 = vpop.xlane.xlu0 %3172
        %v3174 = vmul.f32 %v3173, %v957
        %v3175 = vsub.f32 %v3170, %v3174
        %v3176 = vmul.f32 %v3175, %v3175
        %v3177 = vsel %vm639, %v3176, 0.0
        %3178 = vadd.xlane.f32.xlu0 %v3177
        %v3179 = vpop.xlane.xlu0 %3178
        %v3180 = vmul.f32 %v3179, %v957
        %v3181 = vadd.f32 %v3180, 1e-05
        %v3182 = vrsqrt.pop %v3181
        %v3183 = vmul.f32 %v3182, %v3181
        %v3184 = vmul.f32 %v3183, %v3182
        %v3185 = vmul.f32 0.5, %v3184
        %v3186 = vsub.f32 1.5, %v3185
        %v3187 = vmul.f32 %v3182, %v3186
        %vm3188 = vweird.f32 %v3181
        %vm3189 = vweird.f32 %v3182
        %vm3190 = vmor %vm3188, %vm3189
        %v3191 = vsel %vm3190, %v3182, %v3187
        %v3192 = vmul.f32 %v3175, %v3191
        %v3193 = vperm.slane %v2465, 5
        %v3194 = vmul.f32 %v3192, %v3193
        %v3195 = vperm.slane %v2465, 6
        %v3196 = vadd.f32 %v3194, %v3195
        %v3197 = vpack.c.bf16 %v3196, %v3196
        %v3199 = vperm.slane %v2472, 0
        %v3205 = vunpack.c.l.b16 %v2451
        %v3206 = vunpack.c.l.b16 %v2452
        %v3207 = vunpack.c.l.b16 %v2453
        %v3208 = vunpack.c.l.b16 %v2454
        %v3209 = vpack.c.b16 %v3206, %v3205
        %v3210 = vpack.c.b16 %v3208, %v3207
        %v3214 = vsel %vm639, %v3197, 0
        %3216 = vmatpush.bf16.msra.mxu0 0
        %3217 = vmatpush.bf16.msra.mxu0 0
        %3218 = vmatpush.bf16.msra.mxu0 0
        %3219 = vmatpush.bf16.msra.mxu0 0
        %3220 = vmatpush.bf16.msra.mxu0 0
        %3221 = vmatpush.bf16.msra.mxu0 0
        %3222 = vmatpush.bf16.msra.mxu0 %v3210
        %3223 = vmatpush.bf16.msra.mxu0 %v3209
        %3224 = vmatmul.bf16.gmra.mxu0 %v3214
        %v3225 = vpop.f32.mrf.mxu0
        %v3226 = vadd.f32 %v3199, %v3225
        %v3227 = vpop.f32.mrf.mxu0
        %3228 = vdwg.mxu0
        %v3229 = vmax.f32 %v3226, 0.0
        %v3230 = vpack.c.bf16 %v3229, %v3229
        %v3231 = vperm.slane %v2465, 7
        %v3240 = vunpack.c.l.b16 %v2456
        %v3241 = vunpack.c.l.b16 %v2457
        %v3242 = vunpack.c.l.b16 %v2458
        %v3243 = vunpack.c.l.b16 %v2459
        %v3244 = vunpack.c.l.b16 %v2460
        %v3245 = vunpack.c.l.b16 %v2461
        %v3246 = vunpack.c.l.b16 %v2462
        %v3247 = vunpack.c.l.b16 %v2463
        %v3248 = vpack.c.b16 %v3241, %v3240
        %v3249 = vpack.c.b16 %v3243, %v3242
        %v3250 = vpack.c.b16 %v3245, %v3244
        %v3251 = vpack.c.b16 %v3247, %v3246
        %v3257 = vsel %vm1040, %v3230, 0
        %3259 = vmatpush.bf16.msra.mxu0 0
        %3260 = vmatpush.bf16.msra.mxu0 0
        %3261 = vmatpush.bf16.msra.mxu0 0
        %3262 = vmatpush.bf16.msra.mxu0 0
        %3263 = vmatpush.bf16.msra.mxu0 %v3251
        %3264 = vmatpush.bf16.msra.mxu0 %v3250
        %3265 = vmatpush.bf16.msra.mxu0 %v3249
        %3266 = vmatpush.bf16.msra.mxu0 %v3248
        %3267 = vmatmul.bf16.gmra.mxu0 %v3257
        %v3268 = vpop.f32.mrf.mxu0
        %v3269 = vadd.f32 %v3231, %v3268
        %v3270 = vpop.f32.mrf.mxu0
        %3271 = vdwg.mxu0
        %v3272 = vadd.f32 %v3196, %v3269
        %v3273 = vsel %vm639, %v3272, 0.0
        %3274 = vadd.xlane.f32.xlu0 %v3273
        %v3275 = vpop.xlane.xlu0 %3274
        %v3276 = vmul.f32 %v3275, %v957
        %v3277 = vsub.f32 %v3272, %v3276
        %v3278 = vmul.f32 %v3277, %v3277
        %v3279 = vsel %vm639, %v3278, 0.0
        %3280 = vadd.xlane.f32.xlu0 %v3279
        %v3281 = vpop.xlane.xlu0 %3280
        %v3282 = vmul.f32 %v3281, %v957
        %v3283 = vadd.f32 %v3282, 1e-05
        %v3284 = vrsqrt.pop %v3283
        %v3285 = vmul.f32 %v3284, %v3283
        %v3286 = vmul.f32 %v3285, %v3284
        %v3287 = vmul.f32 0.5, %v3286
        %v3288 = vsub.f32 1.5, %v3287
        %v3289 = vmul.f32 %v3284, %v3288
        %vm3290 = vweird.f32 %v3283
        %vm3291 = vweird.f32 %v3284
        %vm3292 = vmor %vm3290, %vm3291
        %v3293 = vsel %vm3292, %v3284, %v3289
        %v3294 = vmul.f32 %v3277, %v3293
        %v3295 = vperm.slane %v2466, 0
        %v3296 = vmul.f32 %v3294, %v3295
        %v3297 = vperm.slane %v2466, 1
        %v3298 = vadd.f32 %v3296, %v3297
        %v3299 = vsel %vm639, %v3298, 0.0
        %3300 = vst [vmem:[%s593] sm:$0xff] %v3299
        %s3301 = sand.u32 %s445, 1
        %s3302 = scalar_lea.sflag [#allocation3], %s3301
        %s3303 = sand.u32 %s445, 1
        %s3304 = smul.addr %s3303, 8
        %s3305 = scalar_lea.vmem [#allocation2], %s3304
        // Predicated region
        $region97: #{_forward.1} parent=95 // pred_check
          %p3306 = pneg %p455
        $region98: #{_forward.1} parent=95 // pred_check_branch
          %3308 = sbr.rel (%p3306) target = $region100
        $region99: #{_forward.1} parent=95 // pred_region
          %3310 = vsyncadd %s3302, 0
          %s3311 = smul.addr %s33, 8
          %s3312 = scalar_lea.hbm %s19, %s3311
          %s3314 = sshll.u32 %s3305, 4
          %s3315 = int_to_ptr.vmem [resolvable:$true] %s3314
          %s3316 = sshll.u32 %s3312, 4
          %s3317 = int_to_ptr.hbm [resolvable:$true] %s3316
          %3319 = dma.vmem_to_hbm [thread:$0]  %s3315, 128, %s3317, %s3302
        $region100: #{_forward.1} parent=95 // pred_fallthru
          _
      $region96: #{_forward.1} parent=5 // pred_fallthru
        _
      %p3320 = scmp.le.s32.totalorder 2, %s28
      // Predicated region
      $region101: #{_forward.1} parent=5 // pred_check
        %p3321 = pneg %p3320
      $region102: #{_forward.1} parent=5 // pred_check_branch
        %3323 = sbr.rel (%p3321) target = $region104
      $region103: #{_forward.1} parent=5 // pred_region
        %s3324 = ssub.s32 %s28, 2
        // Predicated region
        $region105: #{_forward.1} parent=103 // pred_check
          %p3325 = pneg %p461
        $region106: #{_forward.1} parent=103 // pred_check_branch
          %3327 = sbr.rel (%p3325) target = $region108
        $region107: #{_forward.1} parent=103 // pred_region
          %s3328 = sand.u32 %s446, 1
          %s3329 = scalar_lea.sflag [#allocation3], %s3328
          %s3330 = sand.u32 %s446, 1
          %s3331 = smul.addr %s3330, 8
          %s3332 = scalar_lea.vmem [#allocation2], %s3331
          %3334 = dma.done %s3329, 128
        $region108: #{_forward.1} parent=103 // pred_fallthru
          _
      $region104: #{_forward.1} parent=5 // pred_fallthru
        _
    $region6: #{_forward.1} parent=1 // loop_footer
      %s32 = sadd.s32 1, %s28
    $region7: #{_forward.1} parent=1 // loop_footer_branch
      %27 = sbr.rel target = $region3
    $region8: #{_forward.1} parent=1 // loop_exit
      _
    %3335 = vsyncpa [#allocation3], 1
    %s3336 = scalar_lea.sflag [#allocation3], 1
    %3337 = vsyncpa %s3336, 1

</llo_original>
